<compile_context>
chip_gen: v5e
topology: v5e:2x2
jax: 0.10.0
libtpu: 0.0.40
codegen_flags: <defaults>
</compile_context>

<pallas_src>
import jax
import jax.numpy as jnp
from jax.experimental import pallas as pl
from jax.experimental.pallas import tpu as pltpu

IMG_DIM = 784
K1_PAD = 896          # 7 * 128, MXU-aligned padding of the layer-1 K axis
H1, H2, H3 = 1024, 512, 256
TILE_B = 128          # multiple of 128 -> good M utilization on every gen


def discriminator_kernel(x_ref,
                         w1_ref, b1_ref,
                         w2_ref, b2_ref,
                         w3_ref, b3_ref,
                         w4_ref, b4_ref,
                         o_ref):
    """Fused MLP forward for one batch tile: 3 MXU matmuls + VPU head."""

    def leaky_relu(h):
        return jnp.where(h > 0, h, 0.2 * h)

    x = x_ref[...]                      # [TILE_B, 896] f32 (already padded)

    # Layer 1: 896(pad of 784) -> 1024.  bf16 operands, f32 accumulation.
    h = jnp.dot(x.astype(jnp.bfloat16), w1_ref[...],
                preferred_element_type=jnp.float32) + b1_ref[...]
    h = leaky_relu(h)
    # TODO(synk): Dropout(0.3) is identity in eval mode; training-mode dropout
    # would use pltpu.prng_seed + pltpu.prng_random_bits to build a mask with
    # a 1/(1-p) rescale.

    # Layer 2: 1024 -> 512
    h = jnp.dot(h.astype(jnp.bfloat16), w2_ref[...],
                preferred_element_type=jnp.float32) + b2_ref[...]
    h = leaky_relu(h)

    # Layer 3: 512 -> 256
    h = jnp.dot(h.astype(jnp.bfloat16), w3_ref[...],
                preferred_element_type=jnp.float32) + b3_ref[...]
    h = leaky_relu(h)

    # Layer 4: 256 -> 1 + Sigmoid.  N=1 matmul wastes the MXU; do a VPU
    # multiply + lane (XLU) reduction in f32 instead.
    logit = jnp.sum(h * w4_ref[...], axis=-1, keepdims=True) + b4_ref[...]
    o_ref[...] = jax.nn.sigmoid(logit).astype(o_ref.dtype)


def discriminator_forward(x, params, tile_b=TILE_B):
    """x: [B, 784] float32.  params: dict of (Wi, bi) in f32.  Returns [B, 1]."""
    B, img_dim = x.shape
    assert img_dim == IMG_DIM

    # --- Pack params into kernel layout ---------------------------------
    # bf16 MXU operands; layer-1 rows zero-padded 784 -> 896; final layer kept
    # as an f32 row vector for the VPU reduction head.
    w1 = jnp.zeros((K1_PAD, H1), jnp.bfloat16).at[:IMG_DIM, :].set(
        params["w1"].astype(jnp.bfloat16))
    w2 = params["w2"].astype(jnp.bfloat16)
    w3 = params["w3"].astype(jnp.bfloat16)
    w4 = params["w4"].reshape(1, H3).astype(jnp.float32)
    b1 = params["b1"].astype(jnp.float32)
    b2 = params["b2"].astype(jnp.float32)
    b3 = params["b3"].astype(jnp.float32)
    b4 = params["b4"].reshape(1, 1).astype(jnp.float32)

    # --- Pad batch to a tile multiple and the feature axis to 896 --------
    b_pad = tile_b * pl.cdiv(B, tile_b)
    x_p = jnp.zeros((b_pad, K1_PAD), jnp.float32)
    x_p = x_p.at[:B, :IMG_DIM].set(x.astype(jnp.float32))

    grid = (b_pad // tile_b,)
    const = lambda i: (0, 0)   # weights/biases resident across all grid steps

    flops = 2 * b_pad * (K1_PAD * H1 + H1 * H2 + H2 * H3 + H3)
    bytes_accessed = (x_p.size * 4 + b_pad * 4
                      + w1.size * 2 + w2.size * 2 + w3.size * 2 + w4.size * 4
                      + b1.size * 4 + b2.size * 4 + b3.size * 4 + b4.size * 4)

    out = pl.pallas_call(
        discriminator_kernel,
        out_shape=jax.ShapeDtypeStruct((b_pad, 1), jnp.float32),
        grid=grid,
        in_specs=[
            pl.BlockSpec((tile_b, K1_PAD), lambda i: (i, 0)),   # x tile
            pl.BlockSpec((K1_PAD, H1), const),                  # w1
            pl.BlockSpec((1, H1), const),                       # b1
            pl.BlockSpec((H1, H2), const),                      # w2
            pl.BlockSpec((1, H2), const),                       # b2
            pl.BlockSpec((H2, H3), const),                      # w3
            pl.BlockSpec((1, H3), const),                       # b3
            pl.BlockSpec((1, H3), const),                       # w4 (row, f32)
            pl.BlockSpec((1, 1), const),                        # b4
        ],
        out_specs=pl.BlockSpec((tile_b, 1), lambda i: (i, 0)),
        compiler_params=pltpu.CompilerParams(
            dimension_semantics=("parallel",),
            vmem_limit_bytes=24 << 20),
        cost_estimate=pl.CostEstimate(
            flops=flops, transcendentals=b_pad, bytes_accessed=bytes_accessed),
    )(x_p, w1, b1, w2, b2, w3, b3, w4, b4)

    return out[:B]


def init_params(key, img_dim=IMG_DIM):
    """Deterministic PyTorch-style init: U(-1/sqrt(fan_in), 1/sqrt(fan_in))."""
    dims = [img_dim, H1, H2, H3, 1]
    params = {}
    for i in range(4):
        fan_in, fan_out = dims[i], dims[i + 1]
        key, kw, kb = jax.random.split(key, 3)
        bound = 1.0 / jnp.sqrt(fan_in)
        # stored as [in, out] so the kernel does x @ W
        params[f"w{i+1}"] = jax.random.uniform(
            kw, (fan_in, fan_out), jnp.float32, -bound, bound)
        params[f"b{i+1}"] = jax.random.uniform(
            kb, (1, fan_out), jnp.float32, -bound, bound)
    return params


def reference_forward(x, params):
    """Pure-JAX reference mirroring the kernel's precision policy
    (bf16 MXU operands, f32 accumulation, f32 elementwise; eval-mode dropout)."""
    def mm(a, w):
        return jnp.dot(a.astype(jnp.bfloat16), w.astype(jnp.bfloat16),
                       preferred_element_type=jnp.float32)

    h = mm(x, params["w1"]) + params["b1"]
    h = jnp.where(h > 0, h, 0.2 * h)
    h = mm(h, params["w2"]) + params["b2"]
    h = jnp.where(h > 0, h, 0.2 * h)
    h = mm(h, params["w3"]) + params["b3"]
    h = jnp.where(h > 0, h, 0.2 * h)
    logit = h @ params["w4"] + params["b4"]          # f32 head, like the kernel
    return jax.nn.sigmoid(logit)


if __name__ == "__main__":
    key = jax.random.PRNGKey(0)
    key, kx = jax.random.split(key)

    B = 8
    x = jax.random.normal(kx, (B, IMG_DIM), dtype=jnp.float32)
    params = init_params(key, IMG_DIM)

    y = discriminator_forward(x, params)
    y = jax.block_until_ready(y)

    y_ref = reference_forward(x, params)
    assert y.shape == (B, 1), y.shape
    assert jnp.allclose(y, y_ref, atol=2e-3, rtol=2e-3), (
        float(jnp.max(jnp.abs(y - y_ref))))

    print("KERNEL_OK")
</pallas_src>

<mosaic_0001>
module attributes {stable_mosaic.version = 11 : i64} {
  func.func @discriminator_kernel(%arg0: i32, %arg1: memref<128x896xf32, #tpu.memory_space<vmem>>, %arg2: memref<896x1024xbf16, #tpu.memory_space<vmem>>, %arg3: memref<1x1024xf32, #tpu.memory_space<vmem>>, %arg4: memref<1024x512xbf16, #tpu.memory_space<vmem>>, %arg5: memref<1x512xf32, #tpu.memory_space<vmem>>, %arg6: memref<512x256xbf16, #tpu.memory_space<vmem>>, %arg7: memref<1x256xf32, #tpu.memory_space<vmem>>, %arg8: memref<1x256xf32, #tpu.memory_space<vmem>>, %arg9: memref<1x1xf32, #tpu.memory_space<vmem>>, %arg10: memref<128x1xf32, #tpu.memory_space<vmem>>) attributes {dimension_semantics = [#tpu.dimension_semantics<parallel>], iteration_bounds = array<i64: 1>, scalar_prefetch = 0 : i64, scratch_operands = 0 : i64, tpu.core_type = #tpu.core_type<tc>, window_params = [{transform_indices = @transform_0, window_bounds = array<i64: 128, 896>}, {pipeline_mode = #tpu.pipeline_mode<synchronous>, transform_indices = @transform_1, window_bounds = array<i64: 896, 1024>}, {pipeline_mode = #tpu.pipeline_mode<synchronous>, transform_indices = @transform_2, window_bounds = array<i64: 1, 1024>}, {pipeline_mode = #tpu.pipeline_mode<synchronous>, transform_indices = @transform_3, window_bounds = array<i64: 1024, 512>}, {pipeline_mode = #tpu.pipeline_mode<synchronous>, transform_indices = @transform_4, window_bounds = array<i64: 1, 512>}, {pipeline_mode = #tpu.pipeline_mode<synchronous>, transform_indices = @transform_5, window_bounds = array<i64: 512, 256>}, {pipeline_mode = #tpu.pipeline_mode<synchronous>, transform_indices = @transform_6, window_bounds = array<i64: 1, 256>}, {pipeline_mode = #tpu.pipeline_mode<synchronous>, transform_indices = @transform_7, window_bounds = array<i64: 1, 256>}, {pipeline_mode = #tpu.pipeline_mode<synchronous>, transform_indices = @transform_8, window_bounds = array<i64: 1, 1>}, {transform_indices = @transform_9, window_bounds = array<i64: 128, 1>}]} {
    %c0 = arith.constant 0 : index
    %c0_0 = arith.constant 0 : index
    %0 = vector.load %arg1[%c0, %c0_0] : memref<128x896xf32, #tpu.memory_space<vmem>>, vector<128x896xf32>
    %1 = arith.truncf %0 : vector<128x896xf32> to vector<128x896xbf16>
    %c0_1 = arith.constant 0 : index
    %c0_2 = arith.constant 0 : index
    %2 = vector.load %arg2[%c0_1, %c0_2] : memref<896x1024xbf16, #tpu.memory_space<vmem>>, vector<896x1024xbf16>
    %cst = arith.constant dense<0.000000e+00> : vector<128x1024xf32>
    %3 = tpu.matmul %1, %2, %cst {dimension_numbers = #tpu.dot_dimension_numbers<[1], [0], [0], [1], [0, 0, 1, 1], [], []>} : vector<128x896xbf16>, vector<896x1024xbf16>, vector<128x1024xf32> -> vector<128x1024xf32>
    %c0_3 = arith.constant 0 : index
    %c0_4 = arith.constant 0 : index
    %4 = vector.load %arg3[%c0_3, %c0_4] : memref<1x1024xf32, #tpu.memory_space<vmem>>, vector<1x1024xf32>
    %5 = vector.broadcast %4 : vector<1x1024xf32> to vector<128x1024xf32>
    %6 = arith.addf %3, %5 : vector<128x1024xf32>
    %cst_5 = arith.constant 0.000000e+00 : f32
    %7 = vector.broadcast %cst_5 : f32 to vector<128x1024xf32>
    %8 = arith.cmpf ogt, %6, %7 : vector<128x1024xf32>
    %cst_6 = arith.constant 2.000000e-01 : f32
    %9 = vector.broadcast %cst_6 : f32 to vector<128x1024xf32>
    %10 = arith.mulf %9, %6 : vector<128x1024xf32>
    %11 = arith.select %8, %6, %10 : vector<128x1024xi1>, vector<128x1024xf32>
    %12 = arith.truncf %11 : vector<128x1024xf32> to vector<128x1024xbf16>
    %c0_7 = arith.constant 0 : index
    %c0_8 = arith.constant 0 : index
    %13 = vector.load %arg4[%c0_7, %c0_8] : memref<1024x512xbf16, #tpu.memory_space<vmem>>, vector<1024x512xbf16>
    %cst_9 = arith.constant dense<0.000000e+00> : vector<128x512xf32>
    %14 = tpu.matmul %12, %13, %cst_9 {dimension_numbers = #tpu.dot_dimension_numbers<[1], [0], [0], [1], [0, 0, 1, 1], [], []>} : vector<128x1024xbf16>, vector<1024x512xbf16>, vector<128x512xf32> -> vector<128x512xf32>
    %c0_10 = arith.constant 0 : index
    %c0_11 = arith.constant 0 : index
    %15 = vector.load %arg5[%c0_10, %c0_11] : memref<1x512xf32, #tpu.memory_space<vmem>>, vector<1x512xf32>
    %16 = vector.broadcast %15 : vector<1x512xf32> to vector<128x512xf32>
    %17 = arith.addf %14, %16 : vector<128x512xf32>
    %cst_12 = arith.constant 0.000000e+00 : f32
    %18 = vector.broadcast %cst_12 : f32 to vector<128x512xf32>
    %19 = arith.cmpf ogt, %17, %18 : vector<128x512xf32>
    %cst_13 = arith.constant 2.000000e-01 : f32
    %20 = vector.broadcast %cst_13 : f32 to vector<128x512xf32>
    %21 = arith.mulf %20, %17 : vector<128x512xf32>
    %22 = arith.select %19, %17, %21 : vector<128x512xi1>, vector<128x512xf32>
    %23 = arith.truncf %22 : vector<128x512xf32> to vector<128x512xbf16>
    %c0_14 = arith.constant 0 : index
    %c0_15 = arith.constant 0 : index
    %24 = vector.load %arg6[%c0_14, %c0_15] : memref<512x256xbf16, #tpu.memory_space<vmem>>, vector<512x256xbf16>
    %cst_16 = arith.constant dense<0.000000e+00> : vector<128x256xf32>
    %25 = tpu.matmul %23, %24, %cst_16 {dimension_numbers = #tpu.dot_dimension_numbers<[1], [0], [0], [1], [0, 0, 1, 1], [], []>} : vector<128x512xbf16>, vector<512x256xbf16>, vector<128x256xf32> -> vector<128x256xf32>
    %c0_17 = arith.constant 0 : index
    %c0_18 = arith.constant 0 : index
    %26 = vector.load %arg7[%c0_17, %c0_18] : memref<1x256xf32, #tpu.memory_space<vmem>>, vector<1x256xf32>
    %27 = vector.broadcast %26 : vector<1x256xf32> to vector<128x256xf32>
    %28 = arith.addf %25, %27 : vector<128x256xf32>
    %cst_19 = arith.constant 0.000000e+00 : f32
    %29 = vector.broadcast %cst_19 : f32 to vector<128x256xf32>
    %30 = arith.cmpf ogt, %28, %29 : vector<128x256xf32>
    %cst_20 = arith.constant 2.000000e-01 : f32
    %31 = vector.broadcast %cst_20 : f32 to vector<128x256xf32>
    %32 = arith.mulf %31, %28 : vector<128x256xf32>
    %33 = arith.select %30, %28, %32 : vector<128x256xi1>, vector<128x256xf32>
    %c0_21 = arith.constant 0 : index
    %c0_22 = arith.constant 0 : index
    %34 = vector.load %arg8[%c0_21, %c0_22] : memref<1x256xf32, #tpu.memory_space<vmem>>, vector<1x256xf32>
    %35 = vector.broadcast %34 : vector<1x256xf32> to vector<128x256xf32>
    %36 = arith.mulf %33, %35 : vector<128x256xf32>
    %cst_23 = arith.constant dense<0.000000e+00> : vector<128xf32>
    %37 = vector.multi_reduction <add>, %36, %cst_23 [1] : vector<128x256xf32> to vector<128xf32>
    %38 = vector.shape_cast %37 : vector<128xf32> to vector<128x1xf32>
    %c0_24 = arith.constant 0 : index
    %c0_25 = arith.constant 0 : index
    %39 = vector.load %arg9[%c0_24, %c0_25] : memref<1x1xf32, #tpu.memory_space<vmem>>, vector<1x1xf32>
    %40 = vector.broadcast %39 : vector<1x1xf32> to vector<128x1xf32>
    %41 = arith.addf %38, %40 : vector<128x1xf32>
    %42 = arith.negf %41 : vector<128x1xf32>
    %43 = math.exp %42 : vector<128x1xf32>
    %cst_26 = arith.constant 1.000000e+00 : f32
    %44 = vector.broadcast %cst_26 : f32 to vector<128x1xf32>
    %45 = arith.addf %44, %43 : vector<128x1xf32>
    %46 = arith.divf %44, %45 : vector<128x1xf32>
    %c0_27 = arith.constant 0 : index
    %c0_28 = arith.constant 0 : index
    %47 = vector.load %arg10[%c0_27, %c0_28] : memref<128x1xf32, #tpu.memory_space<vmem>>, vector<128x1xf32>
    tpu.vector_store %arg10[%c0_27, %c0_28], %46 {strides = array<i32>} : memref<128x1xf32, #tpu.memory_space<vmem>>, vector<128x1xf32>,
    return
  }
  func.func @transform_0(%arg0: i32) -> (i32, i32) {
    %c0_i32 = arith.constant 0 : i32
    %c0_i32_0 = arith.constant 0 : i32
    return %arg0, %c0_i32 : i32, i32
  }
  func.func @transform_1(%arg0: i32) -> (i32, i32) {
    %c0_i32 = arith.constant 0 : i32
    %c0_i32_0 = arith.constant 0 : i32
    %c0_i32_1 = arith.constant 0 : i32
    return %c0_i32, %c0_i32_0 : i32, i32
  }
  func.func @transform_2(%arg0: i32) -> (i32, i32) {
    %c0_i32 = arith.constant 0 : i32
    %c0_i32_0 = arith.constant 0 : i32
    %c0_i32_1 = arith.constant 0 : i32
    return %c0_i32, %c0_i32_0 : i32, i32
  }
  func.func @transform_3(%arg0: i32) -> (i32, i32) {
    %c0_i32 = arith.constant 0 : i32
    %c0_i32_0 = arith.constant 0 : i32
    %c0_i32_1 = arith.constant 0 : i32
    return %c0_i32, %c0_i32_0 : i32, i32
  }
  func.func @transform_4(%arg0: i32) -> (i32, i32) {
    %c0_i32 = arith.constant 0 : i32
    %c0_i32_0 = arith.constant 0 : i32
    %c0_i32_1 = arith.constant 0 : i32
    return %c0_i32, %c0_i32_0 : i32, i32
  }
  func.func @transform_5(%arg0: i32) -> (i32, i32) {
    %c0_i32 = arith.constant 0 : i32
    %c0_i32_0 = arith.constant 0 : i32
    %c0_i32_1 = arith.constant 0 : i32
    return %c0_i32, %c0_i32_0 : i32, i32
  }
  func.func @transform_6(%arg0: i32) -> (i32, i32) {
    %c0_i32 = arith.constant 0 : i32
    %c0_i32_0 = arith.constant 0 : i32
    %c0_i32_1 = arith.constant 0 : i32
    return %c0_i32, %c0_i32_0 : i32, i32
  }
  func.func @transform_7(%arg0: i32) -> (i32, i32) {
    %c0_i32 = arith.constant 0 : i32
    %c0_i32_0 = arith.constant 0 : i32
    %c0_i32_1 = arith.constant 0 : i32
    return %c0_i32, %c0_i32_0 : i32, i32
  }
  func.func @transform_8(%arg0: i32) -> (i32, i32) {
    %c0_i32 = arith.constant 0 : i32
    %c0_i32_0 = arith.constant 0 : i32
    %c0_i32_1 = arith.constant 0 : i32
    return %c0_i32, %c0_i32_0 : i32, i32
  }
  func.func @transform_9(%arg0: i32) -> (i32, i32) {
    %c0_i32 = arith.constant 0 : i32
    %c0_i32_0 = arith.constant 0 : i32
    return %arg0, %c0_i32 : i32, i32
  }
}

</mosaic_0001>

<llo_original>
// kernel: tpu_custom_call.1
$region0: #{tpu_custom_call.1}
  #allocation0 [shape = 'u32[]', space=smem, size = 0x4, offset = 0x4, fixed_abs, tag = 'smem constant byte address 0x4 - core index']
  #allocation1 [shape = 'u32[72,128]{1,0:T(1,128)}', space=vmem, size = 0x9000, scoped, tag = 'internal scratch']
  #allocation2 [shape = 'f32[1,1]{1,0:T(1,128)S(1)}', space=vmem, size = 0x200, scoped, tag = 'scoped memory for tpu_custom_call.1']
  %s0 = inlined_call_operand.hbm [shape: f32[128,896], index: 0, kind: input, shape index: {}]
  %s1 = inlined_call_operand.hbm [shape: bf16[896,1024], index: 1, kind: input, shape index: {}]
  %s2 = inlined_call_operand.hbm [shape: f32[1,1024], index: 2, kind: input, shape index: {}]
  %s3 = inlined_call_operand.hbm [shape: bf16[1024,512], index: 3, kind: input, shape index: {}]
  %s4 = inlined_call_operand.hbm [shape: f32[1,512], index: 4, kind: input, shape index: {}]
  %s5 = inlined_call_operand.hbm [shape: bf16[512,256], index: 5, kind: input, shape index: {}]
  %s6 = inlined_call_operand.hbm [shape: f32[1,256], index: 6, kind: input, shape index: {}]
  %s7 = inlined_call_operand.hbm [shape: f32[1,256], index: 7, kind: input, shape index: {}]
  %s8 = inlined_call_operand.<no memory space> [shape: f32[1,1], index: 8, kind: input, shape index: {}]
  %s9 = inlined_call_operand.vmem [shape: f32[128,1], index: 9, kind: output, shape index: {}]
  %s10 = sld [smem:[#allocation0]]
  $region78: #{tpu_custom_call.1} parent=0
    _
  %s12 = ssub.s32 1, %s10
  %s13 = scalar_select 0, %s12, %s10
  %v14 = vstv %s8
  %15 = vst [vmem:[#allocation2] sm:$0x1] %v14
  $region1: #{tpu_custom_call.1} parent=0
    #allocation3 [shape = 'u8[458752]{0}', space=vmem, size = 0x70000, scoped, tag = 'input window, operand 0, single buffered']
    #allocation4 [shape = 's32[1]{0}', space=sflag, size = 0x4, scoped, tag = 'scoped memory for tpu_custom_call.1']
    #allocation5 [shape = 'u8[1835008]{0}', space=vmem, size = 0x1c0000, scoped, tag = 'input window, operand 1, single buffered']
    #allocation6 [shape = 's32[1]{0}', space=sflag, size = 0x4, scoped, tag = 'scoped memory for tpu_custom_call.1']
    #allocation7 [shape = 'u8[4096]{0}', space=vmem, size = 0x1000, scoped, tag = 'input window, operand 2, single buffered']
    #allocation8 [shape = 'u8[1048576]{0}', space=vmem, size = 0x100000, scoped, tag = 'input window, operand 3, single buffered']
    #allocation9 [shape = 's32[1]{0}', space=sflag, size = 0x4, scoped, tag = 'scoped memory for tpu_custom_call.1']
    #allocation10 [shape = 'u8[2048]{0}', space=vmem, size = 0x800, scoped, tag = 'input window, operand 4, single buffered']
    #allocation11 [shape = 'u8[262144]{0}', space=vmem, size = 0x40000, scoped, tag = 'input window, operand 5, single buffered']
    #allocation12 [shape = 's32[1]{0}', space=sflag, size = 0x4, scoped, tag = 'scoped memory for tpu_custom_call.1']
    #allocation13 [shape = 'u8[1024]{0}', space=vmem, size = 0x400, scoped, tag = 'input window, operand 6, single buffered']
    #allocation14 [shape = 'u8[1024]{0}', space=vmem, size = 0x400, scoped, tag = 'input window, operand 7, single buffered']
    #allocation15 [shape = 's32[1]{0}', space=sflag, size = 0x4, scoped, tag = 'scoped memory for tpu_custom_call.1']
    %16 = vsyncpa [#allocation4], 0
    %17 = vsyncpa [#allocation6], 0
    %18 = vsyncpa [#allocation9], 0
    %19 = vsyncpa [#allocation12], 0
    %20 = vsyncpa [#allocation15], 0
    // Predicated region
    $region2: #{tpu_custom_call.1} parent=1 // pred_check
      _
    $region3: #{tpu_custom_call.1} parent=1 // pred_check_branch
      %22 = sbr.rel (0) target = $region5
    $region4: #{tpu_custom_call.1} parent=1 // pred_region
      %24 = vsyncadd [#allocation4], 0
      %s25 = sshll.u32 %s0, 4
      %s26 = int_to_ptr.hbm [resolvable:$true] %s25
      %s27 = sshll.u32 [#allocation3], 4
      %s28 = int_to_ptr.vmem [resolvable:$true] %s27
      %33 = dma.hbm_to_vmem [thread:$0]  %s26, 14336, %s28, [#allocation4], 896, 896, 56
    $region5: #{tpu_custom_call.1} parent=1 // pred_fallthru
      _
    // Predicated region
    $region6: #{tpu_custom_call.1} parent=1 // pred_check
      _
    $region7: #{tpu_custom_call.1} parent=1 // pred_check_branch
      %35 = sbr.rel (0) target = $region9
    $region8: #{tpu_custom_call.1} parent=1 // pred_region
      %37 = vsyncadd [#allocation6], 0
      %s38 = sshll.u32 %s1, 4
      %s39 = int_to_ptr.hbm [resolvable:$true] %s38
      %s40 = sshll.u32 [#allocation5], 4
      %s41 = int_to_ptr.vmem [resolvable:$true] %s40
      %46 = dma.hbm_to_vmem [thread:$0]  %s39, 57344, %s41, [#allocation6], 512, 512, 32
    $region9: #{tpu_custom_call.1} parent=1 // pred_fallthru
      _
    // Predicated region
    $region10: #{tpu_custom_call.1} parent=1 // pred_check
      _
    $region11: #{tpu_custom_call.1} parent=1 // pred_check_branch
      %48 = sbr.rel (0) target = $region13
    $region12: #{tpu_custom_call.1} parent=1 // pred_region
      %50 = vsyncadd [#allocation6], 0
      %s52 = sshll.u32 %s2, 4
      %s53 = int_to_ptr.hbm [resolvable:$true] %s52
      %s54 = sshll.u32 [#allocation7], 4
      %s55 = int_to_ptr.vmem [resolvable:$true] %s54
      %57 = dma.hbm_to_vmem [thread:$0]  %s53, 128, %s55, [#allocation6]
    $region13: #{tpu_custom_call.1} parent=1 // pred_fallthru
      _
    // Predicated region
    $region14: #{tpu_custom_call.1} parent=1 // pred_check
      _
    $region15: #{tpu_custom_call.1} parent=1 // pred_check_branch
      %59 = sbr.rel (0) target = $region17
    $region16: #{tpu_custom_call.1} parent=1 // pred_region
      %61 = vsyncadd [#allocation9], 0
      %s62 = sshll.u32 %s3, 4
      %s63 = int_to_ptr.hbm [resolvable:$true] %s62
      %s64 = sshll.u32 [#allocation8], 4
      %s65 = int_to_ptr.vmem [resolvable:$true] %s64
      %70 = dma.hbm_to_vmem [thread:$0]  %s63, 32768, %s65, [#allocation9], 256, 256, 16
    $region17: #{tpu_custom_call.1} parent=1 // pred_fallthru
      _
    // Predicated region
    $region18: #{tpu_custom_call.1} parent=1 // pred_check
      _
    $region19: #{tpu_custom_call.1} parent=1 // pred_check_branch
      %72 = sbr.rel (0) target = $region21
    $region20: #{tpu_custom_call.1} parent=1 // pred_region
      %74 = vsyncadd [#allocation9], 0
      %s76 = sshll.u32 %s4, 4
      %s77 = int_to_ptr.hbm [resolvable:$true] %s76
      %s78 = sshll.u32 [#allocation10], 4
      %s79 = int_to_ptr.vmem [resolvable:$true] %s78
      %81 = dma.hbm_to_vmem [thread:$0]  %s77, 64, %s79, [#allocation9]
    $region21: #{tpu_custom_call.1} parent=1 // pred_fallthru
      _
    // Predicated region
    $region22: #{tpu_custom_call.1} parent=1 // pred_check
      _
    $region23: #{tpu_custom_call.1} parent=1 // pred_check_branch
      %83 = sbr.rel (0) target = $region25
    $region24: #{tpu_custom_call.1} parent=1 // pred_region
      %85 = vsyncadd [#allocation12], 0
      %s86 = sshll.u32 %s5, 4
      %s87 = int_to_ptr.hbm [resolvable:$true] %s86
      %s88 = sshll.u32 [#allocation11], 4
      %s89 = int_to_ptr.vmem [resolvable:$true] %s88
      %94 = dma.hbm_to_vmem [thread:$0]  %s87, 8192, %s89, [#allocation12], 128, 128, 8
    $region25: #{tpu_custom_call.1} parent=1 // pred_fallthru
      _
    // Predicated region
    $region26: #{tpu_custom_call.1} parent=1 // pred_check
      _
    $region27: #{tpu_custom_call.1} parent=1 // pred_check_branch
      %96 = sbr.rel (0) target = $region29
    $region28: #{tpu_custom_call.1} parent=1 // pred_region
      %98 = vsyncadd [#allocation12], 0
      %s100 = sshll.u32 %s6, 4
      %s101 = int_to_ptr.hbm [resolvable:$true] %s100
      %s102 = sshll.u32 [#allocation13], 4
      %s103 = int_to_ptr.vmem [resolvable:$true] %s102
      %105 = dma.hbm_to_vmem [thread:$0]  %s101, 32, %s103, [#allocation12]
    $region29: #{tpu_custom_call.1} parent=1 // pred_fallthru
      _
    // Predicated region
    $region30: #{tpu_custom_call.1} parent=1 // pred_check
      _
    $region31: #{tpu_custom_call.1} parent=1 // pred_check_branch
      %107 = sbr.rel (0) target = $region33
    $region32: #{tpu_custom_call.1} parent=1 // pred_region
      %109 = vsyncadd [#allocation15], 0
      %s111 = sshll.u32 %s7, 4
      %s112 = int_to_ptr.hbm [resolvable:$true] %s111
      %s113 = sshll.u32 [#allocation14], 4
      %s114 = int_to_ptr.vmem [resolvable:$true] %s113
      %116 = dma.hbm_to_vmem [thread:$0]  %s112, 32, %s114, [#allocation15]
    $region33: #{tpu_custom_call.1} parent=1 // pred_fallthru
      _
    // Predicated region
    $region34: #{tpu_custom_call.1} parent=1 // pred_check
      _
    $region35: #{tpu_custom_call.1} parent=1 // pred_check_branch
      %118 = sbr.rel (0) target = $region37
    $region36: #{tpu_custom_call.1} parent=1 // pred_region
      _
    $region37: #{tpu_custom_call.1} parent=1 // pred_fallthru
      _
    // Predicated region
    $region38: #{tpu_custom_call.1} parent=1 // pred_check
      _
    $region39: #{tpu_custom_call.1} parent=1 // pred_check_branch
      %120 = sbr.rel (0) target = $region41
    $region40: #{tpu_custom_call.1} parent=1 // pred_region
      %122 = dma.done [#allocation4], 14336
    $region41: #{tpu_custom_call.1} parent=1 // pred_fallthru
      _
    // Predicated region
    $region42: #{tpu_custom_call.1} parent=1 // pred_check
      _
    $region43: #{tpu_custom_call.1} parent=1 // pred_check_branch
      %124 = sbr.rel (0) target = $region45
    $region44: #{tpu_custom_call.1} parent=1 // pred_region
      %126 = dma.done [#allocation6], 57344
    $region45: #{tpu_custom_call.1} parent=1 // pred_fallthru
      _
    // Predicated region
    $region46: #{tpu_custom_call.1} parent=1 // pred_check
      _
    $region47: #{tpu_custom_call.1} parent=1 // pred_check_branch
      %128 = sbr.rel (0) target = $region49
    $region48: #{tpu_custom_call.1} parent=1 // pred_region
      %130 = dma.done [#allocation6], 128
    $region49: #{tpu_custom_call.1} parent=1 // pred_fallthru
      _
    // Predicated region
    $region50: #{tpu_custom_call.1} parent=1 // pred_check
      _
    $region51: #{tpu_custom_call.1} parent=1 // pred_check_branch
      %132 = sbr.rel (0) target = $region53
    $region52: #{tpu_custom_call.1} parent=1 // pred_region
      %134 = dma.done [#allocation9], 32768
    $region53: #{tpu_custom_call.1} parent=1 // pred_fallthru
      _
    // Predicated region
    $region54: #{tpu_custom_call.1} parent=1 // pred_check
      _
    $region55: #{tpu_custom_call.1} parent=1 // pred_check_branch
      %136 = sbr.rel (0) target = $region57
    $region56: #{tpu_custom_call.1} parent=1 // pred_region
      %138 = dma.done [#allocation9], 64
    $region57: #{tpu_custom_call.1} parent=1 // pred_fallthru
      _
    // Predicated region
    $region58: #{tpu_custom_call.1} parent=1 // pred_check
      _
    $region59: #{tpu_custom_call.1} parent=1 // pred_check_branch
      %140 = sbr.rel (0) target = $region61
    $region60: #{tpu_custom_call.1} parent=1 // pred_region
      %142 = dma.done [#allocation12], 8192
    $region61: #{tpu_custom_call.1} parent=1 // pred_fallthru
      _
    // Predicated region
    $region62: #{tpu_custom_call.1} parent=1 // pred_check
      _
    $region63: #{tpu_custom_call.1} parent=1 // pred_check_branch
      %144 = sbr.rel (0) target = $region65
    $region64: #{tpu_custom_call.1} parent=1 // pred_region
      %146 = dma.done [#allocation12], 32
    $region65: #{tpu_custom_call.1} parent=1 // pred_fallthru
      _
    // Predicated region
    $region66: #{tpu_custom_call.1} parent=1 // pred_check
      _
    $region67: #{tpu_custom_call.1} parent=1 // pred_check_branch
      %148 = sbr.rel (0) target = $region69
    $region68: #{tpu_custom_call.1} parent=1 // pred_region
      %150 = dma.done [#allocation15], 32
    $region69: #{tpu_custom_call.1} parent=1 // pred_fallthru
      _
    %v151 = vld [vmem:[#allocation3] sm:$0xff]
    %v152 = vld [vmem:[#allocation3 + $0x8] sm:$0xff]
    %v153 = vld [vmem:[#allocation3 + $0x10] sm:$0xff]
    %v154 = vld [vmem:[#allocation3 + $0x18] sm:$0xff]
    %v155 = vld [vmem:[#allocation3 + $0x20] sm:$0xff]
    %v156 = vld [vmem:[#allocation3 + $0x28] sm:$0xff]
    %v157 = vld [vmem:[#allocation3 + $0x30] sm:$0xff]
    %v158 = vld [vmem:[#allocation3 + $0x38] sm:$0xff]
    %v159 = vld [vmem:[#allocation3 + $0x40] sm:$0xff]
    %v160 = vld [vmem:[#allocation3 + $0x48] sm:$0xff]
    %v161 = vld [vmem:[#allocation3 + $0x50] sm:$0xff]
    %v162 = vld [vmem:[#allocation3 + $0x58] sm:$0xff]
    %v163 = vld [vmem:[#allocation3 + $0x60] sm:$0xff]
    %v164 = vld [vmem:[#allocation3 + $0x68] sm:$0xff]
    %v165 = vld [vmem:[#allocation3 + $0x70] sm:$0xff]
    %v166 = vld [vmem:[#allocation3 + $0x78] sm:$0xff]
    %v167 = vld [vmem:[#allocation3 + $0x80] sm:$0xff]
    %v168 = vld [vmem:[#allocation3 + $0x88] sm:$0xff]
    %v169 = vld [vmem:[#allocation3 + $0x90] sm:$0xff]
    %v170 = vld [vmem:[#allocation3 + $0x98] sm:$0xff]
    %v171 = vld [vmem:[#allocation3 + $0xa0] sm:$0xff]
    %v172 = vld [vmem:[#allocation3 + $0xa8] sm:$0xff]
    %v173 = vld [vmem:[#allocation3 + $0xb0] sm:$0xff]
    %v174 = vld [vmem:[#allocation3 + $0xb8] sm:$0xff]
    %v175 = vld [vmem:[#allocation3 + $0xc0] sm:$0xff]
    %v176 = vld [vmem:[#allocation3 + $0xc8] sm:$0xff]
    %v177 = vld [vmem:[#allocation3 + $0xd0] sm:$0xff]
    %v178 = vld [vmem:[#allocation3 + $0xd8] sm:$0xff]
    %v179 = vld [vmem:[#allocation3 + $0xe0] sm:$0xff]
    %v180 = vld [vmem:[#allocation3 + $0xe8] sm:$0xff]
    %v181 = vld [vmem:[#allocation3 + $0xf0] sm:$0xff]
    %v182 = vld [vmem:[#allocation3 + $0xf8] sm:$0xff]
    %v183 = vld [vmem:[#allocation3 + $0x100] sm:$0xff]
    %v184 = vld [vmem:[#allocation3 + $0x108] sm:$0xff]
    %v185 = vld [vmem:[#allocation3 + $0x110] sm:$0xff]
    %v186 = vld [vmem:[#allocation3 + $0x118] sm:$0xff]
    %v187 = vld [vmem:[#allocation3 + $0x120] sm:$0xff]
    %v188 = vld [vmem:[#allocation3 + $0x128] sm:$0xff]
    %v189 = vld [vmem:[#allocation3 + $0x130] sm:$0xff]
    %v190 = vld [vmem:[#allocation3 + $0x138] sm:$0xff]
    %v191 = vld [vmem:[#allocation3 + $0x140] sm:$0xff]
    %v192 = vld [vmem:[#allocation3 + $0x148] sm:$0xff]
    %v193 = vld [vmem:[#allocation3 + $0x150] sm:$0xff]
    %v194 = vld [vmem:[#allocation3 + $0x158] sm:$0xff]
    %v195 = vld [vmem:[#allocation3 + $0x160] sm:$0xff]
    %v196 = vld [vmem:[#allocation3 + $0x168] sm:$0xff]
    %v197 = vld [vmem:[#allocation3 + $0x170] sm:$0xff]
    %v198 = vld [vmem:[#allocation3 + $0x178] sm:$0xff]
    %v199 = vld [vmem:[#allocation3 + $0x180] sm:$0xff]
    %v200 = vld [vmem:[#allocation3 + $0x188] sm:$0xff]
    %v201 = vld [vmem:[#allocation3 + $0x190] sm:$0xff]
    %v202 = vld [vmem:[#allocation3 + $0x198] sm:$0xff]
    %v203 = vld [vmem:[#allocation3 + $0x1a0] sm:$0xff]
    %v204 = vld [vmem:[#allocation3 + $0x1a8] sm:$0xff]
    %v205 = vld [vmem:[#allocation3 + $0x1b0] sm:$0xff]
    %v206 = vld [vmem:[#allocation3 + $0x1b8] sm:$0xff]
    %v207 = vld [vmem:[#allocation3 + $0x1c0] sm:$0xff]
    %v208 = vld [vmem:[#allocation3 + $0x1c8] sm:$0xff]
    %v209 = vld [vmem:[#allocation3 + $0x1d0] sm:$0xff]
    %v210 = vld [vmem:[#allocation3 + $0x1d8] sm:$0xff]
    %v211 = vld [vmem:[#allocation3 + $0x1e0] sm:$0xff]
    %v212 = vld [vmem:[#allocation3 + $0x1e8] sm:$0xff]
    %v213 = vld [vmem:[#allocation3 + $0x1f0] sm:$0xff]
    %v214 = vld [vmem:[#allocation3 + $0x1f8] sm:$0xff]
    %v215 = vld [vmem:[#allocation3 + $0x200] sm:$0xff]
    %v216 = vld [vmem:[#allocation3 + $0x208] sm:$0xff]
    %v217 = vld [vmem:[#allocation3 + $0x210] sm:$0xff]
    %v218 = vld [vmem:[#allocation3 + $0x218] sm:$0xff]
    %v219 = vld [vmem:[#allocation3 + $0x220] sm:$0xff]
    %v220 = vld [vmem:[#allocation3 + $0x228] sm:$0xff]
    %v221 = vld [vmem:[#allocation3 + $0x230] sm:$0xff]
    %v222 = vld [vmem:[#allocation3 + $0x238] sm:$0xff]
    %v223 = vld [vmem:[#allocation3 + $0x240] sm:$0xff]
    %v224 = vld [vmem:[#allocation3 + $0x248] sm:$0xff]
    %v225 = vld [vmem:[#allocation3 + $0x250] sm:$0xff]
    %v226 = vld [vmem:[#allocation3 + $0x258] sm:$0xff]
    %v227 = vld [vmem:[#allocation3 + $0x260] sm:$0xff]
    %v228 = vld [vmem:[#allocation3 + $0x268] sm:$0xff]
    %v229 = vld [vmem:[#allocation3 + $0x270] sm:$0xff]
    %v230 = vld [vmem:[#allocation3 + $0x278] sm:$0xff]
    %v231 = vld [vmem:[#allocation3 + $0x280] sm:$0xff]
    %v232 = vld [vmem:[#allocation3 + $0x288] sm:$0xff]
    %v233 = vld [vmem:[#allocation3 + $0x290] sm:$0xff]
    %v234 = vld [vmem:[#allocation3 + $0x298] sm:$0xff]
    %v235 = vld [vmem:[#allocation3 + $0x2a0] sm:$0xff]
    %v236 = vld [vmem:[#allocation3 + $0x2a8] sm:$0xff]
    %v237 = vld [vmem:[#allocation3 + $0x2b0] sm:$0xff]
    %v238 = vld [vmem:[#allocation3 + $0x2b8] sm:$0xff]
    %v239 = vld [vmem:[#allocation3 + $0x2c0] sm:$0xff]
    %v240 = vld [vmem:[#allocation3 + $0x2c8] sm:$0xff]
    %v241 = vld [vmem:[#allocation3 + $0x2d0] sm:$0xff]
    %v242 = vld [vmem:[#allocation3 + $0x2d8] sm:$0xff]
    %v243 = vld [vmem:[#allocation3 + $0x2e0] sm:$0xff]
    %v244 = vld [vmem:[#allocation3 + $0x2e8] sm:$0xff]
    %v245 = vld [vmem:[#allocation3 + $0x2f0] sm:$0xff]
    %v246 = vld [vmem:[#allocation3 + $0x2f8] sm:$0xff]
    %v247 = vld [vmem:[#allocation3 + $0x300] sm:$0xff]
    %v248 = vld [vmem:[#allocation3 + $0x308] sm:$0xff]
    %v249 = vld [vmem:[#allocation3 + $0x310] sm:$0xff]
    %v250 = vld [vmem:[#allocation3 + $0x318] sm:$0xff]
    %v251 = vld [vmem:[#allocation3 + $0x320] sm:$0xff]
    %v252 = vld [vmem:[#allocation3 + $0x328] sm:$0xff]
    %v253 = vld [vmem:[#allocation3 + $0x330] sm:$0xff]
    %v254 = vld [vmem:[#allocation3 + $0x338] sm:$0xff]
    %v255 = vld [vmem:[#allocation3 + $0x340] sm:$0xff]
    %v256 = vld [vmem:[#allocation3 + $0x348] sm:$0xff]
    %v257 = vld [vmem:[#allocation3 + $0x350] sm:$0xff]
    %v258 = vld [vmem:[#allocation3 + $0x358] sm:$0xff]
    %v259 = vld [vmem:[#allocation3 + $0x360] sm:$0xff]
    %v260 = vld [vmem:[#allocation3 + $0x368] sm:$0xff]
    %v261 = vld [vmem:[#allocation3 + $0x370] sm:$0xff]
    %v262 = vld [vmem:[#allocation3 + $0x378] sm:$0xff]
    %v263 = vpack.c.bf16 %v158, %v151
    %v264 = vpack.c.bf16 %v159, %v152
    %v265 = vpack.c.bf16 %v160, %v153
    %v266 = vpack.c.bf16 %v161, %v154
    %v267 = vpack.c.bf16 %v162, %v155
    %v268 = vpack.c.bf16 %v163, %v156
    %v269 = vpack.c.bf16 %v164, %v157
    %v270 = vpack.c.bf16 %v172, %v165
    %v271 = vpack.c.bf16 %v173, %v166
    %v272 = vpack.c.bf16 %v174, %v167
    %v273 = vpack.c.bf16 %v175, %v168
    %v274 = vpack.c.bf16 %v176, %v169
    %v275 = vpack.c.bf16 %v177, %v170
    %v276 = vpack.c.bf16 %v178, %v171
    %v277 = vpack.c.bf16 %v186, %v179
    %v278 = vpack.c.bf16 %v187, %v180
    %v279 = vpack.c.bf16 %v188, %v181
    %v280 = vpack.c.bf16 %v189, %v182
    %v281 = vpack.c.bf16 %v190, %v183
    %v282 = vpack.c.bf16 %v191, %v184
    %v283 = vpack.c.bf16 %v192, %v185
    %v284 = vpack.c.bf16 %v200, %v193
    %v285 = vpack.c.bf16 %v201, %v194
    %v286 = vpack.c.bf16 %v202, %v195
    %v287 = vpack.c.bf16 %v203, %v196
    %v288 = vpack.c.bf16 %v204, %v197
    %v289 = vpack.c.bf16 %v205, %v198
    %v290 = vpack.c.bf16 %v206, %v199
    %v291 = vpack.c.bf16 %v214, %v207
    %v292 = vpack.c.bf16 %v215, %v208
    %v293 = vpack.c.bf16 %v216, %v209
    %v294 = vpack.c.bf16 %v217, %v210
    %v295 = vpack.c.bf16 %v218, %v211
    %v296 = vpack.c.bf16 %v219, %v212
    %v297 = vpack.c.bf16 %v220, %v213
    %v298 = vpack.c.bf16 %v228, %v221
    %v299 = vpack.c.bf16 %v229, %v222
    %v300 = vpack.c.bf16 %v230, %v223
    %v301 = vpack.c.bf16 %v231, %v224
    %v302 = vpack.c.bf16 %v232, %v225
    %v303 = vpack.c.bf16 %v233, %v226
    %v304 = vpack.c.bf16 %v234, %v227
    %v305 = vpack.c.bf16 %v242, %v235
    %v306 = vpack.c.bf16 %v243, %v236
    %v307 = vpack.c.bf16 %v244, %v237
    %v308 = vpack.c.bf16 %v245, %v238
    %v309 = vpack.c.bf16 %v246, %v239
    %v310 = vpack.c.bf16 %v247, %v240
    %v311 = vpack.c.bf16 %v248, %v241
    %v312 = vpack.c.bf16 %v256, %v249
    %v313 = vpack.c.bf16 %v257, %v250
    %v314 = vpack.c.bf16 %v258, %v251
    %v315 = vpack.c.bf16 %v259, %v252
    %v316 = vpack.c.bf16 %v260, %v253
    %v317 = vpack.c.bf16 %v261, %v254
    %v318 = vpack.c.bf16 %v262, %v255
    %v319 = vld [vmem:[#allocation5] sm:$0xff]
    %v320 = vld [vmem:[#allocation5 + $0x8] sm:$0xff]
    %v321 = vld [vmem:[#allocation5 + $0x10] sm:$0xff]
    %v322 = vld [vmem:[#allocation5 + $0x18] sm:$0xff]
    %v323 = vld [vmem:[#allocation5 + $0x20] sm:$0xff]
    %v324 = vld [vmem:[#allocation5 + $0x28] sm:$0xff]
    %v325 = vld [vmem:[#allocation5 + $0x30] sm:$0xff]
    %v326 = vld [vmem:[#allocation5 + $0x38] sm:$0xff]
    %v327 = vld [vmem:[#allocation5 + $0x40] sm:$0xff]
    %v328 = vld [vmem:[#allocation5 + $0x48] sm:$0xff]
    %v329 = vld [vmem:[#allocation5 + $0x50] sm:$0xff]
    %v330 = vld [vmem:[#allocation5 + $0x58] sm:$0xff]
    %v331 = vld [vmem:[#allocation5 + $0x60] sm:$0xff]
    %v332 = vld [vmem:[#allocation5 + $0x68] sm:$0xff]
    %v333 = vld [vmem:[#allocation5 + $0x70] sm:$0xff]
    %v334 = vld [vmem:[#allocation5 + $0x78] sm:$0xff]
    %v335 = vld [vmem:[#allocation5 + $0x80] sm:$0xff]
    %v336 = vld [vmem:[#allocation5 + $0x88] sm:$0xff]
    %v337 = vld [vmem:[#allocation5 + $0x90] sm:$0xff]
    %v338 = vld [vmem:[#allocation5 + $0x98] sm:$0xff]
    %v339 = vld [vmem:[#allocation5 + $0xa0] sm:$0xff]
    %v340 = vld [vmem:[#allocation5 + $0xa8] sm:$0xff]
    %v341 = vld [vmem:[#allocation5 + $0xb0] sm:$0xff]
    %v342 = vld [vmem:[#allocation5 + $0xb8] sm:$0xff]
    %v343 = vld [vmem:[#allocation5 + $0xc0] sm:$0xff]
    %v344 = vld [vmem:[#allocation5 + $0xc8] sm:$0xff]
    %v345 = vld [vmem:[#allocation5 + $0xd0] sm:$0xff]
    %v346 = vld [vmem:[#allocation5 + $0xd8] sm:$0xff]
    %v347 = vld [vmem:[#allocation5 + $0xe0] sm:$0xff]
    %v348 = vld [vmem:[#allocation5 + $0xe8] sm:$0xff]
    %v349 = vld [vmem:[#allocation5 + $0xf0] sm:$0xff]
    %v350 = vld [vmem:[#allocation5 + $0xf8] sm:$0xff]
    %v351 = vld [vmem:[#allocation5 + $0x100] sm:$0xff]
    %v352 = vld [vmem:[#allocation5 + $0x108] sm:$0xff]
    %v353 = vld [vmem:[#allocation5 + $0x110] sm:$0xff]
    %v354 = vld [vmem:[#allocation5 + $0x118] sm:$0xff]
    %v355 = vld [vmem:[#allocation5 + $0x120] sm:$0xff]
    %v356 = vld [vmem:[#allocation5 + $0x128] sm:$0xff]
    %v357 = vld [vmem:[#allocation5 + $0x130] sm:$0xff]
    %v358 = vld [vmem:[#allocation5 + $0x138] sm:$0xff]
    %v359 = vld [vmem:[#allocation5 + $0x140] sm:$0xff]
    %v360 = vld [vmem:[#allocation5 + $0x148] sm:$0xff]
    %v361 = vld [vmem:[#allocation5 + $0x150] sm:$0xff]
    %v362 = vld [vmem:[#allocation5 + $0x158] sm:$0xff]
    %v363 = vld [vmem:[#allocation5 + $0x160] sm:$0xff]
    %v364 = vld [vmem:[#allocation5 + $0x168] sm:$0xff]
    %v365 = vld [vmem:[#allocation5 + $0x170] sm:$0xff]
    %v366 = vld [vmem:[#allocation5 + $0x178] sm:$0xff]
    %v367 = vld [vmem:[#allocation5 + $0x180] sm:$0xff]
    %v368 = vld [vmem:[#allocation5 + $0x188] sm:$0xff]
    %v369 = vld [vmem:[#allocation5 + $0x190] sm:$0xff]
    %v370 = vld [vmem:[#allocation5 + $0x198] sm:$0xff]
    %v371 = vld [vmem:[#allocation5 + $0x1a0] sm:$0xff]
    %v372 = vld [vmem:[#allocation5 + $0x1a8] sm:$0xff]
    %v373 = vld [vmem:[#allocation5 + $0x1b0] sm:$0xff]
    %v374 = vld [vmem:[#allocation5 + $0x1b8] sm:$0xff]
    %v375 = vld [vmem:[#allocation5 + $0x1c0] sm:$0xff]
    %v376 = vld [vmem:[#allocation5 + $0x1c8] sm:$0xff]
    %v377 = vld [vmem:[#allocation5 + $0x1d0] sm:$0xff]
    %v378 = vld [vmem:[#allocation5 + $0x1d8] sm:$0xff]
    %v379 = vld [vmem:[#allocation5 + $0x1e0] sm:$0xff]
    %v380 = vld [vmem:[#allocation5 + $0x1e8] sm:$0xff]
    %v381 = vld [vmem:[#allocation5 + $0x1f0] sm:$0xff]
    %v382 = vld [vmem:[#allocation5 + $0x1f8] sm:$0xff]
    %v383 = vld [vmem:[#allocation5 + $0x200] sm:$0xff]
    %v384 = vld [vmem:[#allocation5 + $0x208] sm:$0xff]
    %v385 = vld [vmem:[#allocation5 + $0x210] sm:$0xff]
    %v386 = vld [vmem:[#allocation5 + $0x218] sm:$0xff]
    %v387 = vld [vmem:[#allocation5 + $0x220] sm:$0xff]
    %v388 = vld [vmem:[#allocation5 + $0x228] sm:$0xff]
    %v389 = vld [vmem:[#allocation5 + $0x230] sm:$0xff]
    %v390 = vld [vmem:[#allocation5 + $0x238] sm:$0xff]
    %v391 = vld [vmem:[#allocation5 + $0x240] sm:$0xff]
    %v392 = vld [vmem:[#allocation5 + $0x248] sm:$0xff]
    %v393 = vld [vmem:[#allocation5 + $0x250] sm:$0xff]
    %v394 = vld [vmem:[#allocation5 + $0x258] sm:$0xff]
    %v395 = vld [vmem:[#allocation5 + $0x260] sm:$0xff]
    %v396 = vld [vmem:[#allocation5 + $0x268] sm:$0xff]
    %v397 = vld [vmem:[#allocation5 + $0x270] sm:$0xff]
    %v398 = vld [vmem:[#allocation5 + $0x278] sm:$0xff]
    %v399 = vld [vmem:[#allocation5 + $0x280] sm:$0xff]
    %v400 = vld [vmem:[#allocation5 + $0x288] sm:$0xff]
    %v401 = vld [vmem:[#allocation5 + $0x290] sm:$0xff]
    %v402 = vld [vmem:[#allocation5 + $0x298] sm:$0xff]
    %v403 = vld [vmem:[#allocation5 + $0x2a0] sm:$0xff]
    %v404 = vld [vmem:[#allocation5 + $0x2a8] sm:$0xff]
    %v405 = vld [vmem:[#allocation5 + $0x2b0] sm:$0xff]
    %v406 = vld [vmem:[#allocation5 + $0x2b8] sm:$0xff]
    %v407 = vld [vmem:[#allocation5 + $0x2c0] sm:$0xff]
    %v408 = vld [vmem:[#allocation5 + $0x2c8] sm:$0xff]
    %v409 = vld [vmem:[#allocation5 + $0x2d0] sm:$0xff]
    %v410 = vld [vmem:[#allocation5 + $0x2d8] sm:$0xff]
    %v411 = vld [vmem:[#allocation5 + $0x2e0] sm:$0xff]
    %v412 = vld [vmem:[#allocation5 + $0x2e8] sm:$0xff]
    %v413 = vld [vmem:[#allocation5 + $0x2f0] sm:$0xff]
    %v414 = vld [vmem:[#allocation5 + $0x2f8] sm:$0xff]
    %v415 = vld [vmem:[#allocation5 + $0x300] sm:$0xff]
    %v416 = vld [vmem:[#allocation5 + $0x308] sm:$0xff]
    %v417 = vld [vmem:[#allocation5 + $0x310] sm:$0xff]
    %v418 = vld [vmem:[#allocation5 + $0x318] sm:$0xff]
    %v419 = vld [vmem:[#allocation5 + $0x320] sm:$0xff]
    %v420 = vld [vmem:[#allocation5 + $0x328] sm:$0xff]
    %v421 = vld [vmem:[#allocation5 + $0x330] sm:$0xff]
    %v422 = vld [vmem:[#allocation5 + $0x338] sm:$0xff]
    %v423 = vld [vmem:[#allocation5 + $0x340] sm:$0xff]
    %v424 = vld [vmem:[#allocation5 + $0x348] sm:$0xff]
    %v425 = vld [vmem:[#allocation5 + $0x350] sm:$0xff]
    %v426 = vld [vmem:[#allocation5 + $0x358] sm:$0xff]
    %v427 = vld [vmem:[#allocation5 + $0x360] sm:$0xff]
    %v428 = vld [vmem:[#allocation5 + $0x368] sm:$0xff]
    %v429 = vld [vmem:[#allocation5 + $0x370] sm:$0xff]
    %v430 = vld [vmem:[#allocation5 + $0x378] sm:$0xff]
    %v431 = vld [vmem:[#allocation5 + $0x380] sm:$0xff]
    %v432 = vld [vmem:[#allocation5 + $0x388] sm:$0xff]
    %v433 = vld [vmem:[#allocation5 + $0x390] sm:$0xff]
    %v434 = vld [vmem:[#allocation5 + $0x398] sm:$0xff]
    %v435 = vld [vmem:[#allocation5 + $0x3a0] sm:$0xff]
    %v436 = vld [vmem:[#allocation5 + $0x3a8] sm:$0xff]
    %v437 = vld [vmem:[#allocation5 + $0x3b0] sm:$0xff]
    %v438 = vld [vmem:[#allocation5 + $0x3b8] sm:$0xff]
    %v439 = vld [vmem:[#allocation5 + $0x3c0] sm:$0xff]
    %v440 = vld [vmem:[#allocation5 + $0x3c8] sm:$0xff]
    %v441 = vld [vmem:[#allocation5 + $0x3d0] sm:$0xff]
    %v442 = vld [vmem:[#allocation5 + $0x3d8] sm:$0xff]
    %v443 = vld [vmem:[#allocation5 + $0x3e0] sm:$0xff]
    %v444 = vld [vmem:[#allocation5 + $0x3e8] sm:$0xff]
    %v445 = vld [vmem:[#allocation5 + $0x3f0] sm:$0xff]
    %v446 = vld [vmem:[#allocation5 + $0x3f8] sm:$0xff]
    %v447 = vld [vmem:[#allocation5 + $0x400] sm:$0xff]
    %v448 = vld [vmem:[#allocation5 + $0x408] sm:$0xff]
    %v449 = vld [vmem:[#allocation5 + $0x410] sm:$0xff]
    %v450 = vld [vmem:[#allocation5 + $0x418] sm:$0xff]
    %v451 = vld [vmem:[#allocation5 + $0x420] sm:$0xff]
    %v452 = vld [vmem:[#allocation5 + $0x428] sm:$0xff]
    %v453 = vld [vmem:[#allocation5 + $0x430] sm:$0xff]
    %v454 = vld [vmem:[#allocation5 + $0x438] sm:$0xff]
    %v455 = vld [vmem:[#allocation5 + $0x440] sm:$0xff]
    %v456 = vld [vmem:[#allocation5 + $0x448] sm:$0xff]
    %v457 = vld [vmem:[#allocation5 + $0x450] sm:$0xff]
    %v458 = vld [vmem:[#allocation5 + $0x458] sm:$0xff]
    %v459 = vld [vmem:[#allocation5 + $0x460] sm:$0xff]
    %v460 = vld [vmem:[#allocation5 + $0x468] sm:$0xff]
    %v461 = vld [vmem:[#allocation5 + $0x470] sm:$0xff]
    %v462 = vld [vmem:[#allocation5 + $0x478] sm:$0xff]
    %v463 = vld [vmem:[#allocation5 + $0x480] sm:$0xff]
    %v464 = vld [vmem:[#allocation5 + $0x488] sm:$0xff]
    %v465 = vld [vmem:[#allocation5 + $0x490] sm:$0xff]
    %v466 = vld [vmem:[#allocation5 + $0x498] sm:$0xff]
    %v467 = vld [vmem:[#allocation5 + $0x4a0] sm:$0xff]
    %v468 = vld [vmem:[#allocation5 + $0x4a8] sm:$0xff]
    %v469 = vld [vmem:[#allocation5 + $0x4b0] sm:$0xff]
    %v470 = vld [vmem:[#allocation5 + $0x4b8] sm:$0xff]
    %v471 = vld [vmem:[#allocation5 + $0x4c0] sm:$0xff]
    %v472 = vld [vmem:[#allocation5 + $0x4c8] sm:$0xff]
    %v473 = vld [vmem:[#allocation5 + $0x4d0] sm:$0xff]
    %v474 = vld [vmem:[#allocation5 + $0x4d8] sm:$0xff]
    %v475 = vld [vmem:[#allocation5 + $0x4e0] sm:$0xff]
    %v476 = vld [vmem:[#allocation5 + $0x4e8] sm:$0xff]
    %v477 = vld [vmem:[#allocation5 + $0x4f0] sm:$0xff]
    %v478 = vld [vmem:[#allocation5 + $0x4f8] sm:$0xff]
    %v479 = vld [vmem:[#allocation5 + $0x500] sm:$0xff]
    %v480 = vld [vmem:[#allocation5 + $0x508] sm:$0xff]
    %v481 = vld [vmem:[#allocation5 + $0x510] sm:$0xff]
    %v482 = vld [vmem:[#allocation5 + $0x518] sm:$0xff]
    %v483 = vld [vmem:[#allocation5 + $0x520] sm:$0xff]
    %v484 = vld [vmem:[#allocation5 + $0x528] sm:$0xff]
    %v485 = vld [vmem:[#allocation5 + $0x530] sm:$0xff]
    %v486 = vld [vmem:[#allocation5 + $0x538] sm:$0xff]
    %v487 = vld [vmem:[#allocation5 + $0x540] sm:$0xff]
    %v488 = vld [vmem:[#allocation5 + $0x548] sm:$0xff]
    %v489 = vld [vmem:[#allocation5 + $0x550] sm:$0xff]
    %v490 = vld [vmem:[#allocation5 + $0x558] sm:$0xff]
    %v491 = vld [vmem:[#allocation5 + $0x560] sm:$0xff]
    %v492 = vld [vmem:[#allocation5 + $0x568] sm:$0xff]
    %v493 = vld [vmem:[#allocation5 + $0x570] sm:$0xff]
    %v494 = vld [vmem:[#allocation5 + $0x578] sm:$0xff]
    %v495 = vld [vmem:[#allocation5 + $0x580] sm:$0xff]
    %v496 = vld [vmem:[#allocation5 + $0x588] sm:$0xff]
    %v497 = vld [vmem:[#allocation5 + $0x590] sm:$0xff]
    %v498 = vld [vmem:[#allocation5 + $0x598] sm:$0xff]
    %v499 = vld [vmem:[#allocation5 + $0x5a0] sm:$0xff]
    %v500 = vld [vmem:[#allocation5 + $0x5a8] sm:$0xff]
    %v501 = vld [vmem:[#allocation5 + $0x5b0] sm:$0xff]
    %v502 = vld [vmem:[#allocation5 + $0x5b8] sm:$0xff]
    %v503 = vld [vmem:[#allocation5 + $0x5c0] sm:$0xff]
    %v504 = vld [vmem:[#allocation5 + $0x5c8] sm:$0xff]
    %v505 = vld [vmem:[#allocation5 + $0x5d0] sm:$0xff]
    %v506 = vld [vmem:[#allocation5 + $0x5d8] sm:$0xff]
    %v507 = vld [vmem:[#allocation5 + $0x5e0] sm:$0xff]
    %v508 = vld [vmem:[#allocation5 + $0x5e8] sm:$0xff]
    %v509 = vld [vmem:[#allocation5 + $0x5f0] sm:$0xff]
    %v510 = vld [vmem:[#allocation5 + $0x5f8] sm:$0xff]
    %v511 = vld [vmem:[#allocation5 + $0x600] sm:$0xff]
    %v512 = vld [vmem:[#allocation5 + $0x608] sm:$0xff]
    %v513 = vld [vmem:[#allocation5 + $0x610] sm:$0xff]
    %v514 = vld [vmem:[#allocation5 + $0x618] sm:$0xff]
    %v515 = vld [vmem:[#allocation5 + $0x620] sm:$0xff]
    %v516 = vld [vmem:[#allocation5 + $0x628] sm:$0xff]
    %v517 = vld [vmem:[#allocation5 + $0x630] sm:$0xff]
    %v518 = vld [vmem:[#allocation5 + $0x638] sm:$0xff]
    %v519 = vld [vmem:[#allocation5 + $0x640] sm:$0xff]
    %v520 = vld [vmem:[#allocation5 + $0x648] sm:$0xff]
    %v521 = vld [vmem:[#allocation5 + $0x650] sm:$0xff]
    %v522 = vld [vmem:[#allocation5 + $0x658] sm:$0xff]
    %v523 = vld [vmem:[#allocation5 + $0x660] sm:$0xff]
    %v524 = vld [vmem:[#allocation5 + $0x668] sm:$0xff]
    %v525 = vld [vmem:[#allocation5 + $0x670] sm:$0xff]
    %v526 = vld [vmem:[#allocation5 + $0x678] sm:$0xff]
    %v527 = vld [vmem:[#allocation5 + $0x680] sm:$0xff]
    %v528 = vld [vmem:[#allocation5 + $0x688] sm:$0xff]
    %v529 = vld [vmem:[#allocation5 + $0x690] sm:$0xff]
    %v530 = vld [vmem:[#allocation5 + $0x698] sm:$0xff]
    %v531 = vld [vmem:[#allocation5 + $0x6a0] sm:$0xff]
    %v532 = vld [vmem:[#allocation5 + $0x6a8] sm:$0xff]
    %v533 = vld [vmem:[#allocation5 + $0x6b0] sm:$0xff]
    %v534 = vld [vmem:[#allocation5 + $0x6b8] sm:$0xff]
    %v535 = vld [vmem:[#allocation5 + $0x6c0] sm:$0xff]
    %v536 = vld [vmem:[#allocation5 + $0x6c8] sm:$0xff]
    %v537 = vld [vmem:[#allocation5 + $0x6d0] sm:$0xff]
    %v538 = vld [vmem:[#allocation5 + $0x6d8] sm:$0xff]
    %v539 = vld [vmem:[#allocation5 + $0x6e0] sm:$0xff]
    %v540 = vld [vmem:[#allocation5 + $0x6e8] sm:$0xff]
    %v541 = vld [vmem:[#allocation5 + $0x6f0] sm:$0xff]
    %v542 = vld [vmem:[#allocation5 + $0x6f8] sm:$0xff]
    %v543 = vld [vmem:[#allocation5 + $0x700] sm:$0xff]
    %v544 = vld [vmem:[#allocation5 + $0x708] sm:$0xff]
    %v545 = vld [vmem:[#allocation5 + $0x710] sm:$0xff]
    %v546 = vld [vmem:[#allocation5 + $0x718] sm:$0xff]
    %v547 = vld [vmem:[#allocation5 + $0x720] sm:$0xff]
    %v548 = vld [vmem:[#allocation5 + $0x728] sm:$0xff]
    %v549 = vld [vmem:[#allocation5 + $0x730] sm:$0xff]
    %v550 = vld [vmem:[#allocation5 + $0x738] sm:$0xff]
    %v551 = vld [vmem:[#allocation5 + $0x740] sm:$0xff]
    %v552 = vld [vmem:[#allocation5 + $0x748] sm:$0xff]
    %v553 = vld [vmem:[#allocation5 + $0x750] sm:$0xff]
    %v554 = vld [vmem:[#allocation5 + $0x758] sm:$0xff]
    %v555 = vld [vmem:[#allocation5 + $0x760] sm:$0xff]
    %v556 = vld [vmem:[#allocation5 + $0x768] sm:$0xff]
    %v557 = vld [vmem:[#allocation5 + $0x770] sm:$0xff]
    %v558 = vld [vmem:[#allocation5 + $0x778] sm:$0xff]
    %v559 = vld [vmem:[#allocation5 + $0x780] sm:$0xff]
    %v560 = vld [vmem:[#allocation5 + $0x788] sm:$0xff]
    %v561 = vld [vmem:[#allocation5 + $0x790] sm:$0xff]
    %v562 = vld [vmem:[#allocation5 + $0x798] sm:$0xff]
    %v563 = vld [vmem:[#allocation5 + $0x7a0] sm:$0xff]
    %v564 = vld [vmem:[#allocation5 + $0x7a8] sm:$0xff]
    %v565 = vld [vmem:[#allocation5 + $0x7b0] sm:$0xff]
    %v566 = vld [vmem:[#allocation5 + $0x7b8] sm:$0xff]
    %v567 = vld [vmem:[#allocation5 + $0x7c0] sm:$0xff]
    %v568 = vld [vmem:[#allocation5 + $0x7c8] sm:$0xff]
    %v569 = vld [vmem:[#allocation5 + $0x7d0] sm:$0xff]
    %v570 = vld [vmem:[#allocation5 + $0x7d8] sm:$0xff]
    %v571 = vld [vmem:[#allocation5 + $0x7e0] sm:$0xff]
    %v572 = vld [vmem:[#allocation5 + $0x7e8] sm:$0xff]
    %v573 = vld [vmem:[#allocation5 + $0x7f0] sm:$0xff]
    %v574 = vld [vmem:[#allocation5 + $0x7f8] sm:$0xff]
    %v575 = vld [vmem:[#allocation5 + $0x800] sm:$0xff]
    %v576 = vld [vmem:[#allocation5 + $0x808] sm:$0xff]
    %v577 = vld [vmem:[#allocation5 + $0x810] sm:$0xff]
    %v578 = vld [vmem:[#allocation5 + $0x818] sm:$0xff]
    %v579 = vld [vmem:[#allocation5 + $0x820] sm:$0xff]
    %v580 = vld [vmem:[#allocation5 + $0x828] sm:$0xff]
    %v581 = vld [vmem:[#allocation5 + $0x830] sm:$0xff]
    %v582 = vld [vmem:[#allocation5 + $0x838] sm:$0xff]
    %v583 = vld [vmem:[#allocation5 + $0x840] sm:$0xff]
    %v584 = vld [vmem:[#allocation5 + $0x848] sm:$0xff]
    %v585 = vld [vmem:[#allocation5 + $0x850] sm:$0xff]
    %v586 = vld [vmem:[#allocation5 + $0x858] sm:$0xff]
    %v587 = vld [vmem:[#allocation5 + $0x860] sm:$0xff]
    %v588 = vld [vmem:[#allocation5 + $0x868] sm:$0xff]
    %v589 = vld [vmem:[#allocation5 + $0x870] sm:$0xff]
    %v590 = vld [vmem:[#allocation5 + $0x878] sm:$0xff]
    %v591 = vld [vmem:[#allocation5 + $0x880] sm:$0xff]
    %v592 = vld [vmem:[#allocation5 + $0x888] sm:$0xff]
    %v593 = vld [vmem:[#allocation5 + $0x890] sm:$0xff]
    %v594 = vld [vmem:[#allocation5 + $0x898] sm:$0xff]
    %v595 = vld [vmem:[#allocation5 + $0x8a0] sm:$0xff]
    %v596 = vld [vmem:[#allocation5 + $0x8a8] sm:$0xff]
    %v597 = vld [vmem:[#allocation5 + $0x8b0] sm:$0xff]
    %v598 = vld [vmem:[#allocation5 + $0x8b8] sm:$0xff]
    %v599 = vld [vmem:[#allocation5 + $0x8c0] sm:$0xff]
    %v600 = vld [vmem:[#allocation5 + $0x8c8] sm:$0xff]
    %v601 = vld [vmem:[#allocation5 + $0x8d0] sm:$0xff]
    %v602 = vld [vmem:[#allocation5 + $0x8d8] sm:$0xff]
    %v603 = vld [vmem:[#allocation5 + $0x8e0] sm:$0xff]
    %v604 = vld [vmem:[#allocation5 + $0x8e8] sm:$0xff]
    %v605 = vld [vmem:[#allocation5 + $0x8f0] sm:$0xff]
    %v606 = vld [vmem:[#allocation5 + $0x8f8] sm:$0xff]
    %v607 = vld [vmem:[#allocation5 + $0x900] sm:$0xff]
    %v608 = vld [vmem:[#allocation5 + $0x908] sm:$0xff]
    %v609 = vld [vmem:[#allocation5 + $0x910] sm:$0xff]
    %v610 = vld [vmem:[#allocation5 + $0x918] sm:$0xff]
    %v611 = vld [vmem:[#allocation5 + $0x920] sm:$0xff]
    %v612 = vld [vmem:[#allocation5 + $0x928] sm:$0xff]
    %v613 = vld [vmem:[#allocation5 + $0x930] sm:$0xff]
    %v614 = vld [vmem:[#allocation5 + $0x938] sm:$0xff]
    %v615 = vld [vmem:[#allocation5 + $0x940] sm:$0xff]
    %v616 = vld [vmem:[#allocation5 + $0x948] sm:$0xff]
    %v617 = vld [vmem:[#allocation5 + $0x950] sm:$0xff]
    %v618 = vld [vmem:[#allocation5 + $0x958] sm:$0xff]
    %v619 = vld [vmem:[#allocation5 + $0x960] sm:$0xff]
    %v620 = vld [vmem:[#allocation5 + $0x968] sm:$0xff]
    %v621 = vld [vmem:[#allocation5 + $0x970] sm:$0xff]
    %v622 = vld [vmem:[#allocation5 + $0x978] sm:$0xff]
    %v623 = vld [vmem:[#allocation5 + $0x980] sm:$0xff]
    %v624 = vld [vmem:[#allocation5 + $0x988] sm:$0xff]
    %v625 = vld [vmem:[#allocation5 + $0x990] sm:$0xff]
    %v626 = vld [vmem:[#allocation5 + $0x998] sm:$0xff]
    %v627 = vld [vmem:[#allocation5 + $0x9a0] sm:$0xff]
    %v628 = vld [vmem:[#allocation5 + $0x9a8] sm:$0xff]
    %v629 = vld [vmem:[#allocation5 + $0x9b0] sm:$0xff]
    %v630 = vld [vmem:[#allocation5 + $0x9b8] sm:$0xff]
    %v631 = vld [vmem:[#allocation5 + $0x9c0] sm:$0xff]
    %v632 = vld [vmem:[#allocation5 + $0x9c8] sm:$0xff]
    %v633 = vld [vmem:[#allocation5 + $0x9d0] sm:$0xff]
    %v634 = vld [vmem:[#allocation5 + $0x9d8] sm:$0xff]
    %v635 = vld [vmem:[#allocation5 + $0x9e0] sm:$0xff]
    %v636 = vld [vmem:[#allocation5 + $0x9e8] sm:$0xff]
    %v637 = vld [vmem:[#allocation5 + $0x9f0] sm:$0xff]
    %v638 = vld [vmem:[#allocation5 + $0x9f8] sm:$0xff]
    %v639 = vld [vmem:[#allocation5 + $0xa00] sm:$0xff]
    %v640 = vld [vmem:[#allocation5 + $0xa08] sm:$0xff]
    %v641 = vld [vmem:[#allocation5 + $0xa10] sm:$0xff]
    %v642 = vld [vmem:[#allocation5 + $0xa18] sm:$0xff]
    %v643 = vld [vmem:[#allocation5 + $0xa20] sm:$0xff]
    %v644 = vld [vmem:[#allocation5 + $0xa28] sm:$0xff]
    %v645 = vld [vmem:[#allocation5 + $0xa30] sm:$0xff]
    %v646 = vld [vmem:[#allocation5 + $0xa38] sm:$0xff]
    %v647 = vld [vmem:[#allocation5 + $0xa40] sm:$0xff]
    %v648 = vld [vmem:[#allocation5 + $0xa48] sm:$0xff]
    %v649 = vld [vmem:[#allocation5 + $0xa50] sm:$0xff]
    %v650 = vld [vmem:[#allocation5 + $0xa58] sm:$0xff]
    %v651 = vld [vmem:[#allocation5 + $0xa60] sm:$0xff]
    %v652 = vld [vmem:[#allocation5 + $0xa68] sm:$0xff]
    %v653 = vld [vmem:[#allocation5 + $0xa70] sm:$0xff]
    %v654 = vld [vmem:[#allocation5 + $0xa78] sm:$0xff]
    %v655 = vld [vmem:[#allocation5 + $0xa80] sm:$0xff]
    %v656 = vld [vmem:[#allocation5 + $0xa88] sm:$0xff]
    %v657 = vld [vmem:[#allocation5 + $0xa90] sm:$0xff]
    %v658 = vld [vmem:[#allocation5 + $0xa98] sm:$0xff]
    %v659 = vld [vmem:[#allocation5 + $0xaa0] sm:$0xff]
    %v660 = vld [vmem:[#allocation5 + $0xaa8] sm:$0xff]
    %v661 = vld [vmem:[#allocation5 + $0xab0] sm:$0xff]
    %v662 = vld [vmem:[#allocation5 + $0xab8] sm:$0xff]
    %v663 = vld [vmem:[#allocation5 + $0xac0] sm:$0xff]
    %v664 = vld [vmem:[#allocation5 + $0xac8] sm:$0xff]
    %v665 = vld [vmem:[#allocation5 + $0xad0] sm:$0xff]
    %v666 = vld [vmem:[#allocation5 + $0xad8] sm:$0xff]
    %v667 = vld [vmem:[#allocation5 + $0xae0] sm:$0xff]
    %v668 = vld [vmem:[#allocation5 + $0xae8] sm:$0xff]
    %v669 = vld [vmem:[#allocation5 + $0xaf0] sm:$0xff]
    %v670 = vld [vmem:[#allocation5 + $0xaf8] sm:$0xff]
    %v671 = vld [vmem:[#allocation5 + $0xb00] sm:$0xff]
    %v672 = vld [vmem:[#allocation5 + $0xb08] sm:$0xff]
    %v673 = vld [vmem:[#allocation5 + $0xb10] sm:$0xff]
    %v674 = vld [vmem:[#allocation5 + $0xb18] sm:$0xff]
    %v675 = vld [vmem:[#allocation5 + $0xb20] sm:$0xff]
    %v676 = vld [vmem:[#allocation5 + $0xb28] sm:$0xff]
    %v677 = vld [vmem:[#allocation5 + $0xb30] sm:$0xff]
    %v678 = vld [vmem:[#allocation5 + $0xb38] sm:$0xff]
    %v679 = vld [vmem:[#allocation5 + $0xb40] sm:$0xff]
    %v680 = vld [vmem:[#allocation5 + $0xb48] sm:$0xff]
    %v681 = vld [vmem:[#allocation5 + $0xb50] sm:$0xff]
    %v682 = vld [vmem:[#allocation5 + $0xb58] sm:$0xff]
    %v683 = vld [vmem:[#allocation5 + $0xb60] sm:$0xff]
    %v684 = vld [vmem:[#allocation5 + $0xb68] sm:$0xff]
    %v685 = vld [vmem:[#allocation5 + $0xb70] sm:$0xff]
    %v686 = vld [vmem:[#allocation5 + $0xb78] sm:$0xff]
    %v687 = vld [vmem:[#allocation5 + $0xb80] sm:$0xff]
    %v688 = vld [vmem:[#allocation5 + $0xb88] sm:$0xff]
    %v689 = vld [vmem:[#allocation5 + $0xb90] sm:$0xff]
    %v690 = vld [vmem:[#allocation5 + $0xb98] sm:$0xff]
    %v691 = vld [vmem:[#allocation5 + $0xba0] sm:$0xff]
    %v692 = vld [vmem:[#allocation5 + $0xba8] sm:$0xff]
    %v693 = vld [vmem:[#allocation5 + $0xbb0] sm:$0xff]
    %v694 = vld [vmem:[#allocation5 + $0xbb8] sm:$0xff]
    %v695 = vld [vmem:[#allocation5 + $0xbc0] sm:$0xff]
    %v696 = vld [vmem:[#allocation5 + $0xbc8] sm:$0xff]
    %v697 = vld [vmem:[#allocation5 + $0xbd0] sm:$0xff]
    %v698 = vld [vmem:[#allocation5 + $0xbd8] sm:$0xff]
    %v699 = vld [vmem:[#allocation5 + $0xbe0] sm:$0xff]
    %v700 = vld [vmem:[#allocation5 + $0xbe8] sm:$0xff]
    %v701 = vld [vmem:[#allocation5 + $0xbf0] sm:$0xff]
    %v702 = vld [vmem:[#allocation5 + $0xbf8] sm:$0xff]
    %v703 = vld [vmem:[#allocation5 + $0xc00] sm:$0xff]
    %v704 = vld [vmem:[#allocation5 + $0xc08] sm:$0xff]
    %v705 = vld [vmem:[#allocation5 + $0xc10] sm:$0xff]
    %v706 = vld [vmem:[#allocation5 + $0xc18] sm:$0xff]
    %v707 = vld [vmem:[#allocation5 + $0xc20] sm:$0xff]
    %v708 = vld [vmem:[#allocation5 + $0xc28] sm:$0xff]
    %v709 = vld [vmem:[#allocation5 + $0xc30] sm:$0xff]
    %v710 = vld [vmem:[#allocation5 + $0xc38] sm:$0xff]
    %v711 = vld [vmem:[#allocation5 + $0xc40] sm:$0xff]
    %v712 = vld [vmem:[#allocation5 + $0xc48] sm:$0xff]
    %v713 = vld [vmem:[#allocation5 + $0xc50] sm:$0xff]
    %v714 = vld [vmem:[#allocation5 + $0xc58] sm:$0xff]
    %v715 = vld [vmem:[#allocation5 + $0xc60] sm:$0xff]
    %v716 = vld [vmem:[#allocation5 + $0xc68] sm:$0xff]
    %v717 = vld [vmem:[#allocation5 + $0xc70] sm:$0xff]
    %v718 = vld [vmem:[#allocation5 + $0xc78] sm:$0xff]
    %v719 = vld [vmem:[#allocation5 + $0xc80] sm:$0xff]
    %v720 = vld [vmem:[#allocation5 + $0xc88] sm:$0xff]
    %v721 = vld [vmem:[#allocation5 + $0xc90] sm:$0xff]
    %v722 = vld [vmem:[#allocation5 + $0xc98] sm:$0xff]
    %v723 = vld [vmem:[#allocation5 + $0xca0] sm:$0xff]
    %v724 = vld [vmem:[#allocation5 + $0xca8] sm:$0xff]
    %v725 = vld [vmem:[#allocation5 + $0xcb0] sm:$0xff]
    %v726 = vld [vmem:[#allocation5 + $0xcb8] sm:$0xff]
    %v727 = vld [vmem:[#allocation5 + $0xcc0] sm:$0xff]
    %v728 = vld [vmem:[#allocation5 + $0xcc8] sm:$0xff]
    %v729 = vld [vmem:[#allocation5 + $0xcd0] sm:$0xff]
    %v730 = vld [vmem:[#allocation5 + $0xcd8] sm:$0xff]
    %v731 = vld [vmem:[#allocation5 + $0xce0] sm:$0xff]
    %v732 = vld [vmem:[#allocation5 + $0xce8] sm:$0xff]
    %v733 = vld [vmem:[#allocation5 + $0xcf0] sm:$0xff]
    %v734 = vld [vmem:[#allocation5 + $0xcf8] sm:$0xff]
    %v735 = vld [vmem:[#allocation5 + $0xd00] sm:$0xff]
    %v736 = vld [vmem:[#allocation5 + $0xd08] sm:$0xff]
    %v737 = vld [vmem:[#allocation5 + $0xd10] sm:$0xff]
    %v738 = vld [vmem:[#allocation5 + $0xd18] sm:$0xff]
    %v739 = vld [vmem:[#allocation5 + $0xd20] sm:$0xff]
    %v740 = vld [vmem:[#allocation5 + $0xd28] sm:$0xff]
    %v741 = vld [vmem:[#allocation5 + $0xd30] sm:$0xff]
    %v742 = vld [vmem:[#allocation5 + $0xd38] sm:$0xff]
    %v743 = vld [vmem:[#allocation5 + $0xd40] sm:$0xff]
    %v744 = vld [vmem:[#allocation5 + $0xd48] sm:$0xff]
    %v745 = vld [vmem:[#allocation5 + $0xd50] sm:$0xff]
    %v746 = vld [vmem:[#allocation5 + $0xd58] sm:$0xff]
    %v747 = vld [vmem:[#allocation5 + $0xd60] sm:$0xff]
    %v748 = vld [vmem:[#allocation5 + $0xd68] sm:$0xff]
    %v749 = vld [vmem:[#allocation5 + $0xd70] sm:$0xff]
    %v750 = vld [vmem:[#allocation5 + $0xd78] sm:$0xff]
    %v751 = vld [vmem:[#allocation5 + $0xd80] sm:$0xff]
    %v752 = vld [vmem:[#allocation5 + $0xd88] sm:$0xff]
    %v753 = vld [vmem:[#allocation5 + $0xd90] sm:$0xff]
    %v754 = vld [vmem:[#allocation5 + $0xd98] sm:$0xff]
    %v755 = vld [vmem:[#allocation5 + $0xda0] sm:$0xff]
    %v756 = vld [vmem:[#allocation5 + $0xda8] sm:$0xff]
    %v757 = vld [vmem:[#allocation5 + $0xdb0] sm:$0xff]
    %v758 = vld [vmem:[#allocation5 + $0xdb8] sm:$0xff]
    %v759 = vld [vmem:[#allocation5 + $0xdc0] sm:$0xff]
    %v760 = vld [vmem:[#allocation5 + $0xdc8] sm:$0xff]
    %v761 = vld [vmem:[#allocation5 + $0xdd0] sm:$0xff]
    %v762 = vld [vmem:[#allocation5 + $0xdd8] sm:$0xff]
    %v763 = vld [vmem:[#allocation5 + $0xde0] sm:$0xff]
    %v764 = vld [vmem:[#allocation5 + $0xde8] sm:$0xff]
    %v765 = vld [vmem:[#allocation5 + $0xdf0] sm:$0xff]
    %v766 = vld [vmem:[#allocation5 + $0xdf8] sm:$0xff]
    %v767 = vld [vmem:[#allocation7] sm:$0xff]
    %v769 = vperm.slane %v767, 0
    %v770 = vperm.slane %v767, 1
    %v771 = vperm.slane %v767, 2
    %v772 = vperm.slane %v767, 3
    %v773 = vperm.slane %v767, 4
    %v774 = vperm.slane %v767, 5
    %v775 = vperm.slane %v767, 6
    %v776 = vperm.slane %v767, 7
    %v1233 = vunpack.c.l.b16 %v319
    %v1234 = vunpack.c.h.b16 %v319
    %v1235 = vunpack.c.l.b16 %v320
    %v1236 = vunpack.c.h.b16 %v320
    %v1237 = vunpack.c.l.b16 %v321
    %v1238 = vunpack.c.h.b16 %v321
    %v1239 = vunpack.c.l.b16 %v322
    %v1240 = vunpack.c.h.b16 %v322
    %v1241 = vunpack.c.l.b16 %v323
    %v1242 = vunpack.c.h.b16 %v323
    %v1243 = vunpack.c.l.b16 %v324
    %v1244 = vunpack.c.h.b16 %v324
    %v1245 = vunpack.c.l.b16 %v325
    %v1246 = vunpack.c.h.b16 %v325
    %v1247 = vunpack.c.l.b16 %v326
    %v1248 = vunpack.c.h.b16 %v326
    %v1249 = vunpack.c.l.b16 %v327
    %v1250 = vunpack.c.h.b16 %v327
    %v1251 = vunpack.c.l.b16 %v328
    %v1252 = vunpack.c.h.b16 %v328
    %v1253 = vunpack.c.l.b16 %v329
    %v1254 = vunpack.c.h.b16 %v329
    %v1255 = vunpack.c.l.b16 %v330
    %v1256 = vunpack.c.h.b16 %v330
    %v1257 = vunpack.c.l.b16 %v331
    %v1258 = vunpack.c.h.b16 %v331
    %v1259 = vunpack.c.l.b16 %v332
    %v1260 = vunpack.c.h.b16 %v332
    %v1261 = vunpack.c.l.b16 %v333
    %v1262 = vunpack.c.h.b16 %v333
    %v1263 = vunpack.c.l.b16 %v334
    %v1264 = vunpack.c.h.b16 %v334
    %v1265 = vunpack.c.l.b16 %v335
    %v1266 = vunpack.c.h.b16 %v335
    %v1267 = vunpack.c.l.b16 %v336
    %v1268 = vunpack.c.h.b16 %v336
    %v1269 = vunpack.c.l.b16 %v337
    %v1270 = vunpack.c.h.b16 %v337
    %v1271 = vunpack.c.l.b16 %v338
    %v1272 = vunpack.c.h.b16 %v338
    %v1273 = vunpack.c.l.b16 %v339
    %v1274 = vunpack.c.h.b16 %v339
    %v1275 = vunpack.c.l.b16 %v340
    %v1276 = vunpack.c.h.b16 %v340
    %v1277 = vunpack.c.l.b16 %v341
    %v1278 = vunpack.c.h.b16 %v341
    %v1279 = vunpack.c.l.b16 %v342
    %v1280 = vunpack.c.h.b16 %v342
    %v1281 = vunpack.c.l.b16 %v343
    %v1282 = vunpack.c.h.b16 %v343
    %v1283 = vunpack.c.l.b16 %v344
    %v1284 = vunpack.c.h.b16 %v344
    %v1285 = vunpack.c.l.b16 %v345
    %v1286 = vunpack.c.h.b16 %v345
    %v1287 = vunpack.c.l.b16 %v346
    %v1288 = vunpack.c.h.b16 %v346
    %v1289 = vunpack.c.l.b16 %v347
    %v1290 = vunpack.c.h.b16 %v347
    %v1291 = vunpack.c.l.b16 %v348
    %v1292 = vunpack.c.h.b16 %v348
    %v1293 = vunpack.c.l.b16 %v349
    %v1294 = vunpack.c.h.b16 %v349
    %v1295 = vunpack.c.l.b16 %v350
    %v1296 = vunpack.c.h.b16 %v350
    %v1297 = vunpack.c.l.b16 %v351
    %v1298 = vunpack.c.h.b16 %v351
    %v1299 = vunpack.c.l.b16 %v352
    %v1300 = vunpack.c.h.b16 %v352
    %v1301 = vunpack.c.l.b16 %v353
    %v1302 = vunpack.c.h.b16 %v353
    %v1303 = vunpack.c.l.b16 %v354
    %v1304 = vunpack.c.h.b16 %v354
    %v1305 = vunpack.c.l.b16 %v355
    %v1306 = vunpack.c.h.b16 %v355
    %v1307 = vunpack.c.l.b16 %v356
    %v1308 = vunpack.c.h.b16 %v356
    %v1309 = vunpack.c.l.b16 %v357
    %v1310 = vunpack.c.h.b16 %v357
    %v1311 = vunpack.c.l.b16 %v358
    %v1312 = vunpack.c.h.b16 %v358
    %v1313 = vunpack.c.l.b16 %v359
    %v1314 = vunpack.c.h.b16 %v359
    %v1315 = vunpack.c.l.b16 %v360
    %v1316 = vunpack.c.h.b16 %v360
    %v1317 = vunpack.c.l.b16 %v361
    %v1318 = vunpack.c.h.b16 %v361
    %v1319 = vunpack.c.l.b16 %v362
    %v1320 = vunpack.c.h.b16 %v362
    %v1321 = vunpack.c.l.b16 %v363
    %v1322 = vunpack.c.h.b16 %v363
    %v1323 = vunpack.c.l.b16 %v364
    %v1324 = vunpack.c.h.b16 %v364
    %v1325 = vunpack.c.l.b16 %v365
    %v1326 = vunpack.c.h.b16 %v365
    %v1327 = vunpack.c.l.b16 %v366
    %v1328 = vunpack.c.h.b16 %v366
    %v1329 = vunpack.c.l.b16 %v367
    %v1330 = vunpack.c.h.b16 %v367
    %v1331 = vunpack.c.l.b16 %v368
    %v1332 = vunpack.c.h.b16 %v368
    %v1333 = vunpack.c.l.b16 %v369
    %v1334 = vunpack.c.h.b16 %v369
    %v1335 = vunpack.c.l.b16 %v370
    %v1336 = vunpack.c.h.b16 %v370
    %v1337 = vunpack.c.l.b16 %v371
    %v1338 = vunpack.c.h.b16 %v371
    %v1339 = vunpack.c.l.b16 %v372
    %v1340 = vunpack.c.h.b16 %v372
    %v1341 = vunpack.c.l.b16 %v373
    %v1342 = vunpack.c.h.b16 %v373
    %v1343 = vunpack.c.l.b16 %v374
    %v1344 = vunpack.c.h.b16 %v374
    %v1345 = vunpack.c.l.b16 %v375
    %v1346 = vunpack.c.h.b16 %v375
    %v1347 = vunpack.c.l.b16 %v376
    %v1348 = vunpack.c.h.b16 %v376
    %v1349 = vunpack.c.l.b16 %v377
    %v1350 = vunpack.c.h.b16 %v377
    %v1351 = vunpack.c.l.b16 %v378
    %v1352 = vunpack.c.h.b16 %v378
    %v1353 = vunpack.c.l.b16 %v379
    %v1354 = vunpack.c.h.b16 %v379
    %v1355 = vunpack.c.l.b16 %v380
    %v1356 = vunpack.c.h.b16 %v380
    %v1357 = vunpack.c.l.b16 %v381
    %v1358 = vunpack.c.h.b16 %v381
    %v1359 = vunpack.c.l.b16 %v382
    %v1360 = vunpack.c.h.b16 %v382
    %v1361 = vunpack.c.l.b16 %v383
    %v1362 = vunpack.c.h.b16 %v383
    %v1363 = vunpack.c.l.b16 %v384
    %v1364 = vunpack.c.h.b16 %v384
    %v1365 = vunpack.c.l.b16 %v385
    %v1366 = vunpack.c.h.b16 %v385
    %v1367 = vunpack.c.l.b16 %v386
    %v1368 = vunpack.c.h.b16 %v386
    %v1369 = vunpack.c.l.b16 %v387
    %v1370 = vunpack.c.h.b16 %v387
    %v1371 = vunpack.c.l.b16 %v388
    %v1372 = vunpack.c.h.b16 %v388
    %v1373 = vunpack.c.l.b16 %v389
    %v1374 = vunpack.c.h.b16 %v389
    %v1375 = vunpack.c.l.b16 %v390
    %v1376 = vunpack.c.h.b16 %v390
    %v1377 = vunpack.c.l.b16 %v391
    %v1378 = vunpack.c.h.b16 %v391
    %v1379 = vunpack.c.l.b16 %v392
    %v1380 = vunpack.c.h.b16 %v392
    %v1381 = vunpack.c.l.b16 %v393
    %v1382 = vunpack.c.h.b16 %v393
    %v1383 = vunpack.c.l.b16 %v394
    %v1384 = vunpack.c.h.b16 %v394
    %v1385 = vunpack.c.l.b16 %v395
    %v1386 = vunpack.c.h.b16 %v395
    %v1387 = vunpack.c.l.b16 %v396
    %v1388 = vunpack.c.h.b16 %v396
    %v1389 = vunpack.c.l.b16 %v397
    %v1390 = vunpack.c.h.b16 %v397
    %v1391 = vunpack.c.l.b16 %v398
    %v1392 = vunpack.c.h.b16 %v398
    %v1393 = vunpack.c.l.b16 %v399
    %v1394 = vunpack.c.h.b16 %v399
    %v1395 = vunpack.c.l.b16 %v400
    %v1396 = vunpack.c.h.b16 %v400
    %v1397 = vunpack.c.l.b16 %v401
    %v1398 = vunpack.c.h.b16 %v401
    %v1399 = vunpack.c.l.b16 %v402
    %v1400 = vunpack.c.h.b16 %v402
    %v1401 = vunpack.c.l.b16 %v403
    %v1402 = vunpack.c.h.b16 %v403
    %v1403 = vunpack.c.l.b16 %v404
    %v1404 = vunpack.c.h.b16 %v404
    %v1405 = vunpack.c.l.b16 %v405
    %v1406 = vunpack.c.h.b16 %v405
    %v1407 = vunpack.c.l.b16 %v406
    %v1408 = vunpack.c.h.b16 %v406
    %v1409 = vunpack.c.l.b16 %v407
    %v1410 = vunpack.c.h.b16 %v407
    %v1411 = vunpack.c.l.b16 %v408
    %v1412 = vunpack.c.h.b16 %v408
    %v1413 = vunpack.c.l.b16 %v409
    %v1414 = vunpack.c.h.b16 %v409
    %v1415 = vunpack.c.l.b16 %v410
    %v1416 = vunpack.c.h.b16 %v410
    %v1417 = vunpack.c.l.b16 %v411
    %v1418 = vunpack.c.h.b16 %v411
    %v1419 = vunpack.c.l.b16 %v412
    %v1420 = vunpack.c.h.b16 %v412
    %v1421 = vunpack.c.l.b16 %v413
    %v1422 = vunpack.c.h.b16 %v413
    %v1423 = vunpack.c.l.b16 %v414
    %v1424 = vunpack.c.h.b16 %v414
    %v1425 = vunpack.c.l.b16 %v415
    %v1426 = vunpack.c.h.b16 %v415
    %v1427 = vunpack.c.l.b16 %v416
    %v1428 = vunpack.c.h.b16 %v416
    %v1429 = vunpack.c.l.b16 %v417
    %v1430 = vunpack.c.h.b16 %v417
    %v1431 = vunpack.c.l.b16 %v418
    %v1432 = vunpack.c.h.b16 %v418
    %v1433 = vunpack.c.l.b16 %v419
    %v1434 = vunpack.c.h.b16 %v419
    %v1435 = vunpack.c.l.b16 %v420
    %v1436 = vunpack.c.h.b16 %v420
    %v1437 = vunpack.c.l.b16 %v421
    %v1438 = vunpack.c.h.b16 %v421
    %v1439 = vunpack.c.l.b16 %v422
    %v1440 = vunpack.c.h.b16 %v422
    %v1441 = vunpack.c.l.b16 %v423
    %v1442 = vunpack.c.h.b16 %v423
    %v1443 = vunpack.c.l.b16 %v424
    %v1444 = vunpack.c.h.b16 %v424
    %v1445 = vunpack.c.l.b16 %v425
    %v1446 = vunpack.c.h.b16 %v425
    %v1447 = vunpack.c.l.b16 %v426
    %v1448 = vunpack.c.h.b16 %v426
    %v1449 = vunpack.c.l.b16 %v427
    %v1450 = vunpack.c.h.b16 %v427
    %v1451 = vunpack.c.l.b16 %v428
    %v1452 = vunpack.c.h.b16 %v428
    %v1453 = vunpack.c.l.b16 %v429
    %v1454 = vunpack.c.h.b16 %v429
    %v1455 = vunpack.c.l.b16 %v430
    %v1456 = vunpack.c.h.b16 %v430
    %v1457 = vunpack.c.l.b16 %v431
    %v1458 = vunpack.c.h.b16 %v431
    %v1459 = vunpack.c.l.b16 %v432
    %v1460 = vunpack.c.h.b16 %v432
    %v1461 = vunpack.c.l.b16 %v433
    %v1462 = vunpack.c.h.b16 %v433
    %v1463 = vunpack.c.l.b16 %v434
    %v1464 = vunpack.c.h.b16 %v434
    %v1465 = vunpack.c.l.b16 %v435
    %v1466 = vunpack.c.h.b16 %v435
    %v1467 = vunpack.c.l.b16 %v436
    %v1468 = vunpack.c.h.b16 %v436
    %v1469 = vunpack.c.l.b16 %v437
    %v1470 = vunpack.c.h.b16 %v437
    %v1471 = vunpack.c.l.b16 %v438
    %v1472 = vunpack.c.h.b16 %v438
    %v1473 = vunpack.c.l.b16 %v439
    %v1474 = vunpack.c.h.b16 %v439
    %v1475 = vunpack.c.l.b16 %v440
    %v1476 = vunpack.c.h.b16 %v440
    %v1477 = vunpack.c.l.b16 %v441
    %v1478 = vunpack.c.h.b16 %v441
    %v1479 = vunpack.c.l.b16 %v442
    %v1480 = vunpack.c.h.b16 %v442
    %v1481 = vunpack.c.l.b16 %v443
    %v1482 = vunpack.c.h.b16 %v443
    %v1483 = vunpack.c.l.b16 %v444
    %v1484 = vunpack.c.h.b16 %v444
    %v1485 = vunpack.c.l.b16 %v445
    %v1486 = vunpack.c.h.b16 %v445
    %v1487 = vunpack.c.l.b16 %v446
    %v1488 = vunpack.c.h.b16 %v446
    %v1489 = vunpack.c.l.b16 %v447
    %v1490 = vunpack.c.h.b16 %v447
    %v1491 = vunpack.c.l.b16 %v448
    %v1492 = vunpack.c.h.b16 %v448
    %v1493 = vunpack.c.l.b16 %v449
    %v1494 = vunpack.c.h.b16 %v449
    %v1495 = vunpack.c.l.b16 %v450
    %v1496 = vunpack.c.h.b16 %v450
    %v1497 = vunpack.c.l.b16 %v451
    %v1498 = vunpack.c.h.b16 %v451
    %v1499 = vunpack.c.l.b16 %v452
    %v1500 = vunpack.c.h.b16 %v452
    %v1501 = vunpack.c.l.b16 %v453
    %v1502 = vunpack.c.h.b16 %v453
    %v1503 = vunpack.c.l.b16 %v454
    %v1504 = vunpack.c.h.b16 %v454
    %v1505 = vunpack.c.l.b16 %v455
    %v1506 = vunpack.c.h.b16 %v455
    %v1507 = vunpack.c.l.b16 %v456
    %v1508 = vunpack.c.h.b16 %v456
    %v1509 = vunpack.c.l.b16 %v457
    %v1510 = vunpack.c.h.b16 %v457
    %v1511 = vunpack.c.l.b16 %v458
    %v1512 = vunpack.c.h.b16 %v458
    %v1513 = vunpack.c.l.b16 %v459
    %v1514 = vunpack.c.h.b16 %v459
    %v1515 = vunpack.c.l.b16 %v460
    %v1516 = vunpack.c.h.b16 %v460
    %v1517 = vunpack.c.l.b16 %v461
    %v1518 = vunpack.c.h.b16 %v461
    %v1519 = vunpack.c.l.b16 %v462
    %v1520 = vunpack.c.h.b16 %v462
    %v1521 = vunpack.c.l.b16 %v463
    %v1522 = vunpack.c.h.b16 %v463
    %v1523 = vunpack.c.l.b16 %v464
    %v1524 = vunpack.c.h.b16 %v464
    %v1525 = vunpack.c.l.b16 %v465
    %v1526 = vunpack.c.h.b16 %v465
    %v1527 = vunpack.c.l.b16 %v466
    %v1528 = vunpack.c.h.b16 %v466
    %v1529 = vunpack.c.l.b16 %v467
    %v1530 = vunpack.c.h.b16 %v467
    %v1531 = vunpack.c.l.b16 %v468
    %v1532 = vunpack.c.h.b16 %v468
    %v1533 = vunpack.c.l.b16 %v469
    %v1534 = vunpack.c.h.b16 %v469
    %v1535 = vunpack.c.l.b16 %v470
    %v1536 = vunpack.c.h.b16 %v470
    %v1537 = vunpack.c.l.b16 %v471
    %v1538 = vunpack.c.h.b16 %v471
    %v1539 = vunpack.c.l.b16 %v472
    %v1540 = vunpack.c.h.b16 %v472
    %v1541 = vunpack.c.l.b16 %v473
    %v1542 = vunpack.c.h.b16 %v473
    %v1543 = vunpack.c.l.b16 %v474
    %v1544 = vunpack.c.h.b16 %v474
    %v1545 = vunpack.c.l.b16 %v475
    %v1546 = vunpack.c.h.b16 %v475
    %v1547 = vunpack.c.l.b16 %v476
    %v1548 = vunpack.c.h.b16 %v476
    %v1549 = vunpack.c.l.b16 %v477
    %v1550 = vunpack.c.h.b16 %v477
    %v1551 = vunpack.c.l.b16 %v478
    %v1552 = vunpack.c.h.b16 %v478
    %v1553 = vunpack.c.l.b16 %v479
    %v1554 = vunpack.c.h.b16 %v479
    %v1555 = vunpack.c.l.b16 %v480
    %v1556 = vunpack.c.h.b16 %v480
    %v1557 = vunpack.c.l.b16 %v481
    %v1558 = vunpack.c.h.b16 %v481
    %v1559 = vunpack.c.l.b16 %v482
    %v1560 = vunpack.c.h.b16 %v482
    %v1561 = vunpack.c.l.b16 %v483
    %v1562 = vunpack.c.h.b16 %v483
    %v1563 = vunpack.c.l.b16 %v484
    %v1564 = vunpack.c.h.b16 %v484
    %v1565 = vunpack.c.l.b16 %v485
    %v1566 = vunpack.c.h.b16 %v485
    %v1567 = vunpack.c.l.b16 %v486
    %v1568 = vunpack.c.h.b16 %v486
    %v1569 = vunpack.c.l.b16 %v487
    %v1570 = vunpack.c.h.b16 %v487
    %v1571 = vunpack.c.l.b16 %v488
    %v1572 = vunpack.c.h.b16 %v488
    %v1573 = vunpack.c.l.b16 %v489
    %v1574 = vunpack.c.h.b16 %v489
    %v1575 = vunpack.c.l.b16 %v490
    %v1576 = vunpack.c.h.b16 %v490
    %v1577 = vunpack.c.l.b16 %v491
    %v1578 = vunpack.c.h.b16 %v491
    %v1579 = vunpack.c.l.b16 %v492
    %v1580 = vunpack.c.h.b16 %v492
    %v1581 = vunpack.c.l.b16 %v493
    %v1582 = vunpack.c.h.b16 %v493
    %v1583 = vunpack.c.l.b16 %v494
    %v1584 = vunpack.c.h.b16 %v494
    %v1585 = vunpack.c.l.b16 %v495
    %v1586 = vunpack.c.h.b16 %v495
    %v1587 = vunpack.c.l.b16 %v496
    %v1588 = vunpack.c.h.b16 %v496
    %v1589 = vunpack.c.l.b16 %v497
    %v1590 = vunpack.c.h.b16 %v497
    %v1591 = vunpack.c.l.b16 %v498
    %v1592 = vunpack.c.h.b16 %v498
    %v1593 = vunpack.c.l.b16 %v499
    %v1594 = vunpack.c.h.b16 %v499
    %v1595 = vunpack.c.l.b16 %v500
    %v1596 = vunpack.c.h.b16 %v500
    %v1597 = vunpack.c.l.b16 %v501
    %v1598 = vunpack.c.h.b16 %v501
    %v1599 = vunpack.c.l.b16 %v502
    %v1600 = vunpack.c.h.b16 %v502
    %v1601 = vunpack.c.l.b16 %v503
    %v1602 = vunpack.c.h.b16 %v503
    %v1603 = vunpack.c.l.b16 %v504
    %v1604 = vunpack.c.h.b16 %v504
    %v1605 = vunpack.c.l.b16 %v505
    %v1606 = vunpack.c.h.b16 %v505
    %v1607 = vunpack.c.l.b16 %v506
    %v1608 = vunpack.c.h.b16 %v506
    %v1609 = vunpack.c.l.b16 %v507
    %v1610 = vunpack.c.h.b16 %v507
    %v1611 = vunpack.c.l.b16 %v508
    %v1612 = vunpack.c.h.b16 %v508
    %v1613 = vunpack.c.l.b16 %v509
    %v1614 = vunpack.c.h.b16 %v509
    %v1615 = vunpack.c.l.b16 %v510
    %v1616 = vunpack.c.h.b16 %v510
    %v1617 = vunpack.c.l.b16 %v511
    %v1618 = vunpack.c.h.b16 %v511
    %v1619 = vunpack.c.l.b16 %v512
    %v1620 = vunpack.c.h.b16 %v512
    %v1621 = vunpack.c.l.b16 %v513
    %v1622 = vunpack.c.h.b16 %v513
    %v1623 = vunpack.c.l.b16 %v514
    %v1624 = vunpack.c.h.b16 %v514
    %v1625 = vunpack.c.l.b16 %v515
    %v1626 = vunpack.c.h.b16 %v515
    %v1627 = vunpack.c.l.b16 %v516
    %v1628 = vunpack.c.h.b16 %v516
    %v1629 = vunpack.c.l.b16 %v517
    %v1630 = vunpack.c.h.b16 %v517
    %v1631 = vunpack.c.l.b16 %v518
    %v1632 = vunpack.c.h.b16 %v518
    %v1633 = vunpack.c.l.b16 %v519
    %v1634 = vunpack.c.h.b16 %v519
    %v1635 = vunpack.c.l.b16 %v520
    %v1636 = vunpack.c.h.b16 %v520
    %v1637 = vunpack.c.l.b16 %v521
    %v1638 = vunpack.c.h.b16 %v521
    %v1639 = vunpack.c.l.b16 %v522
    %v1640 = vunpack.c.h.b16 %v522
    %v1641 = vunpack.c.l.b16 %v523
    %v1642 = vunpack.c.h.b16 %v523
    %v1643 = vunpack.c.l.b16 %v524
    %v1644 = vunpack.c.h.b16 %v524
    %v1645 = vunpack.c.l.b16 %v525
    %v1646 = vunpack.c.h.b16 %v525
    %v1647 = vunpack.c.l.b16 %v526
    %v1648 = vunpack.c.h.b16 %v526
    %v1649 = vunpack.c.l.b16 %v527
    %v1650 = vunpack.c.h.b16 %v527
    %v1651 = vunpack.c.l.b16 %v528
    %v1652 = vunpack.c.h.b16 %v528
    %v1653 = vunpack.c.l.b16 %v529
    %v1654 = vunpack.c.h.b16 %v529
    %v1655 = vunpack.c.l.b16 %v530
    %v1656 = vunpack.c.h.b16 %v530
    %v1657 = vunpack.c.l.b16 %v531
    %v1658 = vunpack.c.h.b16 %v531
    %v1659 = vunpack.c.l.b16 %v532
    %v1660 = vunpack.c.h.b16 %v532
    %v1661 = vunpack.c.l.b16 %v533
    %v1662 = vunpack.c.h.b16 %v533
    %v1663 = vunpack.c.l.b16 %v534
    %v1664 = vunpack.c.h.b16 %v534
    %v1665 = vunpack.c.l.b16 %v535
    %v1666 = vunpack.c.h.b16 %v535
    %v1667 = vunpack.c.l.b16 %v536
    %v1668 = vunpack.c.h.b16 %v536
    %v1669 = vunpack.c.l.b16 %v537
    %v1670 = vunpack.c.h.b16 %v537
    %v1671 = vunpack.c.l.b16 %v538
    %v1672 = vunpack.c.h.b16 %v538
    %v1673 = vunpack.c.l.b16 %v539
    %v1674 = vunpack.c.h.b16 %v539
    %v1675 = vunpack.c.l.b16 %v540
    %v1676 = vunpack.c.h.b16 %v540
    %v1677 = vunpack.c.l.b16 %v541
    %v1678 = vunpack.c.h.b16 %v541
    %v1679 = vunpack.c.l.b16 %v542
    %v1680 = vunpack.c.h.b16 %v542
    %v1681 = vunpack.c.l.b16 %v543
    %v1682 = vunpack.c.h.b16 %v543
    %v1683 = vunpack.c.l.b16 %v544
    %v1684 = vunpack.c.h.b16 %v544
    %v1685 = vunpack.c.l.b16 %v545
    %v1686 = vunpack.c.h.b16 %v545
    %v1687 = vunpack.c.l.b16 %v546
    %v1688 = vunpack.c.h.b16 %v546
    %v1689 = vunpack.c.l.b16 %v547
    %v1690 = vunpack.c.h.b16 %v547
    %v1691 = vunpack.c.l.b16 %v548
    %v1692 = vunpack.c.h.b16 %v548
    %v1693 = vunpack.c.l.b16 %v549
    %v1694 = vunpack.c.h.b16 %v549
    %v1695 = vunpack.c.l.b16 %v550
    %v1696 = vunpack.c.h.b16 %v550
    %v1697 = vunpack.c.l.b16 %v551
    %v1698 = vunpack.c.h.b16 %v551
    %v1699 = vunpack.c.l.b16 %v552
    %v1700 = vunpack.c.h.b16 %v552
    %v1701 = vunpack.c.l.b16 %v553
    %v1702 = vunpack.c.h.b16 %v553
    %v1703 = vunpack.c.l.b16 %v554
    %v1704 = vunpack.c.h.b16 %v554
    %v1705 = vunpack.c.l.b16 %v555
    %v1706 = vunpack.c.h.b16 %v555
    %v1707 = vunpack.c.l.b16 %v556
    %v1708 = vunpack.c.h.b16 %v556
    %v1709 = vunpack.c.l.b16 %v557
    %v1710 = vunpack.c.h.b16 %v557
    %v1711 = vunpack.c.l.b16 %v558
    %v1712 = vunpack.c.h.b16 %v558
    %v1713 = vunpack.c.l.b16 %v559
    %v1714 = vunpack.c.h.b16 %v559
    %v1715 = vunpack.c.l.b16 %v560
    %v1716 = vunpack.c.h.b16 %v560
    %v1717 = vunpack.c.l.b16 %v561
    %v1718 = vunpack.c.h.b16 %v561
    %v1719 = vunpack.c.l.b16 %v562
    %v1720 = vunpack.c.h.b16 %v562
    %v1721 = vunpack.c.l.b16 %v563
    %v1722 = vunpack.c.h.b16 %v563
    %v1723 = vunpack.c.l.b16 %v564
    %v1724 = vunpack.c.h.b16 %v564
    %v1725 = vunpack.c.l.b16 %v565
    %v1726 = vunpack.c.h.b16 %v565
    %v1727 = vunpack.c.l.b16 %v566
    %v1728 = vunpack.c.h.b16 %v566
    %v1729 = vunpack.c.l.b16 %v567
    %v1730 = vunpack.c.h.b16 %v567
    %v1731 = vunpack.c.l.b16 %v568
    %v1732 = vunpack.c.h.b16 %v568
    %v1733 = vunpack.c.l.b16 %v569
    %v1734 = vunpack.c.h.b16 %v569
    %v1735 = vunpack.c.l.b16 %v570
    %v1736 = vunpack.c.h.b16 %v570
    %v1737 = vunpack.c.l.b16 %v571
    %v1738 = vunpack.c.h.b16 %v571
    %v1739 = vunpack.c.l.b16 %v572
    %v1740 = vunpack.c.h.b16 %v572
    %v1741 = vunpack.c.l.b16 %v573
    %v1742 = vunpack.c.h.b16 %v573
    %v1743 = vunpack.c.l.b16 %v574
    %v1744 = vunpack.c.h.b16 %v574
    %v1745 = vunpack.c.l.b16 %v575
    %v1746 = vunpack.c.h.b16 %v575
    %v1747 = vunpack.c.l.b16 %v576
    %v1748 = vunpack.c.h.b16 %v576
    %v1749 = vunpack.c.l.b16 %v577
    %v1750 = vunpack.c.h.b16 %v577
    %v1751 = vunpack.c.l.b16 %v578
    %v1752 = vunpack.c.h.b16 %v578
    %v1753 = vunpack.c.l.b16 %v579
    %v1754 = vunpack.c.h.b16 %v579
    %v1755 = vunpack.c.l.b16 %v580
    %v1756 = vunpack.c.h.b16 %v580
    %v1757 = vunpack.c.l.b16 %v581
    %v1758 = vunpack.c.h.b16 %v581
    %v1759 = vunpack.c.l.b16 %v582
    %v1760 = vunpack.c.h.b16 %v582
    %v1761 = vunpack.c.l.b16 %v583
    %v1762 = vunpack.c.h.b16 %v583
    %v1763 = vunpack.c.l.b16 %v584
    %v1764 = vunpack.c.h.b16 %v584
    %v1765 = vunpack.c.l.b16 %v585
    %v1766 = vunpack.c.h.b16 %v585
    %v1767 = vunpack.c.l.b16 %v586
    %v1768 = vunpack.c.h.b16 %v586
    %v1769 = vunpack.c.l.b16 %v587
    %v1770 = vunpack.c.h.b16 %v587
    %v1771 = vunpack.c.l.b16 %v588
    %v1772 = vunpack.c.h.b16 %v588
    %v1773 = vunpack.c.l.b16 %v589
    %v1774 = vunpack.c.h.b16 %v589
    %v1775 = vunpack.c.l.b16 %v590
    %v1776 = vunpack.c.h.b16 %v590
    %v1777 = vunpack.c.l.b16 %v591
    %v1778 = vunpack.c.h.b16 %v591
    %v1779 = vunpack.c.l.b16 %v592
    %v1780 = vunpack.c.h.b16 %v592
    %v1781 = vunpack.c.l.b16 %v593
    %v1782 = vunpack.c.h.b16 %v593
    %v1783 = vunpack.c.l.b16 %v594
    %v1784 = vunpack.c.h.b16 %v594
    %v1785 = vunpack.c.l.b16 %v595
    %v1786 = vunpack.c.h.b16 %v595
    %v1787 = vunpack.c.l.b16 %v596
    %v1788 = vunpack.c.h.b16 %v596
    %v1789 = vunpack.c.l.b16 %v597
    %v1790 = vunpack.c.h.b16 %v597
    %v1791 = vunpack.c.l.b16 %v598
    %v1792 = vunpack.c.h.b16 %v598
    %v1793 = vunpack.c.l.b16 %v599
    %v1794 = vunpack.c.h.b16 %v599
    %v1795 = vunpack.c.l.b16 %v600
    %v1796 = vunpack.c.h.b16 %v600
    %v1797 = vunpack.c.l.b16 %v601
    %v1798 = vunpack.c.h.b16 %v601
    %v1799 = vunpack.c.l.b16 %v602
    %v1800 = vunpack.c.h.b16 %v602
    %v1801 = vunpack.c.l.b16 %v603
    %v1802 = vunpack.c.h.b16 %v603
    %v1803 = vunpack.c.l.b16 %v604
    %v1804 = vunpack.c.h.b16 %v604
    %v1805 = vunpack.c.l.b16 %v605
    %v1806 = vunpack.c.h.b16 %v605
    %v1807 = vunpack.c.l.b16 %v606
    %v1808 = vunpack.c.h.b16 %v606
    %v1809 = vunpack.c.l.b16 %v607
    %v1810 = vunpack.c.h.b16 %v607
    %v1811 = vunpack.c.l.b16 %v608
    %v1812 = vunpack.c.h.b16 %v608
    %v1813 = vunpack.c.l.b16 %v609
    %v1814 = vunpack.c.h.b16 %v609
    %v1815 = vunpack.c.l.b16 %v610
    %v1816 = vunpack.c.h.b16 %v610
    %v1817 = vunpack.c.l.b16 %v611
    %v1818 = vunpack.c.h.b16 %v611
    %v1819 = vunpack.c.l.b16 %v612
    %v1820 = vunpack.c.h.b16 %v612
    %v1821 = vunpack.c.l.b16 %v613
    %v1822 = vunpack.c.h.b16 %v613
    %v1823 = vunpack.c.l.b16 %v614
    %v1824 = vunpack.c.h.b16 %v614
    %v1825 = vunpack.c.l.b16 %v615
    %v1826 = vunpack.c.h.b16 %v615
    %v1827 = vunpack.c.l.b16 %v616
    %v1828 = vunpack.c.h.b16 %v616
    %v1829 = vunpack.c.l.b16 %v617
    %v1830 = vunpack.c.h.b16 %v617
    %v1831 = vunpack.c.l.b16 %v618
    %v1832 = vunpack.c.h.b16 %v618
    %v1833 = vunpack.c.l.b16 %v619
    %v1834 = vunpack.c.h.b16 %v619
    %v1835 = vunpack.c.l.b16 %v620
    %v1836 = vunpack.c.h.b16 %v620
    %v1837 = vunpack.c.l.b16 %v621
    %v1838 = vunpack.c.h.b16 %v621
    %v1839 = vunpack.c.l.b16 %v622
    %v1840 = vunpack.c.h.b16 %v622
    %v1841 = vunpack.c.l.b16 %v623
    %v1842 = vunpack.c.h.b16 %v623
    %v1843 = vunpack.c.l.b16 %v624
    %v1844 = vunpack.c.h.b16 %v624
    %v1845 = vunpack.c.l.b16 %v625
    %v1846 = vunpack.c.h.b16 %v625
    %v1847 = vunpack.c.l.b16 %v626
    %v1848 = vunpack.c.h.b16 %v626
    %v1849 = vunpack.c.l.b16 %v627
    %v1850 = vunpack.c.h.b16 %v627
    %v1851 = vunpack.c.l.b16 %v628
    %v1852 = vunpack.c.h.b16 %v628
    %v1853 = vunpack.c.l.b16 %v629
    %v1854 = vunpack.c.h.b16 %v629
    %v1855 = vunpack.c.l.b16 %v630
    %v1856 = vunpack.c.h.b16 %v630
    %v1857 = vunpack.c.l.b16 %v631
    %v1858 = vunpack.c.h.b16 %v631
    %v1859 = vunpack.c.l.b16 %v632
    %v1860 = vunpack.c.h.b16 %v632
    %v1861 = vunpack.c.l.b16 %v633
    %v1862 = vunpack.c.h.b16 %v633
    %v1863 = vunpack.c.l.b16 %v634
    %v1864 = vunpack.c.h.b16 %v634
    %v1865 = vunpack.c.l.b16 %v635
    %v1866 = vunpack.c.h.b16 %v635
    %v1867 = vunpack.c.l.b16 %v636
    %v1868 = vunpack.c.h.b16 %v636
    %v1869 = vunpack.c.l.b16 %v637
    %v1870 = vunpack.c.h.b16 %v637
    %v1871 = vunpack.c.l.b16 %v638
    %v1872 = vunpack.c.h.b16 %v638
    %v1873 = vunpack.c.l.b16 %v639
    %v1874 = vunpack.c.h.b16 %v639
    %v1875 = vunpack.c.l.b16 %v640
    %v1876 = vunpack.c.h.b16 %v640
    %v1877 = vunpack.c.l.b16 %v641
    %v1878 = vunpack.c.h.b16 %v641
    %v1879 = vunpack.c.l.b16 %v642
    %v1880 = vunpack.c.h.b16 %v642
    %v1881 = vunpack.c.l.b16 %v643
    %v1882 = vunpack.c.h.b16 %v643
    %v1883 = vunpack.c.l.b16 %v644
    %v1884 = vunpack.c.h.b16 %v644
    %v1885 = vunpack.c.l.b16 %v645
    %v1886 = vunpack.c.h.b16 %v645
    %v1887 = vunpack.c.l.b16 %v646
    %v1888 = vunpack.c.h.b16 %v646
    %v1889 = vunpack.c.l.b16 %v647
    %v1890 = vunpack.c.h.b16 %v647
    %v1891 = vunpack.c.l.b16 %v648
    %v1892 = vunpack.c.h.b16 %v648
    %v1893 = vunpack.c.l.b16 %v649
    %v1894 = vunpack.c.h.b16 %v649
    %v1895 = vunpack.c.l.b16 %v650
    %v1896 = vunpack.c.h.b16 %v650
    %v1897 = vunpack.c.l.b16 %v651
    %v1898 = vunpack.c.h.b16 %v651
    %v1899 = vunpack.c.l.b16 %v652
    %v1900 = vunpack.c.h.b16 %v652
    %v1901 = vunpack.c.l.b16 %v653
    %v1902 = vunpack.c.h.b16 %v653
    %v1903 = vunpack.c.l.b16 %v654
    %v1904 = vunpack.c.h.b16 %v654
    %v1905 = vunpack.c.l.b16 %v655
    %v1906 = vunpack.c.h.b16 %v655
    %v1907 = vunpack.c.l.b16 %v656
    %v1908 = vunpack.c.h.b16 %v656
    %v1909 = vunpack.c.l.b16 %v657
    %v1910 = vunpack.c.h.b16 %v657
    %v1911 = vunpack.c.l.b16 %v658
    %v1912 = vunpack.c.h.b16 %v658
    %v1913 = vunpack.c.l.b16 %v659
    %v1914 = vunpack.c.h.b16 %v659
    %v1915 = vunpack.c.l.b16 %v660
    %v1916 = vunpack.c.h.b16 %v660
    %v1917 = vunpack.c.l.b16 %v661
    %v1918 = vunpack.c.h.b16 %v661
    %v1919 = vunpack.c.l.b16 %v662
    %v1920 = vunpack.c.h.b16 %v662
    %v1921 = vunpack.c.l.b16 %v663
    %v1922 = vunpack.c.h.b16 %v663
    %v1923 = vunpack.c.l.b16 %v664
    %v1924 = vunpack.c.h.b16 %v664
    %v1925 = vunpack.c.l.b16 %v665
    %v1926 = vunpack.c.h.b16 %v665
    %v1927 = vunpack.c.l.b16 %v666
    %v1928 = vunpack.c.h.b16 %v666
    %v1929 = vunpack.c.l.b16 %v667
    %v1930 = vunpack.c.h.b16 %v667
    %v1931 = vunpack.c.l.b16 %v668
    %v1932 = vunpack.c.h.b16 %v668
    %v1933 = vunpack.c.l.b16 %v669
    %v1934 = vunpack.c.h.b16 %v669
    %v1935 = vunpack.c.l.b16 %v670
    %v1936 = vunpack.c.h.b16 %v670
    %v1937 = vunpack.c.l.b16 %v671
    %v1938 = vunpack.c.h.b16 %v671
    %v1939 = vunpack.c.l.b16 %v672
    %v1940 = vunpack.c.h.b16 %v672
    %v1941 = vunpack.c.l.b16 %v673
    %v1942 = vunpack.c.h.b16 %v673
    %v1943 = vunpack.c.l.b16 %v674
    %v1944 = vunpack.c.h.b16 %v674
    %v1945 = vunpack.c.l.b16 %v675
    %v1946 = vunpack.c.h.b16 %v675
    %v1947 = vunpack.c.l.b16 %v676
    %v1948 = vunpack.c.h.b16 %v676
    %v1949 = vunpack.c.l.b16 %v677
    %v1950 = vunpack.c.h.b16 %v677
    %v1951 = vunpack.c.l.b16 %v678
    %v1952 = vunpack.c.h.b16 %v678
    %v1953 = vunpack.c.l.b16 %v679
    %v1954 = vunpack.c.h.b16 %v679
    %v1955 = vunpack.c.l.b16 %v680
    %v1956 = vunpack.c.h.b16 %v680
    %v1957 = vunpack.c.l.b16 %v681
    %v1958 = vunpack.c.h.b16 %v681
    %v1959 = vunpack.c.l.b16 %v682
    %v1960 = vunpack.c.h.b16 %v682
    %v1961 = vunpack.c.l.b16 %v683
    %v1962 = vunpack.c.h.b16 %v683
    %v1963 = vunpack.c.l.b16 %v684
    %v1964 = vunpack.c.h.b16 %v684
    %v1965 = vunpack.c.l.b16 %v685
    %v1966 = vunpack.c.h.b16 %v685
    %v1967 = vunpack.c.l.b16 %v686
    %v1968 = vunpack.c.h.b16 %v686
    %v1969 = vunpack.c.l.b16 %v687
    %v1970 = vunpack.c.h.b16 %v687
    %v1971 = vunpack.c.l.b16 %v688
    %v1972 = vunpack.c.h.b16 %v688
    %v1973 = vunpack.c.l.b16 %v689
    %v1974 = vunpack.c.h.b16 %v689
    %v1975 = vunpack.c.l.b16 %v690
    %v1976 = vunpack.c.h.b16 %v690
    %v1977 = vunpack.c.l.b16 %v691
    %v1978 = vunpack.c.h.b16 %v691
    %v1979 = vunpack.c.l.b16 %v692
    %v1980 = vunpack.c.h.b16 %v692
    %v1981 = vunpack.c.l.b16 %v693
    %v1982 = vunpack.c.h.b16 %v693
    %v1983 = vunpack.c.l.b16 %v694
    %v1984 = vunpack.c.h.b16 %v694
    %v1985 = vunpack.c.l.b16 %v695
    %v1986 = vunpack.c.h.b16 %v695
    %v1987 = vunpack.c.l.b16 %v696
    %v1988 = vunpack.c.h.b16 %v696
    %v1989 = vunpack.c.l.b16 %v697
    %v1990 = vunpack.c.h.b16 %v697
    %v1991 = vunpack.c.l.b16 %v698
    %v1992 = vunpack.c.h.b16 %v698
    %v1993 = vunpack.c.l.b16 %v699
    %v1994 = vunpack.c.h.b16 %v699
    %v1995 = vunpack.c.l.b16 %v700
    %v1996 = vunpack.c.h.b16 %v700
    %v1997 = vunpack.c.l.b16 %v701
    %v1998 = vunpack.c.h.b16 %v701
    %v1999 = vunpack.c.l.b16 %v702
    %v2000 = vunpack.c.h.b16 %v702
    %v2001 = vunpack.c.l.b16 %v703
    %v2002 = vunpack.c.h.b16 %v703
    %v2003 = vunpack.c.l.b16 %v704
    %v2004 = vunpack.c.h.b16 %v704
    %v2005 = vunpack.c.l.b16 %v705
    %v2006 = vunpack.c.h.b16 %v705
    %v2007 = vunpack.c.l.b16 %v706
    %v2008 = vunpack.c.h.b16 %v706
    %v2009 = vunpack.c.l.b16 %v707
    %v2010 = vunpack.c.h.b16 %v707
    %v2011 = vunpack.c.l.b16 %v708
    %v2012 = vunpack.c.h.b16 %v708
    %v2013 = vunpack.c.l.b16 %v709
    %v2014 = vunpack.c.h.b16 %v709
    %v2015 = vunpack.c.l.b16 %v710
    %v2016 = vunpack.c.h.b16 %v710
    %v2017 = vunpack.c.l.b16 %v711
    %v2018 = vunpack.c.h.b16 %v711
    %v2019 = vunpack.c.l.b16 %v712
    %v2020 = vunpack.c.h.b16 %v712
    %v2021 = vunpack.c.l.b16 %v713
    %v2022 = vunpack.c.h.b16 %v713
    %v2023 = vunpack.c.l.b16 %v714
    %v2024 = vunpack.c.h.b16 %v714
    %v2025 = vunpack.c.l.b16 %v715
    %v2026 = vunpack.c.h.b16 %v715
    %v2027 = vunpack.c.l.b16 %v716
    %v2028 = vunpack.c.h.b16 %v716
    %v2029 = vunpack.c.l.b16 %v717
    %v2030 = vunpack.c.h.b16 %v717
    %v2031 = vunpack.c.l.b16 %v718
    %v2032 = vunpack.c.h.b16 %v718
    %v2033 = vunpack.c.l.b16 %v719
    %v2034 = vunpack.c.h.b16 %v719
    %v2035 = vunpack.c.l.b16 %v720
    %v2036 = vunpack.c.h.b16 %v720
    %v2037 = vunpack.c.l.b16 %v721
    %v2038 = vunpack.c.h.b16 %v721
    %v2039 = vunpack.c.l.b16 %v722
    %v2040 = vunpack.c.h.b16 %v722
    %v2041 = vunpack.c.l.b16 %v723
    %v2042 = vunpack.c.h.b16 %v723
    %v2043 = vunpack.c.l.b16 %v724
    %v2044 = vunpack.c.h.b16 %v724
    %v2045 = vunpack.c.l.b16 %v725
    %v2046 = vunpack.c.h.b16 %v725
    %v2047 = vunpack.c.l.b16 %v726
    %v2048 = vunpack.c.h.b16 %v726
    %v2049 = vunpack.c.l.b16 %v727
    %v2050 = vunpack.c.h.b16 %v727
    %v2051 = vunpack.c.l.b16 %v728
    %v2052 = vunpack.c.h.b16 %v728
    %v2053 = vunpack.c.l.b16 %v729
    %v2054 = vunpack.c.h.b16 %v729
    %v2055 = vunpack.c.l.b16 %v730
    %v2056 = vunpack.c.h.b16 %v730
    %v2057 = vunpack.c.l.b16 %v731
    %v2058 = vunpack.c.h.b16 %v731
    %v2059 = vunpack.c.l.b16 %v732
    %v2060 = vunpack.c.h.b16 %v732
    %v2061 = vunpack.c.l.b16 %v733
    %v2062 = vunpack.c.h.b16 %v733
    %v2063 = vunpack.c.l.b16 %v734
    %v2064 = vunpack.c.h.b16 %v734
    %v2065 = vunpack.c.l.b16 %v735
    %v2066 = vunpack.c.h.b16 %v735
    %v2067 = vunpack.c.l.b16 %v736
    %v2068 = vunpack.c.h.b16 %v736
    %v2069 = vunpack.c.l.b16 %v737
    %v2070 = vunpack.c.h.b16 %v737
    %v2071 = vunpack.c.l.b16 %v738
    %v2072 = vunpack.c.h.b16 %v738
    %v2073 = vunpack.c.l.b16 %v739
    %v2074 = vunpack.c.h.b16 %v739
    %v2075 = vunpack.c.l.b16 %v740
    %v2076 = vunpack.c.h.b16 %v740
    %v2077 = vunpack.c.l.b16 %v741
    %v2078 = vunpack.c.h.b16 %v741
    %v2079 = vunpack.c.l.b16 %v742
    %v2080 = vunpack.c.h.b16 %v742
    %v2081 = vunpack.c.l.b16 %v743
    %v2082 = vunpack.c.h.b16 %v743
    %v2083 = vunpack.c.l.b16 %v744
    %v2084 = vunpack.c.h.b16 %v744
    %v2085 = vunpack.c.l.b16 %v745
    %v2086 = vunpack.c.h.b16 %v745
    %v2087 = vunpack.c.l.b16 %v746
    %v2088 = vunpack.c.h.b16 %v746
    %v2089 = vunpack.c.l.b16 %v747
    %v2090 = vunpack.c.h.b16 %v747
    %v2091 = vunpack.c.l.b16 %v748
    %v2092 = vunpack.c.h.b16 %v748
    %v2093 = vunpack.c.l.b16 %v749
    %v2094 = vunpack.c.h.b16 %v749
    %v2095 = vunpack.c.l.b16 %v750
    %v2096 = vunpack.c.h.b16 %v750
    %v2097 = vunpack.c.l.b16 %v751
    %v2098 = vunpack.c.h.b16 %v751
    %v2099 = vunpack.c.l.b16 %v752
    %v2100 = vunpack.c.h.b16 %v752
    %v2101 = vunpack.c.l.b16 %v753
    %v2102 = vunpack.c.h.b16 %v753
    %v2103 = vunpack.c.l.b16 %v754
    %v2104 = vunpack.c.h.b16 %v754
    %v2105 = vunpack.c.l.b16 %v755
    %v2106 = vunpack.c.h.b16 %v755
    %v2107 = vunpack.c.l.b16 %v756
    %v2108 = vunpack.c.h.b16 %v756
    %v2109 = vunpack.c.l.b16 %v757
    %v2110 = vunpack.c.h.b16 %v757
    %v2111 = vunpack.c.l.b16 %v758
    %v2112 = vunpack.c.h.b16 %v758
    %v2113 = vunpack.c.l.b16 %v759
    %v2114 = vunpack.c.h.b16 %v759
    %v2115 = vunpack.c.l.b16 %v760
    %v2116 = vunpack.c.h.b16 %v760
    %v2117 = vunpack.c.l.b16 %v761
    %v2118 = vunpack.c.h.b16 %v761
    %v2119 = vunpack.c.l.b16 %v762
    %v2120 = vunpack.c.h.b16 %v762
    %v2121 = vunpack.c.l.b16 %v763
    %v2122 = vunpack.c.h.b16 %v763
    %v2123 = vunpack.c.l.b16 %v764
    %v2124 = vunpack.c.h.b16 %v764
    %v2125 = vunpack.c.l.b16 %v765
    %v2126 = vunpack.c.h.b16 %v765
    %v2127 = vunpack.c.l.b16 %v766
    %v2128 = vunpack.c.h.b16 %v766
    %v2129 = vpack.c.b16 %v1241, %v1233
    %v2130 = vpack.c.b16 %v1242, %v1234
    %v2131 = vpack.c.b16 %v1243, %v1235
    %v2132 = vpack.c.b16 %v1244, %v1236
    %v2133 = vpack.c.b16 %v1245, %v1237
    %v2134 = vpack.c.b16 %v1246, %v1238
    %v2135 = vpack.c.b16 %v1247, %v1239
    %v2136 = vpack.c.b16 %v1248, %v1240
    %v2137 = vpack.c.b16 %v1257, %v1249
    %v2138 = vpack.c.b16 %v1258, %v1250
    %v2139 = vpack.c.b16 %v1259, %v1251
    %v2140 = vpack.c.b16 %v1260, %v1252
    %v2141 = vpack.c.b16 %v1261, %v1253
    %v2142 = vpack.c.b16 %v1262, %v1254
    %v2143 = vpack.c.b16 %v1263, %v1255
    %v2144 = vpack.c.b16 %v1264, %v1256
    %v2145 = vpack.c.b16 %v1273, %v1265
    %v2146 = vpack.c.b16 %v1274, %v1266
    %v2147 = vpack.c.b16 %v1275, %v1267
    %v2148 = vpack.c.b16 %v1276, %v1268
    %v2149 = vpack.c.b16 %v1277, %v1269
    %v2150 = vpack.c.b16 %v1278, %v1270
    %v2151 = vpack.c.b16 %v1279, %v1271
    %v2152 = vpack.c.b16 %v1280, %v1272
    %v2153 = vpack.c.b16 %v1289, %v1281
    %v2154 = vpack.c.b16 %v1290, %v1282
    %v2155 = vpack.c.b16 %v1291, %v1283
    %v2156 = vpack.c.b16 %v1292, %v1284
    %v2157 = vpack.c.b16 %v1293, %v1285
    %v2158 = vpack.c.b16 %v1294, %v1286
    %v2159 = vpack.c.b16 %v1295, %v1287
    %v2160 = vpack.c.b16 %v1296, %v1288
    %v2161 = vpack.c.b16 %v1305, %v1297
    %v2162 = vpack.c.b16 %v1306, %v1298
    %v2163 = vpack.c.b16 %v1307, %v1299
    %v2164 = vpack.c.b16 %v1308, %v1300
    %v2165 = vpack.c.b16 %v1309, %v1301
    %v2166 = vpack.c.b16 %v1310, %v1302
    %v2167 = vpack.c.b16 %v1311, %v1303
    %v2168 = vpack.c.b16 %v1312, %v1304
    %v2169 = vpack.c.b16 %v1321, %v1313
    %v2170 = vpack.c.b16 %v1322, %v1314
    %v2171 = vpack.c.b16 %v1323, %v1315
    %v2172 = vpack.c.b16 %v1324, %v1316
    %v2173 = vpack.c.b16 %v1325, %v1317
    %v2174 = vpack.c.b16 %v1326, %v1318
    %v2175 = vpack.c.b16 %v1327, %v1319
    %v2176 = vpack.c.b16 %v1328, %v1320
    %v2177 = vpack.c.b16 %v1337, %v1329
    %v2178 = vpack.c.b16 %v1338, %v1330
    %v2179 = vpack.c.b16 %v1339, %v1331
    %v2180 = vpack.c.b16 %v1340, %v1332
    %v2181 = vpack.c.b16 %v1341, %v1333
    %v2182 = vpack.c.b16 %v1342, %v1334
    %v2183 = vpack.c.b16 %v1343, %v1335
    %v2184 = vpack.c.b16 %v1344, %v1336
    %v2185 = vpack.c.b16 %v1353, %v1345
    %v2186 = vpack.c.b16 %v1354, %v1346
    %v2187 = vpack.c.b16 %v1355, %v1347
    %v2188 = vpack.c.b16 %v1356, %v1348
    %v2189 = vpack.c.b16 %v1357, %v1349
    %v2190 = vpack.c.b16 %v1358, %v1350
    %v2191 = vpack.c.b16 %v1359, %v1351
    %v2192 = vpack.c.b16 %v1360, %v1352
    %v2193 = vpack.c.b16 %v1369, %v1361
    %v2194 = vpack.c.b16 %v1370, %v1362
    %v2195 = vpack.c.b16 %v1371, %v1363
    %v2196 = vpack.c.b16 %v1372, %v1364
    %v2197 = vpack.c.b16 %v1373, %v1365
    %v2198 = vpack.c.b16 %v1374, %v1366
    %v2199 = vpack.c.b16 %v1375, %v1367
    %v2200 = vpack.c.b16 %v1376, %v1368
    %v2201 = vpack.c.b16 %v1385, %v1377
    %v2202 = vpack.c.b16 %v1386, %v1378
    %v2203 = vpack.c.b16 %v1387, %v1379
    %v2204 = vpack.c.b16 %v1388, %v1380
    %v2205 = vpack.c.b16 %v1389, %v1381
    %v2206 = vpack.c.b16 %v1390, %v1382
    %v2207 = vpack.c.b16 %v1391, %v1383
    %v2208 = vpack.c.b16 %v1392, %v1384
    %v2209 = vpack.c.b16 %v1401, %v1393
    %v2210 = vpack.c.b16 %v1402, %v1394
    %v2211 = vpack.c.b16 %v1403, %v1395
    %v2212 = vpack.c.b16 %v1404, %v1396
    %v2213 = vpack.c.b16 %v1405, %v1397
    %v2214 = vpack.c.b16 %v1406, %v1398
    %v2215 = vpack.c.b16 %v1407, %v1399
    %v2216 = vpack.c.b16 %v1408, %v1400
    %v2217 = vpack.c.b16 %v1417, %v1409
    %v2218 = vpack.c.b16 %v1418, %v1410
    %v2219 = vpack.c.b16 %v1419, %v1411
    %v2220 = vpack.c.b16 %v1420, %v1412
    %v2221 = vpack.c.b16 %v1421, %v1413
    %v2222 = vpack.c.b16 %v1422, %v1414
    %v2223 = vpack.c.b16 %v1423, %v1415
    %v2224 = vpack.c.b16 %v1424, %v1416
    %v2225 = vpack.c.b16 %v1433, %v1425
    %v2226 = vpack.c.b16 %v1434, %v1426
    %v2227 = vpack.c.b16 %v1435, %v1427
    %v2228 = vpack.c.b16 %v1436, %v1428
    %v2229 = vpack.c.b16 %v1437, %v1429
    %v2230 = vpack.c.b16 %v1438, %v1430
    %v2231 = vpack.c.b16 %v1439, %v1431
    %v2232 = vpack.c.b16 %v1440, %v1432
    %v2233 = vpack.c.b16 %v1449, %v1441
    %v2234 = vpack.c.b16 %v1450, %v1442
    %v2235 = vpack.c.b16 %v1451, %v1443
    %v2236 = vpack.c.b16 %v1452, %v1444
    %v2237 = vpack.c.b16 %v1453, %v1445
    %v2238 = vpack.c.b16 %v1454, %v1446
    %v2239 = vpack.c.b16 %v1455, %v1447
    %v2240 = vpack.c.b16 %v1456, %v1448
    %v2241 = vpack.c.b16 %v1465, %v1457
    %v2242 = vpack.c.b16 %v1466, %v1458
    %v2243 = vpack.c.b16 %v1467, %v1459
    %v2244 = vpack.c.b16 %v1468, %v1460
    %v2245 = vpack.c.b16 %v1469, %v1461
    %v2246 = vpack.c.b16 %v1470, %v1462
    %v2247 = vpack.c.b16 %v1471, %v1463
    %v2248 = vpack.c.b16 %v1472, %v1464
    %v2249 = vpack.c.b16 %v1481, %v1473
    %v2250 = vpack.c.b16 %v1482, %v1474
    %v2251 = vpack.c.b16 %v1483, %v1475
    %v2252 = vpack.c.b16 %v1484, %v1476
    %v2253 = vpack.c.b16 %v1485, %v1477
    %v2254 = vpack.c.b16 %v1486, %v1478
    %v2255 = vpack.c.b16 %v1487, %v1479
    %v2256 = vpack.c.b16 %v1488, %v1480
    %v2257 = vpack.c.b16 %v1497, %v1489
    %v2258 = vpack.c.b16 %v1498, %v1490
    %v2259 = vpack.c.b16 %v1499, %v1491
    %v2260 = vpack.c.b16 %v1500, %v1492
    %v2261 = vpack.c.b16 %v1501, %v1493
    %v2262 = vpack.c.b16 %v1502, %v1494
    %v2263 = vpack.c.b16 %v1503, %v1495
    %v2264 = vpack.c.b16 %v1504, %v1496
    %v2265 = vpack.c.b16 %v1513, %v1505
    %v2266 = vpack.c.b16 %v1514, %v1506
    %v2267 = vpack.c.b16 %v1515, %v1507
    %v2268 = vpack.c.b16 %v1516, %v1508
    %v2269 = vpack.c.b16 %v1517, %v1509
    %v2270 = vpack.c.b16 %v1518, %v1510
    %v2271 = vpack.c.b16 %v1519, %v1511
    %v2272 = vpack.c.b16 %v1520, %v1512
    %v2273 = vpack.c.b16 %v1529, %v1521
    %v2274 = vpack.c.b16 %v1530, %v1522
    %v2275 = vpack.c.b16 %v1531, %v1523
    %v2276 = vpack.c.b16 %v1532, %v1524
    %v2277 = vpack.c.b16 %v1533, %v1525
    %v2278 = vpack.c.b16 %v1534, %v1526
    %v2279 = vpack.c.b16 %v1535, %v1527
    %v2280 = vpack.c.b16 %v1536, %v1528
    %v2281 = vpack.c.b16 %v1545, %v1537
    %v2282 = vpack.c.b16 %v1546, %v1538
    %v2283 = vpack.c.b16 %v1547, %v1539
    %v2284 = vpack.c.b16 %v1548, %v1540
    %v2285 = vpack.c.b16 %v1549, %v1541
    %v2286 = vpack.c.b16 %v1550, %v1542
    %v2287 = vpack.c.b16 %v1551, %v1543
    %v2288 = vpack.c.b16 %v1552, %v1544
    %v2289 = vpack.c.b16 %v1561, %v1553
    %v2290 = vpack.c.b16 %v1562, %v1554
    %v2291 = vpack.c.b16 %v1563, %v1555
    %v2292 = vpack.c.b16 %v1564, %v1556
    %v2293 = vpack.c.b16 %v1565, %v1557
    %v2294 = vpack.c.b16 %v1566, %v1558
    %v2295 = vpack.c.b16 %v1567, %v1559
    %v2296 = vpack.c.b16 %v1568, %v1560
    %v2297 = vpack.c.b16 %v1577, %v1569
    %v2298 = vpack.c.b16 %v1578, %v1570
    %v2299 = vpack.c.b16 %v1579, %v1571
    %v2300 = vpack.c.b16 %v1580, %v1572
    %v2301 = vpack.c.b16 %v1581, %v1573
    %v2302 = vpack.c.b16 %v1582, %v1574
    %v2303 = vpack.c.b16 %v1583, %v1575
    %v2304 = vpack.c.b16 %v1584, %v1576
    %v2305 = vpack.c.b16 %v1593, %v1585
    %v2306 = vpack.c.b16 %v1594, %v1586
    %v2307 = vpack.c.b16 %v1595, %v1587
    %v2308 = vpack.c.b16 %v1596, %v1588
    %v2309 = vpack.c.b16 %v1597, %v1589
    %v2310 = vpack.c.b16 %v1598, %v1590
    %v2311 = vpack.c.b16 %v1599, %v1591
    %v2312 = vpack.c.b16 %v1600, %v1592
    %v2313 = vpack.c.b16 %v1609, %v1601
    %v2314 = vpack.c.b16 %v1610, %v1602
    %v2315 = vpack.c.b16 %v1611, %v1603
    %v2316 = vpack.c.b16 %v1612, %v1604
    %v2317 = vpack.c.b16 %v1613, %v1605
    %v2318 = vpack.c.b16 %v1614, %v1606
    %v2319 = vpack.c.b16 %v1615, %v1607
    %v2320 = vpack.c.b16 %v1616, %v1608
    %v2321 = vpack.c.b16 %v1625, %v1617
    %v2322 = vpack.c.b16 %v1626, %v1618
    %v2323 = vpack.c.b16 %v1627, %v1619
    %v2324 = vpack.c.b16 %v1628, %v1620
    %v2325 = vpack.c.b16 %v1629, %v1621
    %v2326 = vpack.c.b16 %v1630, %v1622
    %v2327 = vpack.c.b16 %v1631, %v1623
    %v2328 = vpack.c.b16 %v1632, %v1624
    %v2329 = vpack.c.b16 %v1641, %v1633
    %v2330 = vpack.c.b16 %v1642, %v1634
    %v2331 = vpack.c.b16 %v1643, %v1635
    %v2332 = vpack.c.b16 %v1644, %v1636
    %v2333 = vpack.c.b16 %v1645, %v1637
    %v2334 = vpack.c.b16 %v1646, %v1638
    %v2335 = vpack.c.b16 %v1647, %v1639
    %v2336 = vpack.c.b16 %v1648, %v1640
    %v2337 = vpack.c.b16 %v1657, %v1649
    %v2338 = vpack.c.b16 %v1658, %v1650
    %v2339 = vpack.c.b16 %v1659, %v1651
    %v2340 = vpack.c.b16 %v1660, %v1652
    %v2341 = vpack.c.b16 %v1661, %v1653
    %v2342 = vpack.c.b16 %v1662, %v1654
    %v2343 = vpack.c.b16 %v1663, %v1655
    %v2344 = vpack.c.b16 %v1664, %v1656
    %v2345 = vpack.c.b16 %v1673, %v1665
    %v2346 = vpack.c.b16 %v1674, %v1666
    %v2347 = vpack.c.b16 %v1675, %v1667
    %v2348 = vpack.c.b16 %v1676, %v1668
    %v2349 = vpack.c.b16 %v1677, %v1669
    %v2350 = vpack.c.b16 %v1678, %v1670
    %v2351 = vpack.c.b16 %v1679, %v1671
    %v2352 = vpack.c.b16 %v1680, %v1672
    %v2353 = vpack.c.b16 %v1689, %v1681
    %v2354 = vpack.c.b16 %v1690, %v1682
    %v2355 = vpack.c.b16 %v1691, %v1683
    %v2356 = vpack.c.b16 %v1692, %v1684
    %v2357 = vpack.c.b16 %v1693, %v1685
    %v2358 = vpack.c.b16 %v1694, %v1686
    %v2359 = vpack.c.b16 %v1695, %v1687
    %v2360 = vpack.c.b16 %v1696, %v1688
    %v2361 = vpack.c.b16 %v1705, %v1697
    %v2362 = vpack.c.b16 %v1706, %v1698
    %v2363 = vpack.c.b16 %v1707, %v1699
    %v2364 = vpack.c.b16 %v1708, %v1700
    %v2365 = vpack.c.b16 %v1709, %v1701
    %v2366 = vpack.c.b16 %v1710, %v1702
    %v2367 = vpack.c.b16 %v1711, %v1703
    %v2368 = vpack.c.b16 %v1712, %v1704
    %v2369 = vpack.c.b16 %v1721, %v1713
    %v2370 = vpack.c.b16 %v1722, %v1714
    %v2371 = vpack.c.b16 %v1723, %v1715
    %v2372 = vpack.c.b16 %v1724, %v1716
    %v2373 = vpack.c.b16 %v1725, %v1717
    %v2374 = vpack.c.b16 %v1726, %v1718
    %v2375 = vpack.c.b16 %v1727, %v1719
    %v2376 = vpack.c.b16 %v1728, %v1720
    %v2377 = vpack.c.b16 %v1737, %v1729
    %v2378 = vpack.c.b16 %v1738, %v1730
    %v2379 = vpack.c.b16 %v1739, %v1731
    %v2380 = vpack.c.b16 %v1740, %v1732
    %v2381 = vpack.c.b16 %v1741, %v1733
    %v2382 = vpack.c.b16 %v1742, %v1734
    %v2383 = vpack.c.b16 %v1743, %v1735
    %v2384 = vpack.c.b16 %v1744, %v1736
    %v2385 = vpack.c.b16 %v1753, %v1745
    %v2386 = vpack.c.b16 %v1754, %v1746
    %v2387 = vpack.c.b16 %v1755, %v1747
    %v2388 = vpack.c.b16 %v1756, %v1748
    %v2389 = vpack.c.b16 %v1757, %v1749
    %v2390 = vpack.c.b16 %v1758, %v1750
    %v2391 = vpack.c.b16 %v1759, %v1751
    %v2392 = vpack.c.b16 %v1760, %v1752
    %v2393 = vpack.c.b16 %v1769, %v1761
    %v2394 = vpack.c.b16 %v1770, %v1762
    %v2395 = vpack.c.b16 %v1771, %v1763
    %v2396 = vpack.c.b16 %v1772, %v1764
    %v2397 = vpack.c.b16 %v1773, %v1765
    %v2398 = vpack.c.b16 %v1774, %v1766
    %v2399 = vpack.c.b16 %v1775, %v1767
    %v2400 = vpack.c.b16 %v1776, %v1768
    %v2401 = vpack.c.b16 %v1785, %v1777
    %v2402 = vpack.c.b16 %v1786, %v1778
    %v2403 = vpack.c.b16 %v1787, %v1779
    %v2404 = vpack.c.b16 %v1788, %v1780
    %v2405 = vpack.c.b16 %v1789, %v1781
    %v2406 = vpack.c.b16 %v1790, %v1782
    %v2407 = vpack.c.b16 %v1791, %v1783
    %v2408 = vpack.c.b16 %v1792, %v1784
    %v2409 = vpack.c.b16 %v1801, %v1793
    %v2410 = vpack.c.b16 %v1802, %v1794
    %v2411 = vpack.c.b16 %v1803, %v1795
    %v2412 = vpack.c.b16 %v1804, %v1796
    %v2413 = vpack.c.b16 %v1805, %v1797
    %v2414 = vpack.c.b16 %v1806, %v1798
    %v2415 = vpack.c.b16 %v1807, %v1799
    %v2416 = vpack.c.b16 %v1808, %v1800
    %v2417 = vpack.c.b16 %v1817, %v1809
    %v2418 = vpack.c.b16 %v1818, %v1810
    %v2419 = vpack.c.b16 %v1819, %v1811
    %v2420 = vpack.c.b16 %v1820, %v1812
    %v2421 = vpack.c.b16 %v1821, %v1813
    %v2422 = vpack.c.b16 %v1822, %v1814
    %v2423 = vpack.c.b16 %v1823, %v1815
    %v2424 = vpack.c.b16 %v1824, %v1816
    %v2425 = vpack.c.b16 %v1833, %v1825
    %v2426 = vpack.c.b16 %v1834, %v1826
    %v2427 = vpack.c.b16 %v1835, %v1827
    %v2428 = vpack.c.b16 %v1836, %v1828
    %v2429 = vpack.c.b16 %v1837, %v1829
    %v2430 = vpack.c.b16 %v1838, %v1830
    %v2431 = vpack.c.b16 %v1839, %v1831
    %v2432 = vpack.c.b16 %v1840, %v1832
    %v2433 = vpack.c.b16 %v1849, %v1841
    %v2434 = vpack.c.b16 %v1850, %v1842
    %v2435 = vpack.c.b16 %v1851, %v1843
    %v2436 = vpack.c.b16 %v1852, %v1844
    %v2437 = vpack.c.b16 %v1853, %v1845
    %v2438 = vpack.c.b16 %v1854, %v1846
    %v2439 = vpack.c.b16 %v1855, %v1847
    %v2440 = vpack.c.b16 %v1856, %v1848
    %v2441 = vpack.c.b16 %v1865, %v1857
    %v2442 = vpack.c.b16 %v1866, %v1858
    %v2443 = vpack.c.b16 %v1867, %v1859
    %v2444 = vpack.c.b16 %v1868, %v1860
    %v2445 = vpack.c.b16 %v1869, %v1861
    %v2446 = vpack.c.b16 %v1870, %v1862
    %v2447 = vpack.c.b16 %v1871, %v1863
    %v2448 = vpack.c.b16 %v1872, %v1864
    %v2449 = vpack.c.b16 %v1881, %v1873
    %v2450 = vpack.c.b16 %v1882, %v1874
    %v2451 = vpack.c.b16 %v1883, %v1875
    %v2452 = vpack.c.b16 %v1884, %v1876
    %v2453 = vpack.c.b16 %v1885, %v1877
    %v2454 = vpack.c.b16 %v1886, %v1878
    %v2455 = vpack.c.b16 %v1887, %v1879
    %v2456 = vpack.c.b16 %v1888, %v1880
    %v2457 = vpack.c.b16 %v1897, %v1889
    %v2458 = vpack.c.b16 %v1898, %v1890
    %v2459 = vpack.c.b16 %v1899, %v1891
    %v2460 = vpack.c.b16 %v1900, %v1892
    %v2461 = vpack.c.b16 %v1901, %v1893
    %v2462 = vpack.c.b16 %v1902, %v1894
    %v2463 = vpack.c.b16 %v1903, %v1895
    %v2464 = vpack.c.b16 %v1904, %v1896
    %v2465 = vpack.c.b16 %v1913, %v1905
    %v2466 = vpack.c.b16 %v1914, %v1906
    %v2467 = vpack.c.b16 %v1915, %v1907
    %v2468 = vpack.c.b16 %v1916, %v1908
    %v2469 = vpack.c.b16 %v1917, %v1909
    %v2470 = vpack.c.b16 %v1918, %v1910
    %v2471 = vpack.c.b16 %v1919, %v1911
    %v2472 = vpack.c.b16 %v1920, %v1912
    %v2473 = vpack.c.b16 %v1929, %v1921
    %v2474 = vpack.c.b16 %v1930, %v1922
    %v2475 = vpack.c.b16 %v1931, %v1923
    %v2476 = vpack.c.b16 %v1932, %v1924
    %v2477 = vpack.c.b16 %v1933, %v1925
    %v2478 = vpack.c.b16 %v1934, %v1926
    %v2479 = vpack.c.b16 %v1935, %v1927
    %v2480 = vpack.c.b16 %v1936, %v1928
    %v2481 = vpack.c.b16 %v1945, %v1937
    %v2482 = vpack.c.b16 %v1946, %v1938
    %v2483 = vpack.c.b16 %v1947, %v1939
    %v2484 = vpack.c.b16 %v1948, %v1940
    %v2485 = vpack.c.b16 %v1949, %v1941
    %v2486 = vpack.c.b16 %v1950, %v1942
    %v2487 = vpack.c.b16 %v1951, %v1943
    %v2488 = vpack.c.b16 %v1952, %v1944
    %v2489 = vpack.c.b16 %v1961, %v1953
    %v2490 = vpack.c.b16 %v1962, %v1954
    %v2491 = vpack.c.b16 %v1963, %v1955
    %v2492 = vpack.c.b16 %v1964, %v1956
    %v2493 = vpack.c.b16 %v1965, %v1957
    %v2494 = vpack.c.b16 %v1966, %v1958
    %v2495 = vpack.c.b16 %v1967, %v1959
    %v2496 = vpack.c.b16 %v1968, %v1960
    %v2497 = vpack.c.b16 %v1977, %v1969
    %v2498 = vpack.c.b16 %v1978, %v1970
    %v2499 = vpack.c.b16 %v1979, %v1971
    %v2500 = vpack.c.b16 %v1980, %v1972
    %v2501 = vpack.c.b16 %v1981, %v1973
    %v2502 = vpack.c.b16 %v1982, %v1974
    %v2503 = vpack.c.b16 %v1983, %v1975
    %v2504 = vpack.c.b16 %v1984, %v1976
    %v2505 = vpack.c.b16 %v1993, %v1985
    %v2506 = vpack.c.b16 %v1994, %v1986
    %v2507 = vpack.c.b16 %v1995, %v1987
    %v2508 = vpack.c.b16 %v1996, %v1988
    %v2509 = vpack.c.b16 %v1997, %v1989
    %v2510 = vpack.c.b16 %v1998, %v1990
    %v2511 = vpack.c.b16 %v1999, %v1991
    %v2512 = vpack.c.b16 %v2000, %v1992
    %v2513 = vpack.c.b16 %v2009, %v2001
    %v2514 = vpack.c.b16 %v2010, %v2002
    %v2515 = vpack.c.b16 %v2011, %v2003
    %v2516 = vpack.c.b16 %v2012, %v2004
    %v2517 = vpack.c.b16 %v2013, %v2005
    %v2518 = vpack.c.b16 %v2014, %v2006
    %v2519 = vpack.c.b16 %v2015, %v2007
    %v2520 = vpack.c.b16 %v2016, %v2008
    %v2521 = vpack.c.b16 %v2025, %v2017
    %v2522 = vpack.c.b16 %v2026, %v2018
    %v2523 = vpack.c.b16 %v2027, %v2019
    %v2524 = vpack.c.b16 %v2028, %v2020
    %v2525 = vpack.c.b16 %v2029, %v2021
    %v2526 = vpack.c.b16 %v2030, %v2022
    %v2527 = vpack.c.b16 %v2031, %v2023
    %v2528 = vpack.c.b16 %v2032, %v2024
    %v2529 = vpack.c.b16 %v2041, %v2033
    %v2530 = vpack.c.b16 %v2042, %v2034
    %v2531 = vpack.c.b16 %v2043, %v2035
    %v2532 = vpack.c.b16 %v2044, %v2036
    %v2533 = vpack.c.b16 %v2045, %v2037
    %v2534 = vpack.c.b16 %v2046, %v2038
    %v2535 = vpack.c.b16 %v2047, %v2039
    %v2536 = vpack.c.b16 %v2048, %v2040
    %v2537 = vpack.c.b16 %v2057, %v2049
    %v2538 = vpack.c.b16 %v2058, %v2050
    %v2539 = vpack.c.b16 %v2059, %v2051
    %v2540 = vpack.c.b16 %v2060, %v2052
    %v2541 = vpack.c.b16 %v2061, %v2053
    %v2542 = vpack.c.b16 %v2062, %v2054
    %v2543 = vpack.c.b16 %v2063, %v2055
    %v2544 = vpack.c.b16 %v2064, %v2056
    %v2545 = vpack.c.b16 %v2073, %v2065
    %v2546 = vpack.c.b16 %v2074, %v2066
    %v2547 = vpack.c.b16 %v2075, %v2067
    %v2548 = vpack.c.b16 %v2076, %v2068
    %v2549 = vpack.c.b16 %v2077, %v2069
    %v2550 = vpack.c.b16 %v2078, %v2070
    %v2551 = vpack.c.b16 %v2079, %v2071
    %v2552 = vpack.c.b16 %v2080, %v2072
    %v2553 = vpack.c.b16 %v2089, %v2081
    %v2554 = vpack.c.b16 %v2090, %v2082
    %v2555 = vpack.c.b16 %v2091, %v2083
    %v2556 = vpack.c.b16 %v2092, %v2084
    %v2557 = vpack.c.b16 %v2093, %v2085
    %v2558 = vpack.c.b16 %v2094, %v2086
    %v2559 = vpack.c.b16 %v2095, %v2087
    %v2560 = vpack.c.b16 %v2096, %v2088
    %v2561 = vpack.c.b16 %v2105, %v2097
    %v2562 = vpack.c.b16 %v2106, %v2098
    %v2563 = vpack.c.b16 %v2107, %v2099
    %v2564 = vpack.c.b16 %v2108, %v2100
    %v2565 = vpack.c.b16 %v2109, %v2101
    %v2566 = vpack.c.b16 %v2110, %v2102
    %v2567 = vpack.c.b16 %v2111, %v2103
    %v2568 = vpack.c.b16 %v2112, %v2104
    %v2569 = vpack.c.b16 %v2121, %v2113
    %v2570 = vpack.c.b16 %v2122, %v2114
    %v2571 = vpack.c.b16 %v2123, %v2115
    %v2572 = vpack.c.b16 %v2124, %v2116
    %v2573 = vpack.c.b16 %v2125, %v2117
    %v2574 = vpack.c.b16 %v2126, %v2118
    %v2575 = vpack.c.b16 %v2127, %v2119
    %v2576 = vpack.c.b16 %v2128, %v2120
    %3025 = vmatpush.bf16.msra.mxu0 %v2185
    %3026 = vmatpush.bf16.msra.mxu0 %v2177
    %3027 = vmatpush.bf16.msra.mxu0 %v2169
    %3028 = vmatpush.bf16.msra.mxu0 %v2161
    %3029 = vmatpush.bf16.msra.mxu0 %v2153
    %3030 = vmatpush.bf16.msra.mxu0 %v2145
    %3031 = vmatpush.bf16.msra.mxu0 %v2137
    %3032 = vmatpush.bf16.msra.mxu0 %v2129
    %3033 = vmatmul.bf16.gmra.mxu0 %v263
    %v3034 = vpop.f32.mrf.mxu0
    %v3035 = vadd.f32 %v769, %v3034
    %v3036 = vpop.f32.mrf.mxu0
    %v3037 = vadd.f32 %v769, %v3036
    %3038 = vmatmul.bf16.gmra.mxu0 %v270
    %v3039 = vpop.f32.mrf.mxu0
    %v3040 = vadd.f32 %v769, %v3039
    %v3041 = vpop.f32.mrf.mxu0
    %v3042 = vadd.f32 %v769, %v3041
    %3043 = vmatmul.bf16.gmra.mxu0 %v277
    %v3044 = vpop.f32.mrf.mxu0
    %v3045 = vadd.f32 %v769, %v3044
    %v3046 = vpop.f32.mrf.mxu0
    %v3047 = vadd.f32 %v769, %v3046
    %3048 = vmatmul.bf16.gmra.mxu0 %v284
    %v3049 = vpop.f32.mrf.mxu0
    %v3050 = vadd.f32 %v769, %v3049
    %v3051 = vpop.f32.mrf.mxu0
    %v3052 = vadd.f32 %v769, %v3051
    %3053 = vmatmul.bf16.gmra.mxu0 %v291
    %v3054 = vpop.f32.mrf.mxu0
    %v3055 = vadd.f32 %v769, %v3054
    %v3056 = vpop.f32.mrf.mxu0
    %v3057 = vadd.f32 %v769, %v3056
    %3058 = vmatmul.bf16.gmra.mxu0 %v298
    %v3059 = vpop.f32.mrf.mxu0
    %v3060 = vadd.f32 %v769, %v3059
    %v3061 = vpop.f32.mrf.mxu0
    %v3062 = vadd.f32 %v769, %v3061
    %3063 = vmatmul.bf16.gmra.mxu0 %v305
    %v3064 = vpop.f32.mrf.mxu0
    %v3065 = vadd.f32 %v769, %v3064
    %v3066 = vpop.f32.mrf.mxu0
    %v3067 = vadd.f32 %v769, %v3066
    %3068 = vmatmul.bf16.gmra.mxu0 %v312
    %v3069 = vpop.f32.mrf.mxu0
    %v3070 = vadd.f32 %v769, %v3069
    %v3071 = vpop.f32.mrf.mxu0
    %v3072 = vadd.f32 %v769, %v3071
    %3073 = vdwg.mxu0
    %3074 = vmatpush.bf16.msra.mxu0 %v2249
    %3075 = vmatpush.bf16.msra.mxu0 %v2241
    %3076 = vmatpush.bf16.msra.mxu0 %v2233
    %3077 = vmatpush.bf16.msra.mxu0 %v2225
    %3078 = vmatpush.bf16.msra.mxu0 %v2217
    %3079 = vmatpush.bf16.msra.mxu0 %v2209
    %3080 = vmatpush.bf16.msra.mxu0 %v2201
    %3081 = vmatpush.bf16.msra.mxu0 %v2193
    %3082 = vmatmul.bf16.gmra.mxu0 %v264
    %v3083 = vpop.f32.mrf.mxu0
    %v3084 = vadd.f32 %v3035, %v3083
    %v3085 = vpop.f32.mrf.mxu0
    %v3086 = vadd.f32 %v3037, %v3085
    %3087 = vmatmul.bf16.gmra.mxu0 %v271
    %v3088 = vpop.f32.mrf.mxu0
    %v3089 = vadd.f32 %v3040, %v3088
    %v3090 = vpop.f32.mrf.mxu0
    %v3091 = vadd.f32 %v3042, %v3090
    %3092 = vmatmul.bf16.gmra.mxu0 %v278
    %v3093 = vpop.f32.mrf.mxu0
    %v3094 = vadd.f32 %v3045, %v3093
    %v3095 = vpop.f32.mrf.mxu0
    %v3096 = vadd.f32 %v3047, %v3095
    %3097 = vmatmul.bf16.gmra.mxu0 %v285
    %v3098 = vpop.f32.mrf.mxu0
    %v3099 = vadd.f32 %v3050, %v3098
    %v3100 = vpop.f32.mrf.mxu0
    %v3101 = vadd.f32 %v3052, %v3100
    %3102 = vmatmul.bf16.gmra.mxu0 %v292
    %v3103 = vpop.f32.mrf.mxu0
    %v3104 = vadd.f32 %v3055, %v3103
    %v3105 = vpop.f32.mrf.mxu0
    %v3106 = vadd.f32 %v3057, %v3105
    %3107 = vmatmul.bf16.gmra.mxu0 %v299
    %v3108 = vpop.f32.mrf.mxu0
    %v3109 = vadd.f32 %v3060, %v3108
    %v3110 = vpop.f32.mrf.mxu0
    %v3111 = vadd.f32 %v3062, %v3110
    %3112 = vmatmul.bf16.gmra.mxu0 %v306
    %v3113 = vpop.f32.mrf.mxu0
    %v3114 = vadd.f32 %v3065, %v3113
    %v3115 = vpop.f32.mrf.mxu0
    %v3116 = vadd.f32 %v3067, %v3115
    %3117 = vmatmul.bf16.gmra.mxu0 %v313
    %v3118 = vpop.f32.mrf.mxu0
    %v3119 = vadd.f32 %v3070, %v3118
    %v3120 = vpop.f32.mrf.mxu0
    %v3121 = vadd.f32 %v3072, %v3120
    %3122 = vdwg.mxu0
    %3123 = vmatpush.bf16.msra.mxu0 %v2313
    %3124 = vmatpush.bf16.msra.mxu0 %v2305
    %3125 = vmatpush.bf16.msra.mxu0 %v2297
    %3126 = vmatpush.bf16.msra.mxu0 %v2289
    %3127 = vmatpush.bf16.msra.mxu0 %v2281
    %3128 = vmatpush.bf16.msra.mxu0 %v2273
    %3129 = vmatpush.bf16.msra.mxu0 %v2265
    %3130 = vmatpush.bf16.msra.mxu0 %v2257
    %3131 = vmatmul.bf16.gmra.mxu0 %v265
    %v3132 = vpop.f32.mrf.mxu0
    %v3133 = vadd.f32 %v3084, %v3132
    %v3134 = vpop.f32.mrf.mxu0
    %v3135 = vadd.f32 %v3086, %v3134
    %3136 = vmatmul.bf16.gmra.mxu0 %v272
    %v3137 = vpop.f32.mrf.mxu0
    %v3138 = vadd.f32 %v3089, %v3137
    %v3139 = vpop.f32.mrf.mxu0
    %v3140 = vadd.f32 %v3091, %v3139
    %3141 = vmatmul.bf16.gmra.mxu0 %v279
    %v3142 = vpop.f32.mrf.mxu0
    %v3143 = vadd.f32 %v3094, %v3142
    %v3144 = vpop.f32.mrf.mxu0
    %v3145 = vadd.f32 %v3096, %v3144
    %3146 = vmatmul.bf16.gmra.mxu0 %v286
    %v3147 = vpop.f32.mrf.mxu0
    %v3148 = vadd.f32 %v3099, %v3147
    %v3149 = vpop.f32.mrf.mxu0
    %v3150 = vadd.f32 %v3101, %v3149
    %3151 = vmatmul.bf16.gmra.mxu0 %v293
    %v3152 = vpop.f32.mrf.mxu0
    %v3153 = vadd.f32 %v3104, %v3152
    %v3154 = vpop.f32.mrf.mxu0
    %v3155 = vadd.f32 %v3106, %v3154
    %3156 = vmatmul.bf16.gmra.mxu0 %v300
    %v3157 = vpop.f32.mrf.mxu0
    %v3158 = vadd.f32 %v3109, %v3157
    %v3159 = vpop.f32.mrf.mxu0
    %v3160 = vadd.f32 %v3111, %v3159
    %3161 = vmatmul.bf16.gmra.mxu0 %v307
    %v3162 = vpop.f32.mrf.mxu0
    %v3163 = vadd.f32 %v3114, %v3162
    %v3164 = vpop.f32.mrf.mxu0
    %v3165 = vadd.f32 %v3116, %v3164
    %3166 = vmatmul.bf16.gmra.mxu0 %v314
    %v3167 = vpop.f32.mrf.mxu0
    %v3168 = vadd.f32 %v3119, %v3167
    %v3169 = vpop.f32.mrf.mxu0
    %v3170 = vadd.f32 %v3121, %v3169
    %3171 = vdwg.mxu0
    %3172 = vmatpush.bf16.msra.mxu0 %v2377
    %3173 = vmatpush.bf16.msra.mxu0 %v2369
    %3174 = vmatpush.bf16.msra.mxu0 %v2361
    %3175 = vmatpush.bf16.msra.mxu0 %v2353
    %3176 = vmatpush.bf16.msra.mxu0 %v2345
    %3177 = vmatpush.bf16.msra.mxu0 %v2337
    %3178 = vmatpush.bf16.msra.mxu0 %v2329
    %3179 = vmatpush.bf16.msra.mxu0 %v2321
    %3180 = vmatmul.bf16.gmra.mxu0 %v266
    %v3181 = vpop.f32.mrf.mxu0
    %v3182 = vadd.f32 %v3133, %v3181
    %v3183 = vpop.f32.mrf.mxu0
    %v3184 = vadd.f32 %v3135, %v3183
    %3185 = vmatmul.bf16.gmra.mxu0 %v273
    %v3186 = vpop.f32.mrf.mxu0
    %v3187 = vadd.f32 %v3138, %v3186
    %v3188 = vpop.f32.mrf.mxu0
    %v3189 = vadd.f32 %v3140, %v3188
    %3190 = vmatmul.bf16.gmra.mxu0 %v280
    %v3191 = vpop.f32.mrf.mxu0
    %v3192 = vadd.f32 %v3143, %v3191
    %v3193 = vpop.f32.mrf.mxu0
    %v3194 = vadd.f32 %v3145, %v3193
    %3195 = vmatmul.bf16.gmra.mxu0 %v287
    %v3196 = vpop.f32.mrf.mxu0
    %v3197 = vadd.f32 %v3148, %v3196
    %v3198 = vpop.f32.mrf.mxu0
    %v3199 = vadd.f32 %v3150, %v3198
    %3200 = vmatmul.bf16.gmra.mxu0 %v294
    %v3201 = vpop.f32.mrf.mxu0
    %v3202 = vadd.f32 %v3153, %v3201
    %v3203 = vpop.f32.mrf.mxu0
    %v3204 = vadd.f32 %v3155, %v3203
    %3205 = vmatmul.bf16.gmra.mxu0 %v301
    %v3206 = vpop.f32.mrf.mxu0
    %v3207 = vadd.f32 %v3158, %v3206
    %v3208 = vpop.f32.mrf.mxu0
    %v3209 = vadd.f32 %v3160, %v3208
    %3210 = vmatmul.bf16.gmra.mxu0 %v308
    %v3211 = vpop.f32.mrf.mxu0
    %v3212 = vadd.f32 %v3163, %v3211
    %v3213 = vpop.f32.mrf.mxu0
    %v3214 = vadd.f32 %v3165, %v3213
    %3215 = vmatmul.bf16.gmra.mxu0 %v315
    %v3216 = vpop.f32.mrf.mxu0
    %v3217 = vadd.f32 %v3168, %v3216
    %v3218 = vpop.f32.mrf.mxu0
    %v3219 = vadd.f32 %v3170, %v3218
    %3220 = vdwg.mxu0
    %3221 = vmatpush.bf16.msra.mxu0 %v2441
    %3222 = vmatpush.bf16.msra.mxu0 %v2433
    %3223 = vmatpush.bf16.msra.mxu0 %v2425
    %3224 = vmatpush.bf16.msra.mxu0 %v2417
    %3225 = vmatpush.bf16.msra.mxu0 %v2409
    %3226 = vmatpush.bf16.msra.mxu0 %v2401
    %3227 = vmatpush.bf16.msra.mxu0 %v2393
    %3228 = vmatpush.bf16.msra.mxu0 %v2385
    %3229 = vmatmul.bf16.gmra.mxu0 %v267
    %v3230 = vpop.f32.mrf.mxu0
    %v3231 = vadd.f32 %v3182, %v3230
    %v3232 = vpop.f32.mrf.mxu0
    %v3233 = vadd.f32 %v3184, %v3232
    %3234 = vmatmul.bf16.gmra.mxu0 %v274
    %v3235 = vpop.f32.mrf.mxu0
    %v3236 = vadd.f32 %v3187, %v3235
    %v3237 = vpop.f32.mrf.mxu0
    %v3238 = vadd.f32 %v3189, %v3237
    %3239 = vmatmul.bf16.gmra.mxu0 %v281
    %v3240 = vpop.f32.mrf.mxu0
    %v3241 = vadd.f32 %v3192, %v3240
    %v3242 = vpop.f32.mrf.mxu0
    %v3243 = vadd.f32 %v3194, %v3242
    %3244 = vmatmul.bf16.gmra.mxu0 %v288
    %v3245 = vpop.f32.mrf.mxu0
    %v3246 = vadd.f32 %v3197, %v3245
    %v3247 = vpop.f32.mrf.mxu0
    %v3248 = vadd.f32 %v3199, %v3247
    %3249 = vmatmul.bf16.gmra.mxu0 %v295
    %v3250 = vpop.f32.mrf.mxu0
    %v3251 = vadd.f32 %v3202, %v3250
    %v3252 = vpop.f32.mrf.mxu0
    %v3253 = vadd.f32 %v3204, %v3252
    %3254 = vmatmul.bf16.gmra.mxu0 %v302
    %v3255 = vpop.f32.mrf.mxu0
    %v3256 = vadd.f32 %v3207, %v3255
    %v3257 = vpop.f32.mrf.mxu0
    %v3258 = vadd.f32 %v3209, %v3257
    %3259 = vmatmul.bf16.gmra.mxu0 %v309
    %v3260 = vpop.f32.mrf.mxu0
    %v3261 = vadd.f32 %v3212, %v3260
    %v3262 = vpop.f32.mrf.mxu0
    %v3263 = vadd.f32 %v3214, %v3262
    %3264 = vmatmul.bf16.gmra.mxu0 %v316
    %v3265 = vpop.f32.mrf.mxu0
    %v3266 = vadd.f32 %v3217, %v3265
    %v3267 = vpop.f32.mrf.mxu0
    %v3268 = vadd.f32 %v3219, %v3267
    %3269 = vdwg.mxu0
    %3270 = vmatpush.bf16.msra.mxu0 %v2505
    %3271 = vmatpush.bf16.msra.mxu0 %v2497
    %3272 = vmatpush.bf16.msra.mxu0 %v2489
    %3273 = vmatpush.bf16.msra.mxu0 %v2481
    %3274 = vmatpush.bf16.msra.mxu0 %v2473
    %3275 = vmatpush.bf16.msra.mxu0 %v2465
    %3276 = vmatpush.bf16.msra.mxu0 %v2457
    %3277 = vmatpush.bf16.msra.mxu0 %v2449
    %3278 = vmatmul.bf16.gmra.mxu0 %v268
    %v3279 = vpop.f32.mrf.mxu0
    %v3280 = vadd.f32 %v3231, %v3279
    %v3281 = vpop.f32.mrf.mxu0
    %v3282 = vadd.f32 %v3233, %v3281
    %3283 = vmatmul.bf16.gmra.mxu0 %v275
    %v3284 = vpop.f32.mrf.mxu0
    %v3285 = vadd.f32 %v3236, %v3284
    %v3286 = vpop.f32.mrf.mxu0
    %v3287 = vadd.f32 %v3238, %v3286
    %3288 = vmatmul.bf16.gmra.mxu0 %v282
    %v3289 = vpop.f32.mrf.mxu0
    %v3290 = vadd.f32 %v3241, %v3289
    %v3291 = vpop.f32.mrf.mxu0
    %v3292 = vadd.f32 %v3243, %v3291
    %3293 = vmatmul.bf16.gmra.mxu0 %v289
    %v3294 = vpop.f32.mrf.mxu0
    %v3295 = vadd.f32 %v3246, %v3294
    %v3296 = vpop.f32.mrf.mxu0
    %v3297 = vadd.f32 %v3248, %v3296
    %3298 = vmatmul.bf16.gmra.mxu0 %v296
    %v3299 = vpop.f32.mrf.mxu0
    %v3300 = vadd.f32 %v3251, %v3299
    %v3301 = vpop.f32.mrf.mxu0
    %v3302 = vadd.f32 %v3253, %v3301
    %3303 = vmatmul.bf16.gmra.mxu0 %v303
    %v3304 = vpop.f32.mrf.mxu0
    %v3305 = vadd.f32 %v3256, %v3304
    %v3306 = vpop.f32.mrf.mxu0
    %v3307 = vadd.f32 %v3258, %v3306
    %3308 = vmatmul.bf16.gmra.mxu0 %v310
    %v3309 = vpop.f32.mrf.mxu0
    %v3310 = vadd.f32 %v3261, %v3309
    %v3311 = vpop.f32.mrf.mxu0
    %v3312 = vadd.f32 %v3263, %v3311
    %3313 = vmatmul.bf16.gmra.mxu0 %v317
    %v3314 = vpop.f32.mrf.mxu0
    %v3315 = vadd.f32 %v3266, %v3314
    %v3316 = vpop.f32.mrf.mxu0
    %v3317 = vadd.f32 %v3268, %v3316
    %3318 = vdwg.mxu0
    %3319 = vmatpush.bf16.msra.mxu0 %v2569
    %3320 = vmatpush.bf16.msra.mxu0 %v2561
    %3321 = vmatpush.bf16.msra.mxu0 %v2553
    %3322 = vmatpush.bf16.msra.mxu0 %v2545
    %3323 = vmatpush.bf16.msra.mxu0 %v2537
    %3324 = vmatpush.bf16.msra.mxu0 %v2529
    %3325 = vmatpush.bf16.msra.mxu0 %v2521
    %3326 = vmatpush.bf16.msra.mxu0 %v2513
    %3327 = vmatmul.bf16.gmra.mxu0 %v269
    %v3328 = vpop.f32.mrf.mxu0
    %v3329 = vadd.f32 %v3280, %v3328
    %v3330 = vpop.f32.mrf.mxu0
    %v3331 = vadd.f32 %v3282, %v3330
    %3332 = vmatmul.bf16.gmra.mxu0 %v276
    %v3333 = vpop.f32.mrf.mxu0
    %v3334 = vadd.f32 %v3285, %v3333
    %v3335 = vpop.f32.mrf.mxu0
    %v3336 = vadd.f32 %v3287, %v3335
    %3337 = vmatmul.bf16.gmra.mxu0 %v283
    %v3338 = vpop.f32.mrf.mxu0
    %v3339 = vadd.f32 %v3290, %v3338
    %v3340 = vpop.f32.mrf.mxu0
    %v3341 = vadd.f32 %v3292, %v3340
    %3342 = vmatmul.bf16.gmra.mxu0 %v290
    %v3343 = vpop.f32.mrf.mxu0
    %v3344 = vadd.f32 %v3295, %v3343
    %v3345 = vpop.f32.mrf.mxu0
    %v3346 = vadd.f32 %v3297, %v3345
    %3347 = vmatmul.bf16.gmra.mxu0 %v297
    %v3348 = vpop.f32.mrf.mxu0
    %v3349 = vadd.f32 %v3300, %v3348
    %v3350 = vpop.f32.mrf.mxu0
    %v3351 = vadd.f32 %v3302, %v3350
    %3352 = vmatmul.bf16.gmra.mxu0 %v304
    %v3353 = vpop.f32.mrf.mxu0
    %v3354 = vadd.f32 %v3305, %v3353
    %v3355 = vpop.f32.mrf.mxu0
    %v3356 = vadd.f32 %v3307, %v3355
    %3357 = vmatmul.bf16.gmra.mxu0 %v311
    %v3358 = vpop.f32.mrf.mxu0
    %v3359 = vadd.f32 %v3310, %v3358
    %v3360 = vpop.f32.mrf.mxu0
    %v3361 = vadd.f32 %v3312, %v3360
    %3362 = vmatmul.bf16.gmra.mxu0 %v318
    %v3363 = vpop.f32.mrf.mxu0
    %v3364 = vadd.f32 %v3315, %v3363
    %v3365 = vpop.f32.mrf.mxu0
    %v3366 = vadd.f32 %v3317, %v3365
    %3367 = vdwg.mxu0
    %3368 = vmatpush.bf16.msra.mxu0 %v2186
    %3369 = vmatpush.bf16.msra.mxu0 %v2178
    %3370 = vmatpush.bf16.msra.mxu0 %v2170
    %3371 = vmatpush.bf16.msra.mxu0 %v2162
    %3372 = vmatpush.bf16.msra.mxu0 %v2154
    %3373 = vmatpush.bf16.msra.mxu0 %v2146
    %3374 = vmatpush.bf16.msra.mxu0 %v2138
    %3375 = vmatpush.bf16.msra.mxu0 %v2130
    %3376 = vmatmul.bf16.gmra.mxu0 %v263
    %v3377 = vpop.f32.mrf.mxu0
    %v3378 = vadd.f32 %v770, %v3377
    %v3379 = vpop.f32.mrf.mxu0
    %v3380 = vadd.f32 %v770, %v3379
    %3381 = vmatmul.bf16.gmra.mxu0 %v270
    %v3382 = vpop.f32.mrf.mxu0
    %v3383 = vadd.f32 %v770, %v3382
    %v3384 = vpop.f32.mrf.mxu0
    %v3385 = vadd.f32 %v770, %v3384
    %3386 = vmatmul.bf16.gmra.mxu0 %v277
    %v3387 = vpop.f32.mrf.mxu0
    %v3388 = vadd.f32 %v770, %v3387
    %v3389 = vpop.f32.mrf.mxu0
    %v3390 = vadd.f32 %v770, %v3389
    %3391 = vmatmul.bf16.gmra.mxu0 %v284
    %v3392 = vpop.f32.mrf.mxu0
    %v3393 = vadd.f32 %v770, %v3392
    %v3394 = vpop.f32.mrf.mxu0
    %v3395 = vadd.f32 %v770, %v3394
    %3396 = vmatmul.bf16.gmra.mxu0 %v291
    %v3397 = vpop.f32.mrf.mxu0
    %v3398 = vadd.f32 %v770, %v3397
    %v3399 = vpop.f32.mrf.mxu0
    %v3400 = vadd.f32 %v770, %v3399
    %3401 = vmatmul.bf16.gmra.mxu0 %v298
    %v3402 = vpop.f32.mrf.mxu0
    %v3403 = vadd.f32 %v770, %v3402
    %v3404 = vpop.f32.mrf.mxu0
    %v3405 = vadd.f32 %v770, %v3404
    %3406 = vmatmul.bf16.gmra.mxu0 %v305
    %v3407 = vpop.f32.mrf.mxu0
    %v3408 = vadd.f32 %v770, %v3407
    %v3409 = vpop.f32.mrf.mxu0
    %v3410 = vadd.f32 %v770, %v3409
    %3411 = vmatmul.bf16.gmra.mxu0 %v312
    %v3412 = vpop.f32.mrf.mxu0
    %v3413 = vadd.f32 %v770, %v3412
    %v3414 = vpop.f32.mrf.mxu0
    %v3415 = vadd.f32 %v770, %v3414
    %3416 = vdwg.mxu0
    %3417 = vmatpush.bf16.msra.mxu0 %v2250
    %3418 = vmatpush.bf16.msra.mxu0 %v2242
    %3419 = vmatpush.bf16.msra.mxu0 %v2234
    %3420 = vmatpush.bf16.msra.mxu0 %v2226
    %3421 = vmatpush.bf16.msra.mxu0 %v2218
    %3422 = vmatpush.bf16.msra.mxu0 %v2210
    %3423 = vmatpush.bf16.msra.mxu0 %v2202
    %3424 = vmatpush.bf16.msra.mxu0 %v2194
    %3425 = vmatmul.bf16.gmra.mxu0 %v264
    %v3426 = vpop.f32.mrf.mxu0
    %v3427 = vadd.f32 %v3378, %v3426
    %v3428 = vpop.f32.mrf.mxu0
    %v3429 = vadd.f32 %v3380, %v3428
    %3430 = vmatmul.bf16.gmra.mxu0 %v271
    %v3431 = vpop.f32.mrf.mxu0
    %v3432 = vadd.f32 %v3383, %v3431
    %v3433 = vpop.f32.mrf.mxu0
    %v3434 = vadd.f32 %v3385, %v3433
    %3435 = vmatmul.bf16.gmra.mxu0 %v278
    %v3436 = vpop.f32.mrf.mxu0
    %v3437 = vadd.f32 %v3388, %v3436
    %v3438 = vpop.f32.mrf.mxu0
    %v3439 = vadd.f32 %v3390, %v3438
    %3440 = vmatmul.bf16.gmra.mxu0 %v285
    %v3441 = vpop.f32.mrf.mxu0
    %v3442 = vadd.f32 %v3393, %v3441
    %v3443 = vpop.f32.mrf.mxu0
    %v3444 = vadd.f32 %v3395, %v3443
    %3445 = vmatmul.bf16.gmra.mxu0 %v292
    %v3446 = vpop.f32.mrf.mxu0
    %v3447 = vadd.f32 %v3398, %v3446
    %v3448 = vpop.f32.mrf.mxu0
    %v3449 = vadd.f32 %v3400, %v3448
    %3450 = vmatmul.bf16.gmra.mxu0 %v299
    %v3451 = vpop.f32.mrf.mxu0
    %v3452 = vadd.f32 %v3403, %v3451
    %v3453 = vpop.f32.mrf.mxu0
    %v3454 = vadd.f32 %v3405, %v3453
    %3455 = vmatmul.bf16.gmra.mxu0 %v306
    %v3456 = vpop.f32.mrf.mxu0
    %v3457 = vadd.f32 %v3408, %v3456
    %v3458 = vpop.f32.mrf.mxu0
    %v3459 = vadd.f32 %v3410, %v3458
    %3460 = vmatmul.bf16.gmra.mxu0 %v313
    %v3461 = vpop.f32.mrf.mxu0
    %v3462 = vadd.f32 %v3413, %v3461
    %v3463 = vpop.f32.mrf.mxu0
    %v3464 = vadd.f32 %v3415, %v3463
    %3465 = vdwg.mxu0
    %3466 = vmatpush.bf16.msra.mxu0 %v2314
    %3467 = vmatpush.bf16.msra.mxu0 %v2306
    %3468 = vmatpush.bf16.msra.mxu0 %v2298
    %3469 = vmatpush.bf16.msra.mxu0 %v2290
    %3470 = vmatpush.bf16.msra.mxu0 %v2282
    %3471 = vmatpush.bf16.msra.mxu0 %v2274
    %3472 = vmatpush.bf16.msra.mxu0 %v2266
    %3473 = vmatpush.bf16.msra.mxu0 %v2258
    %3474 = vmatmul.bf16.gmra.mxu0 %v265
    %v3475 = vpop.f32.mrf.mxu0
    %v3476 = vadd.f32 %v3427, %v3475
    %v3477 = vpop.f32.mrf.mxu0
    %v3478 = vadd.f32 %v3429, %v3477
    %3479 = vmatmul.bf16.gmra.mxu0 %v272
    %v3480 = vpop.f32.mrf.mxu0
    %v3481 = vadd.f32 %v3432, %v3480
    %v3482 = vpop.f32.mrf.mxu0
    %v3483 = vadd.f32 %v3434, %v3482
    %3484 = vmatmul.bf16.gmra.mxu0 %v279
    %v3485 = vpop.f32.mrf.mxu0
    %v3486 = vadd.f32 %v3437, %v3485
    %v3487 = vpop.f32.mrf.mxu0
    %v3488 = vadd.f32 %v3439, %v3487
    %3489 = vmatmul.bf16.gmra.mxu0 %v286
    %v3490 = vpop.f32.mrf.mxu0
    %v3491 = vadd.f32 %v3442, %v3490
    %v3492 = vpop.f32.mrf.mxu0
    %v3493 = vadd.f32 %v3444, %v3492
    %3494 = vmatmul.bf16.gmra.mxu0 %v293
    %v3495 = vpop.f32.mrf.mxu0
    %v3496 = vadd.f32 %v3447, %v3495
    %v3497 = vpop.f32.mrf.mxu0
    %v3498 = vadd.f32 %v3449, %v3497
    %3499 = vmatmul.bf16.gmra.mxu0 %v300
    %v3500 = vpop.f32.mrf.mxu0
    %v3501 = vadd.f32 %v3452, %v3500
    %v3502 = vpop.f32.mrf.mxu0
    %v3503 = vadd.f32 %v3454, %v3502
    %3504 = vmatmul.bf16.gmra.mxu0 %v307
    %v3505 = vpop.f32.mrf.mxu0
    %v3506 = vadd.f32 %v3457, %v3505
    %v3507 = vpop.f32.mrf.mxu0
    %v3508 = vadd.f32 %v3459, %v3507
    %3509 = vmatmul.bf16.gmra.mxu0 %v314
    %v3510 = vpop.f32.mrf.mxu0
    %v3511 = vadd.f32 %v3462, %v3510
    %v3512 = vpop.f32.mrf.mxu0
    %v3513 = vadd.f32 %v3464, %v3512
    %3514 = vdwg.mxu0
    %3515 = vmatpush.bf16.msra.mxu0 %v2378
    %3516 = vmatpush.bf16.msra.mxu0 %v2370
    %3517 = vmatpush.bf16.msra.mxu0 %v2362
    %3518 = vmatpush.bf16.msra.mxu0 %v2354
    %3519 = vmatpush.bf16.msra.mxu0 %v2346
    %3520 = vmatpush.bf16.msra.mxu0 %v2338
    %3521 = vmatpush.bf16.msra.mxu0 %v2330
    %3522 = vmatpush.bf16.msra.mxu0 %v2322
    %3523 = vmatmul.bf16.gmra.mxu0 %v266
    %v3524 = vpop.f32.mrf.mxu0
    %v3525 = vadd.f32 %v3476, %v3524
    %v3526 = vpop.f32.mrf.mxu0
    %v3527 = vadd.f32 %v3478, %v3526
    %3528 = vmatmul.bf16.gmra.mxu0 %v273
    %v3529 = vpop.f32.mrf.mxu0
    %v3530 = vadd.f32 %v3481, %v3529
    %v3531 = vpop.f32.mrf.mxu0
    %v3532 = vadd.f32 %v3483, %v3531
    %3533 = vmatmul.bf16.gmra.mxu0 %v280
    %v3534 = vpop.f32.mrf.mxu0
    %v3535 = vadd.f32 %v3486, %v3534
    %v3536 = vpop.f32.mrf.mxu0
    %v3537 = vadd.f32 %v3488, %v3536
    %3538 = vmatmul.bf16.gmra.mxu0 %v287
    %v3539 = vpop.f32.mrf.mxu0
    %v3540 = vadd.f32 %v3491, %v3539
    %v3541 = vpop.f32.mrf.mxu0
    %v3542 = vadd.f32 %v3493, %v3541
    %3543 = vmatmul.bf16.gmra.mxu0 %v294
    %v3544 = vpop.f32.mrf.mxu0
    %v3545 = vadd.f32 %v3496, %v3544
    %v3546 = vpop.f32.mrf.mxu0
    %v3547 = vadd.f32 %v3498, %v3546
    %3548 = vmatmul.bf16.gmra.mxu0 %v301
    %v3549 = vpop.f32.mrf.mxu0
    %v3550 = vadd.f32 %v3501, %v3549
    %v3551 = vpop.f32.mrf.mxu0
    %v3552 = vadd.f32 %v3503, %v3551
    %3553 = vmatmul.bf16.gmra.mxu0 %v308
    %v3554 = vpop.f32.mrf.mxu0
    %v3555 = vadd.f32 %v3506, %v3554
    %v3556 = vpop.f32.mrf.mxu0
    %v3557 = vadd.f32 %v3508, %v3556
    %3558 = vmatmul.bf16.gmra.mxu0 %v315
    %v3559 = vpop.f32.mrf.mxu0
    %v3560 = vadd.f32 %v3511, %v3559
    %v3561 = vpop.f32.mrf.mxu0
    %v3562 = vadd.f32 %v3513, %v3561
    %3563 = vdwg.mxu0
    %3564 = vmatpush.bf16.msra.mxu0 %v2442
    %3565 = vmatpush.bf16.msra.mxu0 %v2434
    %3566 = vmatpush.bf16.msra.mxu0 %v2426
    %3567 = vmatpush.bf16.msra.mxu0 %v2418
    %3568 = vmatpush.bf16.msra.mxu0 %v2410
    %3569 = vmatpush.bf16.msra.mxu0 %v2402
    %3570 = vmatpush.bf16.msra.mxu0 %v2394
    %3571 = vmatpush.bf16.msra.mxu0 %v2386
    %3572 = vmatmul.bf16.gmra.mxu0 %v267
    %v3573 = vpop.f32.mrf.mxu0
    %v3574 = vadd.f32 %v3525, %v3573
    %v3575 = vpop.f32.mrf.mxu0
    %v3576 = vadd.f32 %v3527, %v3575
    %3577 = vmatmul.bf16.gmra.mxu0 %v274
    %v3578 = vpop.f32.mrf.mxu0
    %v3579 = vadd.f32 %v3530, %v3578
    %v3580 = vpop.f32.mrf.mxu0
    %v3581 = vadd.f32 %v3532, %v3580
    %3582 = vmatmul.bf16.gmra.mxu0 %v281
    %v3583 = vpop.f32.mrf.mxu0
    %v3584 = vadd.f32 %v3535, %v3583
    %v3585 = vpop.f32.mrf.mxu0
    %v3586 = vadd.f32 %v3537, %v3585
    %3587 = vmatmul.bf16.gmra.mxu0 %v288
    %v3588 = vpop.f32.mrf.mxu0
    %v3589 = vadd.f32 %v3540, %v3588
    %v3590 = vpop.f32.mrf.mxu0
    %v3591 = vadd.f32 %v3542, %v3590
    %3592 = vmatmul.bf16.gmra.mxu0 %v295
    %v3593 = vpop.f32.mrf.mxu0
    %v3594 = vadd.f32 %v3545, %v3593
    %v3595 = vpop.f32.mrf.mxu0
    %v3596 = vadd.f32 %v3547, %v3595
    %3597 = vmatmul.bf16.gmra.mxu0 %v302
    %v3598 = vpop.f32.mrf.mxu0
    %v3599 = vadd.f32 %v3550, %v3598
    %v3600 = vpop.f32.mrf.mxu0
    %v3601 = vadd.f32 %v3552, %v3600
    %3602 = vmatmul.bf16.gmra.mxu0 %v309
    %v3603 = vpop.f32.mrf.mxu0
    %v3604 = vadd.f32 %v3555, %v3603
    %v3605 = vpop.f32.mrf.mxu0
    %v3606 = vadd.f32 %v3557, %v3605
    %3607 = vmatmul.bf16.gmra.mxu0 %v316
    %v3608 = vpop.f32.mrf.mxu0
    %v3609 = vadd.f32 %v3560, %v3608
    %v3610 = vpop.f32.mrf.mxu0
    %v3611 = vadd.f32 %v3562, %v3610
    %3612 = vdwg.mxu0
    %3613 = vmatpush.bf16.msra.mxu0 %v2506
    %3614 = vmatpush.bf16.msra.mxu0 %v2498
    %3615 = vmatpush.bf16.msra.mxu0 %v2490
    %3616 = vmatpush.bf16.msra.mxu0 %v2482
    %3617 = vmatpush.bf16.msra.mxu0 %v2474
    %3618 = vmatpush.bf16.msra.mxu0 %v2466
    %3619 = vmatpush.bf16.msra.mxu0 %v2458
    %3620 = vmatpush.bf16.msra.mxu0 %v2450
    %3621 = vmatmul.bf16.gmra.mxu0 %v268
    %v3622 = vpop.f32.mrf.mxu0
    %v3623 = vadd.f32 %v3574, %v3622
    %v3624 = vpop.f32.mrf.mxu0
    %v3625 = vadd.f32 %v3576, %v3624
    %3626 = vmatmul.bf16.gmra.mxu0 %v275
    %v3627 = vpop.f32.mrf.mxu0
    %v3628 = vadd.f32 %v3579, %v3627
    %v3629 = vpop.f32.mrf.mxu0
    %v3630 = vadd.f32 %v3581, %v3629
    %3631 = vmatmul.bf16.gmra.mxu0 %v282
    %v3632 = vpop.f32.mrf.mxu0
    %v3633 = vadd.f32 %v3584, %v3632
    %v3634 = vpop.f32.mrf.mxu0
    %v3635 = vadd.f32 %v3586, %v3634
    %3636 = vmatmul.bf16.gmra.mxu0 %v289
    %v3637 = vpop.f32.mrf.mxu0
    %v3638 = vadd.f32 %v3589, %v3637
    %v3639 = vpop.f32.mrf.mxu0
    %v3640 = vadd.f32 %v3591, %v3639
    %3641 = vmatmul.bf16.gmra.mxu0 %v296
    %v3642 = vpop.f32.mrf.mxu0
    %v3643 = vadd.f32 %v3594, %v3642
    %v3644 = vpop.f32.mrf.mxu0
    %v3645 = vadd.f32 %v3596, %v3644
    %3646 = vmatmul.bf16.gmra.mxu0 %v303
    %v3647 = vpop.f32.mrf.mxu0
    %v3648 = vadd.f32 %v3599, %v3647
    %v3649 = vpop.f32.mrf.mxu0
    %v3650 = vadd.f32 %v3601, %v3649
    %3651 = vmatmul.bf16.gmra.mxu0 %v310
    %v3652 = vpop.f32.mrf.mxu0
    %v3653 = vadd.f32 %v3604, %v3652
    %v3654 = vpop.f32.mrf.mxu0
    %v3655 = vadd.f32 %v3606, %v3654
    %3656 = vmatmul.bf16.gmra.mxu0 %v317
    %v3657 = vpop.f32.mrf.mxu0
    %v3658 = vadd.f32 %v3609, %v3657
    %v3659 = vpop.f32.mrf.mxu0
    %v3660 = vadd.f32 %v3611, %v3659
    %3661 = vdwg.mxu0
    %3662 = vmatpush.bf16.msra.mxu0 %v2570
    %3663 = vmatpush.bf16.msra.mxu0 %v2562
    %3664 = vmatpush.bf16.msra.mxu0 %v2554
    %3665 = vmatpush.bf16.msra.mxu0 %v2546
    %3666 = vmatpush.bf16.msra.mxu0 %v2538
    %3667 = vmatpush.bf16.msra.mxu0 %v2530
    %3668 = vmatpush.bf16.msra.mxu0 %v2522
    %3669 = vmatpush.bf16.msra.mxu0 %v2514
    %3670 = vmatmul.bf16.gmra.mxu0 %v269
    %v3671 = vpop.f32.mrf.mxu0
    %v3672 = vadd.f32 %v3623, %v3671
    %v3673 = vpop.f32.mrf.mxu0
    %v3674 = vadd.f32 %v3625, %v3673
    %3675 = vmatmul.bf16.gmra.mxu0 %v276
    %v3676 = vpop.f32.mrf.mxu0
    %v3677 = vadd.f32 %v3628, %v3676
    %v3678 = vpop.f32.mrf.mxu0
    %v3679 = vadd.f32 %v3630, %v3678
    %3680 = vmatmul.bf16.gmra.mxu0 %v283
    %v3681 = vpop.f32.mrf.mxu0
    %v3682 = vadd.f32 %v3633, %v3681
    %v3683 = vpop.f32.mrf.mxu0
    %v3684 = vadd.f32 %v3635, %v3683
    %3685 = vmatmul.bf16.gmra.mxu0 %v290
    %v3686 = vpop.f32.mrf.mxu0
    %v3687 = vadd.f32 %v3638, %v3686
    %v3688 = vpop.f32.mrf.mxu0
    %v3689 = vadd.f32 %v3640, %v3688
    %3690 = vmatmul.bf16.gmra.mxu0 %v297
    %v3691 = vpop.f32.mrf.mxu0
    %v3692 = vadd.f32 %v3643, %v3691
    %v3693 = vpop.f32.mrf.mxu0
    %v3694 = vadd.f32 %v3645, %v3693
    %3695 = vmatmul.bf16.gmra.mxu0 %v304
    %v3696 = vpop.f32.mrf.mxu0
    %v3697 = vadd.f32 %v3648, %v3696
    %v3698 = vpop.f32.mrf.mxu0
    %v3699 = vadd.f32 %v3650, %v3698
    %3700 = vmatmul.bf16.gmra.mxu0 %v311
    %v3701 = vpop.f32.mrf.mxu0
    %v3702 = vadd.f32 %v3653, %v3701
    %v3703 = vpop.f32.mrf.mxu0
    %v3704 = vadd.f32 %v3655, %v3703
    %3705 = vmatmul.bf16.gmra.mxu0 %v318
    %v3706 = vpop.f32.mrf.mxu0
    %v3707 = vadd.f32 %v3658, %v3706
    %v3708 = vpop.f32.mrf.mxu0
    %v3709 = vadd.f32 %v3660, %v3708
    %3710 = vdwg.mxu0
    %3711 = vmatpush.bf16.msra.mxu0 %v2187
    %3712 = vmatpush.bf16.msra.mxu0 %v2179
    %3713 = vmatpush.bf16.msra.mxu0 %v2171
    %3714 = vmatpush.bf16.msra.mxu0 %v2163
    %3715 = vmatpush.bf16.msra.mxu0 %v2155
    %3716 = vmatpush.bf16.msra.mxu0 %v2147
    %3717 = vmatpush.bf16.msra.mxu0 %v2139
    %3718 = vmatpush.bf16.msra.mxu0 %v2131
    %3719 = vmatmul.bf16.gmra.mxu0 %v263
    %v3720 = vpop.f32.mrf.mxu0
    %v3721 = vadd.f32 %v771, %v3720
    %v3722 = vpop.f32.mrf.mxu0
    %v3723 = vadd.f32 %v771, %v3722
    %3724 = vmatmul.bf16.gmra.mxu0 %v270
    %v3725 = vpop.f32.mrf.mxu0
    %v3726 = vadd.f32 %v771, %v3725
    %v3727 = vpop.f32.mrf.mxu0
    %v3728 = vadd.f32 %v771, %v3727
    %3729 = vmatmul.bf16.gmra.mxu0 %v277
    %v3730 = vpop.f32.mrf.mxu0
    %v3731 = vadd.f32 %v771, %v3730
    %v3732 = vpop.f32.mrf.mxu0
    %v3733 = vadd.f32 %v771, %v3732
    %3734 = vmatmul.bf16.gmra.mxu0 %v284
    %v3735 = vpop.f32.mrf.mxu0
    %v3736 = vadd.f32 %v771, %v3735
    %v3737 = vpop.f32.mrf.mxu0
    %v3738 = vadd.f32 %v771, %v3737
    %3739 = vmatmul.bf16.gmra.mxu0 %v291
    %v3740 = vpop.f32.mrf.mxu0
    %v3741 = vadd.f32 %v771, %v3740
    %v3742 = vpop.f32.mrf.mxu0
    %v3743 = vadd.f32 %v771, %v3742
    %3744 = vmatmul.bf16.gmra.mxu0 %v298
    %v3745 = vpop.f32.mrf.mxu0
    %v3746 = vadd.f32 %v771, %v3745
    %v3747 = vpop.f32.mrf.mxu0
    %v3748 = vadd.f32 %v771, %v3747
    %3749 = vmatmul.bf16.gmra.mxu0 %v305
    %v3750 = vpop.f32.mrf.mxu0
    %v3751 = vadd.f32 %v771, %v3750
    %v3752 = vpop.f32.mrf.mxu0
    %v3753 = vadd.f32 %v771, %v3752
    %3754 = vmatmul.bf16.gmra.mxu0 %v312
    %v3755 = vpop.f32.mrf.mxu0
    %v3756 = vadd.f32 %v771, %v3755
    %v3757 = vpop.f32.mrf.mxu0
    %v3758 = vadd.f32 %v771, %v3757
    %3759 = vdwg.mxu0
    %3760 = vmatpush.bf16.msra.mxu0 %v2251
    %3761 = vmatpush.bf16.msra.mxu0 %v2243
    %3762 = vmatpush.bf16.msra.mxu0 %v2235
    %3763 = vmatpush.bf16.msra.mxu0 %v2227
    %3764 = vmatpush.bf16.msra.mxu0 %v2219
    %3765 = vmatpush.bf16.msra.mxu0 %v2211
    %3766 = vmatpush.bf16.msra.mxu0 %v2203
    %3767 = vmatpush.bf16.msra.mxu0 %v2195
    %3768 = vmatmul.bf16.gmra.mxu0 %v264
    %v3769 = vpop.f32.mrf.mxu0
    %v3770 = vadd.f32 %v3721, %v3769
    %v3771 = vpop.f32.mrf.mxu0
    %v3772 = vadd.f32 %v3723, %v3771
    %3773 = vmatmul.bf16.gmra.mxu0 %v271
    %v3774 = vpop.f32.mrf.mxu0
    %v3775 = vadd.f32 %v3726, %v3774
    %v3776 = vpop.f32.mrf.mxu0
    %v3777 = vadd.f32 %v3728, %v3776
    %3778 = vmatmul.bf16.gmra.mxu0 %v278
    %v3779 = vpop.f32.mrf.mxu0
    %v3780 = vadd.f32 %v3731, %v3779
    %v3781 = vpop.f32.mrf.mxu0
    %v3782 = vadd.f32 %v3733, %v3781
    %3783 = vmatmul.bf16.gmra.mxu0 %v285
    %v3784 = vpop.f32.mrf.mxu0
    %v3785 = vadd.f32 %v3736, %v3784
    %v3786 = vpop.f32.mrf.mxu0
    %v3787 = vadd.f32 %v3738, %v3786
    %3788 = vmatmul.bf16.gmra.mxu0 %v292
    %v3789 = vpop.f32.mrf.mxu0
    %v3790 = vadd.f32 %v3741, %v3789
    %v3791 = vpop.f32.mrf.mxu0
    %v3792 = vadd.f32 %v3743, %v3791
    %3793 = vmatmul.bf16.gmra.mxu0 %v299
    %v3794 = vpop.f32.mrf.mxu0
    %v3795 = vadd.f32 %v3746, %v3794
    %v3796 = vpop.f32.mrf.mxu0
    %v3797 = vadd.f32 %v3748, %v3796
    %3798 = vmatmul.bf16.gmra.mxu0 %v306
    %v3799 = vpop.f32.mrf.mxu0
    %v3800 = vadd.f32 %v3751, %v3799
    %v3801 = vpop.f32.mrf.mxu0
    %v3802 = vadd.f32 %v3753, %v3801
    %3803 = vmatmul.bf16.gmra.mxu0 %v313
    %v3804 = vpop.f32.mrf.mxu0
    %v3805 = vadd.f32 %v3756, %v3804
    %v3806 = vpop.f32.mrf.mxu0
    %v3807 = vadd.f32 %v3758, %v3806
    %3808 = vdwg.mxu0
    %3809 = vmatpush.bf16.msra.mxu0 %v2315
    %3810 = vmatpush.bf16.msra.mxu0 %v2307
    %3811 = vmatpush.bf16.msra.mxu0 %v2299
    %3812 = vmatpush.bf16.msra.mxu0 %v2291
    %3813 = vmatpush.bf16.msra.mxu0 %v2283
    %3814 = vmatpush.bf16.msra.mxu0 %v2275
    %3815 = vmatpush.bf16.msra.mxu0 %v2267
    %3816 = vmatpush.bf16.msra.mxu0 %v2259
    %3817 = vmatmul.bf16.gmra.mxu0 %v265
    %v3818 = vpop.f32.mrf.mxu0
    %v3819 = vadd.f32 %v3770, %v3818
    %v3820 = vpop.f32.mrf.mxu0
    %v3821 = vadd.f32 %v3772, %v3820
    %3822 = vmatmul.bf16.gmra.mxu0 %v272
    %v3823 = vpop.f32.mrf.mxu0
    %v3824 = vadd.f32 %v3775, %v3823
    %v3825 = vpop.f32.mrf.mxu0
    %v3826 = vadd.f32 %v3777, %v3825
    %3827 = vmatmul.bf16.gmra.mxu0 %v279
    %v3828 = vpop.f32.mrf.mxu0
    %v3829 = vadd.f32 %v3780, %v3828
    %v3830 = vpop.f32.mrf.mxu0
    %v3831 = vadd.f32 %v3782, %v3830
    %3832 = vmatmul.bf16.gmra.mxu0 %v286
    %v3833 = vpop.f32.mrf.mxu0
    %v3834 = vadd.f32 %v3785, %v3833
    %v3835 = vpop.f32.mrf.mxu0
    %v3836 = vadd.f32 %v3787, %v3835
    %3837 = vmatmul.bf16.gmra.mxu0 %v293
    %v3838 = vpop.f32.mrf.mxu0
    %v3839 = vadd.f32 %v3790, %v3838
    %v3840 = vpop.f32.mrf.mxu0
    %v3841 = vadd.f32 %v3792, %v3840
    %3842 = vmatmul.bf16.gmra.mxu0 %v300
    %v3843 = vpop.f32.mrf.mxu0
    %v3844 = vadd.f32 %v3795, %v3843
    %v3845 = vpop.f32.mrf.mxu0
    %v3846 = vadd.f32 %v3797, %v3845
    %3847 = vmatmul.bf16.gmra.mxu0 %v307
    %v3848 = vpop.f32.mrf.mxu0
    %v3849 = vadd.f32 %v3800, %v3848
    %v3850 = vpop.f32.mrf.mxu0
    %v3851 = vadd.f32 %v3802, %v3850
    %3852 = vmatmul.bf16.gmra.mxu0 %v314
    %v3853 = vpop.f32.mrf.mxu0
    %v3854 = vadd.f32 %v3805, %v3853
    %v3855 = vpop.f32.mrf.mxu0
    %v3856 = vadd.f32 %v3807, %v3855
    %3857 = vdwg.mxu0
    %3858 = vmatpush.bf16.msra.mxu0 %v2379
    %3859 = vmatpush.bf16.msra.mxu0 %v2371
    %3860 = vmatpush.bf16.msra.mxu0 %v2363
    %3861 = vmatpush.bf16.msra.mxu0 %v2355
    %3862 = vmatpush.bf16.msra.mxu0 %v2347
    %3863 = vmatpush.bf16.msra.mxu0 %v2339
    %3864 = vmatpush.bf16.msra.mxu0 %v2331
    %3865 = vmatpush.bf16.msra.mxu0 %v2323
    %3866 = vmatmul.bf16.gmra.mxu0 %v266
    %v3867 = vpop.f32.mrf.mxu0
    %v3868 = vadd.f32 %v3819, %v3867
    %v3869 = vpop.f32.mrf.mxu0
    %v3870 = vadd.f32 %v3821, %v3869
    %3871 = vmatmul.bf16.gmra.mxu0 %v273
    %v3872 = vpop.f32.mrf.mxu0
    %v3873 = vadd.f32 %v3824, %v3872
    %v3874 = vpop.f32.mrf.mxu0
    %v3875 = vadd.f32 %v3826, %v3874
    %3876 = vmatmul.bf16.gmra.mxu0 %v280
    %v3877 = vpop.f32.mrf.mxu0
    %v3878 = vadd.f32 %v3829, %v3877
    %v3879 = vpop.f32.mrf.mxu0
    %v3880 = vadd.f32 %v3831, %v3879
    %3881 = vmatmul.bf16.gmra.mxu0 %v287
    %v3882 = vpop.f32.mrf.mxu0
    %v3883 = vadd.f32 %v3834, %v3882
    %v3884 = vpop.f32.mrf.mxu0
    %v3885 = vadd.f32 %v3836, %v3884
    %3886 = vmatmul.bf16.gmra.mxu0 %v294
    %v3887 = vpop.f32.mrf.mxu0
    %v3888 = vadd.f32 %v3839, %v3887
    %v3889 = vpop.f32.mrf.mxu0
    %v3890 = vadd.f32 %v3841, %v3889
    %3891 = vmatmul.bf16.gmra.mxu0 %v301
    %v3892 = vpop.f32.mrf.mxu0
    %v3893 = vadd.f32 %v3844, %v3892
    %v3894 = vpop.f32.mrf.mxu0
    %v3895 = vadd.f32 %v3846, %v3894
    %3896 = vmatmul.bf16.gmra.mxu0 %v308
    %v3897 = vpop.f32.mrf.mxu0
    %v3898 = vadd.f32 %v3849, %v3897
    %v3899 = vpop.f32.mrf.mxu0
    %v3900 = vadd.f32 %v3851, %v3899
    %3901 = vmatmul.bf16.gmra.mxu0 %v315
    %v3902 = vpop.f32.mrf.mxu0
    %v3903 = vadd.f32 %v3854, %v3902
    %v3904 = vpop.f32.mrf.mxu0
    %v3905 = vadd.f32 %v3856, %v3904
    %3906 = vdwg.mxu0
    %3907 = vmatpush.bf16.msra.mxu0 %v2443
    %3908 = vmatpush.bf16.msra.mxu0 %v2435
    %3909 = vmatpush.bf16.msra.mxu0 %v2427
    %3910 = vmatpush.bf16.msra.mxu0 %v2419
    %3911 = vmatpush.bf16.msra.mxu0 %v2411
    %3912 = vmatpush.bf16.msra.mxu0 %v2403
    %3913 = vmatpush.bf16.msra.mxu0 %v2395
    %3914 = vmatpush.bf16.msra.mxu0 %v2387
    %3915 = vmatmul.bf16.gmra.mxu0 %v267
    %v3916 = vpop.f32.mrf.mxu0
    %v3917 = vadd.f32 %v3868, %v3916
    %v3918 = vpop.f32.mrf.mxu0
    %v3919 = vadd.f32 %v3870, %v3918
    %3920 = vmatmul.bf16.gmra.mxu0 %v274
    %v3921 = vpop.f32.mrf.mxu0
    %v3922 = vadd.f32 %v3873, %v3921
    %v3923 = vpop.f32.mrf.mxu0
    %v3924 = vadd.f32 %v3875, %v3923
    %3925 = vmatmul.bf16.gmra.mxu0 %v281
    %v3926 = vpop.f32.mrf.mxu0
    %v3927 = vadd.f32 %v3878, %v3926
    %v3928 = vpop.f32.mrf.mxu0
    %v3929 = vadd.f32 %v3880, %v3928
    %3930 = vmatmul.bf16.gmra.mxu0 %v288
    %v3931 = vpop.f32.mrf.mxu0
    %v3932 = vadd.f32 %v3883, %v3931
    %v3933 = vpop.f32.mrf.mxu0
    %v3934 = vadd.f32 %v3885, %v3933
    %3935 = vmatmul.bf16.gmra.mxu0 %v295
    %v3936 = vpop.f32.mrf.mxu0
    %v3937 = vadd.f32 %v3888, %v3936
    %v3938 = vpop.f32.mrf.mxu0
    %v3939 = vadd.f32 %v3890, %v3938
    %3940 = vmatmul.bf16.gmra.mxu0 %v302
    %v3941 = vpop.f32.mrf.mxu0
    %v3942 = vadd.f32 %v3893, %v3941
    %v3943 = vpop.f32.mrf.mxu0
    %v3944 = vadd.f32 %v3895, %v3943
    %3945 = vmatmul.bf16.gmra.mxu0 %v309
    %v3946 = vpop.f32.mrf.mxu0
    %v3947 = vadd.f32 %v3898, %v3946
    %v3948 = vpop.f32.mrf.mxu0
    %v3949 = vadd.f32 %v3900, %v3948
    %3950 = vmatmul.bf16.gmra.mxu0 %v316
    %v3951 = vpop.f32.mrf.mxu0
    %v3952 = vadd.f32 %v3903, %v3951
    %v3953 = vpop.f32.mrf.mxu0
    %v3954 = vadd.f32 %v3905, %v3953
    %3955 = vdwg.mxu0
    %3956 = vmatpush.bf16.msra.mxu0 %v2507
    %3957 = vmatpush.bf16.msra.mxu0 %v2499
    %3958 = vmatpush.bf16.msra.mxu0 %v2491
    %3959 = vmatpush.bf16.msra.mxu0 %v2483
    %3960 = vmatpush.bf16.msra.mxu0 %v2475
    %3961 = vmatpush.bf16.msra.mxu0 %v2467
    %3962 = vmatpush.bf16.msra.mxu0 %v2459
    %3963 = vmatpush.bf16.msra.mxu0 %v2451
    %3964 = vmatmul.bf16.gmra.mxu0 %v268
    %v3965 = vpop.f32.mrf.mxu0
    %v3966 = vadd.f32 %v3917, %v3965
    %v3967 = vpop.f32.mrf.mxu0
    %v3968 = vadd.f32 %v3919, %v3967
    %3969 = vmatmul.bf16.gmra.mxu0 %v275
    %v3970 = vpop.f32.mrf.mxu0
    %v3971 = vadd.f32 %v3922, %v3970
    %v3972 = vpop.f32.mrf.mxu0
    %v3973 = vadd.f32 %v3924, %v3972
    %3974 = vmatmul.bf16.gmra.mxu0 %v282
    %v3975 = vpop.f32.mrf.mxu0
    %v3976 = vadd.f32 %v3927, %v3975
    %v3977 = vpop.f32.mrf.mxu0
    %v3978 = vadd.f32 %v3929, %v3977
    %3979 = vmatmul.bf16.gmra.mxu0 %v289
    %v3980 = vpop.f32.mrf.mxu0
    %v3981 = vadd.f32 %v3932, %v3980
    %v3982 = vpop.f32.mrf.mxu0
    %v3983 = vadd.f32 %v3934, %v3982
    %3984 = vmatmul.bf16.gmra.mxu0 %v296
    %v3985 = vpop.f32.mrf.mxu0
    %v3986 = vadd.f32 %v3937, %v3985
    %v3987 = vpop.f32.mrf.mxu0
    %v3988 = vadd.f32 %v3939, %v3987
    %3989 = vmatmul.bf16.gmra.mxu0 %v303
    %v3990 = vpop.f32.mrf.mxu0
    %v3991 = vadd.f32 %v3942, %v3990
    %v3992 = vpop.f32.mrf.mxu0
    %v3993 = vadd.f32 %v3944, %v3992
    %3994 = vmatmul.bf16.gmra.mxu0 %v310
    %v3995 = vpop.f32.mrf.mxu0
    %v3996 = vadd.f32 %v3947, %v3995
    %v3997 = vpop.f32.mrf.mxu0
    %v3998 = vadd.f32 %v3949, %v3997
    %3999 = vmatmul.bf16.gmra.mxu0 %v317
    %v4000 = vpop.f32.mrf.mxu0
    %v4001 = vadd.f32 %v3952, %v4000
    %v4002 = vpop.f32.mrf.mxu0
    %v4003 = vadd.f32 %v3954, %v4002
    %4004 = vdwg.mxu0
    %4005 = vmatpush.bf16.msra.mxu0 %v2571
    %4006 = vmatpush.bf16.msra.mxu0 %v2563
    %4007 = vmatpush.bf16.msra.mxu0 %v2555
    %4008 = vmatpush.bf16.msra.mxu0 %v2547
    %4009 = vmatpush.bf16.msra.mxu0 %v2539
    %4010 = vmatpush.bf16.msra.mxu0 %v2531
    %4011 = vmatpush.bf16.msra.mxu0 %v2523
    %4012 = vmatpush.bf16.msra.mxu0 %v2515
    %4013 = vmatmul.bf16.gmra.mxu0 %v269
    %v4014 = vpop.f32.mrf.mxu0
    %v4015 = vadd.f32 %v3966, %v4014
    %v4016 = vpop.f32.mrf.mxu0
    %v4017 = vadd.f32 %v3968, %v4016
    %4018 = vmatmul.bf16.gmra.mxu0 %v276
    %v4019 = vpop.f32.mrf.mxu0
    %v4020 = vadd.f32 %v3971, %v4019
    %v4021 = vpop.f32.mrf.mxu0
    %v4022 = vadd.f32 %v3973, %v4021
    %4023 = vmatmul.bf16.gmra.mxu0 %v283
    %v4024 = vpop.f32.mrf.mxu0
    %v4025 = vadd.f32 %v3976, %v4024
    %v4026 = vpop.f32.mrf.mxu0
    %v4027 = vadd.f32 %v3978, %v4026
    %4028 = vmatmul.bf16.gmra.mxu0 %v290
    %v4029 = vpop.f32.mrf.mxu0
    %v4030 = vadd.f32 %v3981, %v4029
    %v4031 = vpop.f32.mrf.mxu0
    %v4032 = vadd.f32 %v3983, %v4031
    %4033 = vmatmul.bf16.gmra.mxu0 %v297
    %v4034 = vpop.f32.mrf.mxu0
    %v4035 = vadd.f32 %v3986, %v4034
    %v4036 = vpop.f32.mrf.mxu0
    %v4037 = vadd.f32 %v3988, %v4036
    %4038 = vmatmul.bf16.gmra.mxu0 %v304
    %v4039 = vpop.f32.mrf.mxu0
    %v4040 = vadd.f32 %v3991, %v4039
    %v4041 = vpop.f32.mrf.mxu0
    %v4042 = vadd.f32 %v3993, %v4041
    %4043 = vmatmul.bf16.gmra.mxu0 %v311
    %v4044 = vpop.f32.mrf.mxu0
    %v4045 = vadd.f32 %v3996, %v4044
    %v4046 = vpop.f32.mrf.mxu0
    %v4047 = vadd.f32 %v3998, %v4046
    %4048 = vmatmul.bf16.gmra.mxu0 %v318
    %v4049 = vpop.f32.mrf.mxu0
    %v4050 = vadd.f32 %v4001, %v4049
    %v4051 = vpop.f32.mrf.mxu0
    %v4052 = vadd.f32 %v4003, %v4051
    %4053 = vdwg.mxu0
    %4054 = vmatpush.bf16.msra.mxu0 %v2188
    %4055 = vmatpush.bf16.msra.mxu0 %v2180
    %4056 = vmatpush.bf16.msra.mxu0 %v2172
    %4057 = vmatpush.bf16.msra.mxu0 %v2164
    %4058 = vmatpush.bf16.msra.mxu0 %v2156
    %4059 = vmatpush.bf16.msra.mxu0 %v2148
    %4060 = vmatpush.bf16.msra.mxu0 %v2140
    %4061 = vmatpush.bf16.msra.mxu0 %v2132
    %4062 = vmatmul.bf16.gmra.mxu0 %v263
    %v4063 = vpop.f32.mrf.mxu0
    %v4064 = vadd.f32 %v772, %v4063
    %v4065 = vpop.f32.mrf.mxu0
    %v4066 = vadd.f32 %v772, %v4065
    %4067 = vmatmul.bf16.gmra.mxu0 %v270
    %v4068 = vpop.f32.mrf.mxu0
    %v4069 = vadd.f32 %v772, %v4068
    %v4070 = vpop.f32.mrf.mxu0
    %v4071 = vadd.f32 %v772, %v4070
    %4072 = vmatmul.bf16.gmra.mxu0 %v277
    %v4073 = vpop.f32.mrf.mxu0
    %v4074 = vadd.f32 %v772, %v4073
    %v4075 = vpop.f32.mrf.mxu0
    %v4076 = vadd.f32 %v772, %v4075
    %4077 = vmatmul.bf16.gmra.mxu0 %v284
    %v4078 = vpop.f32.mrf.mxu0
    %v4079 = vadd.f32 %v772, %v4078
    %v4080 = vpop.f32.mrf.mxu0
    %v4081 = vadd.f32 %v772, %v4080
    %4082 = vmatmul.bf16.gmra.mxu0 %v291
    %v4083 = vpop.f32.mrf.mxu0
    %v4084 = vadd.f32 %v772, %v4083
    %v4085 = vpop.f32.mrf.mxu0
    %v4086 = vadd.f32 %v772, %v4085
    %4087 = vmatmul.bf16.gmra.mxu0 %v298
    %v4088 = vpop.f32.mrf.mxu0
    %v4089 = vadd.f32 %v772, %v4088
    %v4090 = vpop.f32.mrf.mxu0
    %v4091 = vadd.f32 %v772, %v4090
    %4092 = vmatmul.bf16.gmra.mxu0 %v305
    %v4093 = vpop.f32.mrf.mxu0
    %v4094 = vadd.f32 %v772, %v4093
    %v4095 = vpop.f32.mrf.mxu0
    %v4096 = vadd.f32 %v772, %v4095
    %4097 = vmatmul.bf16.gmra.mxu0 %v312
    %v4098 = vpop.f32.mrf.mxu0
    %v4099 = vadd.f32 %v772, %v4098
    %v4100 = vpop.f32.mrf.mxu0
    %v4101 = vadd.f32 %v772, %v4100
    %4102 = vdwg.mxu0
    %4103 = vmatpush.bf16.msra.mxu0 %v2252
    %4104 = vmatpush.bf16.msra.mxu0 %v2244
    %4105 = vmatpush.bf16.msra.mxu0 %v2236
    %4106 = vmatpush.bf16.msra.mxu0 %v2228
    %4107 = vmatpush.bf16.msra.mxu0 %v2220
    %4108 = vmatpush.bf16.msra.mxu0 %v2212
    %4109 = vmatpush.bf16.msra.mxu0 %v2204
    %4110 = vmatpush.bf16.msra.mxu0 %v2196
    %4111 = vmatmul.bf16.gmra.mxu0 %v264
    %v4112 = vpop.f32.mrf.mxu0
    %v4113 = vadd.f32 %v4064, %v4112
    %v4114 = vpop.f32.mrf.mxu0
    %v4115 = vadd.f32 %v4066, %v4114
    %4116 = vmatmul.bf16.gmra.mxu0 %v271
    %v4117 = vpop.f32.mrf.mxu0
    %v4118 = vadd.f32 %v4069, %v4117
    %v4119 = vpop.f32.mrf.mxu0
    %v4120 = vadd.f32 %v4071, %v4119
    %4121 = vmatmul.bf16.gmra.mxu0 %v278
    %v4122 = vpop.f32.mrf.mxu0
    %v4123 = vadd.f32 %v4074, %v4122
    %v4124 = vpop.f32.mrf.mxu0
    %v4125 = vadd.f32 %v4076, %v4124
    %4126 = vmatmul.bf16.gmra.mxu0 %v285
    %v4127 = vpop.f32.mrf.mxu0
    %v4128 = vadd.f32 %v4079, %v4127
    %v4129 = vpop.f32.mrf.mxu0
    %v4130 = vadd.f32 %v4081, %v4129
    %4131 = vmatmul.bf16.gmra.mxu0 %v292
    %v4132 = vpop.f32.mrf.mxu0
    %v4133 = vadd.f32 %v4084, %v4132
    %v4134 = vpop.f32.mrf.mxu0
    %v4135 = vadd.f32 %v4086, %v4134
    %4136 = vmatmul.bf16.gmra.mxu0 %v299
    %v4137 = vpop.f32.mrf.mxu0
    %v4138 = vadd.f32 %v4089, %v4137
    %v4139 = vpop.f32.mrf.mxu0
    %v4140 = vadd.f32 %v4091, %v4139
    %4141 = vmatmul.bf16.gmra.mxu0 %v306
    %v4142 = vpop.f32.mrf.mxu0
    %v4143 = vadd.f32 %v4094, %v4142
    %v4144 = vpop.f32.mrf.mxu0
    %v4145 = vadd.f32 %v4096, %v4144
    %4146 = vmatmul.bf16.gmra.mxu0 %v313
    %v4147 = vpop.f32.mrf.mxu0
    %v4148 = vadd.f32 %v4099, %v4147
    %v4149 = vpop.f32.mrf.mxu0
    %v4150 = vadd.f32 %v4101, %v4149
    %4151 = vdwg.mxu0
    %4152 = vmatpush.bf16.msra.mxu0 %v2316
    %4153 = vmatpush.bf16.msra.mxu0 %v2308
    %4154 = vmatpush.bf16.msra.mxu0 %v2300
    %4155 = vmatpush.bf16.msra.mxu0 %v2292
    %4156 = vmatpush.bf16.msra.mxu0 %v2284
    %4157 = vmatpush.bf16.msra.mxu0 %v2276
    %4158 = vmatpush.bf16.msra.mxu0 %v2268
    %4159 = vmatpush.bf16.msra.mxu0 %v2260
    %4160 = vmatmul.bf16.gmra.mxu0 %v265
    %v4161 = vpop.f32.mrf.mxu0
    %v4162 = vadd.f32 %v4113, %v4161
    %v4163 = vpop.f32.mrf.mxu0
    %v4164 = vadd.f32 %v4115, %v4163
    %4165 = vmatmul.bf16.gmra.mxu0 %v272
    %v4166 = vpop.f32.mrf.mxu0
    %v4167 = vadd.f32 %v4118, %v4166
    %v4168 = vpop.f32.mrf.mxu0
    %v4169 = vadd.f32 %v4120, %v4168
    %4170 = vmatmul.bf16.gmra.mxu0 %v279
    %v4171 = vpop.f32.mrf.mxu0
    %v4172 = vadd.f32 %v4123, %v4171
    %v4173 = vpop.f32.mrf.mxu0
    %v4174 = vadd.f32 %v4125, %v4173
    %4175 = vmatmul.bf16.gmra.mxu0 %v286
    %v4176 = vpop.f32.mrf.mxu0
    %v4177 = vadd.f32 %v4128, %v4176
    %v4178 = vpop.f32.mrf.mxu0
    %v4179 = vadd.f32 %v4130, %v4178
    %4180 = vmatmul.bf16.gmra.mxu0 %v293
    %v4181 = vpop.f32.mrf.mxu0
    %v4182 = vadd.f32 %v4133, %v4181
    %v4183 = vpop.f32.mrf.mxu0
    %v4184 = vadd.f32 %v4135, %v4183
    %4185 = vmatmul.bf16.gmra.mxu0 %v300
    %v4186 = vpop.f32.mrf.mxu0
    %v4187 = vadd.f32 %v4138, %v4186
    %v4188 = vpop.f32.mrf.mxu0
    %v4189 = vadd.f32 %v4140, %v4188
    %4190 = vmatmul.bf16.gmra.mxu0 %v307
    %v4191 = vpop.f32.mrf.mxu0
    %v4192 = vadd.f32 %v4143, %v4191
    %v4193 = vpop.f32.mrf.mxu0
    %v4194 = vadd.f32 %v4145, %v4193
    %4195 = vmatmul.bf16.gmra.mxu0 %v314
    %v4196 = vpop.f32.mrf.mxu0
    %v4197 = vadd.f32 %v4148, %v4196
    %v4198 = vpop.f32.mrf.mxu0
    %v4199 = vadd.f32 %v4150, %v4198
    %4200 = vdwg.mxu0
    %4201 = vmatpush.bf16.msra.mxu0 %v2380
    %4202 = vmatpush.bf16.msra.mxu0 %v2372
    %4203 = vmatpush.bf16.msra.mxu0 %v2364
    %4204 = vmatpush.bf16.msra.mxu0 %v2356
    %4205 = vmatpush.bf16.msra.mxu0 %v2348
    %4206 = vmatpush.bf16.msra.mxu0 %v2340
    %4207 = vmatpush.bf16.msra.mxu0 %v2332
    %4208 = vmatpush.bf16.msra.mxu0 %v2324
    %4209 = vmatmul.bf16.gmra.mxu0 %v266
    %v4210 = vpop.f32.mrf.mxu0
    %v4211 = vadd.f32 %v4162, %v4210
    %v4212 = vpop.f32.mrf.mxu0
    %v4213 = vadd.f32 %v4164, %v4212
    %4214 = vmatmul.bf16.gmra.mxu0 %v273
    %v4215 = vpop.f32.mrf.mxu0
    %v4216 = vadd.f32 %v4167, %v4215
    %v4217 = vpop.f32.mrf.mxu0
    %v4218 = vadd.f32 %v4169, %v4217
    %4219 = vmatmul.bf16.gmra.mxu0 %v280
    %v4220 = vpop.f32.mrf.mxu0
    %v4221 = vadd.f32 %v4172, %v4220
    %v4222 = vpop.f32.mrf.mxu0
    %v4223 = vadd.f32 %v4174, %v4222
    %4224 = vmatmul.bf16.gmra.mxu0 %v287
    %v4225 = vpop.f32.mrf.mxu0
    %v4226 = vadd.f32 %v4177, %v4225
    %v4227 = vpop.f32.mrf.mxu0
    %v4228 = vadd.f32 %v4179, %v4227
    %4229 = vmatmul.bf16.gmra.mxu0 %v294
    %v4230 = vpop.f32.mrf.mxu0
    %v4231 = vadd.f32 %v4182, %v4230
    %v4232 = vpop.f32.mrf.mxu0
    %v4233 = vadd.f32 %v4184, %v4232
    %4234 = vmatmul.bf16.gmra.mxu0 %v301
    %v4235 = vpop.f32.mrf.mxu0
    %v4236 = vadd.f32 %v4187, %v4235
    %v4237 = vpop.f32.mrf.mxu0
    %v4238 = vadd.f32 %v4189, %v4237
    %4239 = vmatmul.bf16.gmra.mxu0 %v308
    %v4240 = vpop.f32.mrf.mxu0
    %v4241 = vadd.f32 %v4192, %v4240
    %v4242 = vpop.f32.mrf.mxu0
    %v4243 = vadd.f32 %v4194, %v4242
    %4244 = vmatmul.bf16.gmra.mxu0 %v315
    %v4245 = vpop.f32.mrf.mxu0
    %v4246 = vadd.f32 %v4197, %v4245
    %v4247 = vpop.f32.mrf.mxu0
    %v4248 = vadd.f32 %v4199, %v4247
    %4249 = vdwg.mxu0
    %4250 = vmatpush.bf16.msra.mxu0 %v2444
    %4251 = vmatpush.bf16.msra.mxu0 %v2436
    %4252 = vmatpush.bf16.msra.mxu0 %v2428
    %4253 = vmatpush.bf16.msra.mxu0 %v2420
    %4254 = vmatpush.bf16.msra.mxu0 %v2412
    %4255 = vmatpush.bf16.msra.mxu0 %v2404
    %4256 = vmatpush.bf16.msra.mxu0 %v2396
    %4257 = vmatpush.bf16.msra.mxu0 %v2388
    %4258 = vmatmul.bf16.gmra.mxu0 %v267
    %v4259 = vpop.f32.mrf.mxu0
    %v4260 = vadd.f32 %v4211, %v4259
    %v4261 = vpop.f32.mrf.mxu0
    %v4262 = vadd.f32 %v4213, %v4261
    %4263 = vmatmul.bf16.gmra.mxu0 %v274
    %v4264 = vpop.f32.mrf.mxu0
    %v4265 = vadd.f32 %v4216, %v4264
    %v4266 = vpop.f32.mrf.mxu0
    %v4267 = vadd.f32 %v4218, %v4266
    %4268 = vmatmul.bf16.gmra.mxu0 %v281
    %v4269 = vpop.f32.mrf.mxu0
    %v4270 = vadd.f32 %v4221, %v4269
    %v4271 = vpop.f32.mrf.mxu0
    %v4272 = vadd.f32 %v4223, %v4271
    %4273 = vmatmul.bf16.gmra.mxu0 %v288
    %v4274 = vpop.f32.mrf.mxu0
    %v4275 = vadd.f32 %v4226, %v4274
    %v4276 = vpop.f32.mrf.mxu0
    %v4277 = vadd.f32 %v4228, %v4276
    %4278 = vmatmul.bf16.gmra.mxu0 %v295
    %v4279 = vpop.f32.mrf.mxu0
    %v4280 = vadd.f32 %v4231, %v4279
    %v4281 = vpop.f32.mrf.mxu0
    %v4282 = vadd.f32 %v4233, %v4281
    %4283 = vmatmul.bf16.gmra.mxu0 %v302
    %v4284 = vpop.f32.mrf.mxu0
    %v4285 = vadd.f32 %v4236, %v4284
    %v4286 = vpop.f32.mrf.mxu0
    %v4287 = vadd.f32 %v4238, %v4286
    %4288 = vmatmul.bf16.gmra.mxu0 %v309
    %v4289 = vpop.f32.mrf.mxu0
    %v4290 = vadd.f32 %v4241, %v4289
    %v4291 = vpop.f32.mrf.mxu0
    %v4292 = vadd.f32 %v4243, %v4291
    %4293 = vmatmul.bf16.gmra.mxu0 %v316
    %v4294 = vpop.f32.mrf.mxu0
    %v4295 = vadd.f32 %v4246, %v4294
    %v4296 = vpop.f32.mrf.mxu0
    %v4297 = vadd.f32 %v4248, %v4296
    %4298 = vdwg.mxu0
    %4299 = vmatpush.bf16.msra.mxu0 %v2508
    %4300 = vmatpush.bf16.msra.mxu0 %v2500
    %4301 = vmatpush.bf16.msra.mxu0 %v2492
    %4302 = vmatpush.bf16.msra.mxu0 %v2484
    %4303 = vmatpush.bf16.msra.mxu0 %v2476
    %4304 = vmatpush.bf16.msra.mxu0 %v2468
    %4305 = vmatpush.bf16.msra.mxu0 %v2460
    %4306 = vmatpush.bf16.msra.mxu0 %v2452
    %4307 = vmatmul.bf16.gmra.mxu0 %v268
    %v4308 = vpop.f32.mrf.mxu0
    %v4309 = vadd.f32 %v4260, %v4308
    %v4310 = vpop.f32.mrf.mxu0
    %v4311 = vadd.f32 %v4262, %v4310
    %4312 = vmatmul.bf16.gmra.mxu0 %v275
    %v4313 = vpop.f32.mrf.mxu0
    %v4314 = vadd.f32 %v4265, %v4313
    %v4315 = vpop.f32.mrf.mxu0
    %v4316 = vadd.f32 %v4267, %v4315
    %4317 = vmatmul.bf16.gmra.mxu0 %v282
    %v4318 = vpop.f32.mrf.mxu0
    %v4319 = vadd.f32 %v4270, %v4318
    %v4320 = vpop.f32.mrf.mxu0
    %v4321 = vadd.f32 %v4272, %v4320
    %4322 = vmatmul.bf16.gmra.mxu0 %v289
    %v4323 = vpop.f32.mrf.mxu0
    %v4324 = vadd.f32 %v4275, %v4323
    %v4325 = vpop.f32.mrf.mxu0
    %v4326 = vadd.f32 %v4277, %v4325
    %4327 = vmatmul.bf16.gmra.mxu0 %v296
    %v4328 = vpop.f32.mrf.mxu0
    %v4329 = vadd.f32 %v4280, %v4328
    %v4330 = vpop.f32.mrf.mxu0
    %v4331 = vadd.f32 %v4282, %v4330
    %4332 = vmatmul.bf16.gmra.mxu0 %v303
    %v4333 = vpop.f32.mrf.mxu0
    %v4334 = vadd.f32 %v4285, %v4333
    %v4335 = vpop.f32.mrf.mxu0
    %v4336 = vadd.f32 %v4287, %v4335
    %4337 = vmatmul.bf16.gmra.mxu0 %v310
    %v4338 = vpop.f32.mrf.mxu0
    %v4339 = vadd.f32 %v4290, %v4338
    %v4340 = vpop.f32.mrf.mxu0
    %v4341 = vadd.f32 %v4292, %v4340
    %4342 = vmatmul.bf16.gmra.mxu0 %v317
    %v4343 = vpop.f32.mrf.mxu0
    %v4344 = vadd.f32 %v4295, %v4343
    %v4345 = vpop.f32.mrf.mxu0
    %v4346 = vadd.f32 %v4297, %v4345
    %4347 = vdwg.mxu0
    %4348 = vmatpush.bf16.msra.mxu0 %v2572
    %4349 = vmatpush.bf16.msra.mxu0 %v2564
    %4350 = vmatpush.bf16.msra.mxu0 %v2556
    %4351 = vmatpush.bf16.msra.mxu0 %v2548
    %4352 = vmatpush.bf16.msra.mxu0 %v2540
    %4353 = vmatpush.bf16.msra.mxu0 %v2532
    %4354 = vmatpush.bf16.msra.mxu0 %v2524
    %4355 = vmatpush.bf16.msra.mxu0 %v2516
    %4356 = vmatmul.bf16.gmra.mxu0 %v269
    %v4357 = vpop.f32.mrf.mxu0
    %v4358 = vadd.f32 %v4309, %v4357
    %v4359 = vpop.f32.mrf.mxu0
    %v4360 = vadd.f32 %v4311, %v4359
    %4361 = vmatmul.bf16.gmra.mxu0 %v276
    %v4362 = vpop.f32.mrf.mxu0
    %v4363 = vadd.f32 %v4314, %v4362
    %v4364 = vpop.f32.mrf.mxu0
    %v4365 = vadd.f32 %v4316, %v4364
    %4366 = vmatmul.bf16.gmra.mxu0 %v283
    %v4367 = vpop.f32.mrf.mxu0
    %v4368 = vadd.f32 %v4319, %v4367
    %v4369 = vpop.f32.mrf.mxu0
    %v4370 = vadd.f32 %v4321, %v4369
    %4371 = vmatmul.bf16.gmra.mxu0 %v290
    %v4372 = vpop.f32.mrf.mxu0
    %v4373 = vadd.f32 %v4324, %v4372
    %v4374 = vpop.f32.mrf.mxu0
    %v4375 = vadd.f32 %v4326, %v4374
    %4376 = vmatmul.bf16.gmra.mxu0 %v297
    %v4377 = vpop.f32.mrf.mxu0
    %v4378 = vadd.f32 %v4329, %v4377
    %v4379 = vpop.f32.mrf.mxu0
    %v4380 = vadd.f32 %v4331, %v4379
    %4381 = vmatmul.bf16.gmra.mxu0 %v304
    %v4382 = vpop.f32.mrf.mxu0
    %v4383 = vadd.f32 %v4334, %v4382
    %v4384 = vpop.f32.mrf.mxu0
    %v4385 = vadd.f32 %v4336, %v4384
    %4386 = vmatmul.bf16.gmra.mxu0 %v311
    %v4387 = vpop.f32.mrf.mxu0
    %v4388 = vadd.f32 %v4339, %v4387
    %v4389 = vpop.f32.mrf.mxu0
    %v4390 = vadd.f32 %v4341, %v4389
    %4391 = vmatmul.bf16.gmra.mxu0 %v318
    %v4392 = vpop.f32.mrf.mxu0
    %v4393 = vadd.f32 %v4344, %v4392
    %v4394 = vpop.f32.mrf.mxu0
    %v4395 = vadd.f32 %v4346, %v4394
    %4396 = vdwg.mxu0
    %4397 = vmatpush.bf16.msra.mxu0 %v2189
    %4398 = vmatpush.bf16.msra.mxu0 %v2181
    %4399 = vmatpush.bf16.msra.mxu0 %v2173
    %4400 = vmatpush.bf16.msra.mxu0 %v2165
    %4401 = vmatpush.bf16.msra.mxu0 %v2157
    %4402 = vmatpush.bf16.msra.mxu0 %v2149
    %4403 = vmatpush.bf16.msra.mxu0 %v2141
    %4404 = vmatpush.bf16.msra.mxu0 %v2133
    %4405 = vmatmul.bf16.gmra.mxu0 %v263
    %v4406 = vpop.f32.mrf.mxu0
    %v4407 = vadd.f32 %v773, %v4406
    %v4408 = vpop.f32.mrf.mxu0
    %v4409 = vadd.f32 %v773, %v4408
    %4410 = vmatmul.bf16.gmra.mxu0 %v270
    %v4411 = vpop.f32.mrf.mxu0
    %v4412 = vadd.f32 %v773, %v4411
    %v4413 = vpop.f32.mrf.mxu0
    %v4414 = vadd.f32 %v773, %v4413
    %4415 = vmatmul.bf16.gmra.mxu0 %v277
    %v4416 = vpop.f32.mrf.mxu0
    %v4417 = vadd.f32 %v773, %v4416
    %v4418 = vpop.f32.mrf.mxu0
    %v4419 = vadd.f32 %v773, %v4418
    %4420 = vmatmul.bf16.gmra.mxu0 %v284
    %v4421 = vpop.f32.mrf.mxu0
    %v4422 = vadd.f32 %v773, %v4421
    %v4423 = vpop.f32.mrf.mxu0
    %v4424 = vadd.f32 %v773, %v4423
    %4425 = vmatmul.bf16.gmra.mxu0 %v291
    %v4426 = vpop.f32.mrf.mxu0
    %v4427 = vadd.f32 %v773, %v4426
    %v4428 = vpop.f32.mrf.mxu0
    %v4429 = vadd.f32 %v773, %v4428
    %4430 = vmatmul.bf16.gmra.mxu0 %v298
    %v4431 = vpop.f32.mrf.mxu0
    %v4432 = vadd.f32 %v773, %v4431
    %v4433 = vpop.f32.mrf.mxu0
    %v4434 = vadd.f32 %v773, %v4433
    %4435 = vmatmul.bf16.gmra.mxu0 %v305
    %v4436 = vpop.f32.mrf.mxu0
    %v4437 = vadd.f32 %v773, %v4436
    %v4438 = vpop.f32.mrf.mxu0
    %v4439 = vadd.f32 %v773, %v4438
    %4440 = vmatmul.bf16.gmra.mxu0 %v312
    %v4441 = vpop.f32.mrf.mxu0
    %v4442 = vadd.f32 %v773, %v4441
    %v4443 = vpop.f32.mrf.mxu0
    %v4444 = vadd.f32 %v773, %v4443
    %4445 = vdwg.mxu0
    %4446 = vmatpush.bf16.msra.mxu0 %v2253
    %4447 = vmatpush.bf16.msra.mxu0 %v2245
    %4448 = vmatpush.bf16.msra.mxu0 %v2237
    %4449 = vmatpush.bf16.msra.mxu0 %v2229
    %4450 = vmatpush.bf16.msra.mxu0 %v2221
    %4451 = vmatpush.bf16.msra.mxu0 %v2213
    %4452 = vmatpush.bf16.msra.mxu0 %v2205
    %4453 = vmatpush.bf16.msra.mxu0 %v2197
    %4454 = vmatmul.bf16.gmra.mxu0 %v264
    %v4455 = vpop.f32.mrf.mxu0
    %v4456 = vadd.f32 %v4407, %v4455
    %v4457 = vpop.f32.mrf.mxu0
    %v4458 = vadd.f32 %v4409, %v4457
    %4459 = vmatmul.bf16.gmra.mxu0 %v271
    %v4460 = vpop.f32.mrf.mxu0
    %v4461 = vadd.f32 %v4412, %v4460
    %v4462 = vpop.f32.mrf.mxu0
    %v4463 = vadd.f32 %v4414, %v4462
    %4464 = vmatmul.bf16.gmra.mxu0 %v278
    %v4465 = vpop.f32.mrf.mxu0
    %v4466 = vadd.f32 %v4417, %v4465
    %v4467 = vpop.f32.mrf.mxu0
    %v4468 = vadd.f32 %v4419, %v4467
    %4469 = vmatmul.bf16.gmra.mxu0 %v285
    %v4470 = vpop.f32.mrf.mxu0
    %v4471 = vadd.f32 %v4422, %v4470
    %v4472 = vpop.f32.mrf.mxu0
    %v4473 = vadd.f32 %v4424, %v4472
    %4474 = vmatmul.bf16.gmra.mxu0 %v292
    %v4475 = vpop.f32.mrf.mxu0
    %v4476 = vadd.f32 %v4427, %v4475
    %v4477 = vpop.f32.mrf.mxu0
    %v4478 = vadd.f32 %v4429, %v4477
    %4479 = vmatmul.bf16.gmra.mxu0 %v299
    %v4480 = vpop.f32.mrf.mxu0
    %v4481 = vadd.f32 %v4432, %v4480
    %v4482 = vpop.f32.mrf.mxu0
    %v4483 = vadd.f32 %v4434, %v4482
    %4484 = vmatmul.bf16.gmra.mxu0 %v306
    %v4485 = vpop.f32.mrf.mxu0
    %v4486 = vadd.f32 %v4437, %v4485
    %v4487 = vpop.f32.mrf.mxu0
    %v4488 = vadd.f32 %v4439, %v4487
    %4489 = vmatmul.bf16.gmra.mxu0 %v313
    %v4490 = vpop.f32.mrf.mxu0
    %v4491 = vadd.f32 %v4442, %v4490
    %v4492 = vpop.f32.mrf.mxu0
    %v4493 = vadd.f32 %v4444, %v4492
    %4494 = vdwg.mxu0
    %4495 = vmatpush.bf16.msra.mxu0 %v2317
    %4496 = vmatpush.bf16.msra.mxu0 %v2309
    %4497 = vmatpush.bf16.msra.mxu0 %v2301
    %4498 = vmatpush.bf16.msra.mxu0 %v2293
    %4499 = vmatpush.bf16.msra.mxu0 %v2285
    %4500 = vmatpush.bf16.msra.mxu0 %v2277
    %4501 = vmatpush.bf16.msra.mxu0 %v2269
    %4502 = vmatpush.bf16.msra.mxu0 %v2261
    %4503 = vmatmul.bf16.gmra.mxu0 %v265
    %v4504 = vpop.f32.mrf.mxu0
    %v4505 = vadd.f32 %v4456, %v4504
    %v4506 = vpop.f32.mrf.mxu0
    %v4507 = vadd.f32 %v4458, %v4506
    %4508 = vmatmul.bf16.gmra.mxu0 %v272
    %v4509 = vpop.f32.mrf.mxu0
    %v4510 = vadd.f32 %v4461, %v4509
    %v4511 = vpop.f32.mrf.mxu0
    %v4512 = vadd.f32 %v4463, %v4511
    %4513 = vmatmul.bf16.gmra.mxu0 %v279
    %v4514 = vpop.f32.mrf.mxu0
    %v4515 = vadd.f32 %v4466, %v4514
    %v4516 = vpop.f32.mrf.mxu0
    %v4517 = vadd.f32 %v4468, %v4516
    %4518 = vmatmul.bf16.gmra.mxu0 %v286
    %v4519 = vpop.f32.mrf.mxu0
    %v4520 = vadd.f32 %v4471, %v4519
    %v4521 = vpop.f32.mrf.mxu0
    %v4522 = vadd.f32 %v4473, %v4521
    %4523 = vmatmul.bf16.gmra.mxu0 %v293
    %v4524 = vpop.f32.mrf.mxu0
    %v4525 = vadd.f32 %v4476, %v4524
    %v4526 = vpop.f32.mrf.mxu0
    %v4527 = vadd.f32 %v4478, %v4526
    %4528 = vmatmul.bf16.gmra.mxu0 %v300
    %v4529 = vpop.f32.mrf.mxu0
    %v4530 = vadd.f32 %v4481, %v4529
    %v4531 = vpop.f32.mrf.mxu0
    %v4532 = vadd.f32 %v4483, %v4531
    %4533 = vmatmul.bf16.gmra.mxu0 %v307
    %v4534 = vpop.f32.mrf.mxu0
    %v4535 = vadd.f32 %v4486, %v4534
    %v4536 = vpop.f32.mrf.mxu0
    %v4537 = vadd.f32 %v4488, %v4536
    %4538 = vmatmul.bf16.gmra.mxu0 %v314
    %v4539 = vpop.f32.mrf.mxu0
    %v4540 = vadd.f32 %v4491, %v4539
    %v4541 = vpop.f32.mrf.mxu0
    %v4542 = vadd.f32 %v4493, %v4541
    %4543 = vdwg.mxu0
    %4544 = vmatpush.bf16.msra.mxu0 %v2381
    %4545 = vmatpush.bf16.msra.mxu0 %v2373
    %4546 = vmatpush.bf16.msra.mxu0 %v2365
    %4547 = vmatpush.bf16.msra.mxu0 %v2357
    %4548 = vmatpush.bf16.msra.mxu0 %v2349
    %4549 = vmatpush.bf16.msra.mxu0 %v2341
    %4550 = vmatpush.bf16.msra.mxu0 %v2333
    %4551 = vmatpush.bf16.msra.mxu0 %v2325
    %4552 = vmatmul.bf16.gmra.mxu0 %v266
    %v4553 = vpop.f32.mrf.mxu0
    %v4554 = vadd.f32 %v4505, %v4553
    %v4555 = vpop.f32.mrf.mxu0
    %v4556 = vadd.f32 %v4507, %v4555
    %4557 = vmatmul.bf16.gmra.mxu0 %v273
    %v4558 = vpop.f32.mrf.mxu0
    %v4559 = vadd.f32 %v4510, %v4558
    %v4560 = vpop.f32.mrf.mxu0
    %v4561 = vadd.f32 %v4512, %v4560
    %4562 = vmatmul.bf16.gmra.mxu0 %v280
    %v4563 = vpop.f32.mrf.mxu0
    %v4564 = vadd.f32 %v4515, %v4563
    %v4565 = vpop.f32.mrf.mxu0
    %v4566 = vadd.f32 %v4517, %v4565
    %4567 = vmatmul.bf16.gmra.mxu0 %v287
    %v4568 = vpop.f32.mrf.mxu0
    %v4569 = vadd.f32 %v4520, %v4568
    %v4570 = vpop.f32.mrf.mxu0
    %v4571 = vadd.f32 %v4522, %v4570
    %4572 = vmatmul.bf16.gmra.mxu0 %v294
    %v4573 = vpop.f32.mrf.mxu0
    %v4574 = vadd.f32 %v4525, %v4573
    %v4575 = vpop.f32.mrf.mxu0
    %v4576 = vadd.f32 %v4527, %v4575
    %4577 = vmatmul.bf16.gmra.mxu0 %v301
    %v4578 = vpop.f32.mrf.mxu0
    %v4579 = vadd.f32 %v4530, %v4578
    %v4580 = vpop.f32.mrf.mxu0
    %v4581 = vadd.f32 %v4532, %v4580
    %4582 = vmatmul.bf16.gmra.mxu0 %v308
    %v4583 = vpop.f32.mrf.mxu0
    %v4584 = vadd.f32 %v4535, %v4583
    %v4585 = vpop.f32.mrf.mxu0
    %v4586 = vadd.f32 %v4537, %v4585
    %4587 = vmatmul.bf16.gmra.mxu0 %v315
    %v4588 = vpop.f32.mrf.mxu0
    %v4589 = vadd.f32 %v4540, %v4588
    %v4590 = vpop.f32.mrf.mxu0
    %v4591 = vadd.f32 %v4542, %v4590
    %4592 = vdwg.mxu0
    %4593 = vmatpush.bf16.msra.mxu0 %v2445
    %4594 = vmatpush.bf16.msra.mxu0 %v2437
    %4595 = vmatpush.bf16.msra.mxu0 %v2429
    %4596 = vmatpush.bf16.msra.mxu0 %v2421
    %4597 = vmatpush.bf16.msra.mxu0 %v2413
    %4598 = vmatpush.bf16.msra.mxu0 %v2405
    %4599 = vmatpush.bf16.msra.mxu0 %v2397
    %4600 = vmatpush.bf16.msra.mxu0 %v2389
    %4601 = vmatmul.bf16.gmra.mxu0 %v267
    %v4602 = vpop.f32.mrf.mxu0
    %v4603 = vadd.f32 %v4554, %v4602
    %v4604 = vpop.f32.mrf.mxu0
    %v4605 = vadd.f32 %v4556, %v4604
    %4606 = vmatmul.bf16.gmra.mxu0 %v274
    %v4607 = vpop.f32.mrf.mxu0
    %v4608 = vadd.f32 %v4559, %v4607
    %v4609 = vpop.f32.mrf.mxu0
    %v4610 = vadd.f32 %v4561, %v4609
    %4611 = vmatmul.bf16.gmra.mxu0 %v281
    %v4612 = vpop.f32.mrf.mxu0
    %v4613 = vadd.f32 %v4564, %v4612
    %v4614 = vpop.f32.mrf.mxu0
    %v4615 = vadd.f32 %v4566, %v4614
    %4616 = vmatmul.bf16.gmra.mxu0 %v288
    %v4617 = vpop.f32.mrf.mxu0
    %v4618 = vadd.f32 %v4569, %v4617
    %v4619 = vpop.f32.mrf.mxu0
    %v4620 = vadd.f32 %v4571, %v4619
    %4621 = vmatmul.bf16.gmra.mxu0 %v295
    %v4622 = vpop.f32.mrf.mxu0
    %v4623 = vadd.f32 %v4574, %v4622
    %v4624 = vpop.f32.mrf.mxu0
    %v4625 = vadd.f32 %v4576, %v4624
    %4626 = vmatmul.bf16.gmra.mxu0 %v302
    %v4627 = vpop.f32.mrf.mxu0
    %v4628 = vadd.f32 %v4579, %v4627
    %v4629 = vpop.f32.mrf.mxu0
    %v4630 = vadd.f32 %v4581, %v4629
    %4631 = vmatmul.bf16.gmra.mxu0 %v309
    %v4632 = vpop.f32.mrf.mxu0
    %v4633 = vadd.f32 %v4584, %v4632
    %v4634 = vpop.f32.mrf.mxu0
    %v4635 = vadd.f32 %v4586, %v4634
    %4636 = vmatmul.bf16.gmra.mxu0 %v316
    %v4637 = vpop.f32.mrf.mxu0
    %v4638 = vadd.f32 %v4589, %v4637
    %v4639 = vpop.f32.mrf.mxu0
    %v4640 = vadd.f32 %v4591, %v4639
    %4641 = vdwg.mxu0
    %4642 = vmatpush.bf16.msra.mxu0 %v2509
    %4643 = vmatpush.bf16.msra.mxu0 %v2501
    %4644 = vmatpush.bf16.msra.mxu0 %v2493
    %4645 = vmatpush.bf16.msra.mxu0 %v2485
    %4646 = vmatpush.bf16.msra.mxu0 %v2477
    %4647 = vmatpush.bf16.msra.mxu0 %v2469
    %4648 = vmatpush.bf16.msra.mxu0 %v2461
    %4649 = vmatpush.bf16.msra.mxu0 %v2453
    %4650 = vmatmul.bf16.gmra.mxu0 %v268
    %v4651 = vpop.f32.mrf.mxu0
    %v4652 = vadd.f32 %v4603, %v4651
    %v4653 = vpop.f32.mrf.mxu0
    %v4654 = vadd.f32 %v4605, %v4653
    %4655 = vmatmul.bf16.gmra.mxu0 %v275
    %v4656 = vpop.f32.mrf.mxu0
    %v4657 = vadd.f32 %v4608, %v4656
    %v4658 = vpop.f32.mrf.mxu0
    %v4659 = vadd.f32 %v4610, %v4658
    %4660 = vmatmul.bf16.gmra.mxu0 %v282
    %v4661 = vpop.f32.mrf.mxu0
    %v4662 = vadd.f32 %v4613, %v4661
    %v4663 = vpop.f32.mrf.mxu0
    %v4664 = vadd.f32 %v4615, %v4663
    %4665 = vmatmul.bf16.gmra.mxu0 %v289
    %v4666 = vpop.f32.mrf.mxu0
    %v4667 = vadd.f32 %v4618, %v4666
    %v4668 = vpop.f32.mrf.mxu0
    %v4669 = vadd.f32 %v4620, %v4668
    %4670 = vmatmul.bf16.gmra.mxu0 %v296
    %v4671 = vpop.f32.mrf.mxu0
    %v4672 = vadd.f32 %v4623, %v4671
    %v4673 = vpop.f32.mrf.mxu0
    %v4674 = vadd.f32 %v4625, %v4673
    %4675 = vmatmul.bf16.gmra.mxu0 %v303
    %v4676 = vpop.f32.mrf.mxu0
    %v4677 = vadd.f32 %v4628, %v4676
    %v4678 = vpop.f32.mrf.mxu0
    %v4679 = vadd.f32 %v4630, %v4678
    %4680 = vmatmul.bf16.gmra.mxu0 %v310
    %v4681 = vpop.f32.mrf.mxu0
    %v4682 = vadd.f32 %v4633, %v4681
    %v4683 = vpop.f32.mrf.mxu0
    %v4684 = vadd.f32 %v4635, %v4683
    %4685 = vmatmul.bf16.gmra.mxu0 %v317
    %v4686 = vpop.f32.mrf.mxu0
    %v4687 = vadd.f32 %v4638, %v4686
    %v4688 = vpop.f32.mrf.mxu0
    %v4689 = vadd.f32 %v4640, %v4688
    %4690 = vdwg.mxu0
    %4691 = vmatpush.bf16.msra.mxu0 %v2573
    %4692 = vmatpush.bf16.msra.mxu0 %v2565
    %4693 = vmatpush.bf16.msra.mxu0 %v2557
    %4694 = vmatpush.bf16.msra.mxu0 %v2549
    %4695 = vmatpush.bf16.msra.mxu0 %v2541
    %4696 = vmatpush.bf16.msra.mxu0 %v2533
    %4697 = vmatpush.bf16.msra.mxu0 %v2525
    %4698 = vmatpush.bf16.msra.mxu0 %v2517
    %4699 = vmatmul.bf16.gmra.mxu0 %v269
    %v4700 = vpop.f32.mrf.mxu0
    %v4701 = vadd.f32 %v4652, %v4700
    %v4702 = vpop.f32.mrf.mxu0
    %v4703 = vadd.f32 %v4654, %v4702
    %4704 = vmatmul.bf16.gmra.mxu0 %v276
    %v4705 = vpop.f32.mrf.mxu0
    %v4706 = vadd.f32 %v4657, %v4705
    %v4707 = vpop.f32.mrf.mxu0
    %v4708 = vadd.f32 %v4659, %v4707
    %4709 = vmatmul.bf16.gmra.mxu0 %v283
    %v4710 = vpop.f32.mrf.mxu0
    %v4711 = vadd.f32 %v4662, %v4710
    %v4712 = vpop.f32.mrf.mxu0
    %v4713 = vadd.f32 %v4664, %v4712
    %4714 = vmatmul.bf16.gmra.mxu0 %v290
    %v4715 = vpop.f32.mrf.mxu0
    %v4716 = vadd.f32 %v4667, %v4715
    %v4717 = vpop.f32.mrf.mxu0
    %v4718 = vadd.f32 %v4669, %v4717
    %4719 = vmatmul.bf16.gmra.mxu0 %v297
    %v4720 = vpop.f32.mrf.mxu0
    %v4721 = vadd.f32 %v4672, %v4720
    %v4722 = vpop.f32.mrf.mxu0
    %v4723 = vadd.f32 %v4674, %v4722
    %4724 = vmatmul.bf16.gmra.mxu0 %v304
    %v4725 = vpop.f32.mrf.mxu0
    %v4726 = vadd.f32 %v4677, %v4725
    %v4727 = vpop.f32.mrf.mxu0
    %v4728 = vadd.f32 %v4679, %v4727
    %4729 = vmatmul.bf16.gmra.mxu0 %v311
    %v4730 = vpop.f32.mrf.mxu0
    %v4731 = vadd.f32 %v4682, %v4730
    %v4732 = vpop.f32.mrf.mxu0
    %v4733 = vadd.f32 %v4684, %v4732
    %4734 = vmatmul.bf16.gmra.mxu0 %v318
    %v4735 = vpop.f32.mrf.mxu0
    %v4736 = vadd.f32 %v4687, %v4735
    %v4737 = vpop.f32.mrf.mxu0
    %v4738 = vadd.f32 %v4689, %v4737
    %4739 = vdwg.mxu0
    %4740 = vmatpush.bf16.msra.mxu0 %v2190
    %4741 = vmatpush.bf16.msra.mxu0 %v2182
    %4742 = vmatpush.bf16.msra.mxu0 %v2174
    %4743 = vmatpush.bf16.msra.mxu0 %v2166
    %4744 = vmatpush.bf16.msra.mxu0 %v2158
    %4745 = vmatpush.bf16.msra.mxu0 %v2150
    %4746 = vmatpush.bf16.msra.mxu0 %v2142
    %4747 = vmatpush.bf16.msra.mxu0 %v2134
    %4748 = vmatmul.bf16.gmra.mxu0 %v263
    %v4749 = vpop.f32.mrf.mxu0
    %v4750 = vadd.f32 %v774, %v4749
    %v4751 = vpop.f32.mrf.mxu0
    %v4752 = vadd.f32 %v774, %v4751
    %4753 = vmatmul.bf16.gmra.mxu0 %v270
    %v4754 = vpop.f32.mrf.mxu0
    %v4755 = vadd.f32 %v774, %v4754
    %v4756 = vpop.f32.mrf.mxu0
    %v4757 = vadd.f32 %v774, %v4756
    %4758 = vmatmul.bf16.gmra.mxu0 %v277
    %v4759 = vpop.f32.mrf.mxu0
    %v4760 = vadd.f32 %v774, %v4759
    %v4761 = vpop.f32.mrf.mxu0
    %v4762 = vadd.f32 %v774, %v4761
    %4763 = vmatmul.bf16.gmra.mxu0 %v284
    %v4764 = vpop.f32.mrf.mxu0
    %v4765 = vadd.f32 %v774, %v4764
    %v4766 = vpop.f32.mrf.mxu0
    %v4767 = vadd.f32 %v774, %v4766
    %4768 = vmatmul.bf16.gmra.mxu0 %v291
    %v4769 = vpop.f32.mrf.mxu0
    %v4770 = vadd.f32 %v774, %v4769
    %v4771 = vpop.f32.mrf.mxu0
    %v4772 = vadd.f32 %v774, %v4771
    %4773 = vmatmul.bf16.gmra.mxu0 %v298
    %v4774 = vpop.f32.mrf.mxu0
    %v4775 = vadd.f32 %v774, %v4774
    %v4776 = vpop.f32.mrf.mxu0
    %v4777 = vadd.f32 %v774, %v4776
    %4778 = vmatmul.bf16.gmra.mxu0 %v305
    %v4779 = vpop.f32.mrf.mxu0
    %v4780 = vadd.f32 %v774, %v4779
    %v4781 = vpop.f32.mrf.mxu0
    %v4782 = vadd.f32 %v774, %v4781
    %4783 = vmatmul.bf16.gmra.mxu0 %v312
    %v4784 = vpop.f32.mrf.mxu0
    %v4785 = vadd.f32 %v774, %v4784
    %v4786 = vpop.f32.mrf.mxu0
    %v4787 = vadd.f32 %v774, %v4786
    %4788 = vdwg.mxu0
    %4789 = vmatpush.bf16.msra.mxu0 %v2254
    %4790 = vmatpush.bf16.msra.mxu0 %v2246
    %4791 = vmatpush.bf16.msra.mxu0 %v2238
    %4792 = vmatpush.bf16.msra.mxu0 %v2230
    %4793 = vmatpush.bf16.msra.mxu0 %v2222
    %4794 = vmatpush.bf16.msra.mxu0 %v2214
    %4795 = vmatpush.bf16.msra.mxu0 %v2206
    %4796 = vmatpush.bf16.msra.mxu0 %v2198
    %4797 = vmatmul.bf16.gmra.mxu0 %v264
    %v4798 = vpop.f32.mrf.mxu0
    %v4799 = vadd.f32 %v4750, %v4798
    %v4800 = vpop.f32.mrf.mxu0
    %v4801 = vadd.f32 %v4752, %v4800
    %4802 = vmatmul.bf16.gmra.mxu0 %v271
    %v4803 = vpop.f32.mrf.mxu0
    %v4804 = vadd.f32 %v4755, %v4803
    %v4805 = vpop.f32.mrf.mxu0
    %v4806 = vadd.f32 %v4757, %v4805
    %4807 = vmatmul.bf16.gmra.mxu0 %v278
    %v4808 = vpop.f32.mrf.mxu0
    %v4809 = vadd.f32 %v4760, %v4808
    %v4810 = vpop.f32.mrf.mxu0
    %v4811 = vadd.f32 %v4762, %v4810
    %4812 = vmatmul.bf16.gmra.mxu0 %v285
    %v4813 = vpop.f32.mrf.mxu0
    %v4814 = vadd.f32 %v4765, %v4813
    %v4815 = vpop.f32.mrf.mxu0
    %v4816 = vadd.f32 %v4767, %v4815
    %4817 = vmatmul.bf16.gmra.mxu0 %v292
    %v4818 = vpop.f32.mrf.mxu0
    %v4819 = vadd.f32 %v4770, %v4818
    %v4820 = vpop.f32.mrf.mxu0
    %v4821 = vadd.f32 %v4772, %v4820
    %4822 = vmatmul.bf16.gmra.mxu0 %v299
    %v4823 = vpop.f32.mrf.mxu0
    %v4824 = vadd.f32 %v4775, %v4823
    %v4825 = vpop.f32.mrf.mxu0
    %v4826 = vadd.f32 %v4777, %v4825
    %4827 = vmatmul.bf16.gmra.mxu0 %v306
    %v4828 = vpop.f32.mrf.mxu0
    %v4829 = vadd.f32 %v4780, %v4828
    %v4830 = vpop.f32.mrf.mxu0
    %v4831 = vadd.f32 %v4782, %v4830
    %4832 = vmatmul.bf16.gmra.mxu0 %v313
    %v4833 = vpop.f32.mrf.mxu0
    %v4834 = vadd.f32 %v4785, %v4833
    %v4835 = vpop.f32.mrf.mxu0
    %v4836 = vadd.f32 %v4787, %v4835
    %4837 = vdwg.mxu0
    %4838 = vmatpush.bf16.msra.mxu0 %v2318
    %4839 = vmatpush.bf16.msra.mxu0 %v2310
    %4840 = vmatpush.bf16.msra.mxu0 %v2302
    %4841 = vmatpush.bf16.msra.mxu0 %v2294
    %4842 = vmatpush.bf16.msra.mxu0 %v2286
    %4843 = vmatpush.bf16.msra.mxu0 %v2278
    %4844 = vmatpush.bf16.msra.mxu0 %v2270
    %4845 = vmatpush.bf16.msra.mxu0 %v2262
    %4846 = vmatmul.bf16.gmra.mxu0 %v265
    %v4847 = vpop.f32.mrf.mxu0
    %v4848 = vadd.f32 %v4799, %v4847
    %v4849 = vpop.f32.mrf.mxu0
    %v4850 = vadd.f32 %v4801, %v4849
    %4851 = vmatmul.bf16.gmra.mxu0 %v272
    %v4852 = vpop.f32.mrf.mxu0
    %v4853 = vadd.f32 %v4804, %v4852
    %v4854 = vpop.f32.mrf.mxu0
    %v4855 = vadd.f32 %v4806, %v4854
    %4856 = vmatmul.bf16.gmra.mxu0 %v279
    %v4857 = vpop.f32.mrf.mxu0
    %v4858 = vadd.f32 %v4809, %v4857
    %v4859 = vpop.f32.mrf.mxu0
    %v4860 = vadd.f32 %v4811, %v4859
    %4861 = vmatmul.bf16.gmra.mxu0 %v286
    %v4862 = vpop.f32.mrf.mxu0
    %v4863 = vadd.f32 %v4814, %v4862
    %v4864 = vpop.f32.mrf.mxu0
    %v4865 = vadd.f32 %v4816, %v4864
    %4866 = vmatmul.bf16.gmra.mxu0 %v293
    %v4867 = vpop.f32.mrf.mxu0
    %v4868 = vadd.f32 %v4819, %v4867
    %v4869 = vpop.f32.mrf.mxu0
    %v4870 = vadd.f32 %v4821, %v4869
    %4871 = vmatmul.bf16.gmra.mxu0 %v300
    %v4872 = vpop.f32.mrf.mxu0
    %v4873 = vadd.f32 %v4824, %v4872
    %v4874 = vpop.f32.mrf.mxu0
    %v4875 = vadd.f32 %v4826, %v4874
    %4876 = vmatmul.bf16.gmra.mxu0 %v307
    %v4877 = vpop.f32.mrf.mxu0
    %v4878 = vadd.f32 %v4829, %v4877
    %v4879 = vpop.f32.mrf.mxu0
    %v4880 = vadd.f32 %v4831, %v4879
    %4881 = vmatmul.bf16.gmra.mxu0 %v314
    %v4882 = vpop.f32.mrf.mxu0
    %v4883 = vadd.f32 %v4834, %v4882
    %v4884 = vpop.f32.mrf.mxu0
    %v4885 = vadd.f32 %v4836, %v4884
    %4886 = vdwg.mxu0
    %4887 = vmatpush.bf16.msra.mxu0 %v2382
    %4888 = vmatpush.bf16.msra.mxu0 %v2374
    %4889 = vmatpush.bf16.msra.mxu0 %v2366
    %4890 = vmatpush.bf16.msra.mxu0 %v2358
    %4891 = vmatpush.bf16.msra.mxu0 %v2350
    %4892 = vmatpush.bf16.msra.mxu0 %v2342
    %4893 = vmatpush.bf16.msra.mxu0 %v2334
    %4894 = vmatpush.bf16.msra.mxu0 %v2326
    %4895 = vmatmul.bf16.gmra.mxu0 %v266
    %v4896 = vpop.f32.mrf.mxu0
    %v4897 = vadd.f32 %v4848, %v4896
    %v4898 = vpop.f32.mrf.mxu0
    %v4899 = vadd.f32 %v4850, %v4898
    %4900 = vmatmul.bf16.gmra.mxu0 %v273
    %v4901 = vpop.f32.mrf.mxu0
    %v4902 = vadd.f32 %v4853, %v4901
    %v4903 = vpop.f32.mrf.mxu0
    %v4904 = vadd.f32 %v4855, %v4903
    %4905 = vmatmul.bf16.gmra.mxu0 %v280
    %v4906 = vpop.f32.mrf.mxu0
    %v4907 = vadd.f32 %v4858, %v4906
    %v4908 = vpop.f32.mrf.mxu0
    %v4909 = vadd.f32 %v4860, %v4908
    %4910 = vmatmul.bf16.gmra.mxu0 %v287
    %v4911 = vpop.f32.mrf.mxu0
    %v4912 = vadd.f32 %v4863, %v4911
    %v4913 = vpop.f32.mrf.mxu0
    %v4914 = vadd.f32 %v4865, %v4913
    %4915 = vmatmul.bf16.gmra.mxu0 %v294
    %v4916 = vpop.f32.mrf.mxu0
    %v4917 = vadd.f32 %v4868, %v4916
    %v4918 = vpop.f32.mrf.mxu0
    %v4919 = vadd.f32 %v4870, %v4918
    %4920 = vmatmul.bf16.gmra.mxu0 %v301
    %v4921 = vpop.f32.mrf.mxu0
    %v4922 = vadd.f32 %v4873, %v4921
    %v4923 = vpop.f32.mrf.mxu0
    %v4924 = vadd.f32 %v4875, %v4923
    %4925 = vmatmul.bf16.gmra.mxu0 %v308
    %v4926 = vpop.f32.mrf.mxu0
    %v4927 = vadd.f32 %v4878, %v4926
    %v4928 = vpop.f32.mrf.mxu0
    %v4929 = vadd.f32 %v4880, %v4928
    %4930 = vmatmul.bf16.gmra.mxu0 %v315
    %v4931 = vpop.f32.mrf.mxu0
    %v4932 = vadd.f32 %v4883, %v4931
    %v4933 = vpop.f32.mrf.mxu0
    %v4934 = vadd.f32 %v4885, %v4933
    %4935 = vdwg.mxu0
    %4936 = vmatpush.bf16.msra.mxu0 %v2446
    %4937 = vmatpush.bf16.msra.mxu0 %v2438
    %4938 = vmatpush.bf16.msra.mxu0 %v2430
    %4939 = vmatpush.bf16.msra.mxu0 %v2422
    %4940 = vmatpush.bf16.msra.mxu0 %v2414
    %4941 = vmatpush.bf16.msra.mxu0 %v2406
    %4942 = vmatpush.bf16.msra.mxu0 %v2398
    %4943 = vmatpush.bf16.msra.mxu0 %v2390
    %4944 = vmatmul.bf16.gmra.mxu0 %v267
    %v4945 = vpop.f32.mrf.mxu0
    %v4946 = vadd.f32 %v4897, %v4945
    %v4947 = vpop.f32.mrf.mxu0
    %v4948 = vadd.f32 %v4899, %v4947
    %4949 = vmatmul.bf16.gmra.mxu0 %v274
    %v4950 = vpop.f32.mrf.mxu0
    %v4951 = vadd.f32 %v4902, %v4950
    %v4952 = vpop.f32.mrf.mxu0
    %v4953 = vadd.f32 %v4904, %v4952
    %4954 = vmatmul.bf16.gmra.mxu0 %v281
    %v4955 = vpop.f32.mrf.mxu0
    %v4956 = vadd.f32 %v4907, %v4955
    %v4957 = vpop.f32.mrf.mxu0
    %v4958 = vadd.f32 %v4909, %v4957
    %4959 = vmatmul.bf16.gmra.mxu0 %v288
    %v4960 = vpop.f32.mrf.mxu0
    %v4961 = vadd.f32 %v4912, %v4960
    %v4962 = vpop.f32.mrf.mxu0
    %v4963 = vadd.f32 %v4914, %v4962
    %4964 = vmatmul.bf16.gmra.mxu0 %v295
    %v4965 = vpop.f32.mrf.mxu0
    %v4966 = vadd.f32 %v4917, %v4965
    %v4967 = vpop.f32.mrf.mxu0
    %v4968 = vadd.f32 %v4919, %v4967
    %4969 = vmatmul.bf16.gmra.mxu0 %v302
    %v4970 = vpop.f32.mrf.mxu0
    %v4971 = vadd.f32 %v4922, %v4970
    %v4972 = vpop.f32.mrf.mxu0
    %v4973 = vadd.f32 %v4924, %v4972
    %4974 = vmatmul.bf16.gmra.mxu0 %v309
    %v4975 = vpop.f32.mrf.mxu0
    %v4976 = vadd.f32 %v4927, %v4975
    %v4977 = vpop.f32.mrf.mxu0
    %v4978 = vadd.f32 %v4929, %v4977
    %4979 = vmatmul.bf16.gmra.mxu0 %v316
    %v4980 = vpop.f32.mrf.mxu0
    %v4981 = vadd.f32 %v4932, %v4980
    %v4982 = vpop.f32.mrf.mxu0
    %v4983 = vadd.f32 %v4934, %v4982
    %4984 = vdwg.mxu0
    %4985 = vmatpush.bf16.msra.mxu0 %v2510
    %4986 = vmatpush.bf16.msra.mxu0 %v2502
    %4987 = vmatpush.bf16.msra.mxu0 %v2494
    %4988 = vmatpush.bf16.msra.mxu0 %v2486
    %4989 = vmatpush.bf16.msra.mxu0 %v2478
    %4990 = vmatpush.bf16.msra.mxu0 %v2470
    %4991 = vmatpush.bf16.msra.mxu0 %v2462
    %4992 = vmatpush.bf16.msra.mxu0 %v2454
    %4993 = vmatmul.bf16.gmra.mxu0 %v268
    %v4994 = vpop.f32.mrf.mxu0
    %v4995 = vadd.f32 %v4946, %v4994
    %v4996 = vpop.f32.mrf.mxu0
    %v4997 = vadd.f32 %v4948, %v4996
    %4998 = vmatmul.bf16.gmra.mxu0 %v275
    %v4999 = vpop.f32.mrf.mxu0
    %v5000 = vadd.f32 %v4951, %v4999
    %v5001 = vpop.f32.mrf.mxu0
    %v5002 = vadd.f32 %v4953, %v5001
    %5003 = vmatmul.bf16.gmra.mxu0 %v282
    %v5004 = vpop.f32.mrf.mxu0
    %v5005 = vadd.f32 %v4956, %v5004
    %v5006 = vpop.f32.mrf.mxu0
    %v5007 = vadd.f32 %v4958, %v5006
    %5008 = vmatmul.bf16.gmra.mxu0 %v289
    %v5009 = vpop.f32.mrf.mxu0
    %v5010 = vadd.f32 %v4961, %v5009
    %v5011 = vpop.f32.mrf.mxu0
    %v5012 = vadd.f32 %v4963, %v5011
    %5013 = vmatmul.bf16.gmra.mxu0 %v296
    %v5014 = vpop.f32.mrf.mxu0
    %v5015 = vadd.f32 %v4966, %v5014
    %v5016 = vpop.f32.mrf.mxu0
    %v5017 = vadd.f32 %v4968, %v5016
    %5018 = vmatmul.bf16.gmra.mxu0 %v303
    %v5019 = vpop.f32.mrf.mxu0
    %v5020 = vadd.f32 %v4971, %v5019
    %v5021 = vpop.f32.mrf.mxu0
    %v5022 = vadd.f32 %v4973, %v5021
    %5023 = vmatmul.bf16.gmra.mxu0 %v310
    %v5024 = vpop.f32.mrf.mxu0
    %v5025 = vadd.f32 %v4976, %v5024
    %v5026 = vpop.f32.mrf.mxu0
    %v5027 = vadd.f32 %v4978, %v5026
    %5028 = vmatmul.bf16.gmra.mxu0 %v317
    %v5029 = vpop.f32.mrf.mxu0
    %v5030 = vadd.f32 %v4981, %v5029
    %v5031 = vpop.f32.mrf.mxu0
    %v5032 = vadd.f32 %v4983, %v5031
    %5033 = vdwg.mxu0
    %5034 = vmatpush.bf16.msra.mxu0 %v2574
    %5035 = vmatpush.bf16.msra.mxu0 %v2566
    %5036 = vmatpush.bf16.msra.mxu0 %v2558
    %5037 = vmatpush.bf16.msra.mxu0 %v2550
    %5038 = vmatpush.bf16.msra.mxu0 %v2542
    %5039 = vmatpush.bf16.msra.mxu0 %v2534
    %5040 = vmatpush.bf16.msra.mxu0 %v2526
    %5041 = vmatpush.bf16.msra.mxu0 %v2518
    %5042 = vmatmul.bf16.gmra.mxu0 %v269
    %v5043 = vpop.f32.mrf.mxu0
    %v5044 = vadd.f32 %v4995, %v5043
    %v5045 = vpop.f32.mrf.mxu0
    %v5046 = vadd.f32 %v4997, %v5045
    %5047 = vmatmul.bf16.gmra.mxu0 %v276
    %v5048 = vpop.f32.mrf.mxu0
    %v5049 = vadd.f32 %v5000, %v5048
    %v5050 = vpop.f32.mrf.mxu0
    %v5051 = vadd.f32 %v5002, %v5050
    %5052 = vmatmul.bf16.gmra.mxu0 %v283
    %v5053 = vpop.f32.mrf.mxu0
    %v5054 = vadd.f32 %v5005, %v5053
    %v5055 = vpop.f32.mrf.mxu0
    %v5056 = vadd.f32 %v5007, %v5055
    %5057 = vmatmul.bf16.gmra.mxu0 %v290
    %v5058 = vpop.f32.mrf.mxu0
    %v5059 = vadd.f32 %v5010, %v5058
    %v5060 = vpop.f32.mrf.mxu0
    %v5061 = vadd.f32 %v5012, %v5060
    %5062 = vmatmul.bf16.gmra.mxu0 %v297
    %v5063 = vpop.f32.mrf.mxu0
    %v5064 = vadd.f32 %v5015, %v5063
    %v5065 = vpop.f32.mrf.mxu0
    %v5066 = vadd.f32 %v5017, %v5065
    %5067 = vmatmul.bf16.gmra.mxu0 %v304
    %v5068 = vpop.f32.mrf.mxu0
    %v5069 = vadd.f32 %v5020, %v5068
    %v5070 = vpop.f32.mrf.mxu0
    %v5071 = vadd.f32 %v5022, %v5070
    %5072 = vmatmul.bf16.gmra.mxu0 %v311
    %v5073 = vpop.f32.mrf.mxu0
    %v5074 = vadd.f32 %v5025, %v5073
    %v5075 = vpop.f32.mrf.mxu0
    %v5076 = vadd.f32 %v5027, %v5075
    %5077 = vmatmul.bf16.gmra.mxu0 %v318
    %v5078 = vpop.f32.mrf.mxu0
    %v5079 = vadd.f32 %v5030, %v5078
    %v5080 = vpop.f32.mrf.mxu0
    %v5081 = vadd.f32 %v5032, %v5080
    %5082 = vdwg.mxu0
    %5083 = vmatpush.bf16.msra.mxu0 %v2191
    %5084 = vmatpush.bf16.msra.mxu0 %v2183
    %5085 = vmatpush.bf16.msra.mxu0 %v2175
    %5086 = vmatpush.bf16.msra.mxu0 %v2167
    %5087 = vmatpush.bf16.msra.mxu0 %v2159
    %5088 = vmatpush.bf16.msra.mxu0 %v2151
    %5089 = vmatpush.bf16.msra.mxu0 %v2143
    %5090 = vmatpush.bf16.msra.mxu0 %v2135
    %5091 = vmatmul.bf16.gmra.mxu0 %v263
    %v5092 = vpop.f32.mrf.mxu0
    %v5093 = vadd.f32 %v775, %v5092
    %v5094 = vpop.f32.mrf.mxu0
    %v5095 = vadd.f32 %v775, %v5094
    %5096 = vmatmul.bf16.gmra.mxu0 %v270
    %v5097 = vpop.f32.mrf.mxu0
    %v5098 = vadd.f32 %v775, %v5097
    %v5099 = vpop.f32.mrf.mxu0
    %v5100 = vadd.f32 %v775, %v5099
    %5101 = vmatmul.bf16.gmra.mxu0 %v277
    %v5102 = vpop.f32.mrf.mxu0
    %v5103 = vadd.f32 %v775, %v5102
    %v5104 = vpop.f32.mrf.mxu0
    %v5105 = vadd.f32 %v775, %v5104
    %5106 = vmatmul.bf16.gmra.mxu0 %v284
    %v5107 = vpop.f32.mrf.mxu0
    %v5108 = vadd.f32 %v775, %v5107
    %v5109 = vpop.f32.mrf.mxu0
    %v5110 = vadd.f32 %v775, %v5109
    %5111 = vmatmul.bf16.gmra.mxu0 %v291
    %v5112 = vpop.f32.mrf.mxu0
    %v5113 = vadd.f32 %v775, %v5112
    %v5114 = vpop.f32.mrf.mxu0
    %v5115 = vadd.f32 %v775, %v5114
    %5116 = vmatmul.bf16.gmra.mxu0 %v298
    %v5117 = vpop.f32.mrf.mxu0
    %v5118 = vadd.f32 %v775, %v5117
    %v5119 = vpop.f32.mrf.mxu0
    %v5120 = vadd.f32 %v775, %v5119
    %5121 = vmatmul.bf16.gmra.mxu0 %v305
    %v5122 = vpop.f32.mrf.mxu0
    %v5123 = vadd.f32 %v775, %v5122
    %v5124 = vpop.f32.mrf.mxu0
    %v5125 = vadd.f32 %v775, %v5124
    %5126 = vmatmul.bf16.gmra.mxu0 %v312
    %v5127 = vpop.f32.mrf.mxu0
    %v5128 = vadd.f32 %v775, %v5127
    %v5129 = vpop.f32.mrf.mxu0
    %v5130 = vadd.f32 %v775, %v5129
    %5131 = vdwg.mxu0
    %5132 = vmatpush.bf16.msra.mxu0 %v2255
    %5133 = vmatpush.bf16.msra.mxu0 %v2247
    %5134 = vmatpush.bf16.msra.mxu0 %v2239
    %5135 = vmatpush.bf16.msra.mxu0 %v2231
    %5136 = vmatpush.bf16.msra.mxu0 %v2223
    %5137 = vmatpush.bf16.msra.mxu0 %v2215
    %5138 = vmatpush.bf16.msra.mxu0 %v2207
    %5139 = vmatpush.bf16.msra.mxu0 %v2199
    %5140 = vmatmul.bf16.gmra.mxu0 %v264
    %v5141 = vpop.f32.mrf.mxu0
    %v5142 = vadd.f32 %v5093, %v5141
    %v5143 = vpop.f32.mrf.mxu0
    %v5144 = vadd.f32 %v5095, %v5143
    %5145 = vmatmul.bf16.gmra.mxu0 %v271
    %v5146 = vpop.f32.mrf.mxu0
    %v5147 = vadd.f32 %v5098, %v5146
    %v5148 = vpop.f32.mrf.mxu0
    %v5149 = vadd.f32 %v5100, %v5148
    %5150 = vmatmul.bf16.gmra.mxu0 %v278
    %v5151 = vpop.f32.mrf.mxu0
    %v5152 = vadd.f32 %v5103, %v5151
    %v5153 = vpop.f32.mrf.mxu0
    %v5154 = vadd.f32 %v5105, %v5153
    %5155 = vmatmul.bf16.gmra.mxu0 %v285
    %v5156 = vpop.f32.mrf.mxu0
    %v5157 = vadd.f32 %v5108, %v5156
    %v5158 = vpop.f32.mrf.mxu0
    %v5159 = vadd.f32 %v5110, %v5158
    %5160 = vmatmul.bf16.gmra.mxu0 %v292
    %v5161 = vpop.f32.mrf.mxu0
    %v5162 = vadd.f32 %v5113, %v5161
    %v5163 = vpop.f32.mrf.mxu0
    %v5164 = vadd.f32 %v5115, %v5163
    %5165 = vmatmul.bf16.gmra.mxu0 %v299
    %v5166 = vpop.f32.mrf.mxu0
    %v5167 = vadd.f32 %v5118, %v5166
    %v5168 = vpop.f32.mrf.mxu0
    %v5169 = vadd.f32 %v5120, %v5168
    %5170 = vmatmul.bf16.gmra.mxu0 %v306
    %v5171 = vpop.f32.mrf.mxu0
    %v5172 = vadd.f32 %v5123, %v5171
    %v5173 = vpop.f32.mrf.mxu0
    %v5174 = vadd.f32 %v5125, %v5173
    %5175 = vmatmul.bf16.gmra.mxu0 %v313
    %v5176 = vpop.f32.mrf.mxu0
    %v5177 = vadd.f32 %v5128, %v5176
    %v5178 = vpop.f32.mrf.mxu0
    %v5179 = vadd.f32 %v5130, %v5178
    %5180 = vdwg.mxu0
    %5181 = vmatpush.bf16.msra.mxu0 %v2319
    %5182 = vmatpush.bf16.msra.mxu0 %v2311
    %5183 = vmatpush.bf16.msra.mxu0 %v2303
    %5184 = vmatpush.bf16.msra.mxu0 %v2295
    %5185 = vmatpush.bf16.msra.mxu0 %v2287
    %5186 = vmatpush.bf16.msra.mxu0 %v2279
    %5187 = vmatpush.bf16.msra.mxu0 %v2271
    %5188 = vmatpush.bf16.msra.mxu0 %v2263
    %5189 = vmatmul.bf16.gmra.mxu0 %v265
    %v5190 = vpop.f32.mrf.mxu0
    %v5191 = vadd.f32 %v5142, %v5190
    %v5192 = vpop.f32.mrf.mxu0
    %v5193 = vadd.f32 %v5144, %v5192
    %5194 = vmatmul.bf16.gmra.mxu0 %v272
    %v5195 = vpop.f32.mrf.mxu0
    %v5196 = vadd.f32 %v5147, %v5195
    %v5197 = vpop.f32.mrf.mxu0
    %v5198 = vadd.f32 %v5149, %v5197
    %5199 = vmatmul.bf16.gmra.mxu0 %v279
    %v5200 = vpop.f32.mrf.mxu0
    %v5201 = vadd.f32 %v5152, %v5200
    %v5202 = vpop.f32.mrf.mxu0
    %v5203 = vadd.f32 %v5154, %v5202
    %5204 = vmatmul.bf16.gmra.mxu0 %v286
    %v5205 = vpop.f32.mrf.mxu0
    %v5206 = vadd.f32 %v5157, %v5205
    %v5207 = vpop.f32.mrf.mxu0
    %v5208 = vadd.f32 %v5159, %v5207
    %5209 = vmatmul.bf16.gmra.mxu0 %v293
    %v5210 = vpop.f32.mrf.mxu0
    %v5211 = vadd.f32 %v5162, %v5210
    %v5212 = vpop.f32.mrf.mxu0
    %v5213 = vadd.f32 %v5164, %v5212
    %5214 = vmatmul.bf16.gmra.mxu0 %v300
    %v5215 = vpop.f32.mrf.mxu0
    %v5216 = vadd.f32 %v5167, %v5215
    %v5217 = vpop.f32.mrf.mxu0
    %v5218 = vadd.f32 %v5169, %v5217
    %5219 = vmatmul.bf16.gmra.mxu0 %v307
    %v5220 = vpop.f32.mrf.mxu0
    %v5221 = vadd.f32 %v5172, %v5220
    %v5222 = vpop.f32.mrf.mxu0
    %v5223 = vadd.f32 %v5174, %v5222
    %5224 = vmatmul.bf16.gmra.mxu0 %v314
    %v5225 = vpop.f32.mrf.mxu0
    %v5226 = vadd.f32 %v5177, %v5225
    %v5227 = vpop.f32.mrf.mxu0
    %v5228 = vadd.f32 %v5179, %v5227
    %5229 = vdwg.mxu0
    %5230 = vmatpush.bf16.msra.mxu0 %v2383
    %5231 = vmatpush.bf16.msra.mxu0 %v2375
    %5232 = vmatpush.bf16.msra.mxu0 %v2367
    %5233 = vmatpush.bf16.msra.mxu0 %v2359
    %5234 = vmatpush.bf16.msra.mxu0 %v2351
    %5235 = vmatpush.bf16.msra.mxu0 %v2343
    %5236 = vmatpush.bf16.msra.mxu0 %v2335
    %5237 = vmatpush.bf16.msra.mxu0 %v2327
    %5238 = vmatmul.bf16.gmra.mxu0 %v266
    %v5239 = vpop.f32.mrf.mxu0
    %v5240 = vadd.f32 %v5191, %v5239
    %v5241 = vpop.f32.mrf.mxu0
    %v5242 = vadd.f32 %v5193, %v5241
    %5243 = vmatmul.bf16.gmra.mxu0 %v273
    %v5244 = vpop.f32.mrf.mxu0
    %v5245 = vadd.f32 %v5196, %v5244
    %v5246 = vpop.f32.mrf.mxu0
    %v5247 = vadd.f32 %v5198, %v5246
    %5248 = vmatmul.bf16.gmra.mxu0 %v280
    %v5249 = vpop.f32.mrf.mxu0
    %v5250 = vadd.f32 %v5201, %v5249
    %v5251 = vpop.f32.mrf.mxu0
    %v5252 = vadd.f32 %v5203, %v5251
    %5253 = vmatmul.bf16.gmra.mxu0 %v287
    %v5254 = vpop.f32.mrf.mxu0
    %v5255 = vadd.f32 %v5206, %v5254
    %v5256 = vpop.f32.mrf.mxu0
    %v5257 = vadd.f32 %v5208, %v5256
    %5258 = vmatmul.bf16.gmra.mxu0 %v294
    %v5259 = vpop.f32.mrf.mxu0
    %v5260 = vadd.f32 %v5211, %v5259
    %v5261 = vpop.f32.mrf.mxu0
    %v5262 = vadd.f32 %v5213, %v5261
    %5263 = vmatmul.bf16.gmra.mxu0 %v301
    %v5264 = vpop.f32.mrf.mxu0
    %v5265 = vadd.f32 %v5216, %v5264
    %v5266 = vpop.f32.mrf.mxu0
    %v5267 = vadd.f32 %v5218, %v5266
    %5268 = vmatmul.bf16.gmra.mxu0 %v308
    %v5269 = vpop.f32.mrf.mxu0
    %v5270 = vadd.f32 %v5221, %v5269
    %v5271 = vpop.f32.mrf.mxu0
    %v5272 = vadd.f32 %v5223, %v5271
    %5273 = vmatmul.bf16.gmra.mxu0 %v315
    %v5274 = vpop.f32.mrf.mxu0
    %v5275 = vadd.f32 %v5226, %v5274
    %v5276 = vpop.f32.mrf.mxu0
    %v5277 = vadd.f32 %v5228, %v5276
    %5278 = vdwg.mxu0
    %5279 = vmatpush.bf16.msra.mxu0 %v2447
    %5280 = vmatpush.bf16.msra.mxu0 %v2439
    %5281 = vmatpush.bf16.msra.mxu0 %v2431
    %5282 = vmatpush.bf16.msra.mxu0 %v2423
    %5283 = vmatpush.bf16.msra.mxu0 %v2415
    %5284 = vmatpush.bf16.msra.mxu0 %v2407
    %5285 = vmatpush.bf16.msra.mxu0 %v2399
    %5286 = vmatpush.bf16.msra.mxu0 %v2391
    %5287 = vmatmul.bf16.gmra.mxu0 %v267
    %v5288 = vpop.f32.mrf.mxu0
    %v5289 = vadd.f32 %v5240, %v5288
    %v5290 = vpop.f32.mrf.mxu0
    %v5291 = vadd.f32 %v5242, %v5290
    %5292 = vmatmul.bf16.gmra.mxu0 %v274
    %v5293 = vpop.f32.mrf.mxu0
    %v5294 = vadd.f32 %v5245, %v5293
    %v5295 = vpop.f32.mrf.mxu0
    %v5296 = vadd.f32 %v5247, %v5295
    %5297 = vmatmul.bf16.gmra.mxu0 %v281
    %v5298 = vpop.f32.mrf.mxu0
    %v5299 = vadd.f32 %v5250, %v5298
    %v5300 = vpop.f32.mrf.mxu0
    %v5301 = vadd.f32 %v5252, %v5300
    %5302 = vmatmul.bf16.gmra.mxu0 %v288
    %v5303 = vpop.f32.mrf.mxu0
    %v5304 = vadd.f32 %v5255, %v5303
    %v5305 = vpop.f32.mrf.mxu0
    %v5306 = vadd.f32 %v5257, %v5305
    %5307 = vmatmul.bf16.gmra.mxu0 %v295
    %v5308 = vpop.f32.mrf.mxu0
    %v5309 = vadd.f32 %v5260, %v5308
    %v5310 = vpop.f32.mrf.mxu0
    %v5311 = vadd.f32 %v5262, %v5310
    %5312 = vmatmul.bf16.gmra.mxu0 %v302
    %v5313 = vpop.f32.mrf.mxu0
    %v5314 = vadd.f32 %v5265, %v5313
    %v5315 = vpop.f32.mrf.mxu0
    %v5316 = vadd.f32 %v5267, %v5315
    %5317 = vmatmul.bf16.gmra.mxu0 %v309
    %v5318 = vpop.f32.mrf.mxu0
    %v5319 = vadd.f32 %v5270, %v5318
    %v5320 = vpop.f32.mrf.mxu0
    %v5321 = vadd.f32 %v5272, %v5320
    %5322 = vmatmul.bf16.gmra.mxu0 %v316
    %v5323 = vpop.f32.mrf.mxu0
    %v5324 = vadd.f32 %v5275, %v5323
    %v5325 = vpop.f32.mrf.mxu0
    %v5326 = vadd.f32 %v5277, %v5325
    %5327 = vdwg.mxu0
    %5328 = vmatpush.bf16.msra.mxu0 %v2511
    %5329 = vmatpush.bf16.msra.mxu0 %v2503
    %5330 = vmatpush.bf16.msra.mxu0 %v2495
    %5331 = vmatpush.bf16.msra.mxu0 %v2487
    %5332 = vmatpush.bf16.msra.mxu0 %v2479
    %5333 = vmatpush.bf16.msra.mxu0 %v2471
    %5334 = vmatpush.bf16.msra.mxu0 %v2463
    %5335 = vmatpush.bf16.msra.mxu0 %v2455
    %5336 = vmatmul.bf16.gmra.mxu0 %v268
    %v5337 = vpop.f32.mrf.mxu0
    %v5338 = vadd.f32 %v5289, %v5337
    %v5339 = vpop.f32.mrf.mxu0
    %v5340 = vadd.f32 %v5291, %v5339
    %5341 = vmatmul.bf16.gmra.mxu0 %v275
    %v5342 = vpop.f32.mrf.mxu0
    %v5343 = vadd.f32 %v5294, %v5342
    %v5344 = vpop.f32.mrf.mxu0
    %v5345 = vadd.f32 %v5296, %v5344
    %5346 = vmatmul.bf16.gmra.mxu0 %v282
    %v5347 = vpop.f32.mrf.mxu0
    %v5348 = vadd.f32 %v5299, %v5347
    %v5349 = vpop.f32.mrf.mxu0
    %v5350 = vadd.f32 %v5301, %v5349
    %5351 = vmatmul.bf16.gmra.mxu0 %v289
    %v5352 = vpop.f32.mrf.mxu0
    %v5353 = vadd.f32 %v5304, %v5352
    %v5354 = vpop.f32.mrf.mxu0
    %v5355 = vadd.f32 %v5306, %v5354
    %5356 = vmatmul.bf16.gmra.mxu0 %v296
    %v5357 = vpop.f32.mrf.mxu0
    %v5358 = vadd.f32 %v5309, %v5357
    %v5359 = vpop.f32.mrf.mxu0
    %v5360 = vadd.f32 %v5311, %v5359
    %5361 = vmatmul.bf16.gmra.mxu0 %v303
    %v5362 = vpop.f32.mrf.mxu0
    %v5363 = vadd.f32 %v5314, %v5362
    %v5364 = vpop.f32.mrf.mxu0
    %v5365 = vadd.f32 %v5316, %v5364
    %5366 = vmatmul.bf16.gmra.mxu0 %v310
    %v5367 = vpop.f32.mrf.mxu0
    %v5368 = vadd.f32 %v5319, %v5367
    %v5369 = vpop.f32.mrf.mxu0
    %v5370 = vadd.f32 %v5321, %v5369
    %5371 = vmatmul.bf16.gmra.mxu0 %v317
    %v5372 = vpop.f32.mrf.mxu0
    %v5373 = vadd.f32 %v5324, %v5372
    %v5374 = vpop.f32.mrf.mxu0
    %v5375 = vadd.f32 %v5326, %v5374
    %5376 = vdwg.mxu0
    %5377 = vmatpush.bf16.msra.mxu0 %v2575
    %5378 = vmatpush.bf16.msra.mxu0 %v2567
    %5379 = vmatpush.bf16.msra.mxu0 %v2559
    %5380 = vmatpush.bf16.msra.mxu0 %v2551
    %5381 = vmatpush.bf16.msra.mxu0 %v2543
    %5382 = vmatpush.bf16.msra.mxu0 %v2535
    %5383 = vmatpush.bf16.msra.mxu0 %v2527
    %5384 = vmatpush.bf16.msra.mxu0 %v2519
    %5385 = vmatmul.bf16.gmra.mxu0 %v269
    %v5386 = vpop.f32.mrf.mxu0
    %v5387 = vadd.f32 %v5338, %v5386
    %v5388 = vpop.f32.mrf.mxu0
    %v5389 = vadd.f32 %v5340, %v5388
    %5390 = vmatmul.bf16.gmra.mxu0 %v276
    %v5391 = vpop.f32.mrf.mxu0
    %v5392 = vadd.f32 %v5343, %v5391
    %v5393 = vpop.f32.mrf.mxu0
    %v5394 = vadd.f32 %v5345, %v5393
    %5395 = vmatmul.bf16.gmra.mxu0 %v283
    %v5396 = vpop.f32.mrf.mxu0
    %v5397 = vadd.f32 %v5348, %v5396
    %v5398 = vpop.f32.mrf.mxu0
    %v5399 = vadd.f32 %v5350, %v5398
    %5400 = vmatmul.bf16.gmra.mxu0 %v290
    %v5401 = vpop.f32.mrf.mxu0
    %v5402 = vadd.f32 %v5353, %v5401
    %v5403 = vpop.f32.mrf.mxu0
    %v5404 = vadd.f32 %v5355, %v5403
    %5405 = vmatmul.bf16.gmra.mxu0 %v297
    %v5406 = vpop.f32.mrf.mxu0
    %v5407 = vadd.f32 %v5358, %v5406
    %v5408 = vpop.f32.mrf.mxu0
    %v5409 = vadd.f32 %v5360, %v5408
    %5410 = vmatmul.bf16.gmra.mxu0 %v304
    %v5411 = vpop.f32.mrf.mxu0
    %v5412 = vadd.f32 %v5363, %v5411
    %v5413 = vpop.f32.mrf.mxu0
    %v5414 = vadd.f32 %v5365, %v5413
    %5415 = vmatmul.bf16.gmra.mxu0 %v311
    %v5416 = vpop.f32.mrf.mxu0
    %v5417 = vadd.f32 %v5368, %v5416
    %v5418 = vpop.f32.mrf.mxu0
    %v5419 = vadd.f32 %v5370, %v5418
    %5420 = vmatmul.bf16.gmra.mxu0 %v318
    %v5421 = vpop.f32.mrf.mxu0
    %v5422 = vadd.f32 %v5373, %v5421
    %v5423 = vpop.f32.mrf.mxu0
    %v5424 = vadd.f32 %v5375, %v5423
    %5425 = vdwg.mxu0
    %5426 = vmatpush.bf16.msra.mxu0 %v2192
    %5427 = vmatpush.bf16.msra.mxu0 %v2184
    %5428 = vmatpush.bf16.msra.mxu0 %v2176
    %5429 = vmatpush.bf16.msra.mxu0 %v2168
    %5430 = vmatpush.bf16.msra.mxu0 %v2160
    %5431 = vmatpush.bf16.msra.mxu0 %v2152
    %5432 = vmatpush.bf16.msra.mxu0 %v2144
    %5433 = vmatpush.bf16.msra.mxu0 %v2136
    %5434 = vmatmul.bf16.gmra.mxu0 %v263
    %v5435 = vpop.f32.mrf.mxu0
    %v5436 = vadd.f32 %v776, %v5435
    %v5437 = vpop.f32.mrf.mxu0
    %v5438 = vadd.f32 %v776, %v5437
    %5439 = vmatmul.bf16.gmra.mxu0 %v270
    %v5440 = vpop.f32.mrf.mxu0
    %v5441 = vadd.f32 %v776, %v5440
    %v5442 = vpop.f32.mrf.mxu0
    %v5443 = vadd.f32 %v776, %v5442
    %5444 = vmatmul.bf16.gmra.mxu0 %v277
    %v5445 = vpop.f32.mrf.mxu0
    %v5446 = vadd.f32 %v776, %v5445
    %v5447 = vpop.f32.mrf.mxu0
    %v5448 = vadd.f32 %v776, %v5447
    %5449 = vmatmul.bf16.gmra.mxu0 %v284
    %v5450 = vpop.f32.mrf.mxu0
    %v5451 = vadd.f32 %v776, %v5450
    %v5452 = vpop.f32.mrf.mxu0
    %v5453 = vadd.f32 %v776, %v5452
    %5454 = vmatmul.bf16.gmra.mxu0 %v291
    %v5455 = vpop.f32.mrf.mxu0
    %v5456 = vadd.f32 %v776, %v5455
    %v5457 = vpop.f32.mrf.mxu0
    %v5458 = vadd.f32 %v776, %v5457
    %5459 = vmatmul.bf16.gmra.mxu0 %v298
    %v5460 = vpop.f32.mrf.mxu0
    %v5461 = vadd.f32 %v776, %v5460
    %v5462 = vpop.f32.mrf.mxu0
    %v5463 = vadd.f32 %v776, %v5462
    %5464 = vmatmul.bf16.gmra.mxu0 %v305
    %v5465 = vpop.f32.mrf.mxu0
    %v5466 = vadd.f32 %v776, %v5465
    %v5467 = vpop.f32.mrf.mxu0
    %v5468 = vadd.f32 %v776, %v5467
    %5469 = vmatmul.bf16.gmra.mxu0 %v312
    %v5470 = vpop.f32.mrf.mxu0
    %v5471 = vadd.f32 %v776, %v5470
    %v5472 = vpop.f32.mrf.mxu0
    %v5473 = vadd.f32 %v776, %v5472
    %5474 = vdwg.mxu0
    %5475 = vmatpush.bf16.msra.mxu0 %v2256
    %5476 = vmatpush.bf16.msra.mxu0 %v2248
    %5477 = vmatpush.bf16.msra.mxu0 %v2240
    %5478 = vmatpush.bf16.msra.mxu0 %v2232
    %5479 = vmatpush.bf16.msra.mxu0 %v2224
    %5480 = vmatpush.bf16.msra.mxu0 %v2216
    %5481 = vmatpush.bf16.msra.mxu0 %v2208
    %5482 = vmatpush.bf16.msra.mxu0 %v2200
    %5483 = vmatmul.bf16.gmra.mxu0 %v264
    %v5484 = vpop.f32.mrf.mxu0
    %v5485 = vadd.f32 %v5436, %v5484
    %v5486 = vpop.f32.mrf.mxu0
    %v5487 = vadd.f32 %v5438, %v5486
    %5488 = vmatmul.bf16.gmra.mxu0 %v271
    %v5489 = vpop.f32.mrf.mxu0
    %v5490 = vadd.f32 %v5441, %v5489
    %v5491 = vpop.f32.mrf.mxu0
    %v5492 = vadd.f32 %v5443, %v5491
    %5493 = vmatmul.bf16.gmra.mxu0 %v278
    %v5494 = vpop.f32.mrf.mxu0
    %v5495 = vadd.f32 %v5446, %v5494
    %v5496 = vpop.f32.mrf.mxu0
    %v5497 = vadd.f32 %v5448, %v5496
    %5498 = vmatmul.bf16.gmra.mxu0 %v285
    %v5499 = vpop.f32.mrf.mxu0
    %v5500 = vadd.f32 %v5451, %v5499
    %v5501 = vpop.f32.mrf.mxu0
    %v5502 = vadd.f32 %v5453, %v5501
    %5503 = vmatmul.bf16.gmra.mxu0 %v292
    %v5504 = vpop.f32.mrf.mxu0
    %v5505 = vadd.f32 %v5456, %v5504
    %v5506 = vpop.f32.mrf.mxu0
    %v5507 = vadd.f32 %v5458, %v5506
    %5508 = vmatmul.bf16.gmra.mxu0 %v299
    %v5509 = vpop.f32.mrf.mxu0
    %v5510 = vadd.f32 %v5461, %v5509
    %v5511 = vpop.f32.mrf.mxu0
    %v5512 = vadd.f32 %v5463, %v5511
    %5513 = vmatmul.bf16.gmra.mxu0 %v306
    %v5514 = vpop.f32.mrf.mxu0
    %v5515 = vadd.f32 %v5466, %v5514
    %v5516 = vpop.f32.mrf.mxu0
    %v5517 = vadd.f32 %v5468, %v5516
    %5518 = vmatmul.bf16.gmra.mxu0 %v313
    %v5519 = vpop.f32.mrf.mxu0
    %v5520 = vadd.f32 %v5471, %v5519
    %v5521 = vpop.f32.mrf.mxu0
    %v5522 = vadd.f32 %v5473, %v5521
    %5523 = vdwg.mxu0
    %5524 = vmatpush.bf16.msra.mxu0 %v2320
    %5525 = vmatpush.bf16.msra.mxu0 %v2312
    %5526 = vmatpush.bf16.msra.mxu0 %v2304
    %5527 = vmatpush.bf16.msra.mxu0 %v2296
    %5528 = vmatpush.bf16.msra.mxu0 %v2288
    %5529 = vmatpush.bf16.msra.mxu0 %v2280
    %5530 = vmatpush.bf16.msra.mxu0 %v2272
    %5531 = vmatpush.bf16.msra.mxu0 %v2264
    %5532 = vmatmul.bf16.gmra.mxu0 %v265
    %v5533 = vpop.f32.mrf.mxu0
    %v5534 = vadd.f32 %v5485, %v5533
    %v5535 = vpop.f32.mrf.mxu0
    %v5536 = vadd.f32 %v5487, %v5535
    %5537 = vmatmul.bf16.gmra.mxu0 %v272
    %v5538 = vpop.f32.mrf.mxu0
    %v5539 = vadd.f32 %v5490, %v5538
    %v5540 = vpop.f32.mrf.mxu0
    %v5541 = vadd.f32 %v5492, %v5540
    %5542 = vmatmul.bf16.gmra.mxu0 %v279
    %v5543 = vpop.f32.mrf.mxu0
    %v5544 = vadd.f32 %v5495, %v5543
    %v5545 = vpop.f32.mrf.mxu0
    %v5546 = vadd.f32 %v5497, %v5545
    %5547 = vmatmul.bf16.gmra.mxu0 %v286
    %v5548 = vpop.f32.mrf.mxu0
    %v5549 = vadd.f32 %v5500, %v5548
    %v5550 = vpop.f32.mrf.mxu0
    %v5551 = vadd.f32 %v5502, %v5550
    %5552 = vmatmul.bf16.gmra.mxu0 %v293
    %v5553 = vpop.f32.mrf.mxu0
    %v5554 = vadd.f32 %v5505, %v5553
    %v5555 = vpop.f32.mrf.mxu0
    %v5556 = vadd.f32 %v5507, %v5555
    %5557 = vmatmul.bf16.gmra.mxu0 %v300
    %v5558 = vpop.f32.mrf.mxu0
    %v5559 = vadd.f32 %v5510, %v5558
    %v5560 = vpop.f32.mrf.mxu0
    %v5561 = vadd.f32 %v5512, %v5560
    %5562 = vmatmul.bf16.gmra.mxu0 %v307
    %v5563 = vpop.f32.mrf.mxu0
    %v5564 = vadd.f32 %v5515, %v5563
    %v5565 = vpop.f32.mrf.mxu0
    %v5566 = vadd.f32 %v5517, %v5565
    %5567 = vmatmul.bf16.gmra.mxu0 %v314
    %v5568 = vpop.f32.mrf.mxu0
    %v5569 = vadd.f32 %v5520, %v5568
    %v5570 = vpop.f32.mrf.mxu0
    %v5571 = vadd.f32 %v5522, %v5570
    %5572 = vdwg.mxu0
    %5573 = vmatpush.bf16.msra.mxu0 %v2384
    %5574 = vmatpush.bf16.msra.mxu0 %v2376
    %5575 = vmatpush.bf16.msra.mxu0 %v2368
    %5576 = vmatpush.bf16.msra.mxu0 %v2360
    %5577 = vmatpush.bf16.msra.mxu0 %v2352
    %5578 = vmatpush.bf16.msra.mxu0 %v2344
    %5579 = vmatpush.bf16.msra.mxu0 %v2336
    %5580 = vmatpush.bf16.msra.mxu0 %v2328
    %5581 = vmatmul.bf16.gmra.mxu0 %v266
    %v5582 = vpop.f32.mrf.mxu0
    %v5583 = vadd.f32 %v5534, %v5582
    %v5584 = vpop.f32.mrf.mxu0
    %v5585 = vadd.f32 %v5536, %v5584
    %5586 = vmatmul.bf16.gmra.mxu0 %v273
    %v5587 = vpop.f32.mrf.mxu0
    %v5588 = vadd.f32 %v5539, %v5587
    %v5589 = vpop.f32.mrf.mxu0
    %v5590 = vadd.f32 %v5541, %v5589
    %5591 = vmatmul.bf16.gmra.mxu0 %v280
    %v5592 = vpop.f32.mrf.mxu0
    %v5593 = vadd.f32 %v5544, %v5592
    %v5594 = vpop.f32.mrf.mxu0
    %v5595 = vadd.f32 %v5546, %v5594
    %5596 = vmatmul.bf16.gmra.mxu0 %v287
    %v5597 = vpop.f32.mrf.mxu0
    %v5598 = vadd.f32 %v5549, %v5597
    %v5599 = vpop.f32.mrf.mxu0
    %v5600 = vadd.f32 %v5551, %v5599
    %5601 = vmatmul.bf16.gmra.mxu0 %v294
    %v5602 = vpop.f32.mrf.mxu0
    %v5603 = vadd.f32 %v5554, %v5602
    %v5604 = vpop.f32.mrf.mxu0
    %v5605 = vadd.f32 %v5556, %v5604
    %5606 = vmatmul.bf16.gmra.mxu0 %v301
    %v5607 = vpop.f32.mrf.mxu0
    %v5608 = vadd.f32 %v5559, %v5607
    %v5609 = vpop.f32.mrf.mxu0
    %v5610 = vadd.f32 %v5561, %v5609
    %5611 = vmatmul.bf16.gmra.mxu0 %v308
    %v5612 = vpop.f32.mrf.mxu0
    %v5613 = vadd.f32 %v5564, %v5612
    %v5614 = vpop.f32.mrf.mxu0
    %v5615 = vadd.f32 %v5566, %v5614
    %5616 = vmatmul.bf16.gmra.mxu0 %v315
    %v5617 = vpop.f32.mrf.mxu0
    %v5618 = vadd.f32 %v5569, %v5617
    %v5619 = vpop.f32.mrf.mxu0
    %v5620 = vadd.f32 %v5571, %v5619
    %5621 = vdwg.mxu0
    %5622 = vmatpush.bf16.msra.mxu0 %v2448
    %5623 = vmatpush.bf16.msra.mxu0 %v2440
    %5624 = vmatpush.bf16.msra.mxu0 %v2432
    %5625 = vmatpush.bf16.msra.mxu0 %v2424
    %5626 = vmatpush.bf16.msra.mxu0 %v2416
    %5627 = vmatpush.bf16.msra.mxu0 %v2408
    %5628 = vmatpush.bf16.msra.mxu0 %v2400
    %5629 = vmatpush.bf16.msra.mxu0 %v2392
    %5630 = vmatmul.bf16.gmra.mxu0 %v267
    %v5631 = vpop.f32.mrf.mxu0
    %v5632 = vadd.f32 %v5583, %v5631
    %v5633 = vpop.f32.mrf.mxu0
    %v5634 = vadd.f32 %v5585, %v5633
    %5635 = vmatmul.bf16.gmra.mxu0 %v274
    %v5636 = vpop.f32.mrf.mxu0
    %v5637 = vadd.f32 %v5588, %v5636
    %v5638 = vpop.f32.mrf.mxu0
    %v5639 = vadd.f32 %v5590, %v5638
    %5640 = vmatmul.bf16.gmra.mxu0 %v281
    %v5641 = vpop.f32.mrf.mxu0
    %v5642 = vadd.f32 %v5593, %v5641
    %v5643 = vpop.f32.mrf.mxu0
    %v5644 = vadd.f32 %v5595, %v5643
    %5645 = vmatmul.bf16.gmra.mxu0 %v288
    %v5646 = vpop.f32.mrf.mxu0
    %v5647 = vadd.f32 %v5598, %v5646
    %v5648 = vpop.f32.mrf.mxu0
    %v5649 = vadd.f32 %v5600, %v5648
    %5650 = vmatmul.bf16.gmra.mxu0 %v295
    %v5651 = vpop.f32.mrf.mxu0
    %v5652 = vadd.f32 %v5603, %v5651
    %v5653 = vpop.f32.mrf.mxu0
    %v5654 = vadd.f32 %v5605, %v5653
    %5655 = vmatmul.bf16.gmra.mxu0 %v302
    %v5656 = vpop.f32.mrf.mxu0
    %v5657 = vadd.f32 %v5608, %v5656
    %v5658 = vpop.f32.mrf.mxu0
    %v5659 = vadd.f32 %v5610, %v5658
    %5660 = vmatmul.bf16.gmra.mxu0 %v309
    %v5661 = vpop.f32.mrf.mxu0
    %v5662 = vadd.f32 %v5613, %v5661
    %v5663 = vpop.f32.mrf.mxu0
    %v5664 = vadd.f32 %v5615, %v5663
    %5665 = vmatmul.bf16.gmra.mxu0 %v316
    %v5666 = vpop.f32.mrf.mxu0
    %v5667 = vadd.f32 %v5618, %v5666
    %v5668 = vpop.f32.mrf.mxu0
    %v5669 = vadd.f32 %v5620, %v5668
    %5670 = vdwg.mxu0
    %5671 = vmatpush.bf16.msra.mxu0 %v2512
    %5672 = vmatpush.bf16.msra.mxu0 %v2504
    %5673 = vmatpush.bf16.msra.mxu0 %v2496
    %5674 = vmatpush.bf16.msra.mxu0 %v2488
    %5675 = vmatpush.bf16.msra.mxu0 %v2480
    %5676 = vmatpush.bf16.msra.mxu0 %v2472
    %5677 = vmatpush.bf16.msra.mxu0 %v2464
    %5678 = vmatpush.bf16.msra.mxu0 %v2456
    %5679 = vmatmul.bf16.gmra.mxu0 %v268
    %v5680 = vpop.f32.mrf.mxu0
    %v5681 = vadd.f32 %v5632, %v5680
    %v5682 = vpop.f32.mrf.mxu0
    %v5683 = vadd.f32 %v5634, %v5682
    %5684 = vmatmul.bf16.gmra.mxu0 %v275
    %v5685 = vpop.f32.mrf.mxu0
    %v5686 = vadd.f32 %v5637, %v5685
    %v5687 = vpop.f32.mrf.mxu0
    %v5688 = vadd.f32 %v5639, %v5687
    %5689 = vmatmul.bf16.gmra.mxu0 %v282
    %v5690 = vpop.f32.mrf.mxu0
    %v5691 = vadd.f32 %v5642, %v5690
    %v5692 = vpop.f32.mrf.mxu0
    %v5693 = vadd.f32 %v5644, %v5692
    %5694 = vmatmul.bf16.gmra.mxu0 %v289
    %v5695 = vpop.f32.mrf.mxu0
    %v5696 = vadd.f32 %v5647, %v5695
    %v5697 = vpop.f32.mrf.mxu0
    %v5698 = vadd.f32 %v5649, %v5697
    %5699 = vmatmul.bf16.gmra.mxu0 %v296
    %v5700 = vpop.f32.mrf.mxu0
    %v5701 = vadd.f32 %v5652, %v5700
    %v5702 = vpop.f32.mrf.mxu0
    %v5703 = vadd.f32 %v5654, %v5702
    %5704 = vmatmul.bf16.gmra.mxu0 %v303
    %v5705 = vpop.f32.mrf.mxu0
    %v5706 = vadd.f32 %v5657, %v5705
    %v5707 = vpop.f32.mrf.mxu0
    %v5708 = vadd.f32 %v5659, %v5707
    %5709 = vmatmul.bf16.gmra.mxu0 %v310
    %v5710 = vpop.f32.mrf.mxu0
    %v5711 = vadd.f32 %v5662, %v5710
    %v5712 = vpop.f32.mrf.mxu0
    %v5713 = vadd.f32 %v5664, %v5712
    %5714 = vmatmul.bf16.gmra.mxu0 %v317
    %v5715 = vpop.f32.mrf.mxu0
    %v5716 = vadd.f32 %v5667, %v5715
    %v5717 = vpop.f32.mrf.mxu0
    %v5718 = vadd.f32 %v5669, %v5717
    %5719 = vdwg.mxu0
    %5720 = vmatpush.bf16.msra.mxu0 %v2576
    %5721 = vmatpush.bf16.msra.mxu0 %v2568
    %5722 = vmatpush.bf16.msra.mxu0 %v2560
    %5723 = vmatpush.bf16.msra.mxu0 %v2552
    %5724 = vmatpush.bf16.msra.mxu0 %v2544
    %5725 = vmatpush.bf16.msra.mxu0 %v2536
    %5726 = vmatpush.bf16.msra.mxu0 %v2528
    %5727 = vmatpush.bf16.msra.mxu0 %v2520
    %5728 = vmatmul.bf16.gmra.mxu0 %v269
    %v5729 = vpop.f32.mrf.mxu0
    %v5730 = vadd.f32 %v5681, %v5729
    %v5731 = vpop.f32.mrf.mxu0
    %v5732 = vadd.f32 %v5683, %v5731
    %5733 = vmatmul.bf16.gmra.mxu0 %v276
    %v5734 = vpop.f32.mrf.mxu0
    %v5735 = vadd.f32 %v5686, %v5734
    %v5736 = vpop.f32.mrf.mxu0
    %v5737 = vadd.f32 %v5688, %v5736
    %5738 = vmatmul.bf16.gmra.mxu0 %v283
    %v5739 = vpop.f32.mrf.mxu0
    %v5740 = vadd.f32 %v5691, %v5739
    %v5741 = vpop.f32.mrf.mxu0
    %v5742 = vadd.f32 %v5693, %v5741
    %5743 = vmatmul.bf16.gmra.mxu0 %v290
    %v5744 = vpop.f32.mrf.mxu0
    %v5745 = vadd.f32 %v5696, %v5744
    %v5746 = vpop.f32.mrf.mxu0
    %v5747 = vadd.f32 %v5698, %v5746
    %5748 = vmatmul.bf16.gmra.mxu0 %v297
    %v5749 = vpop.f32.mrf.mxu0
    %v5750 = vadd.f32 %v5701, %v5749
    %v5751 = vpop.f32.mrf.mxu0
    %v5752 = vadd.f32 %v5703, %v5751
    %5753 = vmatmul.bf16.gmra.mxu0 %v304
    %v5754 = vpop.f32.mrf.mxu0
    %v5755 = vadd.f32 %v5706, %v5754
    %v5756 = vpop.f32.mrf.mxu0
    %v5757 = vadd.f32 %v5708, %v5756
    %5758 = vmatmul.bf16.gmra.mxu0 %v311
    %v5759 = vpop.f32.mrf.mxu0
    %v5760 = vadd.f32 %v5711, %v5759
    %v5761 = vpop.f32.mrf.mxu0
    %v5762 = vadd.f32 %v5713, %v5761
    %5763 = vmatmul.bf16.gmra.mxu0 %v318
    %v5764 = vpop.f32.mrf.mxu0
    %v5765 = vadd.f32 %v5716, %v5764
    %v5766 = vpop.f32.mrf.mxu0
    %v5767 = vadd.f32 %v5718, %v5766
    %5768 = vdwg.mxu0
    %vm5769 = vcmp.gt.f32.partialorder %v3329, 0.0
    %vm5770 = vcmp.gt.f32.partialorder %v3672, 0.0
    %vm5771 = vcmp.gt.f32.partialorder %v4015, 0.0
    %vm5772 = vcmp.gt.f32.partialorder %v4358, 0.0
    %vm5773 = vcmp.gt.f32.partialorder %v4701, 0.0
    %vm5774 = vcmp.gt.f32.partialorder %v5044, 0.0
    %vm5775 = vcmp.gt.f32.partialorder %v5387, 0.0
    %vm5776 = vcmp.gt.f32.partialorder %v5730, 0.0
    %vm5777 = vcmp.gt.f32.partialorder %v3331, 0.0
    %vm5778 = vcmp.gt.f32.partialorder %v3674, 0.0
    %vm5779 = vcmp.gt.f32.partialorder %v4017, 0.0
    %vm5780 = vcmp.gt.f32.partialorder %v4360, 0.0
    %vm5781 = vcmp.gt.f32.partialorder %v4703, 0.0
    %vm5782 = vcmp.gt.f32.partialorder %v5046, 0.0
    %vm5783 = vcmp.gt.f32.partialorder %v5389, 0.0
    %vm5784 = vcmp.gt.f32.partialorder %v5732, 0.0
    %vm5785 = vcmp.gt.f32.partialorder %v3334, 0.0
    %vm5786 = vcmp.gt.f32.partialorder %v3677, 0.0
    %vm5787 = vcmp.gt.f32.partialorder %v4020, 0.0
    %vm5788 = vcmp.gt.f32.partialorder %v4363, 0.0
    %vm5789 = vcmp.gt.f32.partialorder %v4706, 0.0
    %vm5790 = vcmp.gt.f32.partialorder %v5049, 0.0
    %vm5791 = vcmp.gt.f32.partialorder %v5392, 0.0
    %vm5792 = vcmp.gt.f32.partialorder %v5735, 0.0
    %vm5793 = vcmp.gt.f32.partialorder %v3336, 0.0
    %vm5794 = vcmp.gt.f32.partialorder %v3679, 0.0
    %vm5795 = vcmp.gt.f32.partialorder %v4022, 0.0
    %vm5796 = vcmp.gt.f32.partialorder %v4365, 0.0
    %vm5797 = vcmp.gt.f32.partialorder %v4708, 0.0
    %vm5798 = vcmp.gt.f32.partialorder %v5051, 0.0
    %vm5799 = vcmp.gt.f32.partialorder %v5394, 0.0
    %vm5800 = vcmp.gt.f32.partialorder %v5737, 0.0
    %vm5801 = vcmp.gt.f32.partialorder %v3339, 0.0
    %vm5802 = vcmp.gt.f32.partialorder %v3682, 0.0
    %vm5803 = vcmp.gt.f32.partialorder %v4025, 0.0
    %vm5804 = vcmp.gt.f32.partialorder %v4368, 0.0
    %vm5805 = vcmp.gt.f32.partialorder %v4711, 0.0
    %vm5806 = vcmp.gt.f32.partialorder %v5054, 0.0
    %vm5807 = vcmp.gt.f32.partialorder %v5397, 0.0
    %vm5808 = vcmp.gt.f32.partialorder %v5740, 0.0
    %vm5809 = vcmp.gt.f32.partialorder %v3341, 0.0
    %vm5810 = vcmp.gt.f32.partialorder %v3684, 0.0
    %vm5811 = vcmp.gt.f32.partialorder %v4027, 0.0
    %vm5812 = vcmp.gt.f32.partialorder %v4370, 0.0
    %vm5813 = vcmp.gt.f32.partialorder %v4713, 0.0
    %vm5814 = vcmp.gt.f32.partialorder %v5056, 0.0
    %vm5815 = vcmp.gt.f32.partialorder %v5399, 0.0
    %vm5816 = vcmp.gt.f32.partialorder %v5742, 0.0
    %vm5817 = vcmp.gt.f32.partialorder %v3344, 0.0
    %vm5818 = vcmp.gt.f32.partialorder %v3687, 0.0
    %vm5819 = vcmp.gt.f32.partialorder %v4030, 0.0
    %vm5820 = vcmp.gt.f32.partialorder %v4373, 0.0
    %vm5821 = vcmp.gt.f32.partialorder %v4716, 0.0
    %vm5822 = vcmp.gt.f32.partialorder %v5059, 0.0
    %vm5823 = vcmp.gt.f32.partialorder %v5402, 0.0
    %vm5824 = vcmp.gt.f32.partialorder %v5745, 0.0
    %vm5825 = vcmp.gt.f32.partialorder %v3346, 0.0
    %vm5826 = vcmp.gt.f32.partialorder %v3689, 0.0
    %vm5827 = vcmp.gt.f32.partialorder %v4032, 0.0
    %vm5828 = vcmp.gt.f32.partialorder %v4375, 0.0
    %vm5829 = vcmp.gt.f32.partialorder %v4718, 0.0
    %vm5830 = vcmp.gt.f32.partialorder %v5061, 0.0
    %vm5831 = vcmp.gt.f32.partialorder %v5404, 0.0
    %vm5832 = vcmp.gt.f32.partialorder %v5747, 0.0
    %vm5833 = vcmp.gt.f32.partialorder %v3349, 0.0
    %vm5834 = vcmp.gt.f32.partialorder %v3692, 0.0
    %vm5835 = vcmp.gt.f32.partialorder %v4035, 0.0
    %vm5836 = vcmp.gt.f32.partialorder %v4378, 0.0
    %vm5837 = vcmp.gt.f32.partialorder %v4721, 0.0
    %vm5838 = vcmp.gt.f32.partialorder %v5064, 0.0
    %vm5839 = vcmp.gt.f32.partialorder %v5407, 0.0
    %vm5840 = vcmp.gt.f32.partialorder %v5750, 0.0
    %vm5841 = vcmp.gt.f32.partialorder %v3351, 0.0
    %vm5842 = vcmp.gt.f32.partialorder %v3694, 0.0
    %vm5843 = vcmp.gt.f32.partialorder %v4037, 0.0
    %vm5844 = vcmp.gt.f32.partialorder %v4380, 0.0
    %vm5845 = vcmp.gt.f32.partialorder %v4723, 0.0
    %vm5846 = vcmp.gt.f32.partialorder %v5066, 0.0
    %vm5847 = vcmp.gt.f32.partialorder %v5409, 0.0
    %vm5848 = vcmp.gt.f32.partialorder %v5752, 0.0
    %vm5849 = vcmp.gt.f32.partialorder %v3354, 0.0
    %vm5850 = vcmp.gt.f32.partialorder %v3697, 0.0
    %vm5851 = vcmp.gt.f32.partialorder %v4040, 0.0
    %vm5852 = vcmp.gt.f32.partialorder %v4383, 0.0
    %vm5853 = vcmp.gt.f32.partialorder %v4726, 0.0
    %vm5854 = vcmp.gt.f32.partialorder %v5069, 0.0
    %vm5855 = vcmp.gt.f32.partialorder %v5412, 0.0
    %vm5856 = vcmp.gt.f32.partialorder %v5755, 0.0
    %vm5857 = vcmp.gt.f32.partialorder %v3356, 0.0
    %vm5858 = vcmp.gt.f32.partialorder %v3699, 0.0
    %vm5859 = vcmp.gt.f32.partialorder %v4042, 0.0
    %vm5860 = vcmp.gt.f32.partialorder %v4385, 0.0
    %vm5861 = vcmp.gt.f32.partialorder %v4728, 0.0
    %vm5862 = vcmp.gt.f32.partialorder %v5071, 0.0
    %vm5863 = vcmp.gt.f32.partialorder %v5414, 0.0
    %vm5864 = vcmp.gt.f32.partialorder %v5757, 0.0
    %vm5865 = vcmp.gt.f32.partialorder %v3359, 0.0
    %vm5866 = vcmp.gt.f32.partialorder %v3702, 0.0
    %vm5867 = vcmp.gt.f32.partialorder %v4045, 0.0
    %vm5868 = vcmp.gt.f32.partialorder %v4388, 0.0
    %vm5869 = vcmp.gt.f32.partialorder %v4731, 0.0
    %vm5870 = vcmp.gt.f32.partialorder %v5074, 0.0
    %vm5871 = vcmp.gt.f32.partialorder %v5417, 0.0
    %vm5872 = vcmp.gt.f32.partialorder %v5760, 0.0
    %vm5873 = vcmp.gt.f32.partialorder %v3361, 0.0
    %vm5874 = vcmp.gt.f32.partialorder %v3704, 0.0
    %vm5875 = vcmp.gt.f32.partialorder %v4047, 0.0
    %vm5876 = vcmp.gt.f32.partialorder %v4390, 0.0
    %vm5877 = vcmp.gt.f32.partialorder %v4733, 0.0
    %vm5878 = vcmp.gt.f32.partialorder %v5076, 0.0
    %vm5879 = vcmp.gt.f32.partialorder %v5419, 0.0
    %vm5880 = vcmp.gt.f32.partialorder %v5762, 0.0
    %vm5881 = vcmp.gt.f32.partialorder %v3364, 0.0
    %vm5882 = vcmp.gt.f32.partialorder %v3707, 0.0
    %vm5883 = vcmp.gt.f32.partialorder %v4050, 0.0
    %vm5884 = vcmp.gt.f32.partialorder %v4393, 0.0
    %vm5885 = vcmp.gt.f32.partialorder %v4736, 0.0
    %vm5886 = vcmp.gt.f32.partialorder %v5079, 0.0
    %vm5887 = vcmp.gt.f32.partialorder %v5422, 0.0
    %vm5888 = vcmp.gt.f32.partialorder %v5765, 0.0
    %vm5889 = vcmp.gt.f32.partialorder %v3366, 0.0
    %vm5890 = vcmp.gt.f32.partialorder %v3709, 0.0
    %vm5891 = vcmp.gt.f32.partialorder %v4052, 0.0
    %vm5892 = vcmp.gt.f32.partialorder %v4395, 0.0
    %vm5893 = vcmp.gt.f32.partialorder %v4738, 0.0
    %vm5894 = vcmp.gt.f32.partialorder %v5081, 0.0
    %vm5895 = vcmp.gt.f32.partialorder %v5424, 0.0
    %vm5896 = vcmp.gt.f32.partialorder %v5767, 0.0
    %v5897 = vmul.f32 %v3329, 0.2
    %v5898 = vmul.f32 %v3672, 0.2
    %v5899 = vmul.f32 %v4015, 0.2
    %v5900 = vmul.f32 %v4358, 0.2
    %v5901 = vmul.f32 %v4701, 0.2
    %v5902 = vmul.f32 %v5044, 0.2
    %v5903 = vmul.f32 %v5387, 0.2
    %v5904 = vmul.f32 %v5730, 0.2
    %v5905 = vmul.f32 %v3331, 0.2
    %v5906 = vmul.f32 %v3674, 0.2
    %v5907 = vmul.f32 %v4017, 0.2
    %v5908 = vmul.f32 %v4360, 0.2
    %v5909 = vmul.f32 %v4703, 0.2
    %v5910 = vmul.f32 %v5046, 0.2
    %v5911 = vmul.f32 %v5389, 0.2
    %v5912 = vmul.f32 %v5732, 0.2
    %v5913 = vmul.f32 %v3334, 0.2
    %v5914 = vmul.f32 %v3677, 0.2
    %v5915 = vmul.f32 %v4020, 0.2
    %v5916 = vmul.f32 %v4363, 0.2
    %v5917 = vmul.f32 %v4706, 0.2
    %v5918 = vmul.f32 %v5049, 0.2
    %v5919 = vmul.f32 %v5392, 0.2
    %v5920 = vmul.f32 %v5735, 0.2
    %v5921 = vmul.f32 %v3336, 0.2
    %v5922 = vmul.f32 %v3679, 0.2
    %v5923 = vmul.f32 %v4022, 0.2
    %v5924 = vmul.f32 %v4365, 0.2
    %v5925 = vmul.f32 %v4708, 0.2
    %v5926 = vmul.f32 %v5051, 0.2
    %v5927 = vmul.f32 %v5394, 0.2
    %v5928 = vmul.f32 %v5737, 0.2
    %v5929 = vmul.f32 %v3339, 0.2
    %v5930 = vmul.f32 %v3682, 0.2
    %v5931 = vmul.f32 %v4025, 0.2
    %v5932 = vmul.f32 %v4368, 0.2
    %v5933 = vmul.f32 %v4711, 0.2
    %v5934 = vmul.f32 %v5054, 0.2
    %v5935 = vmul.f32 %v5397, 0.2
    %v5936 = vmul.f32 %v5740, 0.2
    %v5937 = vmul.f32 %v3341, 0.2
    %v5938 = vmul.f32 %v3684, 0.2
    %v5939 = vmul.f32 %v4027, 0.2
    %v5940 = vmul.f32 %v4370, 0.2
    %v5941 = vmul.f32 %v4713, 0.2
    %v5942 = vmul.f32 %v5056, 0.2
    %v5943 = vmul.f32 %v5399, 0.2
    %v5944 = vmul.f32 %v5742, 0.2
    %v5945 = vmul.f32 %v3344, 0.2
    %v5946 = vmul.f32 %v3687, 0.2
    %v5947 = vmul.f32 %v4030, 0.2
    %v5948 = vmul.f32 %v4373, 0.2
    %v5949 = vmul.f32 %v4716, 0.2
    %v5950 = vmul.f32 %v5059, 0.2
    %v5951 = vmul.f32 %v5402, 0.2
    %v5952 = vmul.f32 %v5745, 0.2
    %v5953 = vmul.f32 %v3346, 0.2
    %v5954 = vmul.f32 %v3689, 0.2
    %v5955 = vmul.f32 %v4032, 0.2
    %v5956 = vmul.f32 %v4375, 0.2
    %v5957 = vmul.f32 %v4718, 0.2
    %v5958 = vmul.f32 %v5061, 0.2
    %v5959 = vmul.f32 %v5404, 0.2
    %v5960 = vmul.f32 %v5747, 0.2
    %v5961 = vmul.f32 %v3349, 0.2
    %v5962 = vmul.f32 %v3692, 0.2
    %v5963 = vmul.f32 %v4035, 0.2
    %v5964 = vmul.f32 %v4378, 0.2
    %v5965 = vmul.f32 %v4721, 0.2
    %v5966 = vmul.f32 %v5064, 0.2
    %v5967 = vmul.f32 %v5407, 0.2
    %v5968 = vmul.f32 %v5750, 0.2
    %v5969 = vmul.f32 %v3351, 0.2
    %v5970 = vmul.f32 %v3694, 0.2
    %v5971 = vmul.f32 %v4037, 0.2
    %v5972 = vmul.f32 %v4380, 0.2
    %v5973 = vmul.f32 %v4723, 0.2
    %v5974 = vmul.f32 %v5066, 0.2
    %v5975 = vmul.f32 %v5409, 0.2
    %v5976 = vmul.f32 %v5752, 0.2
    %v5977 = vmul.f32 %v3354, 0.2
    %v5978 = vmul.f32 %v3697, 0.2
    %v5979 = vmul.f32 %v4040, 0.2
    %v5980 = vmul.f32 %v4383, 0.2
    %v5981 = vmul.f32 %v4726, 0.2
    %v5982 = vmul.f32 %v5069, 0.2
    %v5983 = vmul.f32 %v5412, 0.2
    %v5984 = vmul.f32 %v5755, 0.2
    %v5985 = vmul.f32 %v3356, 0.2
    %v5986 = vmul.f32 %v3699, 0.2
    %v5987 = vmul.f32 %v4042, 0.2
    %v5988 = vmul.f32 %v4385, 0.2
    %v5989 = vmul.f32 %v4728, 0.2
    %v5990 = vmul.f32 %v5071, 0.2
    %v5991 = vmul.f32 %v5414, 0.2
    %v5992 = vmul.f32 %v5757, 0.2
    %v5993 = vmul.f32 %v3359, 0.2
    %v5994 = vmul.f32 %v3702, 0.2
    %v5995 = vmul.f32 %v4045, 0.2
    %v5996 = vmul.f32 %v4388, 0.2
    %v5997 = vmul.f32 %v4731, 0.2
    %v5998 = vmul.f32 %v5074, 0.2
    %v5999 = vmul.f32 %v5417, 0.2
    %v6000 = vmul.f32 %v5760, 0.2
    %v6001 = vmul.f32 %v3361, 0.2
    %v6002 = vmul.f32 %v3704, 0.2
    %v6003 = vmul.f32 %v4047, 0.2
    %v6004 = vmul.f32 %v4390, 0.2
    %v6005 = vmul.f32 %v4733, 0.2
    %v6006 = vmul.f32 %v5076, 0.2
    %v6007 = vmul.f32 %v5419, 0.2
    %v6008 = vmul.f32 %v5762, 0.2
    %v6009 = vmul.f32 %v3364, 0.2
    %v6010 = vmul.f32 %v3707, 0.2
    %v6011 = vmul.f32 %v4050, 0.2
    %v6012 = vmul.f32 %v4393, 0.2
    %v6013 = vmul.f32 %v4736, 0.2
    %v6014 = vmul.f32 %v5079, 0.2
    %v6015 = vmul.f32 %v5422, 0.2
    %v6016 = vmul.f32 %v5765, 0.2
    %v6017 = vmul.f32 %v3366, 0.2
    %v6018 = vmul.f32 %v3709, 0.2
    %v6019 = vmul.f32 %v4052, 0.2
    %v6020 = vmul.f32 %v4395, 0.2
    %v6021 = vmul.f32 %v4738, 0.2
    %v6022 = vmul.f32 %v5081, 0.2
    %v6023 = vmul.f32 %v5424, 0.2
    %v6024 = vmul.f32 %v5767, 0.2
    %v6025 = vsel %vm5769, %v3329, %v5897
    %v6026 = vsel %vm5770, %v3672, %v5898
    %v6027 = vsel %vm5771, %v4015, %v5899
    %v6028 = vsel %vm5772, %v4358, %v5900
    %v6029 = vsel %vm5773, %v4701, %v5901
    %v6030 = vsel %vm5774, %v5044, %v5902
    %v6031 = vsel %vm5775, %v5387, %v5903
    %v6032 = vsel %vm5776, %v5730, %v5904
    %v6033 = vsel %vm5777, %v3331, %v5905
    %v6034 = vsel %vm5778, %v3674, %v5906
    %v6035 = vsel %vm5779, %v4017, %v5907
    %v6036 = vsel %vm5780, %v4360, %v5908
    %v6037 = vsel %vm5781, %v4703, %v5909
    %v6038 = vsel %vm5782, %v5046, %v5910
    %v6039 = vsel %vm5783, %v5389, %v5911
    %v6040 = vsel %vm5784, %v5732, %v5912
    %v6041 = vsel %vm5785, %v3334, %v5913
    %v6042 = vsel %vm5786, %v3677, %v5914
    %v6043 = vsel %vm5787, %v4020, %v5915
    %v6044 = vsel %vm5788, %v4363, %v5916
    %v6045 = vsel %vm5789, %v4706, %v5917
    %v6046 = vsel %vm5790, %v5049, %v5918
    %v6047 = vsel %vm5791, %v5392, %v5919
    %v6048 = vsel %vm5792, %v5735, %v5920
    %v6049 = vsel %vm5793, %v3336, %v5921
    %v6050 = vsel %vm5794, %v3679, %v5922
    %v6051 = vsel %vm5795, %v4022, %v5923
    %v6052 = vsel %vm5796, %v4365, %v5924
    %v6053 = vsel %vm5797, %v4708, %v5925
    %v6054 = vsel %vm5798, %v5051, %v5926
    %v6055 = vsel %vm5799, %v5394, %v5927
    %v6056 = vsel %vm5800, %v5737, %v5928
    %v6057 = vsel %vm5801, %v3339, %v5929
    %v6058 = vsel %vm5802, %v3682, %v5930
    %v6059 = vsel %vm5803, %v4025, %v5931
    %v6060 = vsel %vm5804, %v4368, %v5932
    %v6061 = vsel %vm5805, %v4711, %v5933
    %v6062 = vsel %vm5806, %v5054, %v5934
    %v6063 = vsel %vm5807, %v5397, %v5935
    %v6064 = vsel %vm5808, %v5740, %v5936
    %v6065 = vsel %vm5809, %v3341, %v5937
    %v6066 = vsel %vm5810, %v3684, %v5938
    %v6067 = vsel %vm5811, %v4027, %v5939
    %v6068 = vsel %vm5812, %v4370, %v5940
    %v6069 = vsel %vm5813, %v4713, %v5941
    %v6070 = vsel %vm5814, %v5056, %v5942
    %v6071 = vsel %vm5815, %v5399, %v5943
    %v6072 = vsel %vm5816, %v5742, %v5944
    %v6073 = vsel %vm5817, %v3344, %v5945
    %v6074 = vsel %vm5818, %v3687, %v5946
    %v6075 = vsel %vm5819, %v4030, %v5947
    %v6076 = vsel %vm5820, %v4373, %v5948
    %v6077 = vsel %vm5821, %v4716, %v5949
    %v6078 = vsel %vm5822, %v5059, %v5950
    %v6079 = vsel %vm5823, %v5402, %v5951
    %v6080 = vsel %vm5824, %v5745, %v5952
    %v6081 = vsel %vm5825, %v3346, %v5953
    %v6082 = vsel %vm5826, %v3689, %v5954
    %v6083 = vsel %vm5827, %v4032, %v5955
    %v6084 = vsel %vm5828, %v4375, %v5956
    %v6085 = vsel %vm5829, %v4718, %v5957
    %v6086 = vsel %vm5830, %v5061, %v5958
    %v6087 = vsel %vm5831, %v5404, %v5959
    %v6088 = vsel %vm5832, %v5747, %v5960
    %v6089 = vsel %vm5833, %v3349, %v5961
    %v6090 = vsel %vm5834, %v3692, %v5962
    %v6091 = vsel %vm5835, %v4035, %v5963
    %v6092 = vsel %vm5836, %v4378, %v5964
    %v6093 = vsel %vm5837, %v4721, %v5965
    %v6094 = vsel %vm5838, %v5064, %v5966
    %v6095 = vsel %vm5839, %v5407, %v5967
    %v6096 = vsel %vm5840, %v5750, %v5968
    %v6097 = vsel %vm5841, %v3351, %v5969
    %v6098 = vsel %vm5842, %v3694, %v5970
    %v6099 = vsel %vm5843, %v4037, %v5971
    %v6100 = vsel %vm5844, %v4380, %v5972
    %v6101 = vsel %vm5845, %v4723, %v5973
    %v6102 = vsel %vm5846, %v5066, %v5974
    %v6103 = vsel %vm5847, %v5409, %v5975
    %v6104 = vsel %vm5848, %v5752, %v5976
    %v6105 = vsel %vm5849, %v3354, %v5977
    %v6106 = vsel %vm5850, %v3697, %v5978
    %v6107 = vsel %vm5851, %v4040, %v5979
    %v6108 = vsel %vm5852, %v4383, %v5980
    %v6109 = vsel %vm5853, %v4726, %v5981
    %v6110 = vsel %vm5854, %v5069, %v5982
    %v6111 = vsel %vm5855, %v5412, %v5983
    %v6112 = vsel %vm5856, %v5755, %v5984
    %v6113 = vsel %vm5857, %v3356, %v5985
    %v6114 = vsel %vm5858, %v3699, %v5986
    %v6115 = vsel %vm5859, %v4042, %v5987
    %v6116 = vsel %vm5860, %v4385, %v5988
    %v6117 = vsel %vm5861, %v4728, %v5989
    %v6118 = vsel %vm5862, %v5071, %v5990
    %v6119 = vsel %vm5863, %v5414, %v5991
    %v6120 = vsel %vm5864, %v5757, %v5992
    %v6121 = vsel %vm5865, %v3359, %v5993
    %v6122 = vsel %vm5866, %v3702, %v5994
    %v6123 = vsel %vm5867, %v4045, %v5995
    %v6124 = vsel %vm5868, %v4388, %v5996
    %v6125 = vsel %vm5869, %v4731, %v5997
    %v6126 = vsel %vm5870, %v5074, %v5998
    %v6127 = vsel %vm5871, %v5417, %v5999
    %v6128 = vsel %vm5872, %v5760, %v6000
    %v6129 = vsel %vm5873, %v3361, %v6001
    %v6130 = vsel %vm5874, %v3704, %v6002
    %v6131 = vsel %vm5875, %v4047, %v6003
    %v6132 = vsel %vm5876, %v4390, %v6004
    %v6133 = vsel %vm5877, %v4733, %v6005
    %v6134 = vsel %vm5878, %v5076, %v6006
    %v6135 = vsel %vm5879, %v5419, %v6007
    %v6136 = vsel %vm5880, %v5762, %v6008
    %v6137 = vsel %vm5881, %v3364, %v6009
    %v6138 = vsel %vm5882, %v3707, %v6010
    %v6139 = vsel %vm5883, %v4050, %v6011
    %v6140 = vsel %vm5884, %v4393, %v6012
    %v6141 = vsel %vm5885, %v4736, %v6013
    %v6142 = vsel %vm5886, %v5079, %v6014
    %v6143 = vsel %vm5887, %v5422, %v6015
    %v6144 = vsel %vm5888, %v5765, %v6016
    %v6145 = vsel %vm5889, %v3366, %v6017
    %v6146 = vsel %vm5890, %v3709, %v6018
    %v6147 = vsel %vm5891, %v4052, %v6019
    %v6148 = vsel %vm5892, %v4395, %v6020
    %v6149 = vsel %vm5893, %v4738, %v6021
    %v6150 = vsel %vm5894, %v5081, %v6022
    %v6151 = vsel %vm5895, %v5424, %v6023
    %v6152 = vsel %vm5896, %v5767, %v6024
    %v6153 = vpack.c.bf16 %v6033, %v6025
    %v6154 = vpack.c.bf16 %v6034, %v6026
    %v6155 = vpack.c.bf16 %v6035, %v6027
    %v6156 = vpack.c.bf16 %v6036, %v6028
    %v6157 = vpack.c.bf16 %v6037, %v6029
    %v6158 = vpack.c.bf16 %v6038, %v6030
    %v6159 = vpack.c.bf16 %v6039, %v6031
    %v6160 = vpack.c.bf16 %v6040, %v6032
    %v6161 = vpack.c.bf16 %v6049, %v6041
    %v6162 = vpack.c.bf16 %v6050, %v6042
    %v6163 = vpack.c.bf16 %v6051, %v6043
    %v6164 = vpack.c.bf16 %v6052, %v6044
    %v6165 = vpack.c.bf16 %v6053, %v6045
    %v6166 = vpack.c.bf16 %v6054, %v6046
    %v6167 = vpack.c.bf16 %v6055, %v6047
    %v6168 = vpack.c.bf16 %v6056, %v6048
    %v6169 = vpack.c.bf16 %v6065, %v6057
    %v6170 = vpack.c.bf16 %v6066, %v6058
    %v6171 = vpack.c.bf16 %v6067, %v6059
    %v6172 = vpack.c.bf16 %v6068, %v6060
    %v6173 = vpack.c.bf16 %v6069, %v6061
    %v6174 = vpack.c.bf16 %v6070, %v6062
    %v6175 = vpack.c.bf16 %v6071, %v6063
    %v6176 = vpack.c.bf16 %v6072, %v6064
    %v6177 = vpack.c.bf16 %v6081, %v6073
    %v6178 = vpack.c.bf16 %v6082, %v6074
    %v6179 = vpack.c.bf16 %v6083, %v6075
    %v6180 = vpack.c.bf16 %v6084, %v6076
    %v6181 = vpack.c.bf16 %v6085, %v6077
    %v6182 = vpack.c.bf16 %v6086, %v6078
    %v6183 = vpack.c.bf16 %v6087, %v6079
    %v6184 = vpack.c.bf16 %v6088, %v6080
    %v6185 = vpack.c.bf16 %v6097, %v6089
    %v6186 = vpack.c.bf16 %v6098, %v6090
    %v6187 = vpack.c.bf16 %v6099, %v6091
    %v6188 = vpack.c.bf16 %v6100, %v6092
    %v6189 = vpack.c.bf16 %v6101, %v6093
    %v6190 = vpack.c.bf16 %v6102, %v6094
    %v6191 = vpack.c.bf16 %v6103, %v6095
    %v6192 = vpack.c.bf16 %v6104, %v6096
    %v6193 = vpack.c.bf16 %v6113, %v6105
    %v6194 = vpack.c.bf16 %v6114, %v6106
    %v6195 = vpack.c.bf16 %v6115, %v6107
    %v6196 = vpack.c.bf16 %v6116, %v6108
    %v6197 = vpack.c.bf16 %v6117, %v6109
    %v6198 = vpack.c.bf16 %v6118, %v6110
    %v6199 = vpack.c.bf16 %v6119, %v6111
    %v6200 = vpack.c.bf16 %v6120, %v6112
    %v6201 = vpack.c.bf16 %v6129, %v6121
    %v6202 = vpack.c.bf16 %v6130, %v6122
    %v6203 = vpack.c.bf16 %v6131, %v6123
    %v6204 = vpack.c.bf16 %v6132, %v6124
    %v6205 = vpack.c.bf16 %v6133, %v6125
    %v6206 = vpack.c.bf16 %v6134, %v6126
    %v6207 = vpack.c.bf16 %v6135, %v6127
    %v6208 = vpack.c.bf16 %v6136, %v6128
    %v6209 = vpack.c.bf16 %v6145, %v6137
    %v6210 = vpack.c.bf16 %v6146, %v6138
    %v6211 = vpack.c.bf16 %v6147, %v6139
    %v6212 = vpack.c.bf16 %v6148, %v6140
    %v6213 = vpack.c.bf16 %v6149, %v6141
    %v6214 = vpack.c.bf16 %v6150, %v6142
    %v6215 = vpack.c.bf16 %v6151, %v6143
    %v6216 = vpack.c.bf16 %v6152, %v6144
    %v6217 = vld [vmem:[#allocation8] sm:$0xff]
    %v6218 = vld [vmem:[#allocation8 + $0x8] sm:$0xff]
    %v6219 = vld [vmem:[#allocation8 + $0x10] sm:$0xff]
    %v6220 = vld [vmem:[#allocation8 + $0x18] sm:$0xff]
    %v6221 = vld [vmem:[#allocation8 + $0x20] sm:$0xff]
    %v6222 = vld [vmem:[#allocation8 + $0x28] sm:$0xff]
    %v6223 = vld [vmem:[#allocation8 + $0x30] sm:$0xff]
    %v6224 = vld [vmem:[#allocation8 + $0x38] sm:$0xff]
    %v6225 = vld [vmem:[#allocation8 + $0x40] sm:$0xff]
    %v6226 = vld [vmem:[#allocation8 + $0x48] sm:$0xff]
    %v6227 = vld [vmem:[#allocation8 + $0x50] sm:$0xff]
    %v6228 = vld [vmem:[#allocation8 + $0x58] sm:$0xff]
    %v6229 = vld [vmem:[#allocation8 + $0x60] sm:$0xff]
    %v6230 = vld [vmem:[#allocation8 + $0x68] sm:$0xff]
    %v6231 = vld [vmem:[#allocation8 + $0x70] sm:$0xff]
    %v6232 = vld [vmem:[#allocation8 + $0x78] sm:$0xff]
    %v6233 = vld [vmem:[#allocation8 + $0x80] sm:$0xff]
    %v6234 = vld [vmem:[#allocation8 + $0x88] sm:$0xff]
    %v6235 = vld [vmem:[#allocation8 + $0x90] sm:$0xff]
    %v6236 = vld [vmem:[#allocation8 + $0x98] sm:$0xff]
    %v6237 = vld [vmem:[#allocation8 + $0xa0] sm:$0xff]
    %v6238 = vld [vmem:[#allocation8 + $0xa8] sm:$0xff]
    %v6239 = vld [vmem:[#allocation8 + $0xb0] sm:$0xff]
    %v6240 = vld [vmem:[#allocation8 + $0xb8] sm:$0xff]
    %v6241 = vld [vmem:[#allocation8 + $0xc0] sm:$0xff]
    %v6242 = vld [vmem:[#allocation8 + $0xc8] sm:$0xff]
    %v6243 = vld [vmem:[#allocation8 + $0xd0] sm:$0xff]
    %v6244 = vld [vmem:[#allocation8 + $0xd8] sm:$0xff]
    %v6245 = vld [vmem:[#allocation8 + $0xe0] sm:$0xff]
    %v6246 = vld [vmem:[#allocation8 + $0xe8] sm:$0xff]
    %v6247 = vld [vmem:[#allocation8 + $0xf0] sm:$0xff]
    %v6248 = vld [vmem:[#allocation8 + $0xf8] sm:$0xff]
    %v6249 = vld [vmem:[#allocation8 + $0x100] sm:$0xff]
    %v6250 = vld [vmem:[#allocation8 + $0x108] sm:$0xff]
    %v6251 = vld [vmem:[#allocation8 + $0x110] sm:$0xff]
    %v6252 = vld [vmem:[#allocation8 + $0x118] sm:$0xff]
    %v6253 = vld [vmem:[#allocation8 + $0x120] sm:$0xff]
    %v6254 = vld [vmem:[#allocation8 + $0x128] sm:$0xff]
    %v6255 = vld [vmem:[#allocation8 + $0x130] sm:$0xff]
    %v6256 = vld [vmem:[#allocation8 + $0x138] sm:$0xff]
    %v6257 = vld [vmem:[#allocation8 + $0x140] sm:$0xff]
    %v6258 = vld [vmem:[#allocation8 + $0x148] sm:$0xff]
    %v6259 = vld [vmem:[#allocation8 + $0x150] sm:$0xff]
    %v6260 = vld [vmem:[#allocation8 + $0x158] sm:$0xff]
    %v6261 = vld [vmem:[#allocation8 + $0x160] sm:$0xff]
    %v6262 = vld [vmem:[#allocation8 + $0x168] sm:$0xff]
    %v6263 = vld [vmem:[#allocation8 + $0x170] sm:$0xff]
    %v6264 = vld [vmem:[#allocation8 + $0x178] sm:$0xff]
    %v6265 = vld [vmem:[#allocation8 + $0x180] sm:$0xff]
    %v6266 = vld [vmem:[#allocation8 + $0x188] sm:$0xff]
    %v6267 = vld [vmem:[#allocation8 + $0x190] sm:$0xff]
    %v6268 = vld [vmem:[#allocation8 + $0x198] sm:$0xff]
    %v6269 = vld [vmem:[#allocation8 + $0x1a0] sm:$0xff]
    %v6270 = vld [vmem:[#allocation8 + $0x1a8] sm:$0xff]
    %v6271 = vld [vmem:[#allocation8 + $0x1b0] sm:$0xff]
    %v6272 = vld [vmem:[#allocation8 + $0x1b8] sm:$0xff]
    %v6273 = vld [vmem:[#allocation8 + $0x1c0] sm:$0xff]
    %v6274 = vld [vmem:[#allocation8 + $0x1c8] sm:$0xff]
    %v6275 = vld [vmem:[#allocation8 + $0x1d0] sm:$0xff]
    %v6276 = vld [vmem:[#allocation8 + $0x1d8] sm:$0xff]
    %v6277 = vld [vmem:[#allocation8 + $0x1e0] sm:$0xff]
    %v6278 = vld [vmem:[#allocation8 + $0x1e8] sm:$0xff]
    %v6279 = vld [vmem:[#allocation8 + $0x1f0] sm:$0xff]
    %v6280 = vld [vmem:[#allocation8 + $0x1f8] sm:$0xff]
    %v6281 = vld [vmem:[#allocation8 + $0x200] sm:$0xff]
    %v6282 = vld [vmem:[#allocation8 + $0x208] sm:$0xff]
    %v6283 = vld [vmem:[#allocation8 + $0x210] sm:$0xff]
    %v6284 = vld [vmem:[#allocation8 + $0x218] sm:$0xff]
    %v6285 = vld [vmem:[#allocation8 + $0x220] sm:$0xff]
    %v6286 = vld [vmem:[#allocation8 + $0x228] sm:$0xff]
    %v6287 = vld [vmem:[#allocation8 + $0x230] sm:$0xff]
    %v6288 = vld [vmem:[#allocation8 + $0x238] sm:$0xff]
    %v6289 = vld [vmem:[#allocation8 + $0x240] sm:$0xff]
    %v6290 = vld [vmem:[#allocation8 + $0x248] sm:$0xff]
    %v6291 = vld [vmem:[#allocation8 + $0x250] sm:$0xff]
    %v6292 = vld [vmem:[#allocation8 + $0x258] sm:$0xff]
    %v6293 = vld [vmem:[#allocation8 + $0x260] sm:$0xff]
    %v6294 = vld [vmem:[#allocation8 + $0x268] sm:$0xff]
    %v6295 = vld [vmem:[#allocation8 + $0x270] sm:$0xff]
    %v6296 = vld [vmem:[#allocation8 + $0x278] sm:$0xff]
    %v6297 = vld [vmem:[#allocation8 + $0x280] sm:$0xff]
    %v6298 = vld [vmem:[#allocation8 + $0x288] sm:$0xff]
    %v6299 = vld [vmem:[#allocation8 + $0x290] sm:$0xff]
    %v6300 = vld [vmem:[#allocation8 + $0x298] sm:$0xff]
    %v6301 = vld [vmem:[#allocation8 + $0x2a0] sm:$0xff]
    %v6302 = vld [vmem:[#allocation8 + $0x2a8] sm:$0xff]
    %v6303 = vld [vmem:[#allocation8 + $0x2b0] sm:$0xff]
    %v6304 = vld [vmem:[#allocation8 + $0x2b8] sm:$0xff]
    %v6305 = vld [vmem:[#allocation8 + $0x2c0] sm:$0xff]
    %v6306 = vld [vmem:[#allocation8 + $0x2c8] sm:$0xff]
    %v6307 = vld [vmem:[#allocation8 + $0x2d0] sm:$0xff]
    %v6308 = vld [vmem:[#allocation8 + $0x2d8] sm:$0xff]
    %v6309 = vld [vmem:[#allocation8 + $0x2e0] sm:$0xff]
    %v6310 = vld [vmem:[#allocation8 + $0x2e8] sm:$0xff]
    %v6311 = vld [vmem:[#allocation8 + $0x2f0] sm:$0xff]
    %v6312 = vld [vmem:[#allocation8 + $0x2f8] sm:$0xff]
    %v6313 = vld [vmem:[#allocation8 + $0x300] sm:$0xff]
    %v6314 = vld [vmem:[#allocation8 + $0x308] sm:$0xff]
    %v6315 = vld [vmem:[#allocation8 + $0x310] sm:$0xff]
    %v6316 = vld [vmem:[#allocation8 + $0x318] sm:$0xff]
    %v6317 = vld [vmem:[#allocation8 + $0x320] sm:$0xff]
    %v6318 = vld [vmem:[#allocation8 + $0x328] sm:$0xff]
    %v6319 = vld [vmem:[#allocation8 + $0x330] sm:$0xff]
    %v6320 = vld [vmem:[#allocation8 + $0x338] sm:$0xff]
    %v6321 = vld [vmem:[#allocation8 + $0x340] sm:$0xff]
    %v6322 = vld [vmem:[#allocation8 + $0x348] sm:$0xff]
    %v6323 = vld [vmem:[#allocation8 + $0x350] sm:$0xff]
    %v6324 = vld [vmem:[#allocation8 + $0x358] sm:$0xff]
    %v6325 = vld [vmem:[#allocation8 + $0x360] sm:$0xff]
    %v6326 = vld [vmem:[#allocation8 + $0x368] sm:$0xff]
    %v6327 = vld [vmem:[#allocation8 + $0x370] sm:$0xff]
    %v6328 = vld [vmem:[#allocation8 + $0x378] sm:$0xff]
    %v6329 = vld [vmem:[#allocation8 + $0x380] sm:$0xff]
    %v6330 = vld [vmem:[#allocation8 + $0x388] sm:$0xff]
    %v6331 = vld [vmem:[#allocation8 + $0x390] sm:$0xff]
    %v6332 = vld [vmem:[#allocation8 + $0x398] sm:$0xff]
    %v6333 = vld [vmem:[#allocation8 + $0x3a0] sm:$0xff]
    %v6334 = vld [vmem:[#allocation8 + $0x3a8] sm:$0xff]
    %v6335 = vld [vmem:[#allocation8 + $0x3b0] sm:$0xff]
    %v6336 = vld [vmem:[#allocation8 + $0x3b8] sm:$0xff]
    %v6337 = vld [vmem:[#allocation8 + $0x3c0] sm:$0xff]
    %v6338 = vld [vmem:[#allocation8 + $0x3c8] sm:$0xff]
    %v6339 = vld [vmem:[#allocation8 + $0x3d0] sm:$0xff]
    %v6340 = vld [vmem:[#allocation8 + $0x3d8] sm:$0xff]
    %v6341 = vld [vmem:[#allocation8 + $0x3e0] sm:$0xff]
    %v6342 = vld [vmem:[#allocation8 + $0x3e8] sm:$0xff]
    %v6343 = vld [vmem:[#allocation8 + $0x3f0] sm:$0xff]
    %v6344 = vld [vmem:[#allocation8 + $0x3f8] sm:$0xff]
    %v6345 = vld [vmem:[#allocation8 + $0x400] sm:$0xff]
    %v6346 = vld [vmem:[#allocation8 + $0x408] sm:$0xff]
    %v6347 = vld [vmem:[#allocation8 + $0x410] sm:$0xff]
    %v6348 = vld [vmem:[#allocation8 + $0x418] sm:$0xff]
    %v6349 = vld [vmem:[#allocation8 + $0x420] sm:$0xff]
    %v6350 = vld [vmem:[#allocation8 + $0x428] sm:$0xff]
    %v6351 = vld [vmem:[#allocation8 + $0x430] sm:$0xff]
    %v6352 = vld [vmem:[#allocation8 + $0x438] sm:$0xff]
    %v6353 = vld [vmem:[#allocation8 + $0x440] sm:$0xff]
    %v6354 = vld [vmem:[#allocation8 + $0x448] sm:$0xff]
    %v6355 = vld [vmem:[#allocation8 + $0x450] sm:$0xff]
    %v6356 = vld [vmem:[#allocation8 + $0x458] sm:$0xff]
    %v6357 = vld [vmem:[#allocation8 + $0x460] sm:$0xff]
    %v6358 = vld [vmem:[#allocation8 + $0x468] sm:$0xff]
    %v6359 = vld [vmem:[#allocation8 + $0x470] sm:$0xff]
    %v6360 = vld [vmem:[#allocation8 + $0x478] sm:$0xff]
    %v6361 = vld [vmem:[#allocation8 + $0x480] sm:$0xff]
    %v6362 = vld [vmem:[#allocation8 + $0x488] sm:$0xff]
    %v6363 = vld [vmem:[#allocation8 + $0x490] sm:$0xff]
    %v6364 = vld [vmem:[#allocation8 + $0x498] sm:$0xff]
    %v6365 = vld [vmem:[#allocation8 + $0x4a0] sm:$0xff]
    %v6366 = vld [vmem:[#allocation8 + $0x4a8] sm:$0xff]
    %v6367 = vld [vmem:[#allocation8 + $0x4b0] sm:$0xff]
    %v6368 = vld [vmem:[#allocation8 + $0x4b8] sm:$0xff]
    %v6369 = vld [vmem:[#allocation8 + $0x4c0] sm:$0xff]
    %v6370 = vld [vmem:[#allocation8 + $0x4c8] sm:$0xff]
    %v6371 = vld [vmem:[#allocation8 + $0x4d0] sm:$0xff]
    %v6372 = vld [vmem:[#allocation8 + $0x4d8] sm:$0xff]
    %v6373 = vld [vmem:[#allocation8 + $0x4e0] sm:$0xff]
    %v6374 = vld [vmem:[#allocation8 + $0x4e8] sm:$0xff]
    %v6375 = vld [vmem:[#allocation8 + $0x4f0] sm:$0xff]
    %v6376 = vld [vmem:[#allocation8 + $0x4f8] sm:$0xff]
    %v6377 = vld [vmem:[#allocation8 + $0x500] sm:$0xff]
    %v6378 = vld [vmem:[#allocation8 + $0x508] sm:$0xff]
    %v6379 = vld [vmem:[#allocation8 + $0x510] sm:$0xff]
    %v6380 = vld [vmem:[#allocation8 + $0x518] sm:$0xff]
    %v6381 = vld [vmem:[#allocation8 + $0x520] sm:$0xff]
    %v6382 = vld [vmem:[#allocation8 + $0x528] sm:$0xff]
    %v6383 = vld [vmem:[#allocation8 + $0x530] sm:$0xff]
    %v6384 = vld [vmem:[#allocation8 + $0x538] sm:$0xff]
    %v6385 = vld [vmem:[#allocation8 + $0x540] sm:$0xff]
    %v6386 = vld [vmem:[#allocation8 + $0x548] sm:$0xff]
    %v6387 = vld [vmem:[#allocation8 + $0x550] sm:$0xff]
    %v6388 = vld [vmem:[#allocation8 + $0x558] sm:$0xff]
    %v6389 = vld [vmem:[#allocation8 + $0x560] sm:$0xff]
    %v6390 = vld [vmem:[#allocation8 + $0x568] sm:$0xff]
    %v6391 = vld [vmem:[#allocation8 + $0x570] sm:$0xff]
    %v6392 = vld [vmem:[#allocation8 + $0x578] sm:$0xff]
    %v6393 = vld [vmem:[#allocation8 + $0x580] sm:$0xff]
    %v6394 = vld [vmem:[#allocation8 + $0x588] sm:$0xff]
    %v6395 = vld [vmem:[#allocation8 + $0x590] sm:$0xff]
    %v6396 = vld [vmem:[#allocation8 + $0x598] sm:$0xff]
    %v6397 = vld [vmem:[#allocation8 + $0x5a0] sm:$0xff]
    %v6398 = vld [vmem:[#allocation8 + $0x5a8] sm:$0xff]
    %v6399 = vld [vmem:[#allocation8 + $0x5b0] sm:$0xff]
    %v6400 = vld [vmem:[#allocation8 + $0x5b8] sm:$0xff]
    %v6401 = vld [vmem:[#allocation8 + $0x5c0] sm:$0xff]
    %v6402 = vld [vmem:[#allocation8 + $0x5c8] sm:$0xff]
    %v6403 = vld [vmem:[#allocation8 + $0x5d0] sm:$0xff]
    %v6404 = vld [vmem:[#allocation8 + $0x5d8] sm:$0xff]
    %v6405 = vld [vmem:[#allocation8 + $0x5e0] sm:$0xff]
    %v6406 = vld [vmem:[#allocation8 + $0x5e8] sm:$0xff]
    %v6407 = vld [vmem:[#allocation8 + $0x5f0] sm:$0xff]
    %v6408 = vld [vmem:[#allocation8 + $0x5f8] sm:$0xff]
    %v6409 = vld [vmem:[#allocation8 + $0x600] sm:$0xff]
    %v6410 = vld [vmem:[#allocation8 + $0x608] sm:$0xff]
    %v6411 = vld [vmem:[#allocation8 + $0x610] sm:$0xff]
    %v6412 = vld [vmem:[#allocation8 + $0x618] sm:$0xff]
    %v6413 = vld [vmem:[#allocation8 + $0x620] sm:$0xff]
    %v6414 = vld [vmem:[#allocation8 + $0x628] sm:$0xff]
    %v6415 = vld [vmem:[#allocation8 + $0x630] sm:$0xff]
    %v6416 = vld [vmem:[#allocation8 + $0x638] sm:$0xff]
    %v6417 = vld [vmem:[#allocation8 + $0x640] sm:$0xff]
    %v6418 = vld [vmem:[#allocation8 + $0x648] sm:$0xff]
    %v6419 = vld [vmem:[#allocation8 + $0x650] sm:$0xff]
    %v6420 = vld [vmem:[#allocation8 + $0x658] sm:$0xff]
    %v6421 = vld [vmem:[#allocation8 + $0x660] sm:$0xff]
    %v6422 = vld [vmem:[#allocation8 + $0x668] sm:$0xff]
    %v6423 = vld [vmem:[#allocation8 + $0x670] sm:$0xff]
    %v6424 = vld [vmem:[#allocation8 + $0x678] sm:$0xff]
    %v6425 = vld [vmem:[#allocation8 + $0x680] sm:$0xff]
    %v6426 = vld [vmem:[#allocation8 + $0x688] sm:$0xff]
    %v6427 = vld [vmem:[#allocation8 + $0x690] sm:$0xff]
    %v6428 = vld [vmem:[#allocation8 + $0x698] sm:$0xff]
    %v6429 = vld [vmem:[#allocation8 + $0x6a0] sm:$0xff]
    %v6430 = vld [vmem:[#allocation8 + $0x6a8] sm:$0xff]
    %v6431 = vld [vmem:[#allocation8 + $0x6b0] sm:$0xff]
    %v6432 = vld [vmem:[#allocation8 + $0x6b8] sm:$0xff]
    %v6433 = vld [vmem:[#allocation8 + $0x6c0] sm:$0xff]
    %v6434 = vld [vmem:[#allocation8 + $0x6c8] sm:$0xff]
    %v6435 = vld [vmem:[#allocation8 + $0x6d0] sm:$0xff]
    %v6436 = vld [vmem:[#allocation8 + $0x6d8] sm:$0xff]
    %v6437 = vld [vmem:[#allocation8 + $0x6e0] sm:$0xff]
    %v6438 = vld [vmem:[#allocation8 + $0x6e8] sm:$0xff]
    %v6439 = vld [vmem:[#allocation8 + $0x6f0] sm:$0xff]
    %v6440 = vld [vmem:[#allocation8 + $0x6f8] sm:$0xff]
    %v6441 = vld [vmem:[#allocation8 + $0x700] sm:$0xff]
    %v6442 = vld [vmem:[#allocation8 + $0x708] sm:$0xff]
    %v6443 = vld [vmem:[#allocation8 + $0x710] sm:$0xff]
    %v6444 = vld [vmem:[#allocation8 + $0x718] sm:$0xff]
    %v6445 = vld [vmem:[#allocation8 + $0x720] sm:$0xff]
    %v6446 = vld [vmem:[#allocation8 + $0x728] sm:$0xff]
    %v6447 = vld [vmem:[#allocation8 + $0x730] sm:$0xff]
    %v6448 = vld [vmem:[#allocation8 + $0x738] sm:$0xff]
    %v6449 = vld [vmem:[#allocation8 + $0x740] sm:$0xff]
    %v6450 = vld [vmem:[#allocation8 + $0x748] sm:$0xff]
    %v6451 = vld [vmem:[#allocation8 + $0x750] sm:$0xff]
    %v6452 = vld [vmem:[#allocation8 + $0x758] sm:$0xff]
    %v6453 = vld [vmem:[#allocation8 + $0x760] sm:$0xff]
    %v6454 = vld [vmem:[#allocation8 + $0x768] sm:$0xff]
    %v6455 = vld [vmem:[#allocation8 + $0x770] sm:$0xff]
    %v6456 = vld [vmem:[#allocation8 + $0x778] sm:$0xff]
    %v6457 = vld [vmem:[#allocation8 + $0x780] sm:$0xff]
    %v6458 = vld [vmem:[#allocation8 + $0x788] sm:$0xff]
    %v6459 = vld [vmem:[#allocation8 + $0x790] sm:$0xff]
    %v6460 = vld [vmem:[#allocation8 + $0x798] sm:$0xff]
    %v6461 = vld [vmem:[#allocation8 + $0x7a0] sm:$0xff]
    %v6462 = vld [vmem:[#allocation8 + $0x7a8] sm:$0xff]
    %v6463 = vld [vmem:[#allocation8 + $0x7b0] sm:$0xff]
    %v6464 = vld [vmem:[#allocation8 + $0x7b8] sm:$0xff]
    %v6465 = vld [vmem:[#allocation8 + $0x7c0] sm:$0xff]
    %v6466 = vld [vmem:[#allocation8 + $0x7c8] sm:$0xff]
    %v6467 = vld [vmem:[#allocation8 + $0x7d0] sm:$0xff]
    %v6468 = vld [vmem:[#allocation8 + $0x7d8] sm:$0xff]
    %v6469 = vld [vmem:[#allocation8 + $0x7e0] sm:$0xff]
    %v6470 = vld [vmem:[#allocation8 + $0x7e8] sm:$0xff]
    %v6471 = vld [vmem:[#allocation8 + $0x7f0] sm:$0xff]
    %v6472 = vld [vmem:[#allocation8 + $0x7f8] sm:$0xff]
    %v6473 = vld [vmem:[#allocation10] sm:$0xf]
    %v6475 = vperm.slane %v6473, 0
    %v6476 = vperm.slane %v6473, 1
    %v6477 = vperm.slane %v6473, 2
    %v6478 = vperm.slane %v6473, 3
    %v6739 = vunpack.c.l.b16 %v6217
    %v6740 = vunpack.c.h.b16 %v6217
    %v6741 = vunpack.c.l.b16 %v6218
    %v6742 = vunpack.c.h.b16 %v6218
    %v6743 = vunpack.c.l.b16 %v6219
    %v6744 = vunpack.c.h.b16 %v6219
    %v6745 = vunpack.c.l.b16 %v6220
    %v6746 = vunpack.c.h.b16 %v6220
    %v6747 = vunpack.c.l.b16 %v6221
    %v6748 = vunpack.c.h.b16 %v6221
    %v6749 = vunpack.c.l.b16 %v6222
    %v6750 = vunpack.c.h.b16 %v6222
    %v6751 = vunpack.c.l.b16 %v6223
    %v6752 = vunpack.c.h.b16 %v6223
    %v6753 = vunpack.c.l.b16 %v6224
    %v6754 = vunpack.c.h.b16 %v6224
    %v6755 = vunpack.c.l.b16 %v6225
    %v6756 = vunpack.c.h.b16 %v6225
    %v6757 = vunpack.c.l.b16 %v6226
    %v6758 = vunpack.c.h.b16 %v6226
    %v6759 = vunpack.c.l.b16 %v6227
    %v6760 = vunpack.c.h.b16 %v6227
    %v6761 = vunpack.c.l.b16 %v6228
    %v6762 = vunpack.c.h.b16 %v6228
    %v6763 = vunpack.c.l.b16 %v6229
    %v6764 = vunpack.c.h.b16 %v6229
    %v6765 = vunpack.c.l.b16 %v6230
    %v6766 = vunpack.c.h.b16 %v6230
    %v6767 = vunpack.c.l.b16 %v6231
    %v6768 = vunpack.c.h.b16 %v6231
    %v6769 = vunpack.c.l.b16 %v6232
    %v6770 = vunpack.c.h.b16 %v6232
    %v6771 = vunpack.c.l.b16 %v6233
    %v6772 = vunpack.c.h.b16 %v6233
    %v6773 = vunpack.c.l.b16 %v6234
    %v6774 = vunpack.c.h.b16 %v6234
    %v6775 = vunpack.c.l.b16 %v6235
    %v6776 = vunpack.c.h.b16 %v6235
    %v6777 = vunpack.c.l.b16 %v6236
    %v6778 = vunpack.c.h.b16 %v6236
    %v6779 = vunpack.c.l.b16 %v6237
    %v6780 = vunpack.c.h.b16 %v6237
    %v6781 = vunpack.c.l.b16 %v6238
    %v6782 = vunpack.c.h.b16 %v6238
    %v6783 = vunpack.c.l.b16 %v6239
    %v6784 = vunpack.c.h.b16 %v6239
    %v6785 = vunpack.c.l.b16 %v6240
    %v6786 = vunpack.c.h.b16 %v6240
    %v6787 = vunpack.c.l.b16 %v6241
    %v6788 = vunpack.c.h.b16 %v6241
    %v6789 = vunpack.c.l.b16 %v6242
    %v6790 = vunpack.c.h.b16 %v6242
    %v6791 = vunpack.c.l.b16 %v6243
    %v6792 = vunpack.c.h.b16 %v6243
    %v6793 = vunpack.c.l.b16 %v6244
    %v6794 = vunpack.c.h.b16 %v6244
    %v6795 = vunpack.c.l.b16 %v6245
    %v6796 = vunpack.c.h.b16 %v6245
    %v6797 = vunpack.c.l.b16 %v6246
    %v6798 = vunpack.c.h.b16 %v6246
    %v6799 = vunpack.c.l.b16 %v6247
    %v6800 = vunpack.c.h.b16 %v6247
    %v6801 = vunpack.c.l.b16 %v6248
    %v6802 = vunpack.c.h.b16 %v6248
    %v6803 = vunpack.c.l.b16 %v6249
    %v6804 = vunpack.c.h.b16 %v6249
    %v6805 = vunpack.c.l.b16 %v6250
    %v6806 = vunpack.c.h.b16 %v6250
    %v6807 = vunpack.c.l.b16 %v6251
    %v6808 = vunpack.c.h.b16 %v6251
    %v6809 = vunpack.c.l.b16 %v6252
    %v6810 = vunpack.c.h.b16 %v6252
    %v6811 = vunpack.c.l.b16 %v6253
    %v6812 = vunpack.c.h.b16 %v6253
    %v6813 = vunpack.c.l.b16 %v6254
    %v6814 = vunpack.c.h.b16 %v6254
    %v6815 = vunpack.c.l.b16 %v6255
    %v6816 = vunpack.c.h.b16 %v6255
    %v6817 = vunpack.c.l.b16 %v6256
    %v6818 = vunpack.c.h.b16 %v6256
    %v6819 = vunpack.c.l.b16 %v6257
    %v6820 = vunpack.c.h.b16 %v6257
    %v6821 = vunpack.c.l.b16 %v6258
    %v6822 = vunpack.c.h.b16 %v6258
    %v6823 = vunpack.c.l.b16 %v6259
    %v6824 = vunpack.c.h.b16 %v6259
    %v6825 = vunpack.c.l.b16 %v6260
    %v6826 = vunpack.c.h.b16 %v6260
    %v6827 = vunpack.c.l.b16 %v6261
    %v6828 = vunpack.c.h.b16 %v6261
    %v6829 = vunpack.c.l.b16 %v6262
    %v6830 = vunpack.c.h.b16 %v6262
    %v6831 = vunpack.c.l.b16 %v6263
    %v6832 = vunpack.c.h.b16 %v6263
    %v6833 = vunpack.c.l.b16 %v6264
    %v6834 = vunpack.c.h.b16 %v6264
    %v6835 = vunpack.c.l.b16 %v6265
    %v6836 = vunpack.c.h.b16 %v6265
    %v6837 = vunpack.c.l.b16 %v6266
    %v6838 = vunpack.c.h.b16 %v6266
    %v6839 = vunpack.c.l.b16 %v6267
    %v6840 = vunpack.c.h.b16 %v6267
    %v6841 = vunpack.c.l.b16 %v6268
    %v6842 = vunpack.c.h.b16 %v6268
    %v6843 = vunpack.c.l.b16 %v6269
    %v6844 = vunpack.c.h.b16 %v6269
    %v6845 = vunpack.c.l.b16 %v6270
    %v6846 = vunpack.c.h.b16 %v6270
    %v6847 = vunpack.c.l.b16 %v6271
    %v6848 = vunpack.c.h.b16 %v6271
    %v6849 = vunpack.c.l.b16 %v6272
    %v6850 = vunpack.c.h.b16 %v6272
    %v6851 = vunpack.c.l.b16 %v6273
    %v6852 = vunpack.c.h.b16 %v6273
    %v6853 = vunpack.c.l.b16 %v6274
    %v6854 = vunpack.c.h.b16 %v6274
    %v6855 = vunpack.c.l.b16 %v6275
    %v6856 = vunpack.c.h.b16 %v6275
    %v6857 = vunpack.c.l.b16 %v6276
    %v6858 = vunpack.c.h.b16 %v6276
    %v6859 = vunpack.c.l.b16 %v6277
    %v6860 = vunpack.c.h.b16 %v6277
    %v6861 = vunpack.c.l.b16 %v6278
    %v6862 = vunpack.c.h.b16 %v6278
    %v6863 = vunpack.c.l.b16 %v6279
    %v6864 = vunpack.c.h.b16 %v6279
    %v6865 = vunpack.c.l.b16 %v6280
    %v6866 = vunpack.c.h.b16 %v6280
    %v6867 = vunpack.c.l.b16 %v6281
    %v6868 = vunpack.c.h.b16 %v6281
    %v6869 = vunpack.c.l.b16 %v6282
    %v6870 = vunpack.c.h.b16 %v6282
    %v6871 = vunpack.c.l.b16 %v6283
    %v6872 = vunpack.c.h.b16 %v6283
    %v6873 = vunpack.c.l.b16 %v6284
    %v6874 = vunpack.c.h.b16 %v6284
    %v6875 = vunpack.c.l.b16 %v6285
    %v6876 = vunpack.c.h.b16 %v6285
    %v6877 = vunpack.c.l.b16 %v6286
    %v6878 = vunpack.c.h.b16 %v6286
    %v6879 = vunpack.c.l.b16 %v6287
    %v6880 = vunpack.c.h.b16 %v6287
    %v6881 = vunpack.c.l.b16 %v6288
    %v6882 = vunpack.c.h.b16 %v6288
    %v6883 = vunpack.c.l.b16 %v6289
    %v6884 = vunpack.c.h.b16 %v6289
    %v6885 = vunpack.c.l.b16 %v6290
    %v6886 = vunpack.c.h.b16 %v6290
    %v6887 = vunpack.c.l.b16 %v6291
    %v6888 = vunpack.c.h.b16 %v6291
    %v6889 = vunpack.c.l.b16 %v6292
    %v6890 = vunpack.c.h.b16 %v6292
    %v6891 = vunpack.c.l.b16 %v6293
    %v6892 = vunpack.c.h.b16 %v6293
    %v6893 = vunpack.c.l.b16 %v6294
    %v6894 = vunpack.c.h.b16 %v6294
    %v6895 = vunpack.c.l.b16 %v6295
    %v6896 = vunpack.c.h.b16 %v6295
    %v6897 = vunpack.c.l.b16 %v6296
    %v6898 = vunpack.c.h.b16 %v6296
    %v6899 = vunpack.c.l.b16 %v6297
    %v6900 = vunpack.c.h.b16 %v6297
    %v6901 = vunpack.c.l.b16 %v6298
    %v6902 = vunpack.c.h.b16 %v6298
    %v6903 = vunpack.c.l.b16 %v6299
    %v6904 = vunpack.c.h.b16 %v6299
    %v6905 = vunpack.c.l.b16 %v6300
    %v6906 = vunpack.c.h.b16 %v6300
    %v6907 = vunpack.c.l.b16 %v6301
    %v6908 = vunpack.c.h.b16 %v6301
    %v6909 = vunpack.c.l.b16 %v6302
    %v6910 = vunpack.c.h.b16 %v6302
    %v6911 = vunpack.c.l.b16 %v6303
    %v6912 = vunpack.c.h.b16 %v6303
    %v6913 = vunpack.c.l.b16 %v6304
    %v6914 = vunpack.c.h.b16 %v6304
    %v6915 = vunpack.c.l.b16 %v6305
    %v6916 = vunpack.c.h.b16 %v6305
    %v6917 = vunpack.c.l.b16 %v6306
    %v6918 = vunpack.c.h.b16 %v6306
    %v6919 = vunpack.c.l.b16 %v6307
    %v6920 = vunpack.c.h.b16 %v6307
    %v6921 = vunpack.c.l.b16 %v6308
    %v6922 = vunpack.c.h.b16 %v6308
    %v6923 = vunpack.c.l.b16 %v6309
    %v6924 = vunpack.c.h.b16 %v6309
    %v6925 = vunpack.c.l.b16 %v6310
    %v6926 = vunpack.c.h.b16 %v6310
    %v6927 = vunpack.c.l.b16 %v6311
    %v6928 = vunpack.c.h.b16 %v6311
    %v6929 = vunpack.c.l.b16 %v6312
    %v6930 = vunpack.c.h.b16 %v6312
    %v6931 = vunpack.c.l.b16 %v6313
    %v6932 = vunpack.c.h.b16 %v6313
    %v6933 = vunpack.c.l.b16 %v6314
    %v6934 = vunpack.c.h.b16 %v6314
    %v6935 = vunpack.c.l.b16 %v6315
    %v6936 = vunpack.c.h.b16 %v6315
    %v6937 = vunpack.c.l.b16 %v6316
    %v6938 = vunpack.c.h.b16 %v6316
    %v6939 = vunpack.c.l.b16 %v6317
    %v6940 = vunpack.c.h.b16 %v6317
    %v6941 = vunpack.c.l.b16 %v6318
    %v6942 = vunpack.c.h.b16 %v6318
    %v6943 = vunpack.c.l.b16 %v6319
    %v6944 = vunpack.c.h.b16 %v6319
    %v6945 = vunpack.c.l.b16 %v6320
    %v6946 = vunpack.c.h.b16 %v6320
    %v6947 = vunpack.c.l.b16 %v6321
    %v6948 = vunpack.c.h.b16 %v6321
    %v6949 = vunpack.c.l.b16 %v6322
    %v6950 = vunpack.c.h.b16 %v6322
    %v6951 = vunpack.c.l.b16 %v6323
    %v6952 = vunpack.c.h.b16 %v6323
    %v6953 = vunpack.c.l.b16 %v6324
    %v6954 = vunpack.c.h.b16 %v6324
    %v6955 = vunpack.c.l.b16 %v6325
    %v6956 = vunpack.c.h.b16 %v6325
    %v6957 = vunpack.c.l.b16 %v6326
    %v6958 = vunpack.c.h.b16 %v6326
    %v6959 = vunpack.c.l.b16 %v6327
    %v6960 = vunpack.c.h.b16 %v6327
    %v6961 = vunpack.c.l.b16 %v6328
    %v6962 = vunpack.c.h.b16 %v6328
    %v6963 = vunpack.c.l.b16 %v6329
    %v6964 = vunpack.c.h.b16 %v6329
    %v6965 = vunpack.c.l.b16 %v6330
    %v6966 = vunpack.c.h.b16 %v6330
    %v6967 = vunpack.c.l.b16 %v6331
    %v6968 = vunpack.c.h.b16 %v6331
    %v6969 = vunpack.c.l.b16 %v6332
    %v6970 = vunpack.c.h.b16 %v6332
    %v6971 = vunpack.c.l.b16 %v6333
    %v6972 = vunpack.c.h.b16 %v6333
    %v6973 = vunpack.c.l.b16 %v6334
    %v6974 = vunpack.c.h.b16 %v6334
    %v6975 = vunpack.c.l.b16 %v6335
    %v6976 = vunpack.c.h.b16 %v6335
    %v6977 = vunpack.c.l.b16 %v6336
    %v6978 = vunpack.c.h.b16 %v6336
    %v6979 = vunpack.c.l.b16 %v6337
    %v6980 = vunpack.c.h.b16 %v6337
    %v6981 = vunpack.c.l.b16 %v6338
    %v6982 = vunpack.c.h.b16 %v6338
    %v6983 = vunpack.c.l.b16 %v6339
    %v6984 = vunpack.c.h.b16 %v6339
    %v6985 = vunpack.c.l.b16 %v6340
    %v6986 = vunpack.c.h.b16 %v6340
    %v6987 = vunpack.c.l.b16 %v6341
    %v6988 = vunpack.c.h.b16 %v6341
    %v6989 = vunpack.c.l.b16 %v6342
    %v6990 = vunpack.c.h.b16 %v6342
    %v6991 = vunpack.c.l.b16 %v6343
    %v6992 = vunpack.c.h.b16 %v6343
    %v6993 = vunpack.c.l.b16 %v6344
    %v6994 = vunpack.c.h.b16 %v6344
    %v6995 = vunpack.c.l.b16 %v6345
    %v6996 = vunpack.c.h.b16 %v6345
    %v6997 = vunpack.c.l.b16 %v6346
    %v6998 = vunpack.c.h.b16 %v6346
    %v6999 = vunpack.c.l.b16 %v6347
    %v7000 = vunpack.c.h.b16 %v6347
    %v7001 = vunpack.c.l.b16 %v6348
    %v7002 = vunpack.c.h.b16 %v6348
    %v7003 = vunpack.c.l.b16 %v6349
    %v7004 = vunpack.c.h.b16 %v6349
    %v7005 = vunpack.c.l.b16 %v6350
    %v7006 = vunpack.c.h.b16 %v6350
    %v7007 = vunpack.c.l.b16 %v6351
    %v7008 = vunpack.c.h.b16 %v6351
    %v7009 = vunpack.c.l.b16 %v6352
    %v7010 = vunpack.c.h.b16 %v6352
    %v7011 = vunpack.c.l.b16 %v6353
    %v7012 = vunpack.c.h.b16 %v6353
    %v7013 = vunpack.c.l.b16 %v6354
    %v7014 = vunpack.c.h.b16 %v6354
    %v7015 = vunpack.c.l.b16 %v6355
    %v7016 = vunpack.c.h.b16 %v6355
    %v7017 = vunpack.c.l.b16 %v6356
    %v7018 = vunpack.c.h.b16 %v6356
    %v7019 = vunpack.c.l.b16 %v6357
    %v7020 = vunpack.c.h.b16 %v6357
    %v7021 = vunpack.c.l.b16 %v6358
    %v7022 = vunpack.c.h.b16 %v6358
    %v7023 = vunpack.c.l.b16 %v6359
    %v7024 = vunpack.c.h.b16 %v6359
    %v7025 = vunpack.c.l.b16 %v6360
    %v7026 = vunpack.c.h.b16 %v6360
    %v7027 = vunpack.c.l.b16 %v6361
    %v7028 = vunpack.c.h.b16 %v6361
    %v7029 = vunpack.c.l.b16 %v6362
    %v7030 = vunpack.c.h.b16 %v6362
    %v7031 = vunpack.c.l.b16 %v6363
    %v7032 = vunpack.c.h.b16 %v6363
    %v7033 = vunpack.c.l.b16 %v6364
    %v7034 = vunpack.c.h.b16 %v6364
    %v7035 = vunpack.c.l.b16 %v6365
    %v7036 = vunpack.c.h.b16 %v6365
    %v7037 = vunpack.c.l.b16 %v6366
    %v7038 = vunpack.c.h.b16 %v6366
    %v7039 = vunpack.c.l.b16 %v6367
    %v7040 = vunpack.c.h.b16 %v6367
    %v7041 = vunpack.c.l.b16 %v6368
    %v7042 = vunpack.c.h.b16 %v6368
    %v7043 = vunpack.c.l.b16 %v6369
    %v7044 = vunpack.c.h.b16 %v6369
    %v7045 = vunpack.c.l.b16 %v6370
    %v7046 = vunpack.c.h.b16 %v6370
    %v7047 = vunpack.c.l.b16 %v6371
    %v7048 = vunpack.c.h.b16 %v6371
    %v7049 = vunpack.c.l.b16 %v6372
    %v7050 = vunpack.c.h.b16 %v6372
    %v7051 = vunpack.c.l.b16 %v6373
    %v7052 = vunpack.c.h.b16 %v6373
    %v7053 = vunpack.c.l.b16 %v6374
    %v7054 = vunpack.c.h.b16 %v6374
    %v7055 = vunpack.c.l.b16 %v6375
    %v7056 = vunpack.c.h.b16 %v6375
    %v7057 = vunpack.c.l.b16 %v6376
    %v7058 = vunpack.c.h.b16 %v6376
    %v7059 = vunpack.c.l.b16 %v6377
    %v7060 = vunpack.c.h.b16 %v6377
    %v7061 = vunpack.c.l.b16 %v6378
    %v7062 = vunpack.c.h.b16 %v6378
    %v7063 = vunpack.c.l.b16 %v6379
    %v7064 = vunpack.c.h.b16 %v6379
    %v7065 = vunpack.c.l.b16 %v6380
    %v7066 = vunpack.c.h.b16 %v6380
    %v7067 = vunpack.c.l.b16 %v6381
    %v7068 = vunpack.c.h.b16 %v6381
    %v7069 = vunpack.c.l.b16 %v6382
    %v7070 = vunpack.c.h.b16 %v6382
    %v7071 = vunpack.c.l.b16 %v6383
    %v7072 = vunpack.c.h.b16 %v6383
    %v7073 = vunpack.c.l.b16 %v6384
    %v7074 = vunpack.c.h.b16 %v6384
    %v7075 = vunpack.c.l.b16 %v6385
    %v7076 = vunpack.c.h.b16 %v6385
    %v7077 = vunpack.c.l.b16 %v6386
    %v7078 = vunpack.c.h.b16 %v6386
    %v7079 = vunpack.c.l.b16 %v6387
    %v7080 = vunpack.c.h.b16 %v6387
    %v7081 = vunpack.c.l.b16 %v6388
    %v7082 = vunpack.c.h.b16 %v6388
    %v7083 = vunpack.c.l.b16 %v6389
    %v7084 = vunpack.c.h.b16 %v6389
    %v7085 = vunpack.c.l.b16 %v6390
    %v7086 = vunpack.c.h.b16 %v6390
    %v7087 = vunpack.c.l.b16 %v6391
    %v7088 = vunpack.c.h.b16 %v6391
    %v7089 = vunpack.c.l.b16 %v6392
    %v7090 = vunpack.c.h.b16 %v6392
    %v7091 = vunpack.c.l.b16 %v6393
    %v7092 = vunpack.c.h.b16 %v6393
    %v7093 = vunpack.c.l.b16 %v6394
    %v7094 = vunpack.c.h.b16 %v6394
    %v7095 = vunpack.c.l.b16 %v6395
    %v7096 = vunpack.c.h.b16 %v6395
    %v7097 = vunpack.c.l.b16 %v6396
    %v7098 = vunpack.c.h.b16 %v6396
    %v7099 = vunpack.c.l.b16 %v6397
    %v7100 = vunpack.c.h.b16 %v6397
    %v7101 = vunpack.c.l.b16 %v6398
    %v7102 = vunpack.c.h.b16 %v6398
    %v7103 = vunpack.c.l.b16 %v6399
    %v7104 = vunpack.c.h.b16 %v6399
    %v7105 = vunpack.c.l.b16 %v6400
    %v7106 = vunpack.c.h.b16 %v6400
    %v7107 = vunpack.c.l.b16 %v6401
    %v7108 = vunpack.c.h.b16 %v6401
    %v7109 = vunpack.c.l.b16 %v6402
    %v7110 = vunpack.c.h.b16 %v6402
    %v7111 = vunpack.c.l.b16 %v6403
    %v7112 = vunpack.c.h.b16 %v6403
    %v7113 = vunpack.c.l.b16 %v6404
    %v7114 = vunpack.c.h.b16 %v6404
    %v7115 = vunpack.c.l.b16 %v6405
    %v7116 = vunpack.c.h.b16 %v6405
    %v7117 = vunpack.c.l.b16 %v6406
    %v7118 = vunpack.c.h.b16 %v6406
    %v7119 = vunpack.c.l.b16 %v6407
    %v7120 = vunpack.c.h.b16 %v6407
    %v7121 = vunpack.c.l.b16 %v6408
    %v7122 = vunpack.c.h.b16 %v6408
    %v7123 = vunpack.c.l.b16 %v6409
    %v7124 = vunpack.c.h.b16 %v6409
    %v7125 = vunpack.c.l.b16 %v6410
    %v7126 = vunpack.c.h.b16 %v6410
    %v7127 = vunpack.c.l.b16 %v6411
    %v7128 = vunpack.c.h.b16 %v6411
    %v7129 = vunpack.c.l.b16 %v6412
    %v7130 = vunpack.c.h.b16 %v6412
    %v7131 = vunpack.c.l.b16 %v6413
    %v7132 = vunpack.c.h.b16 %v6413
    %v7133 = vunpack.c.l.b16 %v6414
    %v7134 = vunpack.c.h.b16 %v6414
    %v7135 = vunpack.c.l.b16 %v6415
    %v7136 = vunpack.c.h.b16 %v6415
    %v7137 = vunpack.c.l.b16 %v6416
    %v7138 = vunpack.c.h.b16 %v6416
    %v7139 = vunpack.c.l.b16 %v6417
    %v7140 = vunpack.c.h.b16 %v6417
    %v7141 = vunpack.c.l.b16 %v6418
    %v7142 = vunpack.c.h.b16 %v6418
    %v7143 = vunpack.c.l.b16 %v6419
    %v7144 = vunpack.c.h.b16 %v6419
    %v7145 = vunpack.c.l.b16 %v6420
    %v7146 = vunpack.c.h.b16 %v6420
    %v7147 = vunpack.c.l.b16 %v6421
    %v7148 = vunpack.c.h.b16 %v6421
    %v7149 = vunpack.c.l.b16 %v6422
    %v7150 = vunpack.c.h.b16 %v6422
    %v7151 = vunpack.c.l.b16 %v6423
    %v7152 = vunpack.c.h.b16 %v6423
    %v7153 = vunpack.c.l.b16 %v6424
    %v7154 = vunpack.c.h.b16 %v6424
    %v7155 = vunpack.c.l.b16 %v6425
    %v7156 = vunpack.c.h.b16 %v6425
    %v7157 = vunpack.c.l.b16 %v6426
    %v7158 = vunpack.c.h.b16 %v6426
    %v7159 = vunpack.c.l.b16 %v6427
    %v7160 = vunpack.c.h.b16 %v6427
    %v7161 = vunpack.c.l.b16 %v6428
    %v7162 = vunpack.c.h.b16 %v6428
    %v7163 = vunpack.c.l.b16 %v6429
    %v7164 = vunpack.c.h.b16 %v6429
    %v7165 = vunpack.c.l.b16 %v6430
    %v7166 = vunpack.c.h.b16 %v6430
    %v7167 = vunpack.c.l.b16 %v6431
    %v7168 = vunpack.c.h.b16 %v6431
    %v7169 = vunpack.c.l.b16 %v6432
    %v7170 = vunpack.c.h.b16 %v6432
    %v7171 = vunpack.c.l.b16 %v6433
    %v7172 = vunpack.c.h.b16 %v6433
    %v7173 = vunpack.c.l.b16 %v6434
    %v7174 = vunpack.c.h.b16 %v6434
    %v7175 = vunpack.c.l.b16 %v6435
    %v7176 = vunpack.c.h.b16 %v6435
    %v7177 = vunpack.c.l.b16 %v6436
    %v7178 = vunpack.c.h.b16 %v6436
    %v7179 = vunpack.c.l.b16 %v6437
    %v7180 = vunpack.c.h.b16 %v6437
    %v7181 = vunpack.c.l.b16 %v6438
    %v7182 = vunpack.c.h.b16 %v6438
    %v7183 = vunpack.c.l.b16 %v6439
    %v7184 = vunpack.c.h.b16 %v6439
    %v7185 = vunpack.c.l.b16 %v6440
    %v7186 = vunpack.c.h.b16 %v6440
    %v7187 = vunpack.c.l.b16 %v6441
    %v7188 = vunpack.c.h.b16 %v6441
    %v7189 = vunpack.c.l.b16 %v6442
    %v7190 = vunpack.c.h.b16 %v6442
    %v7191 = vunpack.c.l.b16 %v6443
    %v7192 = vunpack.c.h.b16 %v6443
    %v7193 = vunpack.c.l.b16 %v6444
    %v7194 = vunpack.c.h.b16 %v6444
    %v7195 = vunpack.c.l.b16 %v6445
    %v7196 = vunpack.c.h.b16 %v6445
    %v7197 = vunpack.c.l.b16 %v6446
    %v7198 = vunpack.c.h.b16 %v6446
    %v7199 = vunpack.c.l.b16 %v6447
    %v7200 = vunpack.c.h.b16 %v6447
    %v7201 = vunpack.c.l.b16 %v6448
    %v7202 = vunpack.c.h.b16 %v6448
    %v7203 = vunpack.c.l.b16 %v6449
    %v7204 = vunpack.c.h.b16 %v6449
    %v7205 = vunpack.c.l.b16 %v6450
    %v7206 = vunpack.c.h.b16 %v6450
    %v7207 = vunpack.c.l.b16 %v6451
    %v7208 = vunpack.c.h.b16 %v6451
    %v7209 = vunpack.c.l.b16 %v6452
    %v7210 = vunpack.c.h.b16 %v6452
    %v7211 = vunpack.c.l.b16 %v6453
    %v7212 = vunpack.c.h.b16 %v6453
    %v7213 = vunpack.c.l.b16 %v6454
    %v7214 = vunpack.c.h.b16 %v6454
    %v7215 = vunpack.c.l.b16 %v6455
    %v7216 = vunpack.c.h.b16 %v6455
    %v7217 = vunpack.c.l.b16 %v6456
    %v7218 = vunpack.c.h.b16 %v6456
    %v7219 = vunpack.c.l.b16 %v6457
    %v7220 = vunpack.c.h.b16 %v6457
    %v7221 = vunpack.c.l.b16 %v6458
    %v7222 = vunpack.c.h.b16 %v6458
    %v7223 = vunpack.c.l.b16 %v6459
    %v7224 = vunpack.c.h.b16 %v6459
    %v7225 = vunpack.c.l.b16 %v6460
    %v7226 = vunpack.c.h.b16 %v6460
    %v7227 = vunpack.c.l.b16 %v6461
    %v7228 = vunpack.c.h.b16 %v6461
    %v7229 = vunpack.c.l.b16 %v6462
    %v7230 = vunpack.c.h.b16 %v6462
    %v7231 = vunpack.c.l.b16 %v6463
    %v7232 = vunpack.c.h.b16 %v6463
    %v7233 = vunpack.c.l.b16 %v6464
    %v7234 = vunpack.c.h.b16 %v6464
    %v7235 = vunpack.c.l.b16 %v6465
    %v7236 = vunpack.c.h.b16 %v6465
    %v7237 = vunpack.c.l.b16 %v6466
    %v7238 = vunpack.c.h.b16 %v6466
    %v7239 = vunpack.c.l.b16 %v6467
    %v7240 = vunpack.c.h.b16 %v6467
    %v7241 = vunpack.c.l.b16 %v6468
    %v7242 = vunpack.c.h.b16 %v6468
    %v7243 = vunpack.c.l.b16 %v6469
    %v7244 = vunpack.c.h.b16 %v6469
    %v7245 = vunpack.c.l.b16 %v6470
    %v7246 = vunpack.c.h.b16 %v6470
    %v7247 = vunpack.c.l.b16 %v6471
    %v7248 = vunpack.c.h.b16 %v6471
    %v7249 = vunpack.c.l.b16 %v6472
    %v7250 = vunpack.c.h.b16 %v6472
    %v7251 = vpack.c.b16 %v6743, %v6739
    %v7252 = vpack.c.b16 %v6744, %v6740
    %v7253 = vpack.c.b16 %v6745, %v6741
    %v7254 = vpack.c.b16 %v6746, %v6742
    %v7255 = vpack.c.b16 %v6751, %v6747
    %v7256 = vpack.c.b16 %v6752, %v6748
    %v7257 = vpack.c.b16 %v6753, %v6749
    %v7258 = vpack.c.b16 %v6754, %v6750
    %v7259 = vpack.c.b16 %v6759, %v6755
    %v7260 = vpack.c.b16 %v6760, %v6756
    %v7261 = vpack.c.b16 %v6761, %v6757
    %v7262 = vpack.c.b16 %v6762, %v6758
    %v7263 = vpack.c.b16 %v6767, %v6763
    %v7264 = vpack.c.b16 %v6768, %v6764
    %v7265 = vpack.c.b16 %v6769, %v6765
    %v7266 = vpack.c.b16 %v6770, %v6766
    %v7267 = vpack.c.b16 %v6775, %v6771
    %v7268 = vpack.c.b16 %v6776, %v6772
    %v7269 = vpack.c.b16 %v6777, %v6773
    %v7270 = vpack.c.b16 %v6778, %v6774
    %v7271 = vpack.c.b16 %v6783, %v6779
    %v7272 = vpack.c.b16 %v6784, %v6780
    %v7273 = vpack.c.b16 %v6785, %v6781
    %v7274 = vpack.c.b16 %v6786, %v6782
    %v7275 = vpack.c.b16 %v6791, %v6787
    %v7276 = vpack.c.b16 %v6792, %v6788
    %v7277 = vpack.c.b16 %v6793, %v6789
    %v7278 = vpack.c.b16 %v6794, %v6790
    %v7279 = vpack.c.b16 %v6799, %v6795
    %v7280 = vpack.c.b16 %v6800, %v6796
    %v7281 = vpack.c.b16 %v6801, %v6797
    %v7282 = vpack.c.b16 %v6802, %v6798
    %v7283 = vpack.c.b16 %v6807, %v6803
    %v7284 = vpack.c.b16 %v6808, %v6804
    %v7285 = vpack.c.b16 %v6809, %v6805
    %v7286 = vpack.c.b16 %v6810, %v6806
    %v7287 = vpack.c.b16 %v6815, %v6811
    %v7288 = vpack.c.b16 %v6816, %v6812
    %v7289 = vpack.c.b16 %v6817, %v6813
    %v7290 = vpack.c.b16 %v6818, %v6814
    %v7291 = vpack.c.b16 %v6823, %v6819
    %v7292 = vpack.c.b16 %v6824, %v6820
    %v7293 = vpack.c.b16 %v6825, %v6821
    %v7294 = vpack.c.b16 %v6826, %v6822
    %v7295 = vpack.c.b16 %v6831, %v6827
    %v7296 = vpack.c.b16 %v6832, %v6828
    %v7297 = vpack.c.b16 %v6833, %v6829
    %v7298 = vpack.c.b16 %v6834, %v6830
    %v7299 = vpack.c.b16 %v6839, %v6835
    %v7300 = vpack.c.b16 %v6840, %v6836
    %v7301 = vpack.c.b16 %v6841, %v6837
    %v7302 = vpack.c.b16 %v6842, %v6838
    %v7303 = vpack.c.b16 %v6847, %v6843
    %v7304 = vpack.c.b16 %v6848, %v6844
    %v7305 = vpack.c.b16 %v6849, %v6845
    %v7306 = vpack.c.b16 %v6850, %v6846
    %v7307 = vpack.c.b16 %v6855, %v6851
    %v7308 = vpack.c.b16 %v6856, %v6852
    %v7309 = vpack.c.b16 %v6857, %v6853
    %v7310 = vpack.c.b16 %v6858, %v6854
    %v7311 = vpack.c.b16 %v6863, %v6859
    %v7312 = vpack.c.b16 %v6864, %v6860
    %v7313 = vpack.c.b16 %v6865, %v6861
    %v7314 = vpack.c.b16 %v6866, %v6862
    %v7315 = vpack.c.b16 %v6871, %v6867
    %v7316 = vpack.c.b16 %v6872, %v6868
    %v7317 = vpack.c.b16 %v6873, %v6869
    %v7318 = vpack.c.b16 %v6874, %v6870
    %v7319 = vpack.c.b16 %v6879, %v6875
    %v7320 = vpack.c.b16 %v6880, %v6876
    %v7321 = vpack.c.b16 %v6881, %v6877
    %v7322 = vpack.c.b16 %v6882, %v6878
    %v7323 = vpack.c.b16 %v6887, %v6883
    %v7324 = vpack.c.b16 %v6888, %v6884
    %v7325 = vpack.c.b16 %v6889, %v6885
    %v7326 = vpack.c.b16 %v6890, %v6886
    %v7327 = vpack.c.b16 %v6895, %v6891
    %v7328 = vpack.c.b16 %v6896, %v6892
    %v7329 = vpack.c.b16 %v6897, %v6893
    %v7330 = vpack.c.b16 %v6898, %v6894
    %v7331 = vpack.c.b16 %v6903, %v6899
    %v7332 = vpack.c.b16 %v6904, %v6900
    %v7333 = vpack.c.b16 %v6905, %v6901
    %v7334 = vpack.c.b16 %v6906, %v6902
    %v7335 = vpack.c.b16 %v6911, %v6907
    %v7336 = vpack.c.b16 %v6912, %v6908
    %v7337 = vpack.c.b16 %v6913, %v6909
    %v7338 = vpack.c.b16 %v6914, %v6910
    %v7339 = vpack.c.b16 %v6919, %v6915
    %v7340 = vpack.c.b16 %v6920, %v6916
    %v7341 = vpack.c.b16 %v6921, %v6917
    %v7342 = vpack.c.b16 %v6922, %v6918
    %v7343 = vpack.c.b16 %v6927, %v6923
    %v7344 = vpack.c.b16 %v6928, %v6924
    %v7345 = vpack.c.b16 %v6929, %v6925
    %v7346 = vpack.c.b16 %v6930, %v6926
    %v7347 = vpack.c.b16 %v6935, %v6931
    %v7348 = vpack.c.b16 %v6936, %v6932
    %v7349 = vpack.c.b16 %v6937, %v6933
    %v7350 = vpack.c.b16 %v6938, %v6934
    %v7351 = vpack.c.b16 %v6943, %v6939
    %v7352 = vpack.c.b16 %v6944, %v6940
    %v7353 = vpack.c.b16 %v6945, %v6941
    %v7354 = vpack.c.b16 %v6946, %v6942
    %v7355 = vpack.c.b16 %v6951, %v6947
    %v7356 = vpack.c.b16 %v6952, %v6948
    %v7357 = vpack.c.b16 %v6953, %v6949
    %v7358 = vpack.c.b16 %v6954, %v6950
    %v7359 = vpack.c.b16 %v6959, %v6955
    %v7360 = vpack.c.b16 %v6960, %v6956
    %v7361 = vpack.c.b16 %v6961, %v6957
    %v7362 = vpack.c.b16 %v6962, %v6958
    %v7363 = vpack.c.b16 %v6967, %v6963
    %v7364 = vpack.c.b16 %v6968, %v6964
    %v7365 = vpack.c.b16 %v6969, %v6965
    %v7366 = vpack.c.b16 %v6970, %v6966
    %v7367 = vpack.c.b16 %v6975, %v6971
    %v7368 = vpack.c.b16 %v6976, %v6972
    %v7369 = vpack.c.b16 %v6977, %v6973
    %v7370 = vpack.c.b16 %v6978, %v6974
    %v7371 = vpack.c.b16 %v6983, %v6979
    %v7372 = vpack.c.b16 %v6984, %v6980
    %v7373 = vpack.c.b16 %v6985, %v6981
    %v7374 = vpack.c.b16 %v6986, %v6982
    %v7375 = vpack.c.b16 %v6991, %v6987
    %v7376 = vpack.c.b16 %v6992, %v6988
    %v7377 = vpack.c.b16 %v6993, %v6989
    %v7378 = vpack.c.b16 %v6994, %v6990
    %v7379 = vpack.c.b16 %v6999, %v6995
    %v7380 = vpack.c.b16 %v7000, %v6996
    %v7381 = vpack.c.b16 %v7001, %v6997
    %v7382 = vpack.c.b16 %v7002, %v6998
    %v7383 = vpack.c.b16 %v7007, %v7003
    %v7384 = vpack.c.b16 %v7008, %v7004
    %v7385 = vpack.c.b16 %v7009, %v7005
    %v7386 = vpack.c.b16 %v7010, %v7006
    %v7387 = vpack.c.b16 %v7015, %v7011
    %v7388 = vpack.c.b16 %v7016, %v7012
    %v7389 = vpack.c.b16 %v7017, %v7013
    %v7390 = vpack.c.b16 %v7018, %v7014
    %v7391 = vpack.c.b16 %v7023, %v7019
    %v7392 = vpack.c.b16 %v7024, %v7020
    %v7393 = vpack.c.b16 %v7025, %v7021
    %v7394 = vpack.c.b16 %v7026, %v7022
    %v7395 = vpack.c.b16 %v7031, %v7027
    %v7396 = vpack.c.b16 %v7032, %v7028
    %v7397 = vpack.c.b16 %v7033, %v7029
    %v7398 = vpack.c.b16 %v7034, %v7030
    %v7399 = vpack.c.b16 %v7039, %v7035
    %v7400 = vpack.c.b16 %v7040, %v7036
    %v7401 = vpack.c.b16 %v7041, %v7037
    %v7402 = vpack.c.b16 %v7042, %v7038
    %v7403 = vpack.c.b16 %v7047, %v7043
    %v7404 = vpack.c.b16 %v7048, %v7044
    %v7405 = vpack.c.b16 %v7049, %v7045
    %v7406 = vpack.c.b16 %v7050, %v7046
    %v7407 = vpack.c.b16 %v7055, %v7051
    %v7408 = vpack.c.b16 %v7056, %v7052
    %v7409 = vpack.c.b16 %v7057, %v7053
    %v7410 = vpack.c.b16 %v7058, %v7054
    %v7411 = vpack.c.b16 %v7063, %v7059
    %v7412 = vpack.c.b16 %v7064, %v7060
    %v7413 = vpack.c.b16 %v7065, %v7061
    %v7414 = vpack.c.b16 %v7066, %v7062
    %v7415 = vpack.c.b16 %v7071, %v7067
    %v7416 = vpack.c.b16 %v7072, %v7068
    %v7417 = vpack.c.b16 %v7073, %v7069
    %v7418 = vpack.c.b16 %v7074, %v7070
    %v7419 = vpack.c.b16 %v7079, %v7075
    %v7420 = vpack.c.b16 %v7080, %v7076
    %v7421 = vpack.c.b16 %v7081, %v7077
    %v7422 = vpack.c.b16 %v7082, %v7078
    %v7423 = vpack.c.b16 %v7087, %v7083
    %v7424 = vpack.c.b16 %v7088, %v7084
    %v7425 = vpack.c.b16 %v7089, %v7085
    %v7426 = vpack.c.b16 %v7090, %v7086
    %v7427 = vpack.c.b16 %v7095, %v7091
    %v7428 = vpack.c.b16 %v7096, %v7092
    %v7429 = vpack.c.b16 %v7097, %v7093
    %v7430 = vpack.c.b16 %v7098, %v7094
    %v7431 = vpack.c.b16 %v7103, %v7099
    %v7432 = vpack.c.b16 %v7104, %v7100
    %v7433 = vpack.c.b16 %v7105, %v7101
    %v7434 = vpack.c.b16 %v7106, %v7102
    %v7435 = vpack.c.b16 %v7111, %v7107
    %v7436 = vpack.c.b16 %v7112, %v7108
    %v7437 = vpack.c.b16 %v7113, %v7109
    %v7438 = vpack.c.b16 %v7114, %v7110
    %v7439 = vpack.c.b16 %v7119, %v7115
    %v7440 = vpack.c.b16 %v7120, %v7116
    %v7441 = vpack.c.b16 %v7121, %v7117
    %v7442 = vpack.c.b16 %v7122, %v7118
    %v7443 = vpack.c.b16 %v7127, %v7123
    %v7444 = vpack.c.b16 %v7128, %v7124
    %v7445 = vpack.c.b16 %v7129, %v7125
    %v7446 = vpack.c.b16 %v7130, %v7126
    %v7447 = vpack.c.b16 %v7135, %v7131
    %v7448 = vpack.c.b16 %v7136, %v7132
    %v7449 = vpack.c.b16 %v7137, %v7133
    %v7450 = vpack.c.b16 %v7138, %v7134
    %v7451 = vpack.c.b16 %v7143, %v7139
    %v7452 = vpack.c.b16 %v7144, %v7140
    %v7453 = vpack.c.b16 %v7145, %v7141
    %v7454 = vpack.c.b16 %v7146, %v7142
    %v7455 = vpack.c.b16 %v7151, %v7147
    %v7456 = vpack.c.b16 %v7152, %v7148
    %v7457 = vpack.c.b16 %v7153, %v7149
    %v7458 = vpack.c.b16 %v7154, %v7150
    %v7459 = vpack.c.b16 %v7159, %v7155
    %v7460 = vpack.c.b16 %v7160, %v7156
    %v7461 = vpack.c.b16 %v7161, %v7157
    %v7462 = vpack.c.b16 %v7162, %v7158
    %v7463 = vpack.c.b16 %v7167, %v7163
    %v7464 = vpack.c.b16 %v7168, %v7164
    %v7465 = vpack.c.b16 %v7169, %v7165
    %v7466 = vpack.c.b16 %v7170, %v7166
    %v7467 = vpack.c.b16 %v7175, %v7171
    %v7468 = vpack.c.b16 %v7176, %v7172
    %v7469 = vpack.c.b16 %v7177, %v7173
    %v7470 = vpack.c.b16 %v7178, %v7174
    %v7471 = vpack.c.b16 %v7183, %v7179
    %v7472 = vpack.c.b16 %v7184, %v7180
    %v7473 = vpack.c.b16 %v7185, %v7181
    %v7474 = vpack.c.b16 %v7186, %v7182
    %v7475 = vpack.c.b16 %v7191, %v7187
    %v7476 = vpack.c.b16 %v7192, %v7188
    %v7477 = vpack.c.b16 %v7193, %v7189
    %v7478 = vpack.c.b16 %v7194, %v7190
    %v7479 = vpack.c.b16 %v7199, %v7195
    %v7480 = vpack.c.b16 %v7200, %v7196
    %v7481 = vpack.c.b16 %v7201, %v7197
    %v7482 = vpack.c.b16 %v7202, %v7198
    %v7483 = vpack.c.b16 %v7207, %v7203
    %v7484 = vpack.c.b16 %v7208, %v7204
    %v7485 = vpack.c.b16 %v7209, %v7205
    %v7486 = vpack.c.b16 %v7210, %v7206
    %v7487 = vpack.c.b16 %v7215, %v7211
    %v7488 = vpack.c.b16 %v7216, %v7212
    %v7489 = vpack.c.b16 %v7217, %v7213
    %v7490 = vpack.c.b16 %v7218, %v7214
    %v7491 = vpack.c.b16 %v7223, %v7219
    %v7492 = vpack.c.b16 %v7224, %v7220
    %v7493 = vpack.c.b16 %v7225, %v7221
    %v7494 = vpack.c.b16 %v7226, %v7222
    %v7495 = vpack.c.b16 %v7231, %v7227
    %v7496 = vpack.c.b16 %v7232, %v7228
    %v7497 = vpack.c.b16 %v7233, %v7229
    %v7498 = vpack.c.b16 %v7234, %v7230
    %v7499 = vpack.c.b16 %v7239, %v7235
    %v7500 = vpack.c.b16 %v7240, %v7236
    %v7501 = vpack.c.b16 %v7241, %v7237
    %v7502 = vpack.c.b16 %v7242, %v7238
    %v7503 = vpack.c.b16 %v7247, %v7243
    %v7504 = vpack.c.b16 %v7248, %v7244
    %v7505 = vpack.c.b16 %v7249, %v7245
    %v7506 = vpack.c.b16 %v7250, %v7246
    %7763 = vmatpush.bf16.msra.mxu0 %v7279
    %7764 = vmatpush.bf16.msra.mxu0 %v7275
    %7765 = vmatpush.bf16.msra.mxu0 %v7271
    %7766 = vmatpush.bf16.msra.mxu0 %v7267
    %7767 = vmatpush.bf16.msra.mxu0 %v7263
    %7768 = vmatpush.bf16.msra.mxu0 %v7259
    %7769 = vmatpush.bf16.msra.mxu0 %v7255
    %7770 = vmatpush.bf16.msra.mxu0 %v7251
    %7771 = vmatmul.bf16.gmra.mxu0 %v6153
    %v7772 = vpop.f32.mrf.mxu0
    %v7773 = vadd.f32 %v6475, %v7772
    %v7774 = vpop.f32.mrf.mxu0
    %v7775 = vadd.f32 %v6475, %v7774
    %7776 = vmatmul.bf16.gmra.mxu0 %v6161
    %v7777 = vpop.f32.mrf.mxu0
    %v7778 = vadd.f32 %v6475, %v7777
    %v7779 = vpop.f32.mrf.mxu0
    %v7780 = vadd.f32 %v6475, %v7779
    %7781 = vmatmul.bf16.gmra.mxu0 %v6169
    %v7782 = vpop.f32.mrf.mxu0
    %v7783 = vadd.f32 %v6475, %v7782
    %v7784 = vpop.f32.mrf.mxu0
    %v7785 = vadd.f32 %v6475, %v7784
    %7786 = vmatmul.bf16.gmra.mxu0 %v6177
    %v7787 = vpop.f32.mrf.mxu0
    %v7788 = vadd.f32 %v6475, %v7787
    %v7789 = vpop.f32.mrf.mxu0
    %v7790 = vadd.f32 %v6475, %v7789
    %7791 = vmatmul.bf16.gmra.mxu0 %v6185
    %v7792 = vpop.f32.mrf.mxu0
    %v7793 = vadd.f32 %v6475, %v7792
    %v7794 = vpop.f32.mrf.mxu0
    %v7795 = vadd.f32 %v6475, %v7794
    %7796 = vmatmul.bf16.gmra.mxu0 %v6193
    %v7797 = vpop.f32.mrf.mxu0
    %v7798 = vadd.f32 %v6475, %v7797
    %v7799 = vpop.f32.mrf.mxu0
    %v7800 = vadd.f32 %v6475, %v7799
    %7801 = vmatmul.bf16.gmra.mxu0 %v6201
    %v7802 = vpop.f32.mrf.mxu0
    %v7803 = vadd.f32 %v6475, %v7802
    %v7804 = vpop.f32.mrf.mxu0
    %v7805 = vadd.f32 %v6475, %v7804
    %7806 = vmatmul.bf16.gmra.mxu0 %v6209
    %v7807 = vpop.f32.mrf.mxu0
    %v7808 = vadd.f32 %v6475, %v7807
    %v7809 = vpop.f32.mrf.mxu0
    %v7810 = vadd.f32 %v6475, %v7809
    %7811 = vdwg.mxu0
    %7812 = vmatpush.bf16.msra.mxu0 %v7311
    %7813 = vmatpush.bf16.msra.mxu0 %v7307
    %7814 = vmatpush.bf16.msra.mxu0 %v7303
    %7815 = vmatpush.bf16.msra.mxu0 %v7299
    %7816 = vmatpush.bf16.msra.mxu0 %v7295
    %7817 = vmatpush.bf16.msra.mxu0 %v7291
    %7818 = vmatpush.bf16.msra.mxu0 %v7287
    %7819 = vmatpush.bf16.msra.mxu0 %v7283
    %7820 = vmatmul.bf16.gmra.mxu0 %v6154
    %v7821 = vpop.f32.mrf.mxu0
    %v7822 = vadd.f32 %v7773, %v7821
    %v7823 = vpop.f32.mrf.mxu0
    %v7824 = vadd.f32 %v7775, %v7823
    %7825 = vmatmul.bf16.gmra.mxu0 %v6162
    %v7826 = vpop.f32.mrf.mxu0
    %v7827 = vadd.f32 %v7778, %v7826
    %v7828 = vpop.f32.mrf.mxu0
    %v7829 = vadd.f32 %v7780, %v7828
    %7830 = vmatmul.bf16.gmra.mxu0 %v6170
    %v7831 = vpop.f32.mrf.mxu0
    %v7832 = vadd.f32 %v7783, %v7831
    %v7833 = vpop.f32.mrf.mxu0
    %v7834 = vadd.f32 %v7785, %v7833
    %7835 = vmatmul.bf16.gmra.mxu0 %v6178
    %v7836 = vpop.f32.mrf.mxu0
    %v7837 = vadd.f32 %v7788, %v7836
    %v7838 = vpop.f32.mrf.mxu0
    %v7839 = vadd.f32 %v7790, %v7838
    %7840 = vmatmul.bf16.gmra.mxu0 %v6186
    %v7841 = vpop.f32.mrf.mxu0
    %v7842 = vadd.f32 %v7793, %v7841
    %v7843 = vpop.f32.mrf.mxu0
    %v7844 = vadd.f32 %v7795, %v7843
    %7845 = vmatmul.bf16.gmra.mxu0 %v6194
    %v7846 = vpop.f32.mrf.mxu0
    %v7847 = vadd.f32 %v7798, %v7846
    %v7848 = vpop.f32.mrf.mxu0
    %v7849 = vadd.f32 %v7800, %v7848
    %7850 = vmatmul.bf16.gmra.mxu0 %v6202
    %v7851 = vpop.f32.mrf.mxu0
    %v7852 = vadd.f32 %v7803, %v7851
    %v7853 = vpop.f32.mrf.mxu0
    %v7854 = vadd.f32 %v7805, %v7853
    %7855 = vmatmul.bf16.gmra.mxu0 %v6210
    %v7856 = vpop.f32.mrf.mxu0
    %v7857 = vadd.f32 %v7808, %v7856
    %v7858 = vpop.f32.mrf.mxu0
    %v7859 = vadd.f32 %v7810, %v7858
    %7860 = vdwg.mxu0
    %7861 = vmatpush.bf16.msra.mxu0 %v7343
    %7862 = vmatpush.bf16.msra.mxu0 %v7339
    %7863 = vmatpush.bf16.msra.mxu0 %v7335
    %7864 = vmatpush.bf16.msra.mxu0 %v7331
    %7865 = vmatpush.bf16.msra.mxu0 %v7327
    %7866 = vmatpush.bf16.msra.mxu0 %v7323
    %7867 = vmatpush.bf16.msra.mxu0 %v7319
    %7868 = vmatpush.bf16.msra.mxu0 %v7315
    %7869 = vmatmul.bf16.gmra.mxu0 %v6155
    %v7870 = vpop.f32.mrf.mxu0
    %v7871 = vadd.f32 %v7822, %v7870
    %v7872 = vpop.f32.mrf.mxu0
    %v7873 = vadd.f32 %v7824, %v7872
    %7874 = vmatmul.bf16.gmra.mxu0 %v6163
    %v7875 = vpop.f32.mrf.mxu0
    %v7876 = vadd.f32 %v7827, %v7875
    %v7877 = vpop.f32.mrf.mxu0
    %v7878 = vadd.f32 %v7829, %v7877
    %7879 = vmatmul.bf16.gmra.mxu0 %v6171
    %v7880 = vpop.f32.mrf.mxu0
    %v7881 = vadd.f32 %v7832, %v7880
    %v7882 = vpop.f32.mrf.mxu0
    %v7883 = vadd.f32 %v7834, %v7882
    %7884 = vmatmul.bf16.gmra.mxu0 %v6179
    %v7885 = vpop.f32.mrf.mxu0
    %v7886 = vadd.f32 %v7837, %v7885
    %v7887 = vpop.f32.mrf.mxu0
    %v7888 = vadd.f32 %v7839, %v7887
    %7889 = vmatmul.bf16.gmra.mxu0 %v6187
    %v7890 = vpop.f32.mrf.mxu0
    %v7891 = vadd.f32 %v7842, %v7890
    %v7892 = vpop.f32.mrf.mxu0
    %v7893 = vadd.f32 %v7844, %v7892
    %7894 = vmatmul.bf16.gmra.mxu0 %v6195
    %v7895 = vpop.f32.mrf.mxu0
    %v7896 = vadd.f32 %v7847, %v7895
    %v7897 = vpop.f32.mrf.mxu0
    %v7898 = vadd.f32 %v7849, %v7897
    %7899 = vmatmul.bf16.gmra.mxu0 %v6203
    %v7900 = vpop.f32.mrf.mxu0
    %v7901 = vadd.f32 %v7852, %v7900
    %v7902 = vpop.f32.mrf.mxu0
    %v7903 = vadd.f32 %v7854, %v7902
    %7904 = vmatmul.bf16.gmra.mxu0 %v6211
    %v7905 = vpop.f32.mrf.mxu0
    %v7906 = vadd.f32 %v7857, %v7905
    %v7907 = vpop.f32.mrf.mxu0
    %v7908 = vadd.f32 %v7859, %v7907
    %7909 = vdwg.mxu0
    %7910 = vmatpush.bf16.msra.mxu0 %v7375
    %7911 = vmatpush.bf16.msra.mxu0 %v7371
    %7912 = vmatpush.bf16.msra.mxu0 %v7367
    %7913 = vmatpush.bf16.msra.mxu0 %v7363
    %7914 = vmatpush.bf16.msra.mxu0 %v7359
    %7915 = vmatpush.bf16.msra.mxu0 %v7355
    %7916 = vmatpush.bf16.msra.mxu0 %v7351
    %7917 = vmatpush.bf16.msra.mxu0 %v7347
    %7918 = vmatmul.bf16.gmra.mxu0 %v6156
    %v7919 = vpop.f32.mrf.mxu0
    %v7920 = vadd.f32 %v7871, %v7919
    %v7921 = vpop.f32.mrf.mxu0
    %v7922 = vadd.f32 %v7873, %v7921
    %7923 = vmatmul.bf16.gmra.mxu0 %v6164
    %v7924 = vpop.f32.mrf.mxu0
    %v7925 = vadd.f32 %v7876, %v7924
    %v7926 = vpop.f32.mrf.mxu0
    %v7927 = vadd.f32 %v7878, %v7926
    %7928 = vmatmul.bf16.gmra.mxu0 %v6172
    %v7929 = vpop.f32.mrf.mxu0
    %v7930 = vadd.f32 %v7881, %v7929
    %v7931 = vpop.f32.mrf.mxu0
    %v7932 = vadd.f32 %v7883, %v7931
    %7933 = vmatmul.bf16.gmra.mxu0 %v6180
    %v7934 = vpop.f32.mrf.mxu0
    %v7935 = vadd.f32 %v7886, %v7934
    %v7936 = vpop.f32.mrf.mxu0
    %v7937 = vadd.f32 %v7888, %v7936
    %7938 = vmatmul.bf16.gmra.mxu0 %v6188
    %v7939 = vpop.f32.mrf.mxu0
    %v7940 = vadd.f32 %v7891, %v7939
    %v7941 = vpop.f32.mrf.mxu0
    %v7942 = vadd.f32 %v7893, %v7941
    %7943 = vmatmul.bf16.gmra.mxu0 %v6196
    %v7944 = vpop.f32.mrf.mxu0
    %v7945 = vadd.f32 %v7896, %v7944
    %v7946 = vpop.f32.mrf.mxu0
    %v7947 = vadd.f32 %v7898, %v7946
    %7948 = vmatmul.bf16.gmra.mxu0 %v6204
    %v7949 = vpop.f32.mrf.mxu0
    %v7950 = vadd.f32 %v7901, %v7949
    %v7951 = vpop.f32.mrf.mxu0
    %v7952 = vadd.f32 %v7903, %v7951
    %7953 = vmatmul.bf16.gmra.mxu0 %v6212
    %v7954 = vpop.f32.mrf.mxu0
    %v7955 = vadd.f32 %v7906, %v7954
    %v7956 = vpop.f32.mrf.mxu0
    %v7957 = vadd.f32 %v7908, %v7956
    %7958 = vdwg.mxu0
    %7959 = vmatpush.bf16.msra.mxu0 %v7407
    %7960 = vmatpush.bf16.msra.mxu0 %v7403
    %7961 = vmatpush.bf16.msra.mxu0 %v7399
    %7962 = vmatpush.bf16.msra.mxu0 %v7395
    %7963 = vmatpush.bf16.msra.mxu0 %v7391
    %7964 = vmatpush.bf16.msra.mxu0 %v7387
    %7965 = vmatpush.bf16.msra.mxu0 %v7383
    %7966 = vmatpush.bf16.msra.mxu0 %v7379
    %7967 = vmatmul.bf16.gmra.mxu0 %v6157
    %v7968 = vpop.f32.mrf.mxu0
    %v7969 = vadd.f32 %v7920, %v7968
    %v7970 = vpop.f32.mrf.mxu0
    %v7971 = vadd.f32 %v7922, %v7970
    %7972 = vmatmul.bf16.gmra.mxu0 %v6165
    %v7973 = vpop.f32.mrf.mxu0
    %v7974 = vadd.f32 %v7925, %v7973
    %v7975 = vpop.f32.mrf.mxu0
    %v7976 = vadd.f32 %v7927, %v7975
    %7977 = vmatmul.bf16.gmra.mxu0 %v6173
    %v7978 = vpop.f32.mrf.mxu0
    %v7979 = vadd.f32 %v7930, %v7978
    %v7980 = vpop.f32.mrf.mxu0
    %v7981 = vadd.f32 %v7932, %v7980
    %7982 = vmatmul.bf16.gmra.mxu0 %v6181
    %v7983 = vpop.f32.mrf.mxu0
    %v7984 = vadd.f32 %v7935, %v7983
    %v7985 = vpop.f32.mrf.mxu0
    %v7986 = vadd.f32 %v7937, %v7985
    %7987 = vmatmul.bf16.gmra.mxu0 %v6189
    %v7988 = vpop.f32.mrf.mxu0
    %v7989 = vadd.f32 %v7940, %v7988
    %v7990 = vpop.f32.mrf.mxu0
    %v7991 = vadd.f32 %v7942, %v7990
    %7992 = vmatmul.bf16.gmra.mxu0 %v6197
    %v7993 = vpop.f32.mrf.mxu0
    %v7994 = vadd.f32 %v7945, %v7993
    %v7995 = vpop.f32.mrf.mxu0
    %v7996 = vadd.f32 %v7947, %v7995
    %7997 = vmatmul.bf16.gmra.mxu0 %v6205
    %v7998 = vpop.f32.mrf.mxu0
    %v7999 = vadd.f32 %v7950, %v7998
    %v8000 = vpop.f32.mrf.mxu0
    %v8001 = vadd.f32 %v7952, %v8000
    %8002 = vmatmul.bf16.gmra.mxu0 %v6213
    %v8003 = vpop.f32.mrf.mxu0
    %v8004 = vadd.f32 %v7955, %v8003
    %v8005 = vpop.f32.mrf.mxu0
    %v8006 = vadd.f32 %v7957, %v8005
    %8007 = vdwg.mxu0
    %8008 = vmatpush.bf16.msra.mxu0 %v7439
    %8009 = vmatpush.bf16.msra.mxu0 %v7435
    %8010 = vmatpush.bf16.msra.mxu0 %v7431
    %8011 = vmatpush.bf16.msra.mxu0 %v7427
    %8012 = vmatpush.bf16.msra.mxu0 %v7423
    %8013 = vmatpush.bf16.msra.mxu0 %v7419
    %8014 = vmatpush.bf16.msra.mxu0 %v7415
    %8015 = vmatpush.bf16.msra.mxu0 %v7411
    %8016 = vmatmul.bf16.gmra.mxu0 %v6158
    %v8017 = vpop.f32.mrf.mxu0
    %v8018 = vadd.f32 %v7969, %v8017
    %v8019 = vpop.f32.mrf.mxu0
    %v8020 = vadd.f32 %v7971, %v8019
    %8021 = vmatmul.bf16.gmra.mxu0 %v6166
    %v8022 = vpop.f32.mrf.mxu0
    %v8023 = vadd.f32 %v7974, %v8022
    %v8024 = vpop.f32.mrf.mxu0
    %v8025 = vadd.f32 %v7976, %v8024
    %8026 = vmatmul.bf16.gmra.mxu0 %v6174
    %v8027 = vpop.f32.mrf.mxu0
    %v8028 = vadd.f32 %v7979, %v8027
    %v8029 = vpop.f32.mrf.mxu0
    %v8030 = vadd.f32 %v7981, %v8029
    %8031 = vmatmul.bf16.gmra.mxu0 %v6182
    %v8032 = vpop.f32.mrf.mxu0
    %v8033 = vadd.f32 %v7984, %v8032
    %v8034 = vpop.f32.mrf.mxu0
    %v8035 = vadd.f32 %v7986, %v8034
    %8036 = vmatmul.bf16.gmra.mxu0 %v6190
    %v8037 = vpop.f32.mrf.mxu0
    %v8038 = vadd.f32 %v7989, %v8037
    %v8039 = vpop.f32.mrf.mxu0
    %v8040 = vadd.f32 %v7991, %v8039
    %8041 = vmatmul.bf16.gmra.mxu0 %v6198
    %v8042 = vpop.f32.mrf.mxu0
    %v8043 = vadd.f32 %v7994, %v8042
    %v8044 = vpop.f32.mrf.mxu0
    %v8045 = vadd.f32 %v7996, %v8044
    %8046 = vmatmul.bf16.gmra.mxu0 %v6206
    %v8047 = vpop.f32.mrf.mxu0
    %v8048 = vadd.f32 %v7999, %v8047
    %v8049 = vpop.f32.mrf.mxu0
    %v8050 = vadd.f32 %v8001, %v8049
    %8051 = vmatmul.bf16.gmra.mxu0 %v6214
    %v8052 = vpop.f32.mrf.mxu0
    %v8053 = vadd.f32 %v8004, %v8052
    %v8054 = vpop.f32.mrf.mxu0
    %v8055 = vadd.f32 %v8006, %v8054
    %8056 = vdwg.mxu0
    %8057 = vmatpush.bf16.msra.mxu0 %v7471
    %8058 = vmatpush.bf16.msra.mxu0 %v7467
    %8059 = vmatpush.bf16.msra.mxu0 %v7463
    %8060 = vmatpush.bf16.msra.mxu0 %v7459
    %8061 = vmatpush.bf16.msra.mxu0 %v7455
    %8062 = vmatpush.bf16.msra.mxu0 %v7451
    %8063 = vmatpush.bf16.msra.mxu0 %v7447
    %8064 = vmatpush.bf16.msra.mxu0 %v7443
    %8065 = vmatmul.bf16.gmra.mxu0 %v6159
    %v8066 = vpop.f32.mrf.mxu0
    %v8067 = vadd.f32 %v8018, %v8066
    %v8068 = vpop.f32.mrf.mxu0
    %v8069 = vadd.f32 %v8020, %v8068
    %8070 = vmatmul.bf16.gmra.mxu0 %v6167
    %v8071 = vpop.f32.mrf.mxu0
    %v8072 = vadd.f32 %v8023, %v8071
    %v8073 = vpop.f32.mrf.mxu0
    %v8074 = vadd.f32 %v8025, %v8073
    %8075 = vmatmul.bf16.gmra.mxu0 %v6175
    %v8076 = vpop.f32.mrf.mxu0
    %v8077 = vadd.f32 %v8028, %v8076
    %v8078 = vpop.f32.mrf.mxu0
    %v8079 = vadd.f32 %v8030, %v8078
    %8080 = vmatmul.bf16.gmra.mxu0 %v6183
    %v8081 = vpop.f32.mrf.mxu0
    %v8082 = vadd.f32 %v8033, %v8081
    %v8083 = vpop.f32.mrf.mxu0
    %v8084 = vadd.f32 %v8035, %v8083
    %8085 = vmatmul.bf16.gmra.mxu0 %v6191
    %v8086 = vpop.f32.mrf.mxu0
    %v8087 = vadd.f32 %v8038, %v8086
    %v8088 = vpop.f32.mrf.mxu0
    %v8089 = vadd.f32 %v8040, %v8088
    %8090 = vmatmul.bf16.gmra.mxu0 %v6199
    %v8091 = vpop.f32.mrf.mxu0
    %v8092 = vadd.f32 %v8043, %v8091
    %v8093 = vpop.f32.mrf.mxu0
    %v8094 = vadd.f32 %v8045, %v8093
    %8095 = vmatmul.bf16.gmra.mxu0 %v6207
    %v8096 = vpop.f32.mrf.mxu0
    %v8097 = vadd.f32 %v8048, %v8096
    %v8098 = vpop.f32.mrf.mxu0
    %v8099 = vadd.f32 %v8050, %v8098
    %8100 = vmatmul.bf16.gmra.mxu0 %v6215
    %v8101 = vpop.f32.mrf.mxu0
    %v8102 = vadd.f32 %v8053, %v8101
    %v8103 = vpop.f32.mrf.mxu0
    %v8104 = vadd.f32 %v8055, %v8103
    %8105 = vdwg.mxu0
    %8106 = vmatpush.bf16.msra.mxu0 %v7503
    %8107 = vmatpush.bf16.msra.mxu0 %v7499
    %8108 = vmatpush.bf16.msra.mxu0 %v7495
    %8109 = vmatpush.bf16.msra.mxu0 %v7491
    %8110 = vmatpush.bf16.msra.mxu0 %v7487
    %8111 = vmatpush.bf16.msra.mxu0 %v7483
    %8112 = vmatpush.bf16.msra.mxu0 %v7479
    %8113 = vmatpush.bf16.msra.mxu0 %v7475
    %8114 = vmatmul.bf16.gmra.mxu0 %v6160
    %v8115 = vpop.f32.mrf.mxu0
    %v8116 = vadd.f32 %v8067, %v8115
    %v8117 = vpop.f32.mrf.mxu0
    %v8118 = vadd.f32 %v8069, %v8117
    %8119 = vmatmul.bf16.gmra.mxu0 %v6168
    %v8120 = vpop.f32.mrf.mxu0
    %v8121 = vadd.f32 %v8072, %v8120
    %v8122 = vpop.f32.mrf.mxu0
    %v8123 = vadd.f32 %v8074, %v8122
    %8124 = vmatmul.bf16.gmra.mxu0 %v6176
    %v8125 = vpop.f32.mrf.mxu0
    %v8126 = vadd.f32 %v8077, %v8125
    %v8127 = vpop.f32.mrf.mxu0
    %v8128 = vadd.f32 %v8079, %v8127
    %8129 = vmatmul.bf16.gmra.mxu0 %v6184
    %v8130 = vpop.f32.mrf.mxu0
    %v8131 = vadd.f32 %v8082, %v8130
    %v8132 = vpop.f32.mrf.mxu0
    %v8133 = vadd.f32 %v8084, %v8132
    %8134 = vmatmul.bf16.gmra.mxu0 %v6192
    %v8135 = vpop.f32.mrf.mxu0
    %v8136 = vadd.f32 %v8087, %v8135
    %v8137 = vpop.f32.mrf.mxu0
    %v8138 = vadd.f32 %v8089, %v8137
    %8139 = vmatmul.bf16.gmra.mxu0 %v6200
    %v8140 = vpop.f32.mrf.mxu0
    %v8141 = vadd.f32 %v8092, %v8140
    %v8142 = vpop.f32.mrf.mxu0
    %v8143 = vadd.f32 %v8094, %v8142
    %8144 = vmatmul.bf16.gmra.mxu0 %v6208
    %v8145 = vpop.f32.mrf.mxu0
    %v8146 = vadd.f32 %v8097, %v8145
    %v8147 = vpop.f32.mrf.mxu0
    %v8148 = vadd.f32 %v8099, %v8147
    %8149 = vmatmul.bf16.gmra.mxu0 %v6216
    %v8150 = vpop.f32.mrf.mxu0
    %v8151 = vadd.f32 %v8102, %v8150
    %v8152 = vpop.f32.mrf.mxu0
    %v8153 = vadd.f32 %v8104, %v8152
    %8154 = vdwg.mxu0
    %8155 = vmatpush.bf16.msra.mxu0 %v7280
    %8156 = vmatpush.bf16.msra.mxu0 %v7276
    %8157 = vmatpush.bf16.msra.mxu0 %v7272
    %8158 = vmatpush.bf16.msra.mxu0 %v7268
    %8159 = vmatpush.bf16.msra.mxu0 %v7264
    %8160 = vmatpush.bf16.msra.mxu0 %v7260
    %8161 = vmatpush.bf16.msra.mxu0 %v7256
    %8162 = vmatpush.bf16.msra.mxu0 %v7252
    %8163 = vmatmul.bf16.gmra.mxu0 %v6153
    %v8164 = vpop.f32.mrf.mxu0
    %v8165 = vadd.f32 %v6476, %v8164
    %v8166 = vpop.f32.mrf.mxu0
    %v8167 = vadd.f32 %v6476, %v8166
    %8168 = vmatmul.bf16.gmra.mxu0 %v6161
    %v8169 = vpop.f32.mrf.mxu0
    %v8170 = vadd.f32 %v6476, %v8169
    %v8171 = vpop.f32.mrf.mxu0
    %v8172 = vadd.f32 %v6476, %v8171
    %8173 = vmatmul.bf16.gmra.mxu0 %v6169
    %v8174 = vpop.f32.mrf.mxu0
    %v8175 = vadd.f32 %v6476, %v8174
    %v8176 = vpop.f32.mrf.mxu0
    %v8177 = vadd.f32 %v6476, %v8176
    %8178 = vmatmul.bf16.gmra.mxu0 %v6177
    %v8179 = vpop.f32.mrf.mxu0
    %v8180 = vadd.f32 %v6476, %v8179
    %v8181 = vpop.f32.mrf.mxu0
    %v8182 = vadd.f32 %v6476, %v8181
    %8183 = vmatmul.bf16.gmra.mxu0 %v6185
    %v8184 = vpop.f32.mrf.mxu0
    %v8185 = vadd.f32 %v6476, %v8184
    %v8186 = vpop.f32.mrf.mxu0
    %v8187 = vadd.f32 %v6476, %v8186
    %8188 = vmatmul.bf16.gmra.mxu0 %v6193
    %v8189 = vpop.f32.mrf.mxu0
    %v8190 = vadd.f32 %v6476, %v8189
    %v8191 = vpop.f32.mrf.mxu0
    %v8192 = vadd.f32 %v6476, %v8191
    %8193 = vmatmul.bf16.gmra.mxu0 %v6201
    %v8194 = vpop.f32.mrf.mxu0
    %v8195 = vadd.f32 %v6476, %v8194
    %v8196 = vpop.f32.mrf.mxu0
    %v8197 = vadd.f32 %v6476, %v8196
    %8198 = vmatmul.bf16.gmra.mxu0 %v6209
    %v8199 = vpop.f32.mrf.mxu0
    %v8200 = vadd.f32 %v6476, %v8199
    %v8201 = vpop.f32.mrf.mxu0
    %v8202 = vadd.f32 %v6476, %v8201
    %8203 = vdwg.mxu0
    %8204 = vmatpush.bf16.msra.mxu0 %v7312
    %8205 = vmatpush.bf16.msra.mxu0 %v7308
    %8206 = vmatpush.bf16.msra.mxu0 %v7304
    %8207 = vmatpush.bf16.msra.mxu0 %v7300
    %8208 = vmatpush.bf16.msra.mxu0 %v7296
    %8209 = vmatpush.bf16.msra.mxu0 %v7292
    %8210 = vmatpush.bf16.msra.mxu0 %v7288
    %8211 = vmatpush.bf16.msra.mxu0 %v7284
    %8212 = vmatmul.bf16.gmra.mxu0 %v6154
    %v8213 = vpop.f32.mrf.mxu0
    %v8214 = vadd.f32 %v8165, %v8213
    %v8215 = vpop.f32.mrf.mxu0
    %v8216 = vadd.f32 %v8167, %v8215
    %8217 = vmatmul.bf16.gmra.mxu0 %v6162
    %v8218 = vpop.f32.mrf.mxu0
    %v8219 = vadd.f32 %v8170, %v8218
    %v8220 = vpop.f32.mrf.mxu0
    %v8221 = vadd.f32 %v8172, %v8220
    %8222 = vmatmul.bf16.gmra.mxu0 %v6170
    %v8223 = vpop.f32.mrf.mxu0
    %v8224 = vadd.f32 %v8175, %v8223
    %v8225 = vpop.f32.mrf.mxu0
    %v8226 = vadd.f32 %v8177, %v8225
    %8227 = vmatmul.bf16.gmra.mxu0 %v6178
    %v8228 = vpop.f32.mrf.mxu0
    %v8229 = vadd.f32 %v8180, %v8228
    %v8230 = vpop.f32.mrf.mxu0
    %v8231 = vadd.f32 %v8182, %v8230
    %8232 = vmatmul.bf16.gmra.mxu0 %v6186
    %v8233 = vpop.f32.mrf.mxu0
    %v8234 = vadd.f32 %v8185, %v8233
    %v8235 = vpop.f32.mrf.mxu0
    %v8236 = vadd.f32 %v8187, %v8235
    %8237 = vmatmul.bf16.gmra.mxu0 %v6194
    %v8238 = vpop.f32.mrf.mxu0
    %v8239 = vadd.f32 %v8190, %v8238
    %v8240 = vpop.f32.mrf.mxu0
    %v8241 = vadd.f32 %v8192, %v8240
    %8242 = vmatmul.bf16.gmra.mxu0 %v6202
    %v8243 = vpop.f32.mrf.mxu0
    %v8244 = vadd.f32 %v8195, %v8243
    %v8245 = vpop.f32.mrf.mxu0
    %v8246 = vadd.f32 %v8197, %v8245
    %8247 = vmatmul.bf16.gmra.mxu0 %v6210
    %v8248 = vpop.f32.mrf.mxu0
    %v8249 = vadd.f32 %v8200, %v8248
    %v8250 = vpop.f32.mrf.mxu0
    %v8251 = vadd.f32 %v8202, %v8250
    %8252 = vdwg.mxu0
    %8253 = vmatpush.bf16.msra.mxu0 %v7344
    %8254 = vmatpush.bf16.msra.mxu0 %v7340
    %8255 = vmatpush.bf16.msra.mxu0 %v7336
    %8256 = vmatpush.bf16.msra.mxu0 %v7332
    %8257 = vmatpush.bf16.msra.mxu0 %v7328
    %8258 = vmatpush.bf16.msra.mxu0 %v7324
    %8259 = vmatpush.bf16.msra.mxu0 %v7320
    %8260 = vmatpush.bf16.msra.mxu0 %v7316
    %8261 = vmatmul.bf16.gmra.mxu0 %v6155
    %v8262 = vpop.f32.mrf.mxu0
    %v8263 = vadd.f32 %v8214, %v8262
    %v8264 = vpop.f32.mrf.mxu0
    %v8265 = vadd.f32 %v8216, %v8264
    %8266 = vmatmul.bf16.gmra.mxu0 %v6163
    %v8267 = vpop.f32.mrf.mxu0
    %v8268 = vadd.f32 %v8219, %v8267
    %v8269 = vpop.f32.mrf.mxu0
    %v8270 = vadd.f32 %v8221, %v8269
    %8271 = vmatmul.bf16.gmra.mxu0 %v6171
    %v8272 = vpop.f32.mrf.mxu0
    %v8273 = vadd.f32 %v8224, %v8272
    %v8274 = vpop.f32.mrf.mxu0
    %v8275 = vadd.f32 %v8226, %v8274
    %8276 = vmatmul.bf16.gmra.mxu0 %v6179
    %v8277 = vpop.f32.mrf.mxu0
    %v8278 = vadd.f32 %v8229, %v8277
    %v8279 = vpop.f32.mrf.mxu0
    %v8280 = vadd.f32 %v8231, %v8279
    %8281 = vmatmul.bf16.gmra.mxu0 %v6187
    %v8282 = vpop.f32.mrf.mxu0
    %v8283 = vadd.f32 %v8234, %v8282
    %v8284 = vpop.f32.mrf.mxu0
    %v8285 = vadd.f32 %v8236, %v8284
    %8286 = vmatmul.bf16.gmra.mxu0 %v6195
    %v8287 = vpop.f32.mrf.mxu0
    %v8288 = vadd.f32 %v8239, %v8287
    %v8289 = vpop.f32.mrf.mxu0
    %v8290 = vadd.f32 %v8241, %v8289
    %8291 = vmatmul.bf16.gmra.mxu0 %v6203
    %v8292 = vpop.f32.mrf.mxu0
    %v8293 = vadd.f32 %v8244, %v8292
    %v8294 = vpop.f32.mrf.mxu0
    %v8295 = vadd.f32 %v8246, %v8294
    %8296 = vmatmul.bf16.gmra.mxu0 %v6211
    %v8297 = vpop.f32.mrf.mxu0
    %v8298 = vadd.f32 %v8249, %v8297
    %v8299 = vpop.f32.mrf.mxu0
    %v8300 = vadd.f32 %v8251, %v8299
    %8301 = vdwg.mxu0
    %8302 = vmatpush.bf16.msra.mxu0 %v7376
    %8303 = vmatpush.bf16.msra.mxu0 %v7372
    %8304 = vmatpush.bf16.msra.mxu0 %v7368
    %8305 = vmatpush.bf16.msra.mxu0 %v7364
    %8306 = vmatpush.bf16.msra.mxu0 %v7360
    %8307 = vmatpush.bf16.msra.mxu0 %v7356
    %8308 = vmatpush.bf16.msra.mxu0 %v7352
    %8309 = vmatpush.bf16.msra.mxu0 %v7348
    %8310 = vmatmul.bf16.gmra.mxu0 %v6156
    %v8311 = vpop.f32.mrf.mxu0
    %v8312 = vadd.f32 %v8263, %v8311
    %v8313 = vpop.f32.mrf.mxu0
    %v8314 = vadd.f32 %v8265, %v8313
    %8315 = vmatmul.bf16.gmra.mxu0 %v6164
    %v8316 = vpop.f32.mrf.mxu0
    %v8317 = vadd.f32 %v8268, %v8316
    %v8318 = vpop.f32.mrf.mxu0
    %v8319 = vadd.f32 %v8270, %v8318
    %8320 = vmatmul.bf16.gmra.mxu0 %v6172
    %v8321 = vpop.f32.mrf.mxu0
    %v8322 = vadd.f32 %v8273, %v8321
    %v8323 = vpop.f32.mrf.mxu0
    %v8324 = vadd.f32 %v8275, %v8323
    %8325 = vmatmul.bf16.gmra.mxu0 %v6180
    %v8326 = vpop.f32.mrf.mxu0
    %v8327 = vadd.f32 %v8278, %v8326
    %v8328 = vpop.f32.mrf.mxu0
    %v8329 = vadd.f32 %v8280, %v8328
    %8330 = vmatmul.bf16.gmra.mxu0 %v6188
    %v8331 = vpop.f32.mrf.mxu0
    %v8332 = vadd.f32 %v8283, %v8331
    %v8333 = vpop.f32.mrf.mxu0
    %v8334 = vadd.f32 %v8285, %v8333
    %8335 = vmatmul.bf16.gmra.mxu0 %v6196
    %v8336 = vpop.f32.mrf.mxu0
    %v8337 = vadd.f32 %v8288, %v8336
    %v8338 = vpop.f32.mrf.mxu0
    %v8339 = vadd.f32 %v8290, %v8338
    %8340 = vmatmul.bf16.gmra.mxu0 %v6204
    %v8341 = vpop.f32.mrf.mxu0
    %v8342 = vadd.f32 %v8293, %v8341
    %v8343 = vpop.f32.mrf.mxu0
    %v8344 = vadd.f32 %v8295, %v8343
    %8345 = vmatmul.bf16.gmra.mxu0 %v6212
    %v8346 = vpop.f32.mrf.mxu0
    %v8347 = vadd.f32 %v8298, %v8346
    %v8348 = vpop.f32.mrf.mxu0
    %v8349 = vadd.f32 %v8300, %v8348
    %8350 = vdwg.mxu0
    %8351 = vmatpush.bf16.msra.mxu0 %v7408
    %8352 = vmatpush.bf16.msra.mxu0 %v7404
    %8353 = vmatpush.bf16.msra.mxu0 %v7400
    %8354 = vmatpush.bf16.msra.mxu0 %v7396
    %8355 = vmatpush.bf16.msra.mxu0 %v7392
    %8356 = vmatpush.bf16.msra.mxu0 %v7388
    %8357 = vmatpush.bf16.msra.mxu0 %v7384
    %8358 = vmatpush.bf16.msra.mxu0 %v7380
    %8359 = vmatmul.bf16.gmra.mxu0 %v6157
    %v8360 = vpop.f32.mrf.mxu0
    %v8361 = vadd.f32 %v8312, %v8360
    %v8362 = vpop.f32.mrf.mxu0
    %v8363 = vadd.f32 %v8314, %v8362
    %8364 = vmatmul.bf16.gmra.mxu0 %v6165
    %v8365 = vpop.f32.mrf.mxu0
    %v8366 = vadd.f32 %v8317, %v8365
    %v8367 = vpop.f32.mrf.mxu0
    %v8368 = vadd.f32 %v8319, %v8367
    %8369 = vmatmul.bf16.gmra.mxu0 %v6173
    %v8370 = vpop.f32.mrf.mxu0
    %v8371 = vadd.f32 %v8322, %v8370
    %v8372 = vpop.f32.mrf.mxu0
    %v8373 = vadd.f32 %v8324, %v8372
    %8374 = vmatmul.bf16.gmra.mxu0 %v6181
    %v8375 = vpop.f32.mrf.mxu0
    %v8376 = vadd.f32 %v8327, %v8375
    %v8377 = vpop.f32.mrf.mxu0
    %v8378 = vadd.f32 %v8329, %v8377
    %8379 = vmatmul.bf16.gmra.mxu0 %v6189
    %v8380 = vpop.f32.mrf.mxu0
    %v8381 = vadd.f32 %v8332, %v8380
    %v8382 = vpop.f32.mrf.mxu0
    %v8383 = vadd.f32 %v8334, %v8382
    %8384 = vmatmul.bf16.gmra.mxu0 %v6197
    %v8385 = vpop.f32.mrf.mxu0
    %v8386 = vadd.f32 %v8337, %v8385
    %v8387 = vpop.f32.mrf.mxu0
    %v8388 = vadd.f32 %v8339, %v8387
    %8389 = vmatmul.bf16.gmra.mxu0 %v6205
    %v8390 = vpop.f32.mrf.mxu0
    %v8391 = vadd.f32 %v8342, %v8390
    %v8392 = vpop.f32.mrf.mxu0
    %v8393 = vadd.f32 %v8344, %v8392
    %8394 = vmatmul.bf16.gmra.mxu0 %v6213
    %v8395 = vpop.f32.mrf.mxu0
    %v8396 = vadd.f32 %v8347, %v8395
    %v8397 = vpop.f32.mrf.mxu0
    %v8398 = vadd.f32 %v8349, %v8397
    %8399 = vdwg.mxu0
    %8400 = vmatpush.bf16.msra.mxu0 %v7440
    %8401 = vmatpush.bf16.msra.mxu0 %v7436
    %8402 = vmatpush.bf16.msra.mxu0 %v7432
    %8403 = vmatpush.bf16.msra.mxu0 %v7428
    %8404 = vmatpush.bf16.msra.mxu0 %v7424
    %8405 = vmatpush.bf16.msra.mxu0 %v7420
    %8406 = vmatpush.bf16.msra.mxu0 %v7416
    %8407 = vmatpush.bf16.msra.mxu0 %v7412
    %8408 = vmatmul.bf16.gmra.mxu0 %v6158
    %v8409 = vpop.f32.mrf.mxu0
    %v8410 = vadd.f32 %v8361, %v8409
    %v8411 = vpop.f32.mrf.mxu0
    %v8412 = vadd.f32 %v8363, %v8411
    %8413 = vmatmul.bf16.gmra.mxu0 %v6166
    %v8414 = vpop.f32.mrf.mxu0
    %v8415 = vadd.f32 %v8366, %v8414
    %v8416 = vpop.f32.mrf.mxu0
    %v8417 = vadd.f32 %v8368, %v8416
    %8418 = vmatmul.bf16.gmra.mxu0 %v6174
    %v8419 = vpop.f32.mrf.mxu0
    %v8420 = vadd.f32 %v8371, %v8419
    %v8421 = vpop.f32.mrf.mxu0
    %v8422 = vadd.f32 %v8373, %v8421
    %8423 = vmatmul.bf16.gmra.mxu0 %v6182
    %v8424 = vpop.f32.mrf.mxu0
    %v8425 = vadd.f32 %v8376, %v8424
    %v8426 = vpop.f32.mrf.mxu0
    %v8427 = vadd.f32 %v8378, %v8426
    %8428 = vmatmul.bf16.gmra.mxu0 %v6190
    %v8429 = vpop.f32.mrf.mxu0
    %v8430 = vadd.f32 %v8381, %v8429
    %v8431 = vpop.f32.mrf.mxu0
    %v8432 = vadd.f32 %v8383, %v8431
    %8433 = vmatmul.bf16.gmra.mxu0 %v6198
    %v8434 = vpop.f32.mrf.mxu0
    %v8435 = vadd.f32 %v8386, %v8434
    %v8436 = vpop.f32.mrf.mxu0
    %v8437 = vadd.f32 %v8388, %v8436
    %8438 = vmatmul.bf16.gmra.mxu0 %v6206
    %v8439 = vpop.f32.mrf.mxu0
    %v8440 = vadd.f32 %v8391, %v8439
    %v8441 = vpop.f32.mrf.mxu0
    %v8442 = vadd.f32 %v8393, %v8441
    %8443 = vmatmul.bf16.gmra.mxu0 %v6214
    %v8444 = vpop.f32.mrf.mxu0
    %v8445 = vadd.f32 %v8396, %v8444
    %v8446 = vpop.f32.mrf.mxu0
    %v8447 = vadd.f32 %v8398, %v8446
    %8448 = vdwg.mxu0
    %8449 = vmatpush.bf16.msra.mxu0 %v7472
    %8450 = vmatpush.bf16.msra.mxu0 %v7468
    %8451 = vmatpush.bf16.msra.mxu0 %v7464
    %8452 = vmatpush.bf16.msra.mxu0 %v7460
    %8453 = vmatpush.bf16.msra.mxu0 %v7456
    %8454 = vmatpush.bf16.msra.mxu0 %v7452
    %8455 = vmatpush.bf16.msra.mxu0 %v7448
    %8456 = vmatpush.bf16.msra.mxu0 %v7444
    %8457 = vmatmul.bf16.gmra.mxu0 %v6159
    %v8458 = vpop.f32.mrf.mxu0
    %v8459 = vadd.f32 %v8410, %v8458
    %v8460 = vpop.f32.mrf.mxu0
    %v8461 = vadd.f32 %v8412, %v8460
    %8462 = vmatmul.bf16.gmra.mxu0 %v6167
    %v8463 = vpop.f32.mrf.mxu0
    %v8464 = vadd.f32 %v8415, %v8463
    %v8465 = vpop.f32.mrf.mxu0
    %v8466 = vadd.f32 %v8417, %v8465
    %8467 = vmatmul.bf16.gmra.mxu0 %v6175
    %v8468 = vpop.f32.mrf.mxu0
    %v8469 = vadd.f32 %v8420, %v8468
    %v8470 = vpop.f32.mrf.mxu0
    %v8471 = vadd.f32 %v8422, %v8470
    %8472 = vmatmul.bf16.gmra.mxu0 %v6183
    %v8473 = vpop.f32.mrf.mxu0
    %v8474 = vadd.f32 %v8425, %v8473
    %v8475 = vpop.f32.mrf.mxu0
    %v8476 = vadd.f32 %v8427, %v8475
    %8477 = vmatmul.bf16.gmra.mxu0 %v6191
    %v8478 = vpop.f32.mrf.mxu0
    %v8479 = vadd.f32 %v8430, %v8478
    %v8480 = vpop.f32.mrf.mxu0
    %v8481 = vadd.f32 %v8432, %v8480
    %8482 = vmatmul.bf16.gmra.mxu0 %v6199
    %v8483 = vpop.f32.mrf.mxu0
    %v8484 = vadd.f32 %v8435, %v8483
    %v8485 = vpop.f32.mrf.mxu0
    %v8486 = vadd.f32 %v8437, %v8485
    %8487 = vmatmul.bf16.gmra.mxu0 %v6207
    %v8488 = vpop.f32.mrf.mxu0
    %v8489 = vadd.f32 %v8440, %v8488
    %v8490 = vpop.f32.mrf.mxu0
    %v8491 = vadd.f32 %v8442, %v8490
    %8492 = vmatmul.bf16.gmra.mxu0 %v6215
    %v8493 = vpop.f32.mrf.mxu0
    %v8494 = vadd.f32 %v8445, %v8493
    %v8495 = vpop.f32.mrf.mxu0
    %v8496 = vadd.f32 %v8447, %v8495
    %8497 = vdwg.mxu0
    %8498 = vmatpush.bf16.msra.mxu0 %v7504
    %8499 = vmatpush.bf16.msra.mxu0 %v7500
    %8500 = vmatpush.bf16.msra.mxu0 %v7496
    %8501 = vmatpush.bf16.msra.mxu0 %v7492
    %8502 = vmatpush.bf16.msra.mxu0 %v7488
    %8503 = vmatpush.bf16.msra.mxu0 %v7484
    %8504 = vmatpush.bf16.msra.mxu0 %v7480
    %8505 = vmatpush.bf16.msra.mxu0 %v7476
    %8506 = vmatmul.bf16.gmra.mxu0 %v6160
    %v8507 = vpop.f32.mrf.mxu0
    %v8508 = vadd.f32 %v8459, %v8507
    %v8509 = vpop.f32.mrf.mxu0
    %v8510 = vadd.f32 %v8461, %v8509
    %8511 = vmatmul.bf16.gmra.mxu0 %v6168
    %v8512 = vpop.f32.mrf.mxu0
    %v8513 = vadd.f32 %v8464, %v8512
    %v8514 = vpop.f32.mrf.mxu0
    %v8515 = vadd.f32 %v8466, %v8514
    %8516 = vmatmul.bf16.gmra.mxu0 %v6176
    %v8517 = vpop.f32.mrf.mxu0
    %v8518 = vadd.f32 %v8469, %v8517
    %v8519 = vpop.f32.mrf.mxu0
    %v8520 = vadd.f32 %v8471, %v8519
    %8521 = vmatmul.bf16.gmra.mxu0 %v6184
    %v8522 = vpop.f32.mrf.mxu0
    %v8523 = vadd.f32 %v8474, %v8522
    %v8524 = vpop.f32.mrf.mxu0
    %v8525 = vadd.f32 %v8476, %v8524
    %8526 = vmatmul.bf16.gmra.mxu0 %v6192
    %v8527 = vpop.f32.mrf.mxu0
    %v8528 = vadd.f32 %v8479, %v8527
    %v8529 = vpop.f32.mrf.mxu0
    %v8530 = vadd.f32 %v8481, %v8529
    %8531 = vmatmul.bf16.gmra.mxu0 %v6200
    %v8532 = vpop.f32.mrf.mxu0
    %v8533 = vadd.f32 %v8484, %v8532
    %v8534 = vpop.f32.mrf.mxu0
    %v8535 = vadd.f32 %v8486, %v8534
    %8536 = vmatmul.bf16.gmra.mxu0 %v6208
    %v8537 = vpop.f32.mrf.mxu0
    %v8538 = vadd.f32 %v8489, %v8537
    %v8539 = vpop.f32.mrf.mxu0
    %v8540 = vadd.f32 %v8491, %v8539
    %8541 = vmatmul.bf16.gmra.mxu0 %v6216
    %v8542 = vpop.f32.mrf.mxu0
    %v8543 = vadd.f32 %v8494, %v8542
    %v8544 = vpop.f32.mrf.mxu0
    %v8545 = vadd.f32 %v8496, %v8544
    %8546 = vdwg.mxu0
    %8547 = vmatpush.bf16.msra.mxu0 %v7281
    %8548 = vmatpush.bf16.msra.mxu0 %v7277
    %8549 = vmatpush.bf16.msra.mxu0 %v7273
    %8550 = vmatpush.bf16.msra.mxu0 %v7269
    %8551 = vmatpush.bf16.msra.mxu0 %v7265
    %8552 = vmatpush.bf16.msra.mxu0 %v7261
    %8553 = vmatpush.bf16.msra.mxu0 %v7257
    %8554 = vmatpush.bf16.msra.mxu0 %v7253
    %8555 = vmatmul.bf16.gmra.mxu0 %v6153
    %v8556 = vpop.f32.mrf.mxu0
    %v8557 = vadd.f32 %v6477, %v8556
    %v8558 = vpop.f32.mrf.mxu0
    %v8559 = vadd.f32 %v6477, %v8558
    %8560 = vmatmul.bf16.gmra.mxu0 %v6161
    %v8561 = vpop.f32.mrf.mxu0
    %v8562 = vadd.f32 %v6477, %v8561
    %v8563 = vpop.f32.mrf.mxu0
    %v8564 = vadd.f32 %v6477, %v8563
    %8565 = vmatmul.bf16.gmra.mxu0 %v6169
    %v8566 = vpop.f32.mrf.mxu0
    %v8567 = vadd.f32 %v6477, %v8566
    %v8568 = vpop.f32.mrf.mxu0
    %v8569 = vadd.f32 %v6477, %v8568
    %8570 = vmatmul.bf16.gmra.mxu0 %v6177
    %v8571 = vpop.f32.mrf.mxu0
    %v8572 = vadd.f32 %v6477, %v8571
    %v8573 = vpop.f32.mrf.mxu0
    %v8574 = vadd.f32 %v6477, %v8573
    %8575 = vmatmul.bf16.gmra.mxu0 %v6185
    %v8576 = vpop.f32.mrf.mxu0
    %v8577 = vadd.f32 %v6477, %v8576
    %v8578 = vpop.f32.mrf.mxu0
    %v8579 = vadd.f32 %v6477, %v8578
    %8580 = vmatmul.bf16.gmra.mxu0 %v6193
    %v8581 = vpop.f32.mrf.mxu0
    %v8582 = vadd.f32 %v6477, %v8581
    %v8583 = vpop.f32.mrf.mxu0
    %v8584 = vadd.f32 %v6477, %v8583
    %8585 = vmatmul.bf16.gmra.mxu0 %v6201
    %v8586 = vpop.f32.mrf.mxu0
    %v8587 = vadd.f32 %v6477, %v8586
    %v8588 = vpop.f32.mrf.mxu0
    %v8589 = vadd.f32 %v6477, %v8588
    %8590 = vmatmul.bf16.gmra.mxu0 %v6209
    %v8591 = vpop.f32.mrf.mxu0
    %v8592 = vadd.f32 %v6477, %v8591
    %v8593 = vpop.f32.mrf.mxu0
    %v8594 = vadd.f32 %v6477, %v8593
    %8595 = vdwg.mxu0
    %8596 = vmatpush.bf16.msra.mxu0 %v7313
    %8597 = vmatpush.bf16.msra.mxu0 %v7309
    %8598 = vmatpush.bf16.msra.mxu0 %v7305
    %8599 = vmatpush.bf16.msra.mxu0 %v7301
    %8600 = vmatpush.bf16.msra.mxu0 %v7297
    %8601 = vmatpush.bf16.msra.mxu0 %v7293
    %8602 = vmatpush.bf16.msra.mxu0 %v7289
    %8603 = vmatpush.bf16.msra.mxu0 %v7285
    %8604 = vmatmul.bf16.gmra.mxu0 %v6154
    %v8605 = vpop.f32.mrf.mxu0
    %v8606 = vadd.f32 %v8557, %v8605
    %v8607 = vpop.f32.mrf.mxu0
    %v8608 = vadd.f32 %v8559, %v8607
    %8609 = vmatmul.bf16.gmra.mxu0 %v6162
    %v8610 = vpop.f32.mrf.mxu0
    %v8611 = vadd.f32 %v8562, %v8610
    %v8612 = vpop.f32.mrf.mxu0
    %v8613 = vadd.f32 %v8564, %v8612
    %8614 = vmatmul.bf16.gmra.mxu0 %v6170
    %v8615 = vpop.f32.mrf.mxu0
    %v8616 = vadd.f32 %v8567, %v8615
    %v8617 = vpop.f32.mrf.mxu0
    %v8618 = vadd.f32 %v8569, %v8617
    %8619 = vmatmul.bf16.gmra.mxu0 %v6178
    %v8620 = vpop.f32.mrf.mxu0
    %v8621 = vadd.f32 %v8572, %v8620
    %v8622 = vpop.f32.mrf.mxu0
    %v8623 = vadd.f32 %v8574, %v8622
    %8624 = vmatmul.bf16.gmra.mxu0 %v6186
    %v8625 = vpop.f32.mrf.mxu0
    %v8626 = vadd.f32 %v8577, %v8625
    %v8627 = vpop.f32.mrf.mxu0
    %v8628 = vadd.f32 %v8579, %v8627
    %8629 = vmatmul.bf16.gmra.mxu0 %v6194
    %v8630 = vpop.f32.mrf.mxu0
    %v8631 = vadd.f32 %v8582, %v8630
    %v8632 = vpop.f32.mrf.mxu0
    %v8633 = vadd.f32 %v8584, %v8632
    %8634 = vmatmul.bf16.gmra.mxu0 %v6202
    %v8635 = vpop.f32.mrf.mxu0
    %v8636 = vadd.f32 %v8587, %v8635
    %v8637 = vpop.f32.mrf.mxu0
    %v8638 = vadd.f32 %v8589, %v8637
    %8639 = vmatmul.bf16.gmra.mxu0 %v6210
    %v8640 = vpop.f32.mrf.mxu0
    %v8641 = vadd.f32 %v8592, %v8640
    %v8642 = vpop.f32.mrf.mxu0
    %v8643 = vadd.f32 %v8594, %v8642
    %8644 = vdwg.mxu0
    %8645 = vmatpush.bf16.msra.mxu0 %v7345
    %8646 = vmatpush.bf16.msra.mxu0 %v7341
    %8647 = vmatpush.bf16.msra.mxu0 %v7337
    %8648 = vmatpush.bf16.msra.mxu0 %v7333
    %8649 = vmatpush.bf16.msra.mxu0 %v7329
    %8650 = vmatpush.bf16.msra.mxu0 %v7325
    %8651 = vmatpush.bf16.msra.mxu0 %v7321
    %8652 = vmatpush.bf16.msra.mxu0 %v7317
    %8653 = vmatmul.bf16.gmra.mxu0 %v6155
    %v8654 = vpop.f32.mrf.mxu0
    %v8655 = vadd.f32 %v8606, %v8654
    %v8656 = vpop.f32.mrf.mxu0
    %v8657 = vadd.f32 %v8608, %v8656
    %8658 = vmatmul.bf16.gmra.mxu0 %v6163
    %v8659 = vpop.f32.mrf.mxu0
    %v8660 = vadd.f32 %v8611, %v8659
    %v8661 = vpop.f32.mrf.mxu0
    %v8662 = vadd.f32 %v8613, %v8661
    %8663 = vmatmul.bf16.gmra.mxu0 %v6171
    %v8664 = vpop.f32.mrf.mxu0
    %v8665 = vadd.f32 %v8616, %v8664
    %v8666 = vpop.f32.mrf.mxu0
    %v8667 = vadd.f32 %v8618, %v8666
    %8668 = vmatmul.bf16.gmra.mxu0 %v6179
    %v8669 = vpop.f32.mrf.mxu0
    %v8670 = vadd.f32 %v8621, %v8669
    %v8671 = vpop.f32.mrf.mxu0
    %v8672 = vadd.f32 %v8623, %v8671
    %8673 = vmatmul.bf16.gmra.mxu0 %v6187
    %v8674 = vpop.f32.mrf.mxu0
    %v8675 = vadd.f32 %v8626, %v8674
    %v8676 = vpop.f32.mrf.mxu0
    %v8677 = vadd.f32 %v8628, %v8676
    %8678 = vmatmul.bf16.gmra.mxu0 %v6195
    %v8679 = vpop.f32.mrf.mxu0
    %v8680 = vadd.f32 %v8631, %v8679
    %v8681 = vpop.f32.mrf.mxu0
    %v8682 = vadd.f32 %v8633, %v8681
    %8683 = vmatmul.bf16.gmra.mxu0 %v6203
    %v8684 = vpop.f32.mrf.mxu0
    %v8685 = vadd.f32 %v8636, %v8684
    %v8686 = vpop.f32.mrf.mxu0
    %v8687 = vadd.f32 %v8638, %v8686
    %8688 = vmatmul.bf16.gmra.mxu0 %v6211
    %v8689 = vpop.f32.mrf.mxu0
    %v8690 = vadd.f32 %v8641, %v8689
    %v8691 = vpop.f32.mrf.mxu0
    %v8692 = vadd.f32 %v8643, %v8691
    %8693 = vdwg.mxu0
    %8694 = vmatpush.bf16.msra.mxu0 %v7377
    %8695 = vmatpush.bf16.msra.mxu0 %v7373
    %8696 = vmatpush.bf16.msra.mxu0 %v7369
    %8697 = vmatpush.bf16.msra.mxu0 %v7365
    %8698 = vmatpush.bf16.msra.mxu0 %v7361
    %8699 = vmatpush.bf16.msra.mxu0 %v7357
    %8700 = vmatpush.bf16.msra.mxu0 %v7353
    %8701 = vmatpush.bf16.msra.mxu0 %v7349
    %8702 = vmatmul.bf16.gmra.mxu0 %v6156
    %v8703 = vpop.f32.mrf.mxu0
    %v8704 = vadd.f32 %v8655, %v8703
    %v8705 = vpop.f32.mrf.mxu0
    %v8706 = vadd.f32 %v8657, %v8705
    %8707 = vmatmul.bf16.gmra.mxu0 %v6164
    %v8708 = vpop.f32.mrf.mxu0
    %v8709 = vadd.f32 %v8660, %v8708
    %v8710 = vpop.f32.mrf.mxu0
    %v8711 = vadd.f32 %v8662, %v8710
    %8712 = vmatmul.bf16.gmra.mxu0 %v6172
    %v8713 = vpop.f32.mrf.mxu0
    %v8714 = vadd.f32 %v8665, %v8713
    %v8715 = vpop.f32.mrf.mxu0
    %v8716 = vadd.f32 %v8667, %v8715
    %8717 = vmatmul.bf16.gmra.mxu0 %v6180
    %v8718 = vpop.f32.mrf.mxu0
    %v8719 = vadd.f32 %v8670, %v8718
    %v8720 = vpop.f32.mrf.mxu0
    %v8721 = vadd.f32 %v8672, %v8720
    %8722 = vmatmul.bf16.gmra.mxu0 %v6188
    %v8723 = vpop.f32.mrf.mxu0
    %v8724 = vadd.f32 %v8675, %v8723
    %v8725 = vpop.f32.mrf.mxu0
    %v8726 = vadd.f32 %v8677, %v8725
    %8727 = vmatmul.bf16.gmra.mxu0 %v6196
    %v8728 = vpop.f32.mrf.mxu0
    %v8729 = vadd.f32 %v8680, %v8728
    %v8730 = vpop.f32.mrf.mxu0
    %v8731 = vadd.f32 %v8682, %v8730
    %8732 = vmatmul.bf16.gmra.mxu0 %v6204
    %v8733 = vpop.f32.mrf.mxu0
    %v8734 = vadd.f32 %v8685, %v8733
    %v8735 = vpop.f32.mrf.mxu0
    %v8736 = vadd.f32 %v8687, %v8735
    %8737 = vmatmul.bf16.gmra.mxu0 %v6212
    %v8738 = vpop.f32.mrf.mxu0
    %v8739 = vadd.f32 %v8690, %v8738
    %v8740 = vpop.f32.mrf.mxu0
    %v8741 = vadd.f32 %v8692, %v8740
    %8742 = vdwg.mxu0
    %8743 = vmatpush.bf16.msra.mxu0 %v7409
    %8744 = vmatpush.bf16.msra.mxu0 %v7405
    %8745 = vmatpush.bf16.msra.mxu0 %v7401
    %8746 = vmatpush.bf16.msra.mxu0 %v7397
    %8747 = vmatpush.bf16.msra.mxu0 %v7393
    %8748 = vmatpush.bf16.msra.mxu0 %v7389
    %8749 = vmatpush.bf16.msra.mxu0 %v7385
    %8750 = vmatpush.bf16.msra.mxu0 %v7381
    %8751 = vmatmul.bf16.gmra.mxu0 %v6157
    %v8752 = vpop.f32.mrf.mxu0
    %v8753 = vadd.f32 %v8704, %v8752
    %v8754 = vpop.f32.mrf.mxu0
    %v8755 = vadd.f32 %v8706, %v8754
    %8756 = vmatmul.bf16.gmra.mxu0 %v6165
    %v8757 = vpop.f32.mrf.mxu0
    %v8758 = vadd.f32 %v8709, %v8757
    %v8759 = vpop.f32.mrf.mxu0
    %v8760 = vadd.f32 %v8711, %v8759
    %8761 = vmatmul.bf16.gmra.mxu0 %v6173
    %v8762 = vpop.f32.mrf.mxu0
    %v8763 = vadd.f32 %v8714, %v8762
    %v8764 = vpop.f32.mrf.mxu0
    %v8765 = vadd.f32 %v8716, %v8764
    %8766 = vmatmul.bf16.gmra.mxu0 %v6181
    %v8767 = vpop.f32.mrf.mxu0
    %v8768 = vadd.f32 %v8719, %v8767
    %v8769 = vpop.f32.mrf.mxu0
    %v8770 = vadd.f32 %v8721, %v8769
    %8771 = vmatmul.bf16.gmra.mxu0 %v6189
    %v8772 = vpop.f32.mrf.mxu0
    %v8773 = vadd.f32 %v8724, %v8772
    %v8774 = vpop.f32.mrf.mxu0
    %v8775 = vadd.f32 %v8726, %v8774
    %8776 = vmatmul.bf16.gmra.mxu0 %v6197
    %v8777 = vpop.f32.mrf.mxu0
    %v8778 = vadd.f32 %v8729, %v8777
    %v8779 = vpop.f32.mrf.mxu0
    %v8780 = vadd.f32 %v8731, %v8779
    %8781 = vmatmul.bf16.gmra.mxu0 %v6205
    %v8782 = vpop.f32.mrf.mxu0
    %v8783 = vadd.f32 %v8734, %v8782
    %v8784 = vpop.f32.mrf.mxu0
    %v8785 = vadd.f32 %v8736, %v8784
    %8786 = vmatmul.bf16.gmra.mxu0 %v6213
    %v8787 = vpop.f32.mrf.mxu0
    %v8788 = vadd.f32 %v8739, %v8787
    %v8789 = vpop.f32.mrf.mxu0
    %v8790 = vadd.f32 %v8741, %v8789
    %8791 = vdwg.mxu0
    %8792 = vmatpush.bf16.msra.mxu0 %v7441
    %8793 = vmatpush.bf16.msra.mxu0 %v7437
    %8794 = vmatpush.bf16.msra.mxu0 %v7433
    %8795 = vmatpush.bf16.msra.mxu0 %v7429
    %8796 = vmatpush.bf16.msra.mxu0 %v7425
    %8797 = vmatpush.bf16.msra.mxu0 %v7421
    %8798 = vmatpush.bf16.msra.mxu0 %v7417
    %8799 = vmatpush.bf16.msra.mxu0 %v7413
    %8800 = vmatmul.bf16.gmra.mxu0 %v6158
    %v8801 = vpop.f32.mrf.mxu0
    %v8802 = vadd.f32 %v8753, %v8801
    %v8803 = vpop.f32.mrf.mxu0
    %v8804 = vadd.f32 %v8755, %v8803
    %8805 = vmatmul.bf16.gmra.mxu0 %v6166
    %v8806 = vpop.f32.mrf.mxu0
    %v8807 = vadd.f32 %v8758, %v8806
    %v8808 = vpop.f32.mrf.mxu0
    %v8809 = vadd.f32 %v8760, %v8808
    %8810 = vmatmul.bf16.gmra.mxu0 %v6174
    %v8811 = vpop.f32.mrf.mxu0
    %v8812 = vadd.f32 %v8763, %v8811
    %v8813 = vpop.f32.mrf.mxu0
    %v8814 = vadd.f32 %v8765, %v8813
    %8815 = vmatmul.bf16.gmra.mxu0 %v6182
    %v8816 = vpop.f32.mrf.mxu0
    %v8817 = vadd.f32 %v8768, %v8816
    %v8818 = vpop.f32.mrf.mxu0
    %v8819 = vadd.f32 %v8770, %v8818
    %8820 = vmatmul.bf16.gmra.mxu0 %v6190
    %v8821 = vpop.f32.mrf.mxu0
    %v8822 = vadd.f32 %v8773, %v8821
    %v8823 = vpop.f32.mrf.mxu0
    %v8824 = vadd.f32 %v8775, %v8823
    %8825 = vmatmul.bf16.gmra.mxu0 %v6198
    %v8826 = vpop.f32.mrf.mxu0
    %v8827 = vadd.f32 %v8778, %v8826
    %v8828 = vpop.f32.mrf.mxu0
    %v8829 = vadd.f32 %v8780, %v8828
    %8830 = vmatmul.bf16.gmra.mxu0 %v6206
    %v8831 = vpop.f32.mrf.mxu0
    %v8832 = vadd.f32 %v8783, %v8831
    %v8833 = vpop.f32.mrf.mxu0
    %v8834 = vadd.f32 %v8785, %v8833
    %8835 = vmatmul.bf16.gmra.mxu0 %v6214
    %v8836 = vpop.f32.mrf.mxu0
    %v8837 = vadd.f32 %v8788, %v8836
    %v8838 = vpop.f32.mrf.mxu0
    %v8839 = vadd.f32 %v8790, %v8838
    %8840 = vdwg.mxu0
    %8841 = vmatpush.bf16.msra.mxu0 %v7473
    %8842 = vmatpush.bf16.msra.mxu0 %v7469
    %8843 = vmatpush.bf16.msra.mxu0 %v7465
    %8844 = vmatpush.bf16.msra.mxu0 %v7461
    %8845 = vmatpush.bf16.msra.mxu0 %v7457
    %8846 = vmatpush.bf16.msra.mxu0 %v7453
    %8847 = vmatpush.bf16.msra.mxu0 %v7449
    %8848 = vmatpush.bf16.msra.mxu0 %v7445
    %8849 = vmatmul.bf16.gmra.mxu0 %v6159
    %v8850 = vpop.f32.mrf.mxu0
    %v8851 = vadd.f32 %v8802, %v8850
    %v8852 = vpop.f32.mrf.mxu0
    %v8853 = vadd.f32 %v8804, %v8852
    %8854 = vmatmul.bf16.gmra.mxu0 %v6167
    %v8855 = vpop.f32.mrf.mxu0
    %v8856 = vadd.f32 %v8807, %v8855
    %v8857 = vpop.f32.mrf.mxu0
    %v8858 = vadd.f32 %v8809, %v8857
    %8859 = vmatmul.bf16.gmra.mxu0 %v6175
    %v8860 = vpop.f32.mrf.mxu0
    %v8861 = vadd.f32 %v8812, %v8860
    %v8862 = vpop.f32.mrf.mxu0
    %v8863 = vadd.f32 %v8814, %v8862
    %8864 = vmatmul.bf16.gmra.mxu0 %v6183
    %v8865 = vpop.f32.mrf.mxu0
    %v8866 = vadd.f32 %v8817, %v8865
    %v8867 = vpop.f32.mrf.mxu0
    %v8868 = vadd.f32 %v8819, %v8867
    %8869 = vmatmul.bf16.gmra.mxu0 %v6191
    %v8870 = vpop.f32.mrf.mxu0
    %v8871 = vadd.f32 %v8822, %v8870
    %v8872 = vpop.f32.mrf.mxu0
    %v8873 = vadd.f32 %v8824, %v8872
    %8874 = vmatmul.bf16.gmra.mxu0 %v6199
    %v8875 = vpop.f32.mrf.mxu0
    %v8876 = vadd.f32 %v8827, %v8875
    %v8877 = vpop.f32.mrf.mxu0
    %v8878 = vadd.f32 %v8829, %v8877
    %8879 = vmatmul.bf16.gmra.mxu0 %v6207
    %v8880 = vpop.f32.mrf.mxu0
    %v8881 = vadd.f32 %v8832, %v8880
    %v8882 = vpop.f32.mrf.mxu0
    %v8883 = vadd.f32 %v8834, %v8882
    %8884 = vmatmul.bf16.gmra.mxu0 %v6215
    %v8885 = vpop.f32.mrf.mxu0
    %v8886 = vadd.f32 %v8837, %v8885
    %v8887 = vpop.f32.mrf.mxu0
    %v8888 = vadd.f32 %v8839, %v8887
    %8889 = vdwg.mxu0
    %8890 = vmatpush.bf16.msra.mxu0 %v7505
    %8891 = vmatpush.bf16.msra.mxu0 %v7501
    %8892 = vmatpush.bf16.msra.mxu0 %v7497
    %8893 = vmatpush.bf16.msra.mxu0 %v7493
    %8894 = vmatpush.bf16.msra.mxu0 %v7489
    %8895 = vmatpush.bf16.msra.mxu0 %v7485
    %8896 = vmatpush.bf16.msra.mxu0 %v7481
    %8897 = vmatpush.bf16.msra.mxu0 %v7477
    %8898 = vmatmul.bf16.gmra.mxu0 %v6160
    %v8899 = vpop.f32.mrf.mxu0
    %v8900 = vadd.f32 %v8851, %v8899
    %v8901 = vpop.f32.mrf.mxu0
    %v8902 = vadd.f32 %v8853, %v8901
    %8903 = vmatmul.bf16.gmra.mxu0 %v6168
    %v8904 = vpop.f32.mrf.mxu0
    %v8905 = vadd.f32 %v8856, %v8904
    %v8906 = vpop.f32.mrf.mxu0
    %v8907 = vadd.f32 %v8858, %v8906
    %8908 = vmatmul.bf16.gmra.mxu0 %v6176
    %v8909 = vpop.f32.mrf.mxu0
    %v8910 = vadd.f32 %v8861, %v8909
    %v8911 = vpop.f32.mrf.mxu0
    %v8912 = vadd.f32 %v8863, %v8911
    %8913 = vmatmul.bf16.gmra.mxu0 %v6184
    %v8914 = vpop.f32.mrf.mxu0
    %v8915 = vadd.f32 %v8866, %v8914
    %v8916 = vpop.f32.mrf.mxu0
    %v8917 = vadd.f32 %v8868, %v8916
    %8918 = vmatmul.bf16.gmra.mxu0 %v6192
    %v8919 = vpop.f32.mrf.mxu0
    %v8920 = vadd.f32 %v8871, %v8919
    %v8921 = vpop.f32.mrf.mxu0
    %v8922 = vadd.f32 %v8873, %v8921
    %8923 = vmatmul.bf16.gmra.mxu0 %v6200
    %v8924 = vpop.f32.mrf.mxu0
    %v8925 = vadd.f32 %v8876, %v8924
    %v8926 = vpop.f32.mrf.mxu0
    %v8927 = vadd.f32 %v8878, %v8926
    %8928 = vmatmul.bf16.gmra.mxu0 %v6208
    %v8929 = vpop.f32.mrf.mxu0
    %v8930 = vadd.f32 %v8881, %v8929
    %v8931 = vpop.f32.mrf.mxu0
    %v8932 = vadd.f32 %v8883, %v8931
    %8933 = vmatmul.bf16.gmra.mxu0 %v6216
    %v8934 = vpop.f32.mrf.mxu0
    %v8935 = vadd.f32 %v8886, %v8934
    %v8936 = vpop.f32.mrf.mxu0
    %v8937 = vadd.f32 %v8888, %v8936
    %8938 = vdwg.mxu0
    %8939 = vmatpush.bf16.msra.mxu0 %v7282
    %8940 = vmatpush.bf16.msra.mxu0 %v7278
    %8941 = vmatpush.bf16.msra.mxu0 %v7274
    %8942 = vmatpush.bf16.msra.mxu0 %v7270
    %8943 = vmatpush.bf16.msra.mxu0 %v7266
    %8944 = vmatpush.bf16.msra.mxu0 %v7262
    %8945 = vmatpush.bf16.msra.mxu0 %v7258
    %8946 = vmatpush.bf16.msra.mxu0 %v7254
    %8947 = vmatmul.bf16.gmra.mxu0 %v6153
    %v8948 = vpop.f32.mrf.mxu0
    %v8949 = vadd.f32 %v6478, %v8948
    %v8950 = vpop.f32.mrf.mxu0
    %v8951 = vadd.f32 %v6478, %v8950
    %8952 = vmatmul.bf16.gmra.mxu0 %v6161
    %v8953 = vpop.f32.mrf.mxu0
    %v8954 = vadd.f32 %v6478, %v8953
    %v8955 = vpop.f32.mrf.mxu0
    %v8956 = vadd.f32 %v6478, %v8955
    %8957 = vmatmul.bf16.gmra.mxu0 %v6169
    %v8958 = vpop.f32.mrf.mxu0
    %v8959 = vadd.f32 %v6478, %v8958
    %v8960 = vpop.f32.mrf.mxu0
    %v8961 = vadd.f32 %v6478, %v8960
    %8962 = vmatmul.bf16.gmra.mxu0 %v6177
    %v8963 = vpop.f32.mrf.mxu0
    %v8964 = vadd.f32 %v6478, %v8963
    %v8965 = vpop.f32.mrf.mxu0
    %v8966 = vadd.f32 %v6478, %v8965
    %8967 = vmatmul.bf16.gmra.mxu0 %v6185
    %v8968 = vpop.f32.mrf.mxu0
    %v8969 = vadd.f32 %v6478, %v8968
    %v8970 = vpop.f32.mrf.mxu0
    %v8971 = vadd.f32 %v6478, %v8970
    %8972 = vmatmul.bf16.gmra.mxu0 %v6193
    %v8973 = vpop.f32.mrf.mxu0
    %v8974 = vadd.f32 %v6478, %v8973
    %v8975 = vpop.f32.mrf.mxu0
    %v8976 = vadd.f32 %v6478, %v8975
    %8977 = vmatmul.bf16.gmra.mxu0 %v6201
    %v8978 = vpop.f32.mrf.mxu0
    %v8979 = vadd.f32 %v6478, %v8978
    %v8980 = vpop.f32.mrf.mxu0
    %v8981 = vadd.f32 %v6478, %v8980
    %8982 = vmatmul.bf16.gmra.mxu0 %v6209
    %v8983 = vpop.f32.mrf.mxu0
    %v8984 = vadd.f32 %v6478, %v8983
    %v8985 = vpop.f32.mrf.mxu0
    %v8986 = vadd.f32 %v6478, %v8985
    %8987 = vdwg.mxu0
    %8988 = vmatpush.bf16.msra.mxu0 %v7314
    %8989 = vmatpush.bf16.msra.mxu0 %v7310
    %8990 = vmatpush.bf16.msra.mxu0 %v7306
    %8991 = vmatpush.bf16.msra.mxu0 %v7302
    %8992 = vmatpush.bf16.msra.mxu0 %v7298
    %8993 = vmatpush.bf16.msra.mxu0 %v7294
    %8994 = vmatpush.bf16.msra.mxu0 %v7290
    %8995 = vmatpush.bf16.msra.mxu0 %v7286
    %8996 = vmatmul.bf16.gmra.mxu0 %v6154
    %v8997 = vpop.f32.mrf.mxu0
    %v8998 = vadd.f32 %v8949, %v8997
    %v8999 = vpop.f32.mrf.mxu0
    %v9000 = vadd.f32 %v8951, %v8999
    %9001 = vmatmul.bf16.gmra.mxu0 %v6162
    %v9002 = vpop.f32.mrf.mxu0
    %v9003 = vadd.f32 %v8954, %v9002
    %v9004 = vpop.f32.mrf.mxu0
    %v9005 = vadd.f32 %v8956, %v9004
    %9006 = vmatmul.bf16.gmra.mxu0 %v6170
    %v9007 = vpop.f32.mrf.mxu0
    %v9008 = vadd.f32 %v8959, %v9007
    %v9009 = vpop.f32.mrf.mxu0
    %v9010 = vadd.f32 %v8961, %v9009
    %9011 = vmatmul.bf16.gmra.mxu0 %v6178
    %v9012 = vpop.f32.mrf.mxu0
    %v9013 = vadd.f32 %v8964, %v9012
    %v9014 = vpop.f32.mrf.mxu0
    %v9015 = vadd.f32 %v8966, %v9014
    %9016 = vmatmul.bf16.gmra.mxu0 %v6186
    %v9017 = vpop.f32.mrf.mxu0
    %v9018 = vadd.f32 %v8969, %v9017
    %v9019 = vpop.f32.mrf.mxu0
    %v9020 = vadd.f32 %v8971, %v9019
    %9021 = vmatmul.bf16.gmra.mxu0 %v6194
    %v9022 = vpop.f32.mrf.mxu0
    %v9023 = vadd.f32 %v8974, %v9022
    %v9024 = vpop.f32.mrf.mxu0
    %v9025 = vadd.f32 %v8976, %v9024
    %9026 = vmatmul.bf16.gmra.mxu0 %v6202
    %v9027 = vpop.f32.mrf.mxu0
    %v9028 = vadd.f32 %v8979, %v9027
    %v9029 = vpop.f32.mrf.mxu0
    %v9030 = vadd.f32 %v8981, %v9029
    %9031 = vmatmul.bf16.gmra.mxu0 %v6210
    %v9032 = vpop.f32.mrf.mxu0
    %v9033 = vadd.f32 %v8984, %v9032
    %v9034 = vpop.f32.mrf.mxu0
    %v9035 = vadd.f32 %v8986, %v9034
    %9036 = vdwg.mxu0
    %9037 = vmatpush.bf16.msra.mxu0 %v7346
    %9038 = vmatpush.bf16.msra.mxu0 %v7342
    %9039 = vmatpush.bf16.msra.mxu0 %v7338
    %9040 = vmatpush.bf16.msra.mxu0 %v7334
    %9041 = vmatpush.bf16.msra.mxu0 %v7330
    %9042 = vmatpush.bf16.msra.mxu0 %v7326
    %9043 = vmatpush.bf16.msra.mxu0 %v7322
    %9044 = vmatpush.bf16.msra.mxu0 %v7318
    %9045 = vmatmul.bf16.gmra.mxu0 %v6155
    %v9046 = vpop.f32.mrf.mxu0
    %v9047 = vadd.f32 %v8998, %v9046
    %v9048 = vpop.f32.mrf.mxu0
    %v9049 = vadd.f32 %v9000, %v9048
    %9050 = vmatmul.bf16.gmra.mxu0 %v6163
    %v9051 = vpop.f32.mrf.mxu0
    %v9052 = vadd.f32 %v9003, %v9051
    %v9053 = vpop.f32.mrf.mxu0
    %v9054 = vadd.f32 %v9005, %v9053
    %9055 = vmatmul.bf16.gmra.mxu0 %v6171
    %v9056 = vpop.f32.mrf.mxu0
    %v9057 = vadd.f32 %v9008, %v9056
    %v9058 = vpop.f32.mrf.mxu0
    %v9059 = vadd.f32 %v9010, %v9058
    %9060 = vmatmul.bf16.gmra.mxu0 %v6179
    %v9061 = vpop.f32.mrf.mxu0
    %v9062 = vadd.f32 %v9013, %v9061
    %v9063 = vpop.f32.mrf.mxu0
    %v9064 = vadd.f32 %v9015, %v9063
    %9065 = vmatmul.bf16.gmra.mxu0 %v6187
    %v9066 = vpop.f32.mrf.mxu0
    %v9067 = vadd.f32 %v9018, %v9066
    %v9068 = vpop.f32.mrf.mxu0
    %v9069 = vadd.f32 %v9020, %v9068
    %9070 = vmatmul.bf16.gmra.mxu0 %v6195
    %v9071 = vpop.f32.mrf.mxu0
    %v9072 = vadd.f32 %v9023, %v9071
    %v9073 = vpop.f32.mrf.mxu0
    %v9074 = vadd.f32 %v9025, %v9073
    %9075 = vmatmul.bf16.gmra.mxu0 %v6203
    %v9076 = vpop.f32.mrf.mxu0
    %v9077 = vadd.f32 %v9028, %v9076
    %v9078 = vpop.f32.mrf.mxu0
    %v9079 = vadd.f32 %v9030, %v9078
    %9080 = vmatmul.bf16.gmra.mxu0 %v6211
    %v9081 = vpop.f32.mrf.mxu0
    %v9082 = vadd.f32 %v9033, %v9081
    %v9083 = vpop.f32.mrf.mxu0
    %v9084 = vadd.f32 %v9035, %v9083
    %9085 = vdwg.mxu0
    %9086 = vmatpush.bf16.msra.mxu0 %v7378
    %9087 = vmatpush.bf16.msra.mxu0 %v7374
    %9088 = vmatpush.bf16.msra.mxu0 %v7370
    %9089 = vmatpush.bf16.msra.mxu0 %v7366
    %9090 = vmatpush.bf16.msra.mxu0 %v7362
    %9091 = vmatpush.bf16.msra.mxu0 %v7358
    %9092 = vmatpush.bf16.msra.mxu0 %v7354
    %9093 = vmatpush.bf16.msra.mxu0 %v7350
    %9094 = vmatmul.bf16.gmra.mxu0 %v6156
    %v9095 = vpop.f32.mrf.mxu0
    %v9096 = vadd.f32 %v9047, %v9095
    %v9097 = vpop.f32.mrf.mxu0
    %v9098 = vadd.f32 %v9049, %v9097
    %9099 = vmatmul.bf16.gmra.mxu0 %v6164
    %v9100 = vpop.f32.mrf.mxu0
    %v9101 = vadd.f32 %v9052, %v9100
    %v9102 = vpop.f32.mrf.mxu0
    %v9103 = vadd.f32 %v9054, %v9102
    %9104 = vmatmul.bf16.gmra.mxu0 %v6172
    %v9105 = vpop.f32.mrf.mxu0
    %v9106 = vadd.f32 %v9057, %v9105
    %v9107 = vpop.f32.mrf.mxu0
    %v9108 = vadd.f32 %v9059, %v9107
    %9109 = vmatmul.bf16.gmra.mxu0 %v6180
    %v9110 = vpop.f32.mrf.mxu0
    %v9111 = vadd.f32 %v9062, %v9110
    %v9112 = vpop.f32.mrf.mxu0
    %v9113 = vadd.f32 %v9064, %v9112
    %9114 = vmatmul.bf16.gmra.mxu0 %v6188
    %v9115 = vpop.f32.mrf.mxu0
    %v9116 = vadd.f32 %v9067, %v9115
    %v9117 = vpop.f32.mrf.mxu0
    %v9118 = vadd.f32 %v9069, %v9117
    %9119 = vmatmul.bf16.gmra.mxu0 %v6196
    %v9120 = vpop.f32.mrf.mxu0
    %v9121 = vadd.f32 %v9072, %v9120
    %v9122 = vpop.f32.mrf.mxu0
    %v9123 = vadd.f32 %v9074, %v9122
    %9124 = vmatmul.bf16.gmra.mxu0 %v6204
    %v9125 = vpop.f32.mrf.mxu0
    %v9126 = vadd.f32 %v9077, %v9125
    %v9127 = vpop.f32.mrf.mxu0
    %v9128 = vadd.f32 %v9079, %v9127
    %9129 = vmatmul.bf16.gmra.mxu0 %v6212
    %v9130 = vpop.f32.mrf.mxu0
    %v9131 = vadd.f32 %v9082, %v9130
    %v9132 = vpop.f32.mrf.mxu0
    %v9133 = vadd.f32 %v9084, %v9132
    %9134 = vdwg.mxu0
    %9135 = vmatpush.bf16.msra.mxu0 %v7410
    %9136 = vmatpush.bf16.msra.mxu0 %v7406
    %9137 = vmatpush.bf16.msra.mxu0 %v7402
    %9138 = vmatpush.bf16.msra.mxu0 %v7398
    %9139 = vmatpush.bf16.msra.mxu0 %v7394
    %9140 = vmatpush.bf16.msra.mxu0 %v7390
    %9141 = vmatpush.bf16.msra.mxu0 %v7386
    %9142 = vmatpush.bf16.msra.mxu0 %v7382
    %9143 = vmatmul.bf16.gmra.mxu0 %v6157
    %v9144 = vpop.f32.mrf.mxu0
    %v9145 = vadd.f32 %v9096, %v9144
    %v9146 = vpop.f32.mrf.mxu0
    %v9147 = vadd.f32 %v9098, %v9146
    %9148 = vmatmul.bf16.gmra.mxu0 %v6165
    %v9149 = vpop.f32.mrf.mxu0
    %v9150 = vadd.f32 %v9101, %v9149
    %v9151 = vpop.f32.mrf.mxu0
    %v9152 = vadd.f32 %v9103, %v9151
    %9153 = vmatmul.bf16.gmra.mxu0 %v6173
    %v9154 = vpop.f32.mrf.mxu0
    %v9155 = vadd.f32 %v9106, %v9154
    %v9156 = vpop.f32.mrf.mxu0
    %v9157 = vadd.f32 %v9108, %v9156
    %9158 = vmatmul.bf16.gmra.mxu0 %v6181
    %v9159 = vpop.f32.mrf.mxu0
    %v9160 = vadd.f32 %v9111, %v9159
    %v9161 = vpop.f32.mrf.mxu0
    %v9162 = vadd.f32 %v9113, %v9161
    %9163 = vmatmul.bf16.gmra.mxu0 %v6189
    %v9164 = vpop.f32.mrf.mxu0
    %v9165 = vadd.f32 %v9116, %v9164
    %v9166 = vpop.f32.mrf.mxu0
    %v9167 = vadd.f32 %v9118, %v9166
    %9168 = vmatmul.bf16.gmra.mxu0 %v6197
    %v9169 = vpop.f32.mrf.mxu0
    %v9170 = vadd.f32 %v9121, %v9169
    %v9171 = vpop.f32.mrf.mxu0
    %v9172 = vadd.f32 %v9123, %v9171
    %9173 = vmatmul.bf16.gmra.mxu0 %v6205
    %v9174 = vpop.f32.mrf.mxu0
    %v9175 = vadd.f32 %v9126, %v9174
    %v9176 = vpop.f32.mrf.mxu0
    %v9177 = vadd.f32 %v9128, %v9176
    %9178 = vmatmul.bf16.gmra.mxu0 %v6213
    %v9179 = vpop.f32.mrf.mxu0
    %v9180 = vadd.f32 %v9131, %v9179
    %v9181 = vpop.f32.mrf.mxu0
    %v9182 = vadd.f32 %v9133, %v9181
    %9183 = vdwg.mxu0
    %9184 = vmatpush.bf16.msra.mxu0 %v7442
    %9185 = vmatpush.bf16.msra.mxu0 %v7438
    %9186 = vmatpush.bf16.msra.mxu0 %v7434
    %9187 = vmatpush.bf16.msra.mxu0 %v7430
    %9188 = vmatpush.bf16.msra.mxu0 %v7426
    %9189 = vmatpush.bf16.msra.mxu0 %v7422
    %9190 = vmatpush.bf16.msra.mxu0 %v7418
    %9191 = vmatpush.bf16.msra.mxu0 %v7414
    %9192 = vmatmul.bf16.gmra.mxu0 %v6158
    %v9193 = vpop.f32.mrf.mxu0
    %v9194 = vadd.f32 %v9145, %v9193
    %v9195 = vpop.f32.mrf.mxu0
    %v9196 = vadd.f32 %v9147, %v9195
    %9197 = vmatmul.bf16.gmra.mxu0 %v6166
    %v9198 = vpop.f32.mrf.mxu0
    %v9199 = vadd.f32 %v9150, %v9198
    %v9200 = vpop.f32.mrf.mxu0
    %v9201 = vadd.f32 %v9152, %v9200
    %9202 = vmatmul.bf16.gmra.mxu0 %v6174
    %v9203 = vpop.f32.mrf.mxu0
    %v9204 = vadd.f32 %v9155, %v9203
    %v9205 = vpop.f32.mrf.mxu0
    %v9206 = vadd.f32 %v9157, %v9205
    %9207 = vmatmul.bf16.gmra.mxu0 %v6182
    %v9208 = vpop.f32.mrf.mxu0
    %v9209 = vadd.f32 %v9160, %v9208
    %v9210 = vpop.f32.mrf.mxu0
    %v9211 = vadd.f32 %v9162, %v9210
    %9212 = vmatmul.bf16.gmra.mxu0 %v6190
    %v9213 = vpop.f32.mrf.mxu0
    %v9214 = vadd.f32 %v9165, %v9213
    %v9215 = vpop.f32.mrf.mxu0
    %v9216 = vadd.f32 %v9167, %v9215
    %9217 = vmatmul.bf16.gmra.mxu0 %v6198
    %v9218 = vpop.f32.mrf.mxu0
    %v9219 = vadd.f32 %v9170, %v9218
    %v9220 = vpop.f32.mrf.mxu0
    %v9221 = vadd.f32 %v9172, %v9220
    %9222 = vmatmul.bf16.gmra.mxu0 %v6206
    %v9223 = vpop.f32.mrf.mxu0
    %v9224 = vadd.f32 %v9175, %v9223
    %v9225 = vpop.f32.mrf.mxu0
    %v9226 = vadd.f32 %v9177, %v9225
    %9227 = vmatmul.bf16.gmra.mxu0 %v6214
    %v9228 = vpop.f32.mrf.mxu0
    %v9229 = vadd.f32 %v9180, %v9228
    %v9230 = vpop.f32.mrf.mxu0
    %v9231 = vadd.f32 %v9182, %v9230
    %9232 = vdwg.mxu0
    %9233 = vmatpush.bf16.msra.mxu0 %v7474
    %9234 = vmatpush.bf16.msra.mxu0 %v7470
    %9235 = vmatpush.bf16.msra.mxu0 %v7466
    %9236 = vmatpush.bf16.msra.mxu0 %v7462
    %9237 = vmatpush.bf16.msra.mxu0 %v7458
    %9238 = vmatpush.bf16.msra.mxu0 %v7454
    %9239 = vmatpush.bf16.msra.mxu0 %v7450
    %9240 = vmatpush.bf16.msra.mxu0 %v7446
    %9241 = vmatmul.bf16.gmra.mxu0 %v6159
    %v9242 = vpop.f32.mrf.mxu0
    %v9243 = vadd.f32 %v9194, %v9242
    %v9244 = vpop.f32.mrf.mxu0
    %v9245 = vadd.f32 %v9196, %v9244
    %9246 = vmatmul.bf16.gmra.mxu0 %v6167
    %v9247 = vpop.f32.mrf.mxu0
    %v9248 = vadd.f32 %v9199, %v9247
    %v9249 = vpop.f32.mrf.mxu0
    %v9250 = vadd.f32 %v9201, %v9249
    %9251 = vmatmul.bf16.gmra.mxu0 %v6175
    %v9252 = vpop.f32.mrf.mxu0
    %v9253 = vadd.f32 %v9204, %v9252
    %v9254 = vpop.f32.mrf.mxu0
    %v9255 = vadd.f32 %v9206, %v9254
    %9256 = vmatmul.bf16.gmra.mxu0 %v6183
    %v9257 = vpop.f32.mrf.mxu0
    %v9258 = vadd.f32 %v9209, %v9257
    %v9259 = vpop.f32.mrf.mxu0
    %v9260 = vadd.f32 %v9211, %v9259
    %9261 = vmatmul.bf16.gmra.mxu0 %v6191
    %v9262 = vpop.f32.mrf.mxu0
    %v9263 = vadd.f32 %v9214, %v9262
    %v9264 = vpop.f32.mrf.mxu0
    %v9265 = vadd.f32 %v9216, %v9264
    %9266 = vmatmul.bf16.gmra.mxu0 %v6199
    %v9267 = vpop.f32.mrf.mxu0
    %v9268 = vadd.f32 %v9219, %v9267
    %v9269 = vpop.f32.mrf.mxu0
    %v9270 = vadd.f32 %v9221, %v9269
    %9271 = vmatmul.bf16.gmra.mxu0 %v6207
    %v9272 = vpop.f32.mrf.mxu0
    %v9273 = vadd.f32 %v9224, %v9272
    %v9274 = vpop.f32.mrf.mxu0
    %v9275 = vadd.f32 %v9226, %v9274
    %9276 = vmatmul.bf16.gmra.mxu0 %v6215
    %v9277 = vpop.f32.mrf.mxu0
    %v9278 = vadd.f32 %v9229, %v9277
    %v9279 = vpop.f32.mrf.mxu0
    %v9280 = vadd.f32 %v9231, %v9279
    %9281 = vdwg.mxu0
    %9282 = vmatpush.bf16.msra.mxu0 %v7506
    %9283 = vmatpush.bf16.msra.mxu0 %v7502
    %9284 = vmatpush.bf16.msra.mxu0 %v7498
    %9285 = vmatpush.bf16.msra.mxu0 %v7494
    %9286 = vmatpush.bf16.msra.mxu0 %v7490
    %9287 = vmatpush.bf16.msra.mxu0 %v7486
    %9288 = vmatpush.bf16.msra.mxu0 %v7482
    %9289 = vmatpush.bf16.msra.mxu0 %v7478
    %9290 = vmatmul.bf16.gmra.mxu0 %v6160
    %v9291 = vpop.f32.mrf.mxu0
    %v9292 = vadd.f32 %v9243, %v9291
    %v9293 = vpop.f32.mrf.mxu0
    %v9294 = vadd.f32 %v9245, %v9293
    %9295 = vmatmul.bf16.gmra.mxu0 %v6168
    %v9296 = vpop.f32.mrf.mxu0
    %v9297 = vadd.f32 %v9248, %v9296
    %v9298 = vpop.f32.mrf.mxu0
    %v9299 = vadd.f32 %v9250, %v9298
    %9300 = vmatmul.bf16.gmra.mxu0 %v6176
    %v9301 = vpop.f32.mrf.mxu0
    %v9302 = vadd.f32 %v9253, %v9301
    %v9303 = vpop.f32.mrf.mxu0
    %v9304 = vadd.f32 %v9255, %v9303
    %9305 = vmatmul.bf16.gmra.mxu0 %v6184
    %v9306 = vpop.f32.mrf.mxu0
    %v9307 = vadd.f32 %v9258, %v9306
    %v9308 = vpop.f32.mrf.mxu0
    %v9309 = vadd.f32 %v9260, %v9308
    %9310 = vmatmul.bf16.gmra.mxu0 %v6192
    %v9311 = vpop.f32.mrf.mxu0
    %v9312 = vadd.f32 %v9263, %v9311
    %v9313 = vpop.f32.mrf.mxu0
    %v9314 = vadd.f32 %v9265, %v9313
    %9315 = vmatmul.bf16.gmra.mxu0 %v6200
    %v9316 = vpop.f32.mrf.mxu0
    %v9317 = vadd.f32 %v9268, %v9316
    %v9318 = vpop.f32.mrf.mxu0
    %v9319 = vadd.f32 %v9270, %v9318
    %9320 = vmatmul.bf16.gmra.mxu0 %v6208
    %v9321 = vpop.f32.mrf.mxu0
    %v9322 = vadd.f32 %v9273, %v9321
    %v9323 = vpop.f32.mrf.mxu0
    %v9324 = vadd.f32 %v9275, %v9323
    %9325 = vmatmul.bf16.gmra.mxu0 %v6216
    %v9326 = vpop.f32.mrf.mxu0
    %v9327 = vadd.f32 %v9278, %v9326
    %v9328 = vpop.f32.mrf.mxu0
    %v9329 = vadd.f32 %v9280, %v9328
    %9330 = vdwg.mxu0
    %vm9331 = vcmp.gt.f32.partialorder %v8116, 0.0
    %vm9332 = vcmp.gt.f32.partialorder %v8508, 0.0
    %vm9333 = vcmp.gt.f32.partialorder %v8900, 0.0
    %vm9334 = vcmp.gt.f32.partialorder %v9292, 0.0
    %vm9335 = vcmp.gt.f32.partialorder %v8118, 0.0
    %vm9336 = vcmp.gt.f32.partialorder %v8510, 0.0
    %vm9337 = vcmp.gt.f32.partialorder %v8902, 0.0
    %vm9338 = vcmp.gt.f32.partialorder %v9294, 0.0
    %vm9339 = vcmp.gt.f32.partialorder %v8121, 0.0
    %vm9340 = vcmp.gt.f32.partialorder %v8513, 0.0
    %vm9341 = vcmp.gt.f32.partialorder %v8905, 0.0
    %vm9342 = vcmp.gt.f32.partialorder %v9297, 0.0
    %vm9343 = vcmp.gt.f32.partialorder %v8123, 0.0
    %vm9344 = vcmp.gt.f32.partialorder %v8515, 0.0
    %vm9345 = vcmp.gt.f32.partialorder %v8907, 0.0
    %vm9346 = vcmp.gt.f32.partialorder %v9299, 0.0
    %vm9347 = vcmp.gt.f32.partialorder %v8126, 0.0
    %vm9348 = vcmp.gt.f32.partialorder %v8518, 0.0
    %vm9349 = vcmp.gt.f32.partialorder %v8910, 0.0
    %vm9350 = vcmp.gt.f32.partialorder %v9302, 0.0
    %vm9351 = vcmp.gt.f32.partialorder %v8128, 0.0
    %vm9352 = vcmp.gt.f32.partialorder %v8520, 0.0
    %vm9353 = vcmp.gt.f32.partialorder %v8912, 0.0
    %vm9354 = vcmp.gt.f32.partialorder %v9304, 0.0
    %vm9355 = vcmp.gt.f32.partialorder %v8131, 0.0
    %vm9356 = vcmp.gt.f32.partialorder %v8523, 0.0
    %vm9357 = vcmp.gt.f32.partialorder %v8915, 0.0
    %vm9358 = vcmp.gt.f32.partialorder %v9307, 0.0
    %vm9359 = vcmp.gt.f32.partialorder %v8133, 0.0
    %vm9360 = vcmp.gt.f32.partialorder %v8525, 0.0
    %vm9361 = vcmp.gt.f32.partialorder %v8917, 0.0
    %vm9362 = vcmp.gt.f32.partialorder %v9309, 0.0
    %vm9363 = vcmp.gt.f32.partialorder %v8136, 0.0
    %vm9364 = vcmp.gt.f32.partialorder %v8528, 0.0
    %vm9365 = vcmp.gt.f32.partialorder %v8920, 0.0
    %vm9366 = vcmp.gt.f32.partialorder %v9312, 0.0
    %vm9367 = vcmp.gt.f32.partialorder %v8138, 0.0
    %vm9368 = vcmp.gt.f32.partialorder %v8530, 0.0
    %vm9369 = vcmp.gt.f32.partialorder %v8922, 0.0
    %vm9370 = vcmp.gt.f32.partialorder %v9314, 0.0
    %vm9371 = vcmp.gt.f32.partialorder %v8141, 0.0
    %vm9372 = vcmp.gt.f32.partialorder %v8533, 0.0
    %vm9373 = vcmp.gt.f32.partialorder %v8925, 0.0
    %vm9374 = vcmp.gt.f32.partialorder %v9317, 0.0
    %vm9375 = vcmp.gt.f32.partialorder %v8143, 0.0
    %vm9376 = vcmp.gt.f32.partialorder %v8535, 0.0
    %vm9377 = vcmp.gt.f32.partialorder %v8927, 0.0
    %vm9378 = vcmp.gt.f32.partialorder %v9319, 0.0
    %vm9379 = vcmp.gt.f32.partialorder %v8146, 0.0
    %vm9380 = vcmp.gt.f32.partialorder %v8538, 0.0
    %vm9381 = vcmp.gt.f32.partialorder %v8930, 0.0
    %vm9382 = vcmp.gt.f32.partialorder %v9322, 0.0
    %vm9383 = vcmp.gt.f32.partialorder %v8148, 0.0
    %vm9384 = vcmp.gt.f32.partialorder %v8540, 0.0
    %vm9385 = vcmp.gt.f32.partialorder %v8932, 0.0
    %vm9386 = vcmp.gt.f32.partialorder %v9324, 0.0
    %vm9387 = vcmp.gt.f32.partialorder %v8151, 0.0
    %vm9388 = vcmp.gt.f32.partialorder %v8543, 0.0
    %vm9389 = vcmp.gt.f32.partialorder %v8935, 0.0
    %vm9390 = vcmp.gt.f32.partialorder %v9327, 0.0
    %vm9391 = vcmp.gt.f32.partialorder %v8153, 0.0
    %vm9392 = vcmp.gt.f32.partialorder %v8545, 0.0
    %vm9393 = vcmp.gt.f32.partialorder %v8937, 0.0
    %vm9394 = vcmp.gt.f32.partialorder %v9329, 0.0
    %v9395 = vmul.f32 %v8116, 0.2
    %v9396 = vmul.f32 %v8508, 0.2
    %v9397 = vmul.f32 %v8900, 0.2
    %v9398 = vmul.f32 %v9292, 0.2
    %v9399 = vmul.f32 %v8118, 0.2
    %v9400 = vmul.f32 %v8510, 0.2
    %v9401 = vmul.f32 %v8902, 0.2
    %v9402 = vmul.f32 %v9294, 0.2
    %v9403 = vmul.f32 %v8121, 0.2
    %v9404 = vmul.f32 %v8513, 0.2
    %v9405 = vmul.f32 %v8905, 0.2
    %v9406 = vmul.f32 %v9297, 0.2
    %v9407 = vmul.f32 %v8123, 0.2
    %v9408 = vmul.f32 %v8515, 0.2
    %v9409 = vmul.f32 %v8907, 0.2
    %v9410 = vmul.f32 %v9299, 0.2
    %v9411 = vmul.f32 %v8126, 0.2
    %v9412 = vmul.f32 %v8518, 0.2
    %v9413 = vmul.f32 %v8910, 0.2
    %v9414 = vmul.f32 %v9302, 0.2
    %v9415 = vmul.f32 %v8128, 0.2
    %v9416 = vmul.f32 %v8520, 0.2
    %v9417 = vmul.f32 %v8912, 0.2
    %v9418 = vmul.f32 %v9304, 0.2
    %v9419 = vmul.f32 %v8131, 0.2
    %v9420 = vmul.f32 %v8523, 0.2
    %v9421 = vmul.f32 %v8915, 0.2
    %v9422 = vmul.f32 %v9307, 0.2
    %v9423 = vmul.f32 %v8133, 0.2
    %v9424 = vmul.f32 %v8525, 0.2
    %v9425 = vmul.f32 %v8917, 0.2
    %v9426 = vmul.f32 %v9309, 0.2
    %v9427 = vmul.f32 %v8136, 0.2
    %v9428 = vmul.f32 %v8528, 0.2
    %v9429 = vmul.f32 %v8920, 0.2
    %v9430 = vmul.f32 %v9312, 0.2
    %v9431 = vmul.f32 %v8138, 0.2
    %v9432 = vmul.f32 %v8530, 0.2
    %v9433 = vmul.f32 %v8922, 0.2
    %v9434 = vmul.f32 %v9314, 0.2
    %v9435 = vmul.f32 %v8141, 0.2
    %v9436 = vmul.f32 %v8533, 0.2
    %v9437 = vmul.f32 %v8925, 0.2
    %v9438 = vmul.f32 %v9317, 0.2
    %v9439 = vmul.f32 %v8143, 0.2
    %v9440 = vmul.f32 %v8535, 0.2
    %v9441 = vmul.f32 %v8927, 0.2
    %v9442 = vmul.f32 %v9319, 0.2
    %v9443 = vmul.f32 %v8146, 0.2
    %v9444 = vmul.f32 %v8538, 0.2
    %v9445 = vmul.f32 %v8930, 0.2
    %v9446 = vmul.f32 %v9322, 0.2
    %v9447 = vmul.f32 %v8148, 0.2
    %v9448 = vmul.f32 %v8540, 0.2
    %v9449 = vmul.f32 %v8932, 0.2
    %v9450 = vmul.f32 %v9324, 0.2
    %v9451 = vmul.f32 %v8151, 0.2
    %v9452 = vmul.f32 %v8543, 0.2
    %v9453 = vmul.f32 %v8935, 0.2
    %v9454 = vmul.f32 %v9327, 0.2
    %v9455 = vmul.f32 %v8153, 0.2
    %v9456 = vmul.f32 %v8545, 0.2
    %v9457 = vmul.f32 %v8937, 0.2
    %v9458 = vmul.f32 %v9329, 0.2
    %v9459 = vsel %vm9331, %v8116, %v9395
    %v9460 = vsel %vm9332, %v8508, %v9396
    %v9461 = vsel %vm9333, %v8900, %v9397
    %v9462 = vsel %vm9334, %v9292, %v9398
    %v9463 = vsel %vm9335, %v8118, %v9399
    %v9464 = vsel %vm9336, %v8510, %v9400
    %v9465 = vsel %vm9337, %v8902, %v9401
    %v9466 = vsel %vm9338, %v9294, %v9402
    %v9467 = vsel %vm9339, %v8121, %v9403
    %v9468 = vsel %vm9340, %v8513, %v9404
    %v9469 = vsel %vm9341, %v8905, %v9405
    %v9470 = vsel %vm9342, %v9297, %v9406
    %v9471 = vsel %vm9343, %v8123, %v9407
    %v9472 = vsel %vm9344, %v8515, %v9408
    %v9473 = vsel %vm9345, %v8907, %v9409
    %v9474 = vsel %vm9346, %v9299, %v9410
    %v9475 = vsel %vm9347, %v8126, %v9411
    %v9476 = vsel %vm9348, %v8518, %v9412
    %v9477 = vsel %vm9349, %v8910, %v9413
    %v9478 = vsel %vm9350, %v9302, %v9414
    %v9479 = vsel %vm9351, %v8128, %v9415
    %v9480 = vsel %vm9352, %v8520, %v9416
    %v9481 = vsel %vm9353, %v8912, %v9417
    %v9482 = vsel %vm9354, %v9304, %v9418
    %v9483 = vsel %vm9355, %v8131, %v9419
    %v9484 = vsel %vm9356, %v8523, %v9420
    %v9485 = vsel %vm9357, %v8915, %v9421
    %v9486 = vsel %vm9358, %v9307, %v9422
    %v9487 = vsel %vm9359, %v8133, %v9423
    %v9488 = vsel %vm9360, %v8525, %v9424
    %v9489 = vsel %vm9361, %v8917, %v9425
    %v9490 = vsel %vm9362, %v9309, %v9426
    %v9491 = vsel %vm9363, %v8136, %v9427
    %v9492 = vsel %vm9364, %v8528, %v9428
    %v9493 = vsel %vm9365, %v8920, %v9429
    %v9494 = vsel %vm9366, %v9312, %v9430
    %v9495 = vsel %vm9367, %v8138, %v9431
    %v9496 = vsel %vm9368, %v8530, %v9432
    %v9497 = vsel %vm9369, %v8922, %v9433
    %v9498 = vsel %vm9370, %v9314, %v9434
    %v9499 = vsel %vm9371, %v8141, %v9435
    %v9500 = vsel %vm9372, %v8533, %v9436
    %v9501 = vsel %vm9373, %v8925, %v9437
    %v9502 = vsel %vm9374, %v9317, %v9438
    %v9503 = vsel %vm9375, %v8143, %v9439
    %v9504 = vsel %vm9376, %v8535, %v9440
    %v9505 = vsel %vm9377, %v8927, %v9441
    %v9506 = vsel %vm9378, %v9319, %v9442
    %v9507 = vsel %vm9379, %v8146, %v9443
    %v9508 = vsel %vm9380, %v8538, %v9444
    %v9509 = vsel %vm9381, %v8930, %v9445
    %v9510 = vsel %vm9382, %v9322, %v9446
    %v9511 = vsel %vm9383, %v8148, %v9447
    %v9512 = vsel %vm9384, %v8540, %v9448
    %v9513 = vsel %vm9385, %v8932, %v9449
    %v9514 = vsel %vm9386, %v9324, %v9450
    %v9515 = vsel %vm9387, %v8151, %v9451
    %v9516 = vsel %vm9388, %v8543, %v9452
    %v9517 = vsel %vm9389, %v8935, %v9453
    %v9518 = vsel %vm9390, %v9327, %v9454
    %v9519 = vsel %vm9391, %v8153, %v9455
    %v9520 = vsel %vm9392, %v8545, %v9456
    %v9521 = vsel %vm9393, %v8937, %v9457
    %v9522 = vsel %vm9394, %v9329, %v9458
    %v9523 = vpack.c.bf16 %v9463, %v9459
    %v9524 = vpack.c.bf16 %v9464, %v9460
    %v9525 = vpack.c.bf16 %v9465, %v9461
    %v9526 = vpack.c.bf16 %v9466, %v9462
    %v9527 = vpack.c.bf16 %v9471, %v9467
    %v9528 = vpack.c.bf16 %v9472, %v9468
    %v9529 = vpack.c.bf16 %v9473, %v9469
    %v9530 = vpack.c.bf16 %v9474, %v9470
    %v9531 = vpack.c.bf16 %v9479, %v9475
    %v9532 = vpack.c.bf16 %v9480, %v9476
    %v9533 = vpack.c.bf16 %v9481, %v9477
    %v9534 = vpack.c.bf16 %v9482, %v9478
    %v9535 = vpack.c.bf16 %v9487, %v9483
    %v9536 = vpack.c.bf16 %v9488, %v9484
    %v9537 = vpack.c.bf16 %v9489, %v9485
    %v9538 = vpack.c.bf16 %v9490, %v9486
    %v9539 = vpack.c.bf16 %v9495, %v9491
    %v9540 = vpack.c.bf16 %v9496, %v9492
    %v9541 = vpack.c.bf16 %v9497, %v9493
    %v9542 = vpack.c.bf16 %v9498, %v9494
    %v9543 = vpack.c.bf16 %v9503, %v9499
    %v9544 = vpack.c.bf16 %v9504, %v9500
    %v9545 = vpack.c.bf16 %v9505, %v9501
    %v9546 = vpack.c.bf16 %v9506, %v9502
    %v9547 = vpack.c.bf16 %v9511, %v9507
    %v9548 = vpack.c.bf16 %v9512, %v9508
    %v9549 = vpack.c.bf16 %v9513, %v9509
    %v9550 = vpack.c.bf16 %v9514, %v9510
    %v9551 = vpack.c.bf16 %v9519, %v9515
    %v9552 = vpack.c.bf16 %v9520, %v9516
    %v9553 = vpack.c.bf16 %v9521, %v9517
    %v9554 = vpack.c.bf16 %v9522, %v9518
    %v9555 = vld [vmem:[#allocation11] sm:$0xff]
    %v9556 = vld [vmem:[#allocation11 + $0x8] sm:$0xff]
    %v9557 = vld [vmem:[#allocation11 + $0x10] sm:$0xff]
    %v9558 = vld [vmem:[#allocation11 + $0x18] sm:$0xff]
    %v9559 = vld [vmem:[#allocation11 + $0x20] sm:$0xff]
    %v9560 = vld [vmem:[#allocation11 + $0x28] sm:$0xff]
    %v9561 = vld [vmem:[#allocation11 + $0x30] sm:$0xff]
    %v9562 = vld [vmem:[#allocation11 + $0x38] sm:$0xff]
    %v9563 = vld [vmem:[#allocation11 + $0x40] sm:$0xff]
    %v9564 = vld [vmem:[#allocation11 + $0x48] sm:$0xff]
    %v9565 = vld [vmem:[#allocation11 + $0x50] sm:$0xff]
    %v9566 = vld [vmem:[#allocation11 + $0x58] sm:$0xff]
    %v9567 = vld [vmem:[#allocation11 + $0x60] sm:$0xff]
    %v9568 = vld [vmem:[#allocation11 + $0x68] sm:$0xff]
    %v9569 = vld [vmem:[#allocation11 + $0x70] sm:$0xff]
    %v9570 = vld [vmem:[#allocation11 + $0x78] sm:$0xff]
    %v9571 = vld [vmem:[#allocation11 + $0x80] sm:$0xff]
    %v9572 = vld [vmem:[#allocation11 + $0x88] sm:$0xff]
    %v9573 = vld [vmem:[#allocation11 + $0x90] sm:$0xff]
    %v9574 = vld [vmem:[#allocation11 + $0x98] sm:$0xff]
    %v9575 = vld [vmem:[#allocation11 + $0xa0] sm:$0xff]
    %v9576 = vld [vmem:[#allocation11 + $0xa8] sm:$0xff]
    %v9577 = vld [vmem:[#allocation11 + $0xb0] sm:$0xff]
    %v9578 = vld [vmem:[#allocation11 + $0xb8] sm:$0xff]
    %v9579 = vld [vmem:[#allocation11 + $0xc0] sm:$0xff]
    %v9580 = vld [vmem:[#allocation11 + $0xc8] sm:$0xff]
    %v9581 = vld [vmem:[#allocation11 + $0xd0] sm:$0xff]
    %v9582 = vld [vmem:[#allocation11 + $0xd8] sm:$0xff]
    %v9583 = vld [vmem:[#allocation11 + $0xe0] sm:$0xff]
    %v9584 = vld [vmem:[#allocation11 + $0xe8] sm:$0xff]
    %v9585 = vld [vmem:[#allocation11 + $0xf0] sm:$0xff]
    %v9586 = vld [vmem:[#allocation11 + $0xf8] sm:$0xff]
    %v9587 = vld [vmem:[#allocation11 + $0x100] sm:$0xff]
    %v9588 = vld [vmem:[#allocation11 + $0x108] sm:$0xff]
    %v9589 = vld [vmem:[#allocation11 + $0x110] sm:$0xff]
    %v9590 = vld [vmem:[#allocation11 + $0x118] sm:$0xff]
    %v9591 = vld [vmem:[#allocation11 + $0x120] sm:$0xff]
    %v9592 = vld [vmem:[#allocation11 + $0x128] sm:$0xff]
    %v9593 = vld [vmem:[#allocation11 + $0x130] sm:$0xff]
    %v9594 = vld [vmem:[#allocation11 + $0x138] sm:$0xff]
    %v9595 = vld [vmem:[#allocation11 + $0x140] sm:$0xff]
    %v9596 = vld [vmem:[#allocation11 + $0x148] sm:$0xff]
    %v9597 = vld [vmem:[#allocation11 + $0x150] sm:$0xff]
    %v9598 = vld [vmem:[#allocation11 + $0x158] sm:$0xff]
    %v9599 = vld [vmem:[#allocation11 + $0x160] sm:$0xff]
    %v9600 = vld [vmem:[#allocation11 + $0x168] sm:$0xff]
    %v9601 = vld [vmem:[#allocation11 + $0x170] sm:$0xff]
    %v9602 = vld [vmem:[#allocation11 + $0x178] sm:$0xff]
    %v9603 = vld [vmem:[#allocation11 + $0x180] sm:$0xff]
    %v9604 = vld [vmem:[#allocation11 + $0x188] sm:$0xff]
    %v9605 = vld [vmem:[#allocation11 + $0x190] sm:$0xff]
    %v9606 = vld [vmem:[#allocation11 + $0x198] sm:$0xff]
    %v9607 = vld [vmem:[#allocation11 + $0x1a0] sm:$0xff]
    %v9608 = vld [vmem:[#allocation11 + $0x1a8] sm:$0xff]
    %v9609 = vld [vmem:[#allocation11 + $0x1b0] sm:$0xff]
    %v9610 = vld [vmem:[#allocation11 + $0x1b8] sm:$0xff]
    %v9611 = vld [vmem:[#allocation11 + $0x1c0] sm:$0xff]
    %v9612 = vld [vmem:[#allocation11 + $0x1c8] sm:$0xff]
    %v9613 = vld [vmem:[#allocation11 + $0x1d0] sm:$0xff]
    %v9614 = vld [vmem:[#allocation11 + $0x1d8] sm:$0xff]
    %v9615 = vld [vmem:[#allocation11 + $0x1e0] sm:$0xff]
    %v9616 = vld [vmem:[#allocation11 + $0x1e8] sm:$0xff]
    %v9617 = vld [vmem:[#allocation11 + $0x1f0] sm:$0xff]
    %v9618 = vld [vmem:[#allocation11 + $0x1f8] sm:$0xff]
    %v9619 = vld [vmem:[#allocation13] sm:$0x3]
    %v9621 = vperm.slane %v9619, 0
    %v9622 = vperm.slane %v9619, 1
    %v9689 = vunpack.c.l.b16 %v9555
    %v9690 = vunpack.c.h.b16 %v9555
    %v9691 = vunpack.c.l.b16 %v9556
    %v9692 = vunpack.c.h.b16 %v9556
    %v9693 = vunpack.c.l.b16 %v9557
    %v9694 = vunpack.c.h.b16 %v9557
    %v9695 = vunpack.c.l.b16 %v9558
    %v9696 = vunpack.c.h.b16 %v9558
    %v9697 = vunpack.c.l.b16 %v9559
    %v9698 = vunpack.c.h.b16 %v9559
    %v9699 = vunpack.c.l.b16 %v9560
    %v9700 = vunpack.c.h.b16 %v9560
    %v9701 = vunpack.c.l.b16 %v9561
    %v9702 = vunpack.c.h.b16 %v9561
    %v9703 = vunpack.c.l.b16 %v9562
    %v9704 = vunpack.c.h.b16 %v9562
    %v9705 = vunpack.c.l.b16 %v9563
    %v9706 = vunpack.c.h.b16 %v9563
    %v9707 = vunpack.c.l.b16 %v9564
    %v9708 = vunpack.c.h.b16 %v9564
    %v9709 = vunpack.c.l.b16 %v9565
    %v9710 = vunpack.c.h.b16 %v9565
    %v9711 = vunpack.c.l.b16 %v9566
    %v9712 = vunpack.c.h.b16 %v9566
    %v9713 = vunpack.c.l.b16 %v9567
    %v9714 = vunpack.c.h.b16 %v9567
    %v9715 = vunpack.c.l.b16 %v9568
    %v9716 = vunpack.c.h.b16 %v9568
    %v9717 = vunpack.c.l.b16 %v9569
    %v9718 = vunpack.c.h.b16 %v9569
    %v9719 = vunpack.c.l.b16 %v9570
    %v9720 = vunpack.c.h.b16 %v9570
    %v9721 = vunpack.c.l.b16 %v9571
    %v9722 = vunpack.c.h.b16 %v9571
    %v9723 = vunpack.c.l.b16 %v9572
    %v9724 = vunpack.c.h.b16 %v9572
    %v9725 = vunpack.c.l.b16 %v9573
    %v9726 = vunpack.c.h.b16 %v9573
    %v9727 = vunpack.c.l.b16 %v9574
    %v9728 = vunpack.c.h.b16 %v9574
    %v9729 = vunpack.c.l.b16 %v9575
    %v9730 = vunpack.c.h.b16 %v9575
    %v9731 = vunpack.c.l.b16 %v9576
    %v9732 = vunpack.c.h.b16 %v9576
    %v9733 = vunpack.c.l.b16 %v9577
    %v9734 = vunpack.c.h.b16 %v9577
    %v9735 = vunpack.c.l.b16 %v9578
    %v9736 = vunpack.c.h.b16 %v9578
    %v9737 = vunpack.c.l.b16 %v9579
    %v9738 = vunpack.c.h.b16 %v9579
    %v9739 = vunpack.c.l.b16 %v9580
    %v9740 = vunpack.c.h.b16 %v9580
    %v9741 = vunpack.c.l.b16 %v9581
    %v9742 = vunpack.c.h.b16 %v9581
    %v9743 = vunpack.c.l.b16 %v9582
    %v9744 = vunpack.c.h.b16 %v9582
    %v9745 = vunpack.c.l.b16 %v9583
    %v9746 = vunpack.c.h.b16 %v9583
    %v9747 = vunpack.c.l.b16 %v9584
    %v9748 = vunpack.c.h.b16 %v9584
    %v9749 = vunpack.c.l.b16 %v9585
    %v9750 = vunpack.c.h.b16 %v9585
    %v9751 = vunpack.c.l.b16 %v9586
    %v9752 = vunpack.c.h.b16 %v9586
    %v9753 = vunpack.c.l.b16 %v9587
    %v9754 = vunpack.c.h.b16 %v9587
    %v9755 = vunpack.c.l.b16 %v9588
    %v9756 = vunpack.c.h.b16 %v9588
    %v9757 = vunpack.c.l.b16 %v9589
    %v9758 = vunpack.c.h.b16 %v9589
    %v9759 = vunpack.c.l.b16 %v9590
    %v9760 = vunpack.c.h.b16 %v9590
    %v9761 = vunpack.c.l.b16 %v9591
    %v9762 = vunpack.c.h.b16 %v9591
    %v9763 = vunpack.c.l.b16 %v9592
    %v9764 = vunpack.c.h.b16 %v9592
    %v9765 = vunpack.c.l.b16 %v9593
    %v9766 = vunpack.c.h.b16 %v9593
    %v9767 = vunpack.c.l.b16 %v9594
    %v9768 = vunpack.c.h.b16 %v9594
    %v9769 = vunpack.c.l.b16 %v9595
    %v9770 = vunpack.c.h.b16 %v9595
    %v9771 = vunpack.c.l.b16 %v9596
    %v9772 = vunpack.c.h.b16 %v9596
    %v9773 = vunpack.c.l.b16 %v9597
    %v9774 = vunpack.c.h.b16 %v9597
    %v9775 = vunpack.c.l.b16 %v9598
    %v9776 = vunpack.c.h.b16 %v9598
    %v9777 = vunpack.c.l.b16 %v9599
    %v9778 = vunpack.c.h.b16 %v9599
    %v9779 = vunpack.c.l.b16 %v9600
    %v9780 = vunpack.c.h.b16 %v9600
    %v9781 = vunpack.c.l.b16 %v9601
    %v9782 = vunpack.c.h.b16 %v9601
    %v9783 = vunpack.c.l.b16 %v9602
    %v9784 = vunpack.c.h.b16 %v9602
    %v9785 = vunpack.c.l.b16 %v9603
    %v9786 = vunpack.c.h.b16 %v9603
    %v9787 = vunpack.c.l.b16 %v9604
    %v9788 = vunpack.c.h.b16 %v9604
    %v9789 = vunpack.c.l.b16 %v9605
    %v9790 = vunpack.c.h.b16 %v9605
    %v9791 = vunpack.c.l.b16 %v9606
    %v9792 = vunpack.c.h.b16 %v9606
    %v9793 = vunpack.c.l.b16 %v9607
    %v9794 = vunpack.c.h.b16 %v9607
    %v9795 = vunpack.c.l.b16 %v9608
    %v9796 = vunpack.c.h.b16 %v9608
    %v9797 = vunpack.c.l.b16 %v9609
    %v9798 = vunpack.c.h.b16 %v9609
    %v9799 = vunpack.c.l.b16 %v9610
    %v9800 = vunpack.c.h.b16 %v9610
    %v9801 = vunpack.c.l.b16 %v9611
    %v9802 = vunpack.c.h.b16 %v9611
    %v9803 = vunpack.c.l.b16 %v9612
    %v9804 = vunpack.c.h.b16 %v9612
    %v9805 = vunpack.c.l.b16 %v9613
    %v9806 = vunpack.c.h.b16 %v9613
    %v9807 = vunpack.c.l.b16 %v9614
    %v9808 = vunpack.c.h.b16 %v9614
    %v9809 = vunpack.c.l.b16 %v9615
    %v9810 = vunpack.c.h.b16 %v9615
    %v9811 = vunpack.c.l.b16 %v9616
    %v9812 = vunpack.c.h.b16 %v9616
    %v9813 = vunpack.c.l.b16 %v9617
    %v9814 = vunpack.c.h.b16 %v9617
    %v9815 = vunpack.c.l.b16 %v9618
    %v9816 = vunpack.c.h.b16 %v9618
    %v9817 = vpack.c.b16 %v9691, %v9689
    %v9818 = vpack.c.b16 %v9692, %v9690
    %v9819 = vpack.c.b16 %v9695, %v9693
    %v9820 = vpack.c.b16 %v9696, %v9694
    %v9821 = vpack.c.b16 %v9699, %v9697
    %v9822 = vpack.c.b16 %v9700, %v9698
    %v9823 = vpack.c.b16 %v9703, %v9701
    %v9824 = vpack.c.b16 %v9704, %v9702
    %v9825 = vpack.c.b16 %v9707, %v9705
    %v9826 = vpack.c.b16 %v9708, %v9706
    %v9827 = vpack.c.b16 %v9711, %v9709
    %v9828 = vpack.c.b16 %v9712, %v9710
    %v9829 = vpack.c.b16 %v9715, %v9713
    %v9830 = vpack.c.b16 %v9716, %v9714
    %v9831 = vpack.c.b16 %v9719, %v9717
    %v9832 = vpack.c.b16 %v9720, %v9718
    %v9833 = vpack.c.b16 %v9723, %v9721
    %v9834 = vpack.c.b16 %v9724, %v9722
    %v9835 = vpack.c.b16 %v9727, %v9725
    %v9836 = vpack.c.b16 %v9728, %v9726
    %v9837 = vpack.c.b16 %v9731, %v9729
    %v9838 = vpack.c.b16 %v9732, %v9730
    %v9839 = vpack.c.b16 %v9735, %v9733
    %v9840 = vpack.c.b16 %v9736, %v9734
    %v9841 = vpack.c.b16 %v9739, %v9737
    %v9842 = vpack.c.b16 %v9740, %v9738
    %v9843 = vpack.c.b16 %v9743, %v9741
    %v9844 = vpack.c.b16 %v9744, %v9742
    %v9845 = vpack.c.b16 %v9747, %v9745
    %v9846 = vpack.c.b16 %v9748, %v9746
    %v9847 = vpack.c.b16 %v9751, %v9749
    %v9848 = vpack.c.b16 %v9752, %v9750
    %v9849 = vpack.c.b16 %v9755, %v9753
    %v9850 = vpack.c.b16 %v9756, %v9754
    %v9851 = vpack.c.b16 %v9759, %v9757
    %v9852 = vpack.c.b16 %v9760, %v9758
    %v9853 = vpack.c.b16 %v9763, %v9761
    %v9854 = vpack.c.b16 %v9764, %v9762
    %v9855 = vpack.c.b16 %v9767, %v9765
    %v9856 = vpack.c.b16 %v9768, %v9766
    %v9857 = vpack.c.b16 %v9771, %v9769
    %v9858 = vpack.c.b16 %v9772, %v9770
    %v9859 = vpack.c.b16 %v9775, %v9773
    %v9860 = vpack.c.b16 %v9776, %v9774
    %v9861 = vpack.c.b16 %v9779, %v9777
    %v9862 = vpack.c.b16 %v9780, %v9778
    %v9863 = vpack.c.b16 %v9783, %v9781
    %v9864 = vpack.c.b16 %v9784, %v9782
    %v9865 = vpack.c.b16 %v9787, %v9785
    %v9866 = vpack.c.b16 %v9788, %v9786
    %v9867 = vpack.c.b16 %v9791, %v9789
    %v9868 = vpack.c.b16 %v9792, %v9790
    %v9869 = vpack.c.b16 %v9795, %v9793
    %v9870 = vpack.c.b16 %v9796, %v9794
    %v9871 = vpack.c.b16 %v9799, %v9797
    %v9872 = vpack.c.b16 %v9800, %v9798
    %v9873 = vpack.c.b16 %v9803, %v9801
    %v9874 = vpack.c.b16 %v9804, %v9802
    %v9875 = vpack.c.b16 %v9807, %v9805
    %v9876 = vpack.c.b16 %v9808, %v9806
    %v9877 = vpack.c.b16 %v9811, %v9809
    %v9878 = vpack.c.b16 %v9812, %v9810
    %v9879 = vpack.c.b16 %v9815, %v9813
    %v9880 = vpack.c.b16 %v9816, %v9814
    %9945 = vmatpush.bf16.msra.mxu0 %v9831
    %9946 = vmatpush.bf16.msra.mxu0 %v9829
    %9947 = vmatpush.bf16.msra.mxu0 %v9827
    %9948 = vmatpush.bf16.msra.mxu0 %v9825
    %9949 = vmatpush.bf16.msra.mxu0 %v9823
    %9950 = vmatpush.bf16.msra.mxu0 %v9821
    %9951 = vmatpush.bf16.msra.mxu0 %v9819
    %9952 = vmatpush.bf16.msra.mxu0 %v9817
    %9953 = vmatmul.bf16.gmra.mxu0 %v9523
    %v9954 = vpop.f32.mrf.mxu0
    %v9955 = vadd.f32 %v9621, %v9954
    %v9956 = vpop.f32.mrf.mxu0
    %v9957 = vadd.f32 %v9621, %v9956
    %9958 = vmatmul.bf16.gmra.mxu0 %v9527
    %v9959 = vpop.f32.mrf.mxu0
    %v9960 = vadd.f32 %v9621, %v9959
    %v9961 = vpop.f32.mrf.mxu0
    %v9962 = vadd.f32 %v9621, %v9961
    %9963 = vmatmul.bf16.gmra.mxu0 %v9531
    %v9964 = vpop.f32.mrf.mxu0
    %v9965 = vadd.f32 %v9621, %v9964
    %v9966 = vpop.f32.mrf.mxu0
    %v9967 = vadd.f32 %v9621, %v9966
    %9968 = vmatmul.bf16.gmra.mxu0 %v9535
    %v9969 = vpop.f32.mrf.mxu0
    %v9970 = vadd.f32 %v9621, %v9969
    %v9971 = vpop.f32.mrf.mxu0
    %v9972 = vadd.f32 %v9621, %v9971
    %9973 = vmatmul.bf16.gmra.mxu0 %v9539
    %v9974 = vpop.f32.mrf.mxu0
    %v9975 = vadd.f32 %v9621, %v9974
    %v9976 = vpop.f32.mrf.mxu0
    %v9977 = vadd.f32 %v9621, %v9976
    %9978 = vmatmul.bf16.gmra.mxu0 %v9543
    %v9979 = vpop.f32.mrf.mxu0
    %v9980 = vadd.f32 %v9621, %v9979
    %v9981 = vpop.f32.mrf.mxu0
    %v9982 = vadd.f32 %v9621, %v9981
    %9983 = vmatmul.bf16.gmra.mxu0 %v9547
    %v9984 = vpop.f32.mrf.mxu0
    %v9985 = vadd.f32 %v9621, %v9984
    %v9986 = vpop.f32.mrf.mxu0
    %v9987 = vadd.f32 %v9621, %v9986
    %9988 = vmatmul.bf16.gmra.mxu0 %v9551
    %v9989 = vpop.f32.mrf.mxu0
    %v9990 = vadd.f32 %v9621, %v9989
    %v9991 = vpop.f32.mrf.mxu0
    %v9992 = vadd.f32 %v9621, %v9991
    %9993 = vdwg.mxu0
    %9994 = vmatpush.bf16.msra.mxu0 %v9847
    %9995 = vmatpush.bf16.msra.mxu0 %v9845
    %9996 = vmatpush.bf16.msra.mxu0 %v9843
    %9997 = vmatpush.bf16.msra.mxu0 %v9841
    %9998 = vmatpush.bf16.msra.mxu0 %v9839
    %9999 = vmatpush.bf16.msra.mxu0 %v9837
    %10000 = vmatpush.bf16.msra.mxu0 %v9835
    %10001 = vmatpush.bf16.msra.mxu0 %v9833
    %10002 = vmatmul.bf16.gmra.mxu0 %v9524
    %v10003 = vpop.f32.mrf.mxu0
    %v10004 = vadd.f32 %v9955, %v10003
    %v10005 = vpop.f32.mrf.mxu0
    %v10006 = vadd.f32 %v9957, %v10005
    %10007 = vmatmul.bf16.gmra.mxu0 %v9528
    %v10008 = vpop.f32.mrf.mxu0
    %v10009 = vadd.f32 %v9960, %v10008
    %v10010 = vpop.f32.mrf.mxu0
    %v10011 = vadd.f32 %v9962, %v10010
    %10012 = vmatmul.bf16.gmra.mxu0 %v9532
    %v10013 = vpop.f32.mrf.mxu0
    %v10014 = vadd.f32 %v9965, %v10013
    %v10015 = vpop.f32.mrf.mxu0
    %v10016 = vadd.f32 %v9967, %v10015
    %10017 = vmatmul.bf16.gmra.mxu0 %v9536
    %v10018 = vpop.f32.mrf.mxu0
    %v10019 = vadd.f32 %v9970, %v10018
    %v10020 = vpop.f32.mrf.mxu0
    %v10021 = vadd.f32 %v9972, %v10020
    %10022 = vmatmul.bf16.gmra.mxu0 %v9540
    %v10023 = vpop.f32.mrf.mxu0
    %v10024 = vadd.f32 %v9975, %v10023
    %v10025 = vpop.f32.mrf.mxu0
    %v10026 = vadd.f32 %v9977, %v10025
    %10027 = vmatmul.bf16.gmra.mxu0 %v9544
    %v10028 = vpop.f32.mrf.mxu0
    %v10029 = vadd.f32 %v9980, %v10028
    %v10030 = vpop.f32.mrf.mxu0
    %v10031 = vadd.f32 %v9982, %v10030
    %10032 = vmatmul.bf16.gmra.mxu0 %v9548
    %v10033 = vpop.f32.mrf.mxu0
    %v10034 = vadd.f32 %v9985, %v10033
    %v10035 = vpop.f32.mrf.mxu0
    %v10036 = vadd.f32 %v9987, %v10035
    %10037 = vmatmul.bf16.gmra.mxu0 %v9552
    %v10038 = vpop.f32.mrf.mxu0
    %v10039 = vadd.f32 %v9990, %v10038
    %v10040 = vpop.f32.mrf.mxu0
    %v10041 = vadd.f32 %v9992, %v10040
    %10042 = vdwg.mxu0
    %10043 = vmatpush.bf16.msra.mxu0 %v9863
    %10044 = vmatpush.bf16.msra.mxu0 %v9861
    %10045 = vmatpush.bf16.msra.mxu0 %v9859
    %10046 = vmatpush.bf16.msra.mxu0 %v9857
    %10047 = vmatpush.bf16.msra.mxu0 %v9855
    %10048 = vmatpush.bf16.msra.mxu0 %v9853
    %10049 = vmatpush.bf16.msra.mxu0 %v9851
    %10050 = vmatpush.bf16.msra.mxu0 %v9849
    %10051 = vmatmul.bf16.gmra.mxu0 %v9525
    %v10052 = vpop.f32.mrf.mxu0
    %v10053 = vadd.f32 %v10004, %v10052
    %v10054 = vpop.f32.mrf.mxu0
    %v10055 = vadd.f32 %v10006, %v10054
    %10056 = vmatmul.bf16.gmra.mxu0 %v9529
    %v10057 = vpop.f32.mrf.mxu0
    %v10058 = vadd.f32 %v10009, %v10057
    %v10059 = vpop.f32.mrf.mxu0
    %v10060 = vadd.f32 %v10011, %v10059
    %10061 = vmatmul.bf16.gmra.mxu0 %v9533
    %v10062 = vpop.f32.mrf.mxu0
    %v10063 = vadd.f32 %v10014, %v10062
    %v10064 = vpop.f32.mrf.mxu0
    %v10065 = vadd.f32 %v10016, %v10064
    %10066 = vmatmul.bf16.gmra.mxu0 %v9537
    %v10067 = vpop.f32.mrf.mxu0
    %v10068 = vadd.f32 %v10019, %v10067
    %v10069 = vpop.f32.mrf.mxu0
    %v10070 = vadd.f32 %v10021, %v10069
    %10071 = vmatmul.bf16.gmra.mxu0 %v9541
    %v10072 = vpop.f32.mrf.mxu0
    %v10073 = vadd.f32 %v10024, %v10072
    %v10074 = vpop.f32.mrf.mxu0
    %v10075 = vadd.f32 %v10026, %v10074
    %10076 = vmatmul.bf16.gmra.mxu0 %v9545
    %v10077 = vpop.f32.mrf.mxu0
    %v10078 = vadd.f32 %v10029, %v10077
    %v10079 = vpop.f32.mrf.mxu0
    %v10080 = vadd.f32 %v10031, %v10079
    %10081 = vmatmul.bf16.gmra.mxu0 %v9549
    %v10082 = vpop.f32.mrf.mxu0
    %v10083 = vadd.f32 %v10034, %v10082
    %v10084 = vpop.f32.mrf.mxu0
    %v10085 = vadd.f32 %v10036, %v10084
    %10086 = vmatmul.bf16.gmra.mxu0 %v9553
    %v10087 = vpop.f32.mrf.mxu0
    %v10088 = vadd.f32 %v10039, %v10087
    %v10089 = vpop.f32.mrf.mxu0
    %v10090 = vadd.f32 %v10041, %v10089
    %10091 = vdwg.mxu0
    %10092 = vmatpush.bf16.msra.mxu0 %v9879
    %10093 = vmatpush.bf16.msra.mxu0 %v9877
    %10094 = vmatpush.bf16.msra.mxu0 %v9875
    %10095 = vmatpush.bf16.msra.mxu0 %v9873
    %10096 = vmatpush.bf16.msra.mxu0 %v9871
    %10097 = vmatpush.bf16.msra.mxu0 %v9869
    %10098 = vmatpush.bf16.msra.mxu0 %v9867
    %10099 = vmatpush.bf16.msra.mxu0 %v9865
    %10100 = vmatmul.bf16.gmra.mxu0 %v9526
    %v10101 = vpop.f32.mrf.mxu0
    %v10102 = vadd.f32 %v10053, %v10101
    %v10103 = vpop.f32.mrf.mxu0
    %v10104 = vadd.f32 %v10055, %v10103
    %10105 = vmatmul.bf16.gmra.mxu0 %v9530
    %v10106 = vpop.f32.mrf.mxu0
    %v10107 = vadd.f32 %v10058, %v10106
    %v10108 = vpop.f32.mrf.mxu0
    %v10109 = vadd.f32 %v10060, %v10108
    %10110 = vmatmul.bf16.gmra.mxu0 %v9534
    %v10111 = vpop.f32.mrf.mxu0
    %v10112 = vadd.f32 %v10063, %v10111
    %v10113 = vpop.f32.mrf.mxu0
    %v10114 = vadd.f32 %v10065, %v10113
    %10115 = vmatmul.bf16.gmra.mxu0 %v9538
    %v10116 = vpop.f32.mrf.mxu0
    %v10117 = vadd.f32 %v10068, %v10116
    %v10118 = vpop.f32.mrf.mxu0
    %v10119 = vadd.f32 %v10070, %v10118
    %10120 = vmatmul.bf16.gmra.mxu0 %v9542
    %v10121 = vpop.f32.mrf.mxu0
    %v10122 = vadd.f32 %v10073, %v10121
    %v10123 = vpop.f32.mrf.mxu0
    %v10124 = vadd.f32 %v10075, %v10123
    %10125 = vmatmul.bf16.gmra.mxu0 %v9546
    %v10126 = vpop.f32.mrf.mxu0
    %v10127 = vadd.f32 %v10078, %v10126
    %v10128 = vpop.f32.mrf.mxu0
    %v10129 = vadd.f32 %v10080, %v10128
    %10130 = vmatmul.bf16.gmra.mxu0 %v9550
    %v10131 = vpop.f32.mrf.mxu0
    %v10132 = vadd.f32 %v10083, %v10131
    %v10133 = vpop.f32.mrf.mxu0
    %v10134 = vadd.f32 %v10085, %v10133
    %10135 = vmatmul.bf16.gmra.mxu0 %v9554
    %v10136 = vpop.f32.mrf.mxu0
    %v10137 = vadd.f32 %v10088, %v10136
    %v10138 = vpop.f32.mrf.mxu0
    %v10139 = vadd.f32 %v10090, %v10138
    %10140 = vdwg.mxu0
    %10141 = vmatpush.bf16.msra.mxu0 %v9832
    %10142 = vmatpush.bf16.msra.mxu0 %v9830
    %10143 = vmatpush.bf16.msra.mxu0 %v9828
    %10144 = vmatpush.bf16.msra.mxu0 %v9826
    %10145 = vmatpush.bf16.msra.mxu0 %v9824
    %10146 = vmatpush.bf16.msra.mxu0 %v9822
    %10147 = vmatpush.bf16.msra.mxu0 %v9820
    %10148 = vmatpush.bf16.msra.mxu0 %v9818
    %10149 = vmatmul.bf16.gmra.mxu0 %v9523
    %v10150 = vpop.f32.mrf.mxu0
    %v10151 = vadd.f32 %v9622, %v10150
    %v10152 = vpop.f32.mrf.mxu0
    %v10153 = vadd.f32 %v9622, %v10152
    %10154 = vmatmul.bf16.gmra.mxu0 %v9527
    %v10155 = vpop.f32.mrf.mxu0
    %v10156 = vadd.f32 %v9622, %v10155
    %v10157 = vpop.f32.mrf.mxu0
    %v10158 = vadd.f32 %v9622, %v10157
    %10159 = vmatmul.bf16.gmra.mxu0 %v9531
    %v10160 = vpop.f32.mrf.mxu0
    %v10161 = vadd.f32 %v9622, %v10160
    %v10162 = vpop.f32.mrf.mxu0
    %v10163 = vadd.f32 %v9622, %v10162
    %10164 = vmatmul.bf16.gmra.mxu0 %v9535
    %v10165 = vpop.f32.mrf.mxu0
    %v10166 = vadd.f32 %v9622, %v10165
    %v10167 = vpop.f32.mrf.mxu0
    %v10168 = vadd.f32 %v9622, %v10167
    %10169 = vmatmul.bf16.gmra.mxu0 %v9539
    %v10170 = vpop.f32.mrf.mxu0
    %v10171 = vadd.f32 %v9622, %v10170
    %v10172 = vpop.f32.mrf.mxu0
    %v10173 = vadd.f32 %v9622, %v10172
    %10174 = vmatmul.bf16.gmra.mxu0 %v9543
    %v10175 = vpop.f32.mrf.mxu0
    %v10176 = vadd.f32 %v9622, %v10175
    %v10177 = vpop.f32.mrf.mxu0
    %v10178 = vadd.f32 %v9622, %v10177
    %10179 = vmatmul.bf16.gmra.mxu0 %v9547
    %v10180 = vpop.f32.mrf.mxu0
    %v10181 = vadd.f32 %v9622, %v10180
    %v10182 = vpop.f32.mrf.mxu0
    %v10183 = vadd.f32 %v9622, %v10182
    %10184 = vmatmul.bf16.gmra.mxu0 %v9551
    %v10185 = vpop.f32.mrf.mxu0
    %v10186 = vadd.f32 %v9622, %v10185
    %v10187 = vpop.f32.mrf.mxu0
    %v10188 = vadd.f32 %v9622, %v10187
    %10189 = vdwg.mxu0
    %10190 = vmatpush.bf16.msra.mxu0 %v9848
    %10191 = vmatpush.bf16.msra.mxu0 %v9846
    %10192 = vmatpush.bf16.msra.mxu0 %v9844
    %10193 = vmatpush.bf16.msra.mxu0 %v9842
    %10194 = vmatpush.bf16.msra.mxu0 %v9840
    %10195 = vmatpush.bf16.msra.mxu0 %v9838
    %10196 = vmatpush.bf16.msra.mxu0 %v9836
    %10197 = vmatpush.bf16.msra.mxu0 %v9834
    %10198 = vmatmul.bf16.gmra.mxu0 %v9524
    %v10199 = vpop.f32.mrf.mxu0
    %v10200 = vadd.f32 %v10151, %v10199
    %v10201 = vpop.f32.mrf.mxu0
    %v10202 = vadd.f32 %v10153, %v10201
    %10203 = vmatmul.bf16.gmra.mxu0 %v9528
    %v10204 = vpop.f32.mrf.mxu0
    %v10205 = vadd.f32 %v10156, %v10204
    %v10206 = vpop.f32.mrf.mxu0
    %v10207 = vadd.f32 %v10158, %v10206
    %10208 = vmatmul.bf16.gmra.mxu0 %v9532
    %v10209 = vpop.f32.mrf.mxu0
    %v10210 = vadd.f32 %v10161, %v10209
    %v10211 = vpop.f32.mrf.mxu0
    %v10212 = vadd.f32 %v10163, %v10211
    %10213 = vmatmul.bf16.gmra.mxu0 %v9536
    %v10214 = vpop.f32.mrf.mxu0
    %v10215 = vadd.f32 %v10166, %v10214
    %v10216 = vpop.f32.mrf.mxu0
    %v10217 = vadd.f32 %v10168, %v10216
    %10218 = vmatmul.bf16.gmra.mxu0 %v9540
    %v10219 = vpop.f32.mrf.mxu0
    %v10220 = vadd.f32 %v10171, %v10219
    %v10221 = vpop.f32.mrf.mxu0
    %v10222 = vadd.f32 %v10173, %v10221
    %10223 = vmatmul.bf16.gmra.mxu0 %v9544
    %v10224 = vpop.f32.mrf.mxu0
    %v10225 = vadd.f32 %v10176, %v10224
    %v10226 = vpop.f32.mrf.mxu0
    %v10227 = vadd.f32 %v10178, %v10226
    %10228 = vmatmul.bf16.gmra.mxu0 %v9548
    %v10229 = vpop.f32.mrf.mxu0
    %v10230 = vadd.f32 %v10181, %v10229
    %v10231 = vpop.f32.mrf.mxu0
    %v10232 = vadd.f32 %v10183, %v10231
    %10233 = vmatmul.bf16.gmra.mxu0 %v9552
    %v10234 = vpop.f32.mrf.mxu0
    %v10235 = vadd.f32 %v10186, %v10234
    %v10236 = vpop.f32.mrf.mxu0
    %v10237 = vadd.f32 %v10188, %v10236
    %10238 = vdwg.mxu0
    %10239 = vmatpush.bf16.msra.mxu0 %v9864
    %10240 = vmatpush.bf16.msra.mxu0 %v9862
    %10241 = vmatpush.bf16.msra.mxu0 %v9860
    %10242 = vmatpush.bf16.msra.mxu0 %v9858
    %10243 = vmatpush.bf16.msra.mxu0 %v9856
    %10244 = vmatpush.bf16.msra.mxu0 %v9854
    %10245 = vmatpush.bf16.msra.mxu0 %v9852
    %10246 = vmatpush.bf16.msra.mxu0 %v9850
    %10247 = vmatmul.bf16.gmra.mxu0 %v9525
    %v10248 = vpop.f32.mrf.mxu0
    %v10249 = vadd.f32 %v10200, %v10248
    %v10250 = vpop.f32.mrf.mxu0
    %v10251 = vadd.f32 %v10202, %v10250
    %10252 = vmatmul.bf16.gmra.mxu0 %v9529
    %v10253 = vpop.f32.mrf.mxu0
    %v10254 = vadd.f32 %v10205, %v10253
    %v10255 = vpop.f32.mrf.mxu0
    %v10256 = vadd.f32 %v10207, %v10255
    %10257 = vmatmul.bf16.gmra.mxu0 %v9533
    %v10258 = vpop.f32.mrf.mxu0
    %v10259 = vadd.f32 %v10210, %v10258
    %v10260 = vpop.f32.mrf.mxu0
    %v10261 = vadd.f32 %v10212, %v10260
    %10262 = vmatmul.bf16.gmra.mxu0 %v9537
    %v10263 = vpop.f32.mrf.mxu0
    %v10264 = vadd.f32 %v10215, %v10263
    %v10265 = vpop.f32.mrf.mxu0
    %v10266 = vadd.f32 %v10217, %v10265
    %10267 = vmatmul.bf16.gmra.mxu0 %v9541
    %v10268 = vpop.f32.mrf.mxu0
    %v10269 = vadd.f32 %v10220, %v10268
    %v10270 = vpop.f32.mrf.mxu0
    %v10271 = vadd.f32 %v10222, %v10270
    %10272 = vmatmul.bf16.gmra.mxu0 %v9545
    %v10273 = vpop.f32.mrf.mxu0
    %v10274 = vadd.f32 %v10225, %v10273
    %v10275 = vpop.f32.mrf.mxu0
    %v10276 = vadd.f32 %v10227, %v10275
    %10277 = vmatmul.bf16.gmra.mxu0 %v9549
    %v10278 = vpop.f32.mrf.mxu0
    %v10279 = vadd.f32 %v10230, %v10278
    %v10280 = vpop.f32.mrf.mxu0
    %v10281 = vadd.f32 %v10232, %v10280
    %10282 = vmatmul.bf16.gmra.mxu0 %v9553
    %v10283 = vpop.f32.mrf.mxu0
    %v10284 = vadd.f32 %v10235, %v10283
    %v10285 = vpop.f32.mrf.mxu0
    %v10286 = vadd.f32 %v10237, %v10285
    %10287 = vdwg.mxu0
    %10288 = vmatpush.bf16.msra.mxu0 %v9880
    %10289 = vmatpush.bf16.msra.mxu0 %v9878
    %10290 = vmatpush.bf16.msra.mxu0 %v9876
    %10291 = vmatpush.bf16.msra.mxu0 %v9874
    %10292 = vmatpush.bf16.msra.mxu0 %v9872
    %10293 = vmatpush.bf16.msra.mxu0 %v9870
    %10294 = vmatpush.bf16.msra.mxu0 %v9868
    %10295 = vmatpush.bf16.msra.mxu0 %v9866
    %10296 = vmatmul.bf16.gmra.mxu0 %v9526
    %v10297 = vpop.f32.mrf.mxu0
    %v10298 = vadd.f32 %v10249, %v10297
    %v10299 = vpop.f32.mrf.mxu0
    %v10300 = vadd.f32 %v10251, %v10299
    %10301 = vmatmul.bf16.gmra.mxu0 %v9530
    %v10302 = vpop.f32.mrf.mxu0
    %v10303 = vadd.f32 %v10254, %v10302
    %v10304 = vpop.f32.mrf.mxu0
    %v10305 = vadd.f32 %v10256, %v10304
    %10306 = vmatmul.bf16.gmra.mxu0 %v9534
    %v10307 = vpop.f32.mrf.mxu0
    %v10308 = vadd.f32 %v10259, %v10307
    %v10309 = vpop.f32.mrf.mxu0
    %v10310 = vadd.f32 %v10261, %v10309
    %10311 = vmatmul.bf16.gmra.mxu0 %v9538
    %v10312 = vpop.f32.mrf.mxu0
    %v10313 = vadd.f32 %v10264, %v10312
    %v10314 = vpop.f32.mrf.mxu0
    %v10315 = vadd.f32 %v10266, %v10314
    %10316 = vmatmul.bf16.gmra.mxu0 %v9542
    %v10317 = vpop.f32.mrf.mxu0
    %v10318 = vadd.f32 %v10269, %v10317
    %v10319 = vpop.f32.mrf.mxu0
    %v10320 = vadd.f32 %v10271, %v10319
    %10321 = vmatmul.bf16.gmra.mxu0 %v9546
    %v10322 = vpop.f32.mrf.mxu0
    %v10323 = vadd.f32 %v10274, %v10322
    %v10324 = vpop.f32.mrf.mxu0
    %v10325 = vadd.f32 %v10276, %v10324
    %10326 = vmatmul.bf16.gmra.mxu0 %v9550
    %v10327 = vpop.f32.mrf.mxu0
    %v10328 = vadd.f32 %v10279, %v10327
    %v10329 = vpop.f32.mrf.mxu0
    %v10330 = vadd.f32 %v10281, %v10329
    %10331 = vmatmul.bf16.gmra.mxu0 %v9554
    %v10332 = vpop.f32.mrf.mxu0
    %v10333 = vadd.f32 %v10284, %v10332
    %v10334 = vpop.f32.mrf.mxu0
    %v10335 = vadd.f32 %v10286, %v10334
    %10336 = vdwg.mxu0
    %vm10337 = vcmp.gt.f32.partialorder %v10102, 0.0
    %vm10338 = vcmp.gt.f32.partialorder %v10298, 0.0
    %vm10339 = vcmp.gt.f32.partialorder %v10104, 0.0
    %vm10340 = vcmp.gt.f32.partialorder %v10300, 0.0
    %vm10341 = vcmp.gt.f32.partialorder %v10107, 0.0
    %vm10342 = vcmp.gt.f32.partialorder %v10303, 0.0
    %vm10343 = vcmp.gt.f32.partialorder %v10109, 0.0
    %vm10344 = vcmp.gt.f32.partialorder %v10305, 0.0
    %vm10345 = vcmp.gt.f32.partialorder %v10112, 0.0
    %vm10346 = vcmp.gt.f32.partialorder %v10308, 0.0
    %vm10347 = vcmp.gt.f32.partialorder %v10114, 0.0
    %vm10348 = vcmp.gt.f32.partialorder %v10310, 0.0
    %vm10349 = vcmp.gt.f32.partialorder %v10117, 0.0
    %vm10350 = vcmp.gt.f32.partialorder %v10313, 0.0
    %vm10351 = vcmp.gt.f32.partialorder %v10119, 0.0
    %vm10352 = vcmp.gt.f32.partialorder %v10315, 0.0
    %vm10353 = vcmp.gt.f32.partialorder %v10122, 0.0
    %vm10354 = vcmp.gt.f32.partialorder %v10318, 0.0
    %vm10355 = vcmp.gt.f32.partialorder %v10124, 0.0
    %vm10356 = vcmp.gt.f32.partialorder %v10320, 0.0
    %vm10357 = vcmp.gt.f32.partialorder %v10127, 0.0
    %vm10358 = vcmp.gt.f32.partialorder %v10323, 0.0
    %vm10359 = vcmp.gt.f32.partialorder %v10129, 0.0
    %vm10360 = vcmp.gt.f32.partialorder %v10325, 0.0
    %vm10361 = vcmp.gt.f32.partialorder %v10132, 0.0
    %vm10362 = vcmp.gt.f32.partialorder %v10328, 0.0
    %vm10363 = vcmp.gt.f32.partialorder %v10134, 0.0
    %vm10364 = vcmp.gt.f32.partialorder %v10330, 0.0
    %vm10365 = vcmp.gt.f32.partialorder %v10137, 0.0
    %vm10366 = vcmp.gt.f32.partialorder %v10333, 0.0
    %vm10367 = vcmp.gt.f32.partialorder %v10139, 0.0
    %vm10368 = vcmp.gt.f32.partialorder %v10335, 0.0
    %v10369 = vmul.f32 %v10102, 0.2
    %v10370 = vmul.f32 %v10298, 0.2
    %v10371 = vmul.f32 %v10104, 0.2
    %v10372 = vmul.f32 %v10300, 0.2
    %v10373 = vmul.f32 %v10107, 0.2
    %v10374 = vmul.f32 %v10303, 0.2
    %v10375 = vmul.f32 %v10109, 0.2
    %v10376 = vmul.f32 %v10305, 0.2
    %v10377 = vmul.f32 %v10112, 0.2
    %v10378 = vmul.f32 %v10308, 0.2
    %v10379 = vmul.f32 %v10114, 0.2
    %v10380 = vmul.f32 %v10310, 0.2
    %v10381 = vmul.f32 %v10117, 0.2
    %v10382 = vmul.f32 %v10313, 0.2
    %v10383 = vmul.f32 %v10119, 0.2
    %v10384 = vmul.f32 %v10315, 0.2
    %v10385 = vmul.f32 %v10122, 0.2
    %v10386 = vmul.f32 %v10318, 0.2
    %v10387 = vmul.f32 %v10124, 0.2
    %v10388 = vmul.f32 %v10320, 0.2
    %v10389 = vmul.f32 %v10127, 0.2
    %v10390 = vmul.f32 %v10323, 0.2
    %v10391 = vmul.f32 %v10129, 0.2
    %v10392 = vmul.f32 %v10325, 0.2
    %v10393 = vmul.f32 %v10132, 0.2
    %v10394 = vmul.f32 %v10328, 0.2
    %v10395 = vmul.f32 %v10134, 0.2
    %v10396 = vmul.f32 %v10330, 0.2
    %v10397 = vmul.f32 %v10137, 0.2
    %v10398 = vmul.f32 %v10333, 0.2
    %v10399 = vmul.f32 %v10139, 0.2
    %v10400 = vmul.f32 %v10335, 0.2
    %v10401 = vsel %vm10337, %v10102, %v10369
    %v10402 = vsel %vm10338, %v10298, %v10370
    %v10403 = vsel %vm10339, %v10104, %v10371
    %v10404 = vsel %vm10340, %v10300, %v10372
    %v10405 = vsel %vm10341, %v10107, %v10373
    %v10406 = vsel %vm10342, %v10303, %v10374
    %v10407 = vsel %vm10343, %v10109, %v10375
    %v10408 = vsel %vm10344, %v10305, %v10376
    %v10409 = vsel %vm10345, %v10112, %v10377
    %v10410 = vsel %vm10346, %v10308, %v10378
    %v10411 = vsel %vm10347, %v10114, %v10379
    %v10412 = vsel %vm10348, %v10310, %v10380
    %v10413 = vsel %vm10349, %v10117, %v10381
    %v10414 = vsel %vm10350, %v10313, %v10382
    %v10415 = vsel %vm10351, %v10119, %v10383
    %v10416 = vsel %vm10352, %v10315, %v10384
    %v10417 = vsel %vm10353, %v10122, %v10385
    %v10418 = vsel %vm10354, %v10318, %v10386
    %v10419 = vsel %vm10355, %v10124, %v10387
    %v10420 = vsel %vm10356, %v10320, %v10388
    %v10421 = vsel %vm10357, %v10127, %v10389
    %v10422 = vsel %vm10358, %v10323, %v10390
    %v10423 = vsel %vm10359, %v10129, %v10391
    %v10424 = vsel %vm10360, %v10325, %v10392
    %v10425 = vsel %vm10361, %v10132, %v10393
    %v10426 = vsel %vm10362, %v10328, %v10394
    %v10427 = vsel %vm10363, %v10134, %v10395
    %v10428 = vsel %vm10364, %v10330, %v10396
    %v10429 = vsel %vm10365, %v10137, %v10397
    %v10430 = vsel %vm10366, %v10333, %v10398
    %v10431 = vsel %vm10367, %v10139, %v10399
    %v10432 = vsel %vm10368, %v10335, %v10400
    %v10433 = vld [vmem:[#allocation14] sm:$0x3]
    %v10435 = vperm.slane %v10433, 0
    %v10436 = vperm.slane %v10433, 1
    %v10439 = vmul.f32 %v10401, %v10435
    %v10440 = vmul.f32 %v10402, %v10436
    %v10441 = vmul.f32 %v10403, %v10435
    %v10442 = vmul.f32 %v10404, %v10436
    %v10443 = vmul.f32 %v10405, %v10435
    %v10444 = vmul.f32 %v10406, %v10436
    %v10445 = vmul.f32 %v10407, %v10435
    %v10446 = vmul.f32 %v10408, %v10436
    %v10447 = vmul.f32 %v10409, %v10435
    %v10448 = vmul.f32 %v10410, %v10436
    %v10449 = vmul.f32 %v10411, %v10435
    %v10450 = vmul.f32 %v10412, %v10436
    %v10451 = vmul.f32 %v10413, %v10435
    %v10452 = vmul.f32 %v10414, %v10436
    %v10453 = vmul.f32 %v10415, %v10435
    %v10454 = vmul.f32 %v10416, %v10436
    %v10455 = vmul.f32 %v10417, %v10435
    %v10456 = vmul.f32 %v10418, %v10436
    %v10457 = vmul.f32 %v10419, %v10435
    %v10458 = vmul.f32 %v10420, %v10436
    %v10459 = vmul.f32 %v10421, %v10435
    %v10460 = vmul.f32 %v10422, %v10436
    %v10461 = vmul.f32 %v10423, %v10435
    %v10462 = vmul.f32 %v10424, %v10436
    %v10463 = vmul.f32 %v10425, %v10435
    %v10464 = vmul.f32 %v10426, %v10436
    %v10465 = vmul.f32 %v10427, %v10435
    %v10466 = vmul.f32 %v10428, %v10436
    %v10467 = vmul.f32 %v10429, %v10435
    %v10468 = vmul.f32 %v10430, %v10436
    %v10469 = vmul.f32 %v10431, %v10435
    %v10470 = vmul.f32 %v10432, %v10436
    %v10471 = vadd.f32 %v10439, %v10440
    %10472 = vadd.xlane.f32.xlu0 %v10471
    %v10473 = vpop.xlane.xlu0 %10472
    %v10474 = vadd.f32 %v10441, %v10442
    %10475 = vadd.xlane.f32.xlu0 %v10474
    %v10476 = vpop.xlane.xlu0 %10475
    %v10477 = vadd.f32 %v10443, %v10444
    %10478 = vadd.xlane.f32.xlu0 %v10477
    %v10479 = vpop.xlane.xlu0 %10478
    %v10480 = vadd.f32 %v10445, %v10446
    %10481 = vadd.xlane.f32.xlu0 %v10480
    %v10482 = vpop.xlane.xlu0 %10481
    %v10483 = vadd.f32 %v10447, %v10448
    %10484 = vadd.xlane.f32.xlu0 %v10483
    %v10485 = vpop.xlane.xlu0 %10484
    %v10486 = vadd.f32 %v10449, %v10450
    %10487 = vadd.xlane.f32.xlu0 %v10486
    %v10488 = vpop.xlane.xlu0 %10487
    %v10489 = vadd.f32 %v10451, %v10452
    %10490 = vadd.xlane.f32.xlu0 %v10489
    %v10491 = vpop.xlane.xlu0 %10490
    %v10492 = vadd.f32 %v10453, %v10454
    %10493 = vadd.xlane.f32.xlu0 %v10492
    %v10494 = vpop.xlane.xlu0 %10493
    %v10495 = vadd.f32 %v10455, %v10456
    %10496 = vadd.xlane.f32.xlu0 %v10495
    %v10497 = vpop.xlane.xlu0 %10496
    %v10498 = vadd.f32 %v10457, %v10458
    %10499 = vadd.xlane.f32.xlu0 %v10498
    %v10500 = vpop.xlane.xlu0 %10499
    %v10501 = vadd.f32 %v10459, %v10460
    %10502 = vadd.xlane.f32.xlu0 %v10501
    %v10503 = vpop.xlane.xlu0 %10502
    %v10504 = vadd.f32 %v10461, %v10462
    %10505 = vadd.xlane.f32.xlu0 %v10504
    %v10506 = vpop.xlane.xlu0 %10505
    %v10507 = vadd.f32 %v10463, %v10464
    %10508 = vadd.xlane.f32.xlu0 %v10507
    %v10509 = vpop.xlane.xlu0 %10508
    %v10510 = vadd.f32 %v10465, %v10466
    %10511 = vadd.xlane.f32.xlu0 %v10510
    %v10512 = vpop.xlane.xlu0 %10511
    %v10513 = vadd.f32 %v10467, %v10468
    %10514 = vadd.xlane.f32.xlu0 %v10513
    %v10515 = vpop.xlane.xlu0 %10514
    %v10516 = vadd.f32 %v10469, %v10470
    %10517 = vadd.xlane.f32.xlu0 %v10516
    %v10518 = vpop.xlane.xlu0 %10517
    %v10519 = vld [vmem:[#allocation2] sm:$0x1]
    %v10521 = vperm.slane %v10519, 0
    %v10523 = vadd.f32 %v10473, %v10521
    %v10524 = vadd.f32 %v10476, %v10521
    %v10525 = vadd.f32 %v10479, %v10521
    %v10526 = vadd.f32 %v10482, %v10521
    %v10527 = vadd.f32 %v10485, %v10521
    %v10528 = vadd.f32 %v10488, %v10521
    %v10529 = vadd.f32 %v10491, %v10521
    %v10530 = vadd.f32 %v10494, %v10521
    %v10531 = vadd.f32 %v10497, %v10521
    %v10532 = vadd.f32 %v10500, %v10521
    %v10533 = vadd.f32 %v10503, %v10521
    %v10534 = vadd.f32 %v10506, %v10521
    %v10535 = vadd.f32 %v10509, %v10521
    %v10536 = vadd.f32 %v10512, %v10521
    %v10537 = vadd.f32 %v10515, %v10521
    %v10538 = vadd.f32 %v10518, %v10521
    %v10539 = vxor.u32 %v10523, 2147483648
    %v10540 = vxor.u32 %v10524, 2147483648
    %v10541 = vxor.u32 %v10525, 2147483648
    %v10542 = vxor.u32 %v10526, 2147483648
    %v10543 = vxor.u32 %v10527, 2147483648
    %v10544 = vxor.u32 %v10528, 2147483648
    %v10545 = vxor.u32 %v10529, 2147483648
    %v10546 = vxor.u32 %v10530, 2147483648
    %v10547 = vxor.u32 %v10531, 2147483648
    %v10548 = vxor.u32 %v10532, 2147483648
    %v10549 = vxor.u32 %v10533, 2147483648
    %v10550 = vxor.u32 %v10534, 2147483648
    %v10551 = vxor.u32 %v10535, 2147483648
    %v10552 = vxor.u32 %v10536, 2147483648
    %v10553 = vxor.u32 %v10537, 2147483648
    %v10554 = vxor.u32 %v10538, 2147483648
    %v10555 = vmul.f32 %v10539, 1.442695
    %v10556 = vpow.pop %v10555
    %v10557 = vmul.f32 %v10540, 1.442695
    %v10558 = vpow.pop %v10557
    %v10559 = vmul.f32 %v10541, 1.442695
    %v10560 = vpow.pop %v10559
    %v10561 = vmul.f32 %v10542, 1.442695
    %v10562 = vpow.pop %v10561
    %v10563 = vmul.f32 %v10543, 1.442695
    %v10564 = vpow.pop %v10563
    %v10565 = vmul.f32 %v10544, 1.442695
    %v10566 = vpow.pop %v10565
    %v10567 = vmul.f32 %v10545, 1.442695
    %v10568 = vpow.pop %v10567
    %v10569 = vmul.f32 %v10546, 1.442695
    %v10570 = vpow.pop %v10569
    %v10571 = vmul.f32 %v10547, 1.442695
    %v10572 = vpow.pop %v10571
    %v10573 = vmul.f32 %v10548, 1.442695
    %v10574 = vpow.pop %v10573
    %v10575 = vmul.f32 %v10549, 1.442695
    %v10576 = vpow.pop %v10575
    %v10577 = vmul.f32 %v10550, 1.442695
    %v10578 = vpow.pop %v10577
    %v10579 = vmul.f32 %v10551, 1.442695
    %v10580 = vpow.pop %v10579
    %v10581 = vmul.f32 %v10552, 1.442695
    %v10582 = vpow.pop %v10581
    %v10583 = vmul.f32 %v10553, 1.442695
    %v10584 = vpow.pop %v10583
    %v10585 = vmul.f32 %v10554, 1.442695
    %v10586 = vpow.pop %v10585
    %v10587 = vadd.f32 %v10556, 1.0
    %v10588 = vadd.f32 %v10558, 1.0
    %v10589 = vadd.f32 %v10560, 1.0
    %v10590 = vadd.f32 %v10562, 1.0
    %v10591 = vadd.f32 %v10564, 1.0
    %v10592 = vadd.f32 %v10566, 1.0
    %v10593 = vadd.f32 %v10568, 1.0
    %v10594 = vadd.f32 %v10570, 1.0
    %v10595 = vadd.f32 %v10572, 1.0
    %v10596 = vadd.f32 %v10574, 1.0
    %v10597 = vadd.f32 %v10576, 1.0
    %v10598 = vadd.f32 %v10578, 1.0
    %v10599 = vadd.f32 %v10580, 1.0
    %v10600 = vadd.f32 %v10582, 1.0
    %v10601 = vadd.f32 %v10584, 1.0
    %v10602 = vadd.f32 %v10586, 1.0
    %v10603 = vrcp.pop %v10587
    %v10604 = vmul.f32 %v10587, %v10603
    %v10605 = vsub.f32 1.0, %v10604
    %v10606 = vmul.f32 %v10603, %v10605
    %v10607 = vadd.f32 %v10603, %v10606
    %vm10608 = vweird.f32 %v10587
    %vm10609 = vweird.f32 %v10603
    %vm10610 = vmor %vm10608, %vm10609
    %v10611 = vsel %vm10610, %v10603, %v10607
    %v10612 = vand.u32 2147483647, %v10587
    %vm10613 = vcmp.eq.f32.partialorder %v10612, 8.507059e+37
    %v10614 = vand.u32 %v10587, 2147483648
    %v10615 = vor.u32 1.1754944e-38, %v10614
    %v10616 = vsel %vm10613, %v10615, %v10611
    %v10617 = vmul.f32 1.0, %v10616
    %v10618 = vrcp.pop %v10588
    %v10619 = vmul.f32 %v10588, %v10618
    %v10620 = vsub.f32 1.0, %v10619
    %v10621 = vmul.f32 %v10618, %v10620
    %v10622 = vadd.f32 %v10618, %v10621
    %vm10623 = vweird.f32 %v10588
    %vm10624 = vweird.f32 %v10618
    %vm10625 = vmor %vm10623, %vm10624
    %v10626 = vsel %vm10625, %v10618, %v10622
    %v10627 = vand.u32 2147483647, %v10588
    %vm10628 = vcmp.eq.f32.partialorder %v10627, 8.507059e+37
    %v10629 = vand.u32 %v10588, 2147483648
    %v10630 = vor.u32 1.1754944e-38, %v10629
    %v10631 = vsel %vm10628, %v10630, %v10626
    %v10632 = vmul.f32 1.0, %v10631
    %v10633 = vrcp.pop %v10589
    %v10634 = vmul.f32 %v10589, %v10633
    %v10635 = vsub.f32 1.0, %v10634
    %v10636 = vmul.f32 %v10633, %v10635
    %v10637 = vadd.f32 %v10633, %v10636
    %vm10638 = vweird.f32 %v10589
    %vm10639 = vweird.f32 %v10633
    %vm10640 = vmor %vm10638, %vm10639
    %v10641 = vsel %vm10640, %v10633, %v10637
    %v10642 = vand.u32 2147483647, %v10589
    %vm10643 = vcmp.eq.f32.partialorder %v10642, 8.507059e+37
    %v10644 = vand.u32 %v10589, 2147483648
    %v10645 = vor.u32 1.1754944e-38, %v10644
    %v10646 = vsel %vm10643, %v10645, %v10641
    %v10647 = vmul.f32 1.0, %v10646
    %v10648 = vrcp.pop %v10590
    %v10649 = vmul.f32 %v10590, %v10648
    %v10650 = vsub.f32 1.0, %v10649
    %v10651 = vmul.f32 %v10648, %v10650
    %v10652 = vadd.f32 %v10648, %v10651
    %vm10653 = vweird.f32 %v10590
    %vm10654 = vweird.f32 %v10648
    %vm10655 = vmor %vm10653, %vm10654
    %v10656 = vsel %vm10655, %v10648, %v10652
    %v10657 = vand.u32 2147483647, %v10590
    %vm10658 = vcmp.eq.f32.partialorder %v10657, 8.507059e+37
    %v10659 = vand.u32 %v10590, 2147483648
    %v10660 = vor.u32 1.1754944e-38, %v10659
    %v10661 = vsel %vm10658, %v10660, %v10656
    %v10662 = vmul.f32 1.0, %v10661
    %v10663 = vrcp.pop %v10591
    %v10664 = vmul.f32 %v10591, %v10663
    %v10665 = vsub.f32 1.0, %v10664
    %v10666 = vmul.f32 %v10663, %v10665
    %v10667 = vadd.f32 %v10663, %v10666
    %vm10668 = vweird.f32 %v10591
    %vm10669 = vweird.f32 %v10663
    %vm10670 = vmor %vm10668, %vm10669
    %v10671 = vsel %vm10670, %v10663, %v10667
    %v10672 = vand.u32 2147483647, %v10591
    %vm10673 = vcmp.eq.f32.partialorder %v10672, 8.507059e+37
    %v10674 = vand.u32 %v10591, 2147483648
    %v10675 = vor.u32 1.1754944e-38, %v10674
    %v10676 = vsel %vm10673, %v10675, %v10671
    %v10677 = vmul.f32 1.0, %v10676
    %v10678 = vrcp.pop %v10592
    %v10679 = vmul.f32 %v10592, %v10678
    %v10680 = vsub.f32 1.0, %v10679
    %v10681 = vmul.f32 %v10678, %v10680
    %v10682 = vadd.f32 %v10678, %v10681
    %vm10683 = vweird.f32 %v10592
    %vm10684 = vweird.f32 %v10678
    %vm10685 = vmor %vm10683, %vm10684
    %v10686 = vsel %vm10685, %v10678, %v10682
    %v10687 = vand.u32 2147483647, %v10592
    %vm10688 = vcmp.eq.f32.partialorder %v10687, 8.507059e+37
    %v10689 = vand.u32 %v10592, 2147483648
    %v10690 = vor.u32 1.1754944e-38, %v10689
    %v10691 = vsel %vm10688, %v10690, %v10686
    %v10692 = vmul.f32 1.0, %v10691
    %v10693 = vrcp.pop %v10593
    %v10694 = vmul.f32 %v10593, %v10693
    %v10695 = vsub.f32 1.0, %v10694
    %v10696 = vmul.f32 %v10693, %v10695
    %v10697 = vadd.f32 %v10693, %v10696
    %vm10698 = vweird.f32 %v10593
    %vm10699 = vweird.f32 %v10693
    %vm10700 = vmor %vm10698, %vm10699
    %v10701 = vsel %vm10700, %v10693, %v10697
    %v10702 = vand.u32 2147483647, %v10593
    %vm10703 = vcmp.eq.f32.partialorder %v10702, 8.507059e+37
    %v10704 = vand.u32 %v10593, 2147483648
    %v10705 = vor.u32 1.1754944e-38, %v10704
    %v10706 = vsel %vm10703, %v10705, %v10701
    %v10707 = vmul.f32 1.0, %v10706
    %v10708 = vrcp.pop %v10594
    %v10709 = vmul.f32 %v10594, %v10708
    %v10710 = vsub.f32 1.0, %v10709
    %v10711 = vmul.f32 %v10708, %v10710
    %v10712 = vadd.f32 %v10708, %v10711
    %vm10713 = vweird.f32 %v10594
    %vm10714 = vweird.f32 %v10708
    %vm10715 = vmor %vm10713, %vm10714
    %v10716 = vsel %vm10715, %v10708, %v10712
    %v10717 = vand.u32 2147483647, %v10594
    %vm10718 = vcmp.eq.f32.partialorder %v10717, 8.507059e+37
    %v10719 = vand.u32 %v10594, 2147483648
    %v10720 = vor.u32 1.1754944e-38, %v10719
    %v10721 = vsel %vm10718, %v10720, %v10716
    %v10722 = vmul.f32 1.0, %v10721
    %v10723 = vrcp.pop %v10595
    %v10724 = vmul.f32 %v10595, %v10723
    %v10725 = vsub.f32 1.0, %v10724
    %v10726 = vmul.f32 %v10723, %v10725
    %v10727 = vadd.f32 %v10723, %v10726
    %vm10728 = vweird.f32 %v10595
    %vm10729 = vweird.f32 %v10723
    %vm10730 = vmor %vm10728, %vm10729
    %v10731 = vsel %vm10730, %v10723, %v10727
    %v10732 = vand.u32 2147483647, %v10595
    %vm10733 = vcmp.eq.f32.partialorder %v10732, 8.507059e+37
    %v10734 = vand.u32 %v10595, 2147483648
    %v10735 = vor.u32 1.1754944e-38, %v10734
    %v10736 = vsel %vm10733, %v10735, %v10731
    %v10737 = vmul.f32 1.0, %v10736
    %v10738 = vrcp.pop %v10596
    %v10739 = vmul.f32 %v10596, %v10738
    %v10740 = vsub.f32 1.0, %v10739
    %v10741 = vmul.f32 %v10738, %v10740
    %v10742 = vadd.f32 %v10738, %v10741
    %vm10743 = vweird.f32 %v10596
    %vm10744 = vweird.f32 %v10738
    %vm10745 = vmor %vm10743, %vm10744
    %v10746 = vsel %vm10745, %v10738, %v10742
    %v10747 = vand.u32 2147483647, %v10596
    %vm10748 = vcmp.eq.f32.partialorder %v10747, 8.507059e+37
    %v10749 = vand.u32 %v10596, 2147483648
    %v10750 = vor.u32 1.1754944e-38, %v10749
    %v10751 = vsel %vm10748, %v10750, %v10746
    %v10752 = vmul.f32 1.0, %v10751
    %v10753 = vrcp.pop %v10597
    %v10754 = vmul.f32 %v10597, %v10753
    %v10755 = vsub.f32 1.0, %v10754
    %v10756 = vmul.f32 %v10753, %v10755
    %v10757 = vadd.f32 %v10753, %v10756
    %vm10758 = vweird.f32 %v10597
    %vm10759 = vweird.f32 %v10753
    %vm10760 = vmor %vm10758, %vm10759
    %v10761 = vsel %vm10760, %v10753, %v10757
    %v10762 = vand.u32 2147483647, %v10597
    %vm10763 = vcmp.eq.f32.partialorder %v10762, 8.507059e+37
    %v10764 = vand.u32 %v10597, 2147483648
    %v10765 = vor.u32 1.1754944e-38, %v10764
    %v10766 = vsel %vm10763, %v10765, %v10761
    %v10767 = vmul.f32 1.0, %v10766
    %v10768 = vrcp.pop %v10598
    %v10769 = vmul.f32 %v10598, %v10768
    %v10770 = vsub.f32 1.0, %v10769
    %v10771 = vmul.f32 %v10768, %v10770
    %v10772 = vadd.f32 %v10768, %v10771
    %vm10773 = vweird.f32 %v10598
    %vm10774 = vweird.f32 %v10768
    %vm10775 = vmor %vm10773, %vm10774
    %v10776 = vsel %vm10775, %v10768, %v10772
    %v10777 = vand.u32 2147483647, %v10598
    %vm10778 = vcmp.eq.f32.partialorder %v10777, 8.507059e+37
    %v10779 = vand.u32 %v10598, 2147483648
    %v10780 = vor.u32 1.1754944e-38, %v10779
    %v10781 = vsel %vm10778, %v10780, %v10776
    %v10782 = vmul.f32 1.0, %v10781
    %v10783 = vrcp.pop %v10599
    %v10784 = vmul.f32 %v10599, %v10783
    %v10785 = vsub.f32 1.0, %v10784
    %v10786 = vmul.f32 %v10783, %v10785
    %v10787 = vadd.f32 %v10783, %v10786
    %vm10788 = vweird.f32 %v10599
    %vm10789 = vweird.f32 %v10783
    %vm10790 = vmor %vm10788, %vm10789
    %v10791 = vsel %vm10790, %v10783, %v10787
    %v10792 = vand.u32 2147483647, %v10599
    %vm10793 = vcmp.eq.f32.partialorder %v10792, 8.507059e+37
    %v10794 = vand.u32 %v10599, 2147483648
    %v10795 = vor.u32 1.1754944e-38, %v10794
    %v10796 = vsel %vm10793, %v10795, %v10791
    %v10797 = vmul.f32 1.0, %v10796
    %v10798 = vrcp.pop %v10600
    %v10799 = vmul.f32 %v10600, %v10798
    %v10800 = vsub.f32 1.0, %v10799
    %v10801 = vmul.f32 %v10798, %v10800
    %v10802 = vadd.f32 %v10798, %v10801
    %vm10803 = vweird.f32 %v10600
    %vm10804 = vweird.f32 %v10798
    %vm10805 = vmor %vm10803, %vm10804
    %v10806 = vsel %vm10805, %v10798, %v10802
    %v10807 = vand.u32 2147483647, %v10600
    %vm10808 = vcmp.eq.f32.partialorder %v10807, 8.507059e+37
    %v10809 = vand.u32 %v10600, 2147483648
    %v10810 = vor.u32 1.1754944e-38, %v10809
    %v10811 = vsel %vm10808, %v10810, %v10806
    %v10812 = vmul.f32 1.0, %v10811
    %v10813 = vrcp.pop %v10601
    %v10814 = vmul.f32 %v10601, %v10813
    %v10815 = vsub.f32 1.0, %v10814
    %v10816 = vmul.f32 %v10813, %v10815
    %v10817 = vadd.f32 %v10813, %v10816
    %vm10818 = vweird.f32 %v10601
    %vm10819 = vweird.f32 %v10813
    %vm10820 = vmor %vm10818, %vm10819
    %v10821 = vsel %vm10820, %v10813, %v10817
    %v10822 = vand.u32 2147483647, %v10601
    %vm10823 = vcmp.eq.f32.partialorder %v10822, 8.507059e+37
    %v10824 = vand.u32 %v10601, 2147483648
    %v10825 = vor.u32 1.1754944e-38, %v10824
    %v10826 = vsel %vm10823, %v10825, %v10821
    %v10827 = vmul.f32 1.0, %v10826
    %v10828 = vrcp.pop %v10602
    %v10829 = vmul.f32 %v10602, %v10828
    %v10830 = vsub.f32 1.0, %v10829
    %v10831 = vmul.f32 %v10828, %v10830
    %v10832 = vadd.f32 %v10828, %v10831
    %vm10833 = vweird.f32 %v10602
    %vm10834 = vweird.f32 %v10828
    %vm10835 = vmor %vm10833, %vm10834
    %v10836 = vsel %vm10835, %v10828, %v10832
    %v10837 = vand.u32 2147483647, %v10602
    %vm10838 = vcmp.eq.f32.partialorder %v10837, 8.507059e+37
    %v10839 = vand.u32 %v10602, 2147483648
    %v10840 = vor.u32 1.1754944e-38, %v10839
    %v10841 = vsel %vm10838, %v10840, %v10836
    %v10842 = vmul.f32 1.0, %v10841
    %vm10843 = vcmask 7168
    %10844 = vst.msk [vmem:[%s9] sm:$0xff] %vm10843, %v10617
    %10845 = vst.msk [vmem:[%s9 + $0x8] sm:$0xff] %vm10843, %v10632
    %10846 = vst.msk [vmem:[%s9 + $0x10] sm:$0xff] %vm10843, %v10647
    %10847 = vst.msk [vmem:[%s9 + $0x18] sm:$0xff] %vm10843, %v10662
    %10848 = vst.msk [vmem:[%s9 + $0x20] sm:$0xff] %vm10843, %v10677
    %10849 = vst.msk [vmem:[%s9 + $0x28] sm:$0xff] %vm10843, %v10692
    %10850 = vst.msk [vmem:[%s9 + $0x30] sm:$0xff] %vm10843, %v10707
    %10851 = vst.msk [vmem:[%s9 + $0x38] sm:$0xff] %vm10843, %v10722
    %10852 = vst.msk [vmem:[%s9 + $0x40] sm:$0xff] %vm10843, %v10737
    %10853 = vst.msk [vmem:[%s9 + $0x48] sm:$0xff] %vm10843, %v10752
    %10854 = vst.msk [vmem:[%s9 + $0x50] sm:$0xff] %vm10843, %v10767
    %10855 = vst.msk [vmem:[%s9 + $0x58] sm:$0xff] %vm10843, %v10782
    %10856 = vst.msk [vmem:[%s9 + $0x60] sm:$0xff] %vm10843, %v10797
    %10857 = vst.msk [vmem:[%s9 + $0x68] sm:$0xff] %vm10843, %v10812
    %10858 = vst.msk [vmem:[%s9 + $0x70] sm:$0xff] %vm10843, %v10827
    %10859 = vst.msk [vmem:[%s9 + $0x78] sm:$0xff] %vm10843, %v10842
    // Predicated region
    $region70: #{tpu_custom_call.1} parent=1 // pred_check
      _
    $region71: #{tpu_custom_call.1} parent=1 // pred_check_branch
      %10861 = sbr.rel (0) target = $region73
    $region72: #{tpu_custom_call.1} parent=1 // pred_region
      _
    $region73: #{tpu_custom_call.1} parent=1 // pred_fallthru
      _
    // Predicated region
    $region74: #{tpu_custom_call.1} parent=1 // pred_check
      _
    $region75: #{tpu_custom_call.1} parent=1 // pred_check_branch
      %10863 = sbr.rel (0) target = $region77
    $region76: #{tpu_custom_call.1} parent=1 // pred_region
      _
    $region77: #{tpu_custom_call.1} parent=1 // pred_fallthru
      _
    %10864 = vsyncpa [#allocation4], 1
    %10865 = vsyncpa [#allocation6], 1
    %10866 = vsyncpa [#allocation9], 1
    %10867 = vsyncpa [#allocation12], 1
    %10868 = vsyncpa [#allocation15], 1

</llo_original>
